<compile_context>
chip_gen: v7x
topology: tpu7x:2x2x1
jax: 0.10.0
libtpu: 0.0.40
codegen_flags: <defaults>
</compile_context>

<pallas_src>
import functools
import math

import jax
import jax.numpy as jnp
import numpy as np
from jax.experimental import pallas as pl
from jax.experimental.pallas import tpu as pltpu


_NBP = 8          # branch-segment lanes (4 real branches + 4 zero padding lanes)
_QPAD = 256       # per-head lane padding (multiple of 128) -> aligned head slices
_LN_EPS = 1e-6    # all LayerNorms in the module use eps=1e-06
_IN_EPS = 1e-5    # nn.InstanceNorm2d default eps, affine=False


# ----------------------------- in-kernel helpers -----------------------------

def _gelu_tanh(x):
    # tanh-approx GELU: tanh runs on the EUP slot (free next to the FFN matmuls).
    c = math.sqrt(2.0 / math.pi)
    return 0.5 * x * (1.0 + jnp.tanh(c * (x + 0.044715 * (x * x * x))))


def _branch_layer_norm(x, seg, invc, gamma, beta):
    """Per-branch LayerNorm over channel segments (seg = one-hot membership)."""
    s1 = jnp.dot(x, seg, preferred_element_type=jnp.float32)        # (N, NBP)
    s2 = jnp.dot(x * x, seg, preferred_element_type=jnp.float32)    # (N, NBP)
    mu_b = s1 * invc
    var_b = jnp.maximum(s2 * invc - mu_b * mu_b, 0.0)               # biased var
    rstd_b = jax.lax.rsqrt(var_b + _LN_EPS)
    mu = jax.lax.dot_general(mu_b, seg, (((1,), (1,)), ((), ())),
                             preferred_element_type=jnp.float32)    # (N, KV)
    rstd = jax.lax.dot_general(rstd_b, seg, (((1,), (1,)), ((), ())),
                               preferred_element_type=jnp.float32)  # (N, KV)
    return (x - mu) * rstd * gamma + beta


def _full_layer_norm(x, gamma, beta):
    mu = jnp.mean(x, axis=-1, keepdims=True)
    var = jnp.maximum(jnp.mean(x * x, axis=-1, keepdims=True) - mu * mu, 0.0)
    return (x - mu) * jax.lax.rsqrt(var + _LN_EPS) * gamma + beta


# ------------------------------- fused kernel --------------------------------

def _block_vit_kernel(num_heads, channels, qpad,
                      emb_ref, seg_ref, invc_ref,
                      g_attn_ref, b_attn_ref, g_all_ref, b_all_ref,
                      g_ffn_ref, b_ffn_ref,
                      wq_ref, wkv_ref, wout_ref,
                      w1_ref, b1_ref, w2_ref, b2_ref,
                      o_ref):
    H = num_heads
    chans = list(channels)
    KV = sum(chans)
    offs = [0]
    for c in chans:
        offs.append(offs[-1] + c)
    scale = 1.0 / math.sqrt(KV)
    bf16 = jnp.bfloat16

    x = emb_ref[0]                       # (N, KV) packed tokens of this batch (f32)
    seg = seg_ref[...]                   # (KV, NBP)
    invc = invc_ref[...]                 # (1, NBP) = 1/C_i (0 for padding lanes)
    n_tok = x.shape[0]

    # --- attention pre-norms (f32) -------------------------------------------
    cx = _branch_layer_norm(x, seg, invc, g_attn_ref[...], b_attn_ref[...])
    e_all = _full_layer_norm(x, g_all_ref[...], b_all_ref[...])

    # --- fused projections: all heads' Q in one matmul, all heads' K|V in one -
    q_all = jnp.dot(cx.astype(bf16), wq_ref[...],
                    preferred_element_type=jnp.float32).astype(bf16)   # (N, H*QPAD)
    kv_all = jnp.dot(e_all.astype(bf16), wkv_ref[...],
                     preferred_element_type=jnp.float32).astype(bf16)  # (N, 2*H*QPAD)

    # per-branch transposed context accumulators (C_i, N), summed over heads
    ctx_t = [jnp.zeros((c, n_tok), jnp.float32) for c in chans]

    for h in range(H):                   # short static loop, unrolled
        qh = q_all[:, h * qpad: h * qpad + KV]                  # (N, KV) bf16
        kh = kv_all[:, 2 * h * qpad: 2 * h * qpad + KV]         # (N, KV) bf16
        vh = kv_all[:, (2 * h + 1) * qpad: (2 * h + 1) * qpad + KV]

        # scores = Q^T @ K / sqrt(KV): rows = packed query channels
        s = jax.lax.dot_general(qh, kh, (((0,), (0,)), ((), ())),
                                preferred_element_type=jnp.float32) * scale  # (KV, KV)

        # branch-tiled InstanceNorm2d(num_heads) + softmax(dim=-1) + PV
        for i, c in enumerate(chans):
            r0, r1 = offs[i], offs[i + 1]                       # 8-sublane aligned
            s_i = s[r0:r1, :]                                   # (C_i, KV) f32
            inv_cnt = 1.0 / (c * KV)
            mu = jnp.sum(jnp.sum(s_i, axis=-1, keepdims=True),
                         axis=0, keepdims=True) * inv_cnt       # (1,1)
            d = s_i - mu
            var = jnp.sum(jnp.sum(d * d, axis=-1, keepdims=True),
                          axis=0, keepdims=True) * inv_cnt      # two-pass variance
            sn = d * jax.lax.rsqrt(var + _IN_EPS)

            m = jnp.max(sn, axis=-1, keepdims=True)
            e = jnp.exp(sn - m)
            p = e * pl.reciprocal(jnp.sum(e, axis=-1, keepdims=True), approx=True)

            ctx_t[i] = ctx_t[i] + jax.lax.dot_general(
                p.astype(bf16), vh, (((1,), (1,)), ((), ())),
                preferred_element_type=jnp.float32)             # (C_i, N)

    # assemble (sublane-aligned concat), mean over heads, output projection
    ctx_all = jnp.concatenate(ctx_t, axis=0) * (1.0 / H)        # (KV, N)
    attn_o = jax.lax.dot_general(ctx_all.astype(bf16), wout_ref[...],
                                 (((0,), (0,)), ((), ())),
                                 preferred_element_type=jnp.float32)   # (N, KV)

    res1 = x + attn_o                                           # residual 1 (folded)

    # --- FFN: per-branch LN -> fc1 -> GELU -> fc2, residual 2 folded ----------
    xn = _branch_layer_norm(res1, seg, invc, g_ffn_ref[...], b_ffn_ref[...])
    hdn = jnp.dot(xn.astype(bf16), w1_ref[...],
                  preferred_element_type=jnp.float32) + b1_ref[...]
    hdn = _gelu_tanh(hdn)
    y = jnp.dot(hdn.astype(bf16), w2_ref[...],
                preferred_element_type=jnp.float32) + b2_ref[...]

    o_ref[0] = (y + res1).astype(o_ref.dtype)


# ------------------------------ Block_ViT forward ------------------------------

def block_vit_forward(packed, emb1, emb2, emb3, emb4, *, num_heads):
    embs = (emb1, emb2, emb3, emb4)
    chans = tuple(int(e.shape[-1]) for e in embs)
    emb_all = jnp.concatenate(embs, axis=2)          # (B, N, KV) token-major
    B, N, KV = emb_all.shape
    HID = 4 * KV

    kernel = functools.partial(_block_vit_kernel, num_heads, chans, _QPAD)

    def const2(shape):
        # Constant-index weight blocks stay VMEM-resident across the batch grid.
        # (pipeline_mode=pl.Buffered(1) would drop the second buffer; left at the
        #  default for maximum compatibility — irrelevant at ~1.5 MB of weights.)
        return pl.BlockSpec(shape, lambda b: (0, 0))

    out = pl.pallas_call(
        kernel,
        out_shape=jax.ShapeDtypeStruct((B, N, KV), emb_all.dtype),
        grid=(B,),
        in_specs=[
            pl.BlockSpec((1, N, KV), lambda b: (b, 0, 0)),    # packed embeddings
            const2((KV, _NBP)),                               # branch one-hot seg
            const2((1, _NBP)),                                # 1/C_i
            const2((1, KV)), const2((1, KV)),                 # attn_norm1..4 gamma/beta
            const2((1, KV)), const2((1, KV)),                 # attn_norm(KV)  gamma/beta
            const2((1, KV)), const2((1, KV)),                 # ffn_norm1..4   gamma/beta
            const2((KV, num_heads * _QPAD)),                  # Wq  packed across heads (bf16)
            const2((KV, 2 * num_heads * _QPAD)),              # Wk|Wv packed across heads (bf16)
            const2((KV, KV)),                                 # Wout (block-diag, bf16)
            const2((KV, HID)), const2((1, HID)),              # ffn fc1 (block-diag) + bias
            const2((HID, KV)), const2((1, KV)),               # ffn fc2 (block-diag) + bias
        ],
        out_specs=pl.BlockSpec((1, N, KV), lambda b: (b, 0, 0)),
        compiler_params=pltpu.CompilerParams(
            dimension_semantics=("parallel",)),               # B=2 -> both v7x TCs busy
    )(emb_all,
      packed["seg"], packed["invc"],
      packed["g_attn"], packed["b_attn"],
      packed["g_all"], packed["b_all"],
      packed["g_ffn"], packed["b_ffn"],
      packed["wq"], packed["wkv"], packed["wout"],
      packed["w1"], packed["b1"], packed["w2"], packed["b2"])

    offs = np.cumsum([0] + list(chans))
    outs = tuple(out[:, :, int(offs[i]):int(offs[i + 1])] for i in range(4))
    return outs + (None,)    # vis=False -> attention weights are None


# ------------------------------ parameter setup -------------------------------

def init_params(key, channel_num, num_heads):
    """Parameters in PyTorch nn.Linear / LayerNorm layout."""
    KV = sum(channel_num)
    keys = iter(jax.random.split(key, 256))

    def lin(out_f, in_f):
        return jax.random.normal(next(keys), (out_f, in_f), jnp.float32) * 0.02

    p = {}
    for i, c in enumerate(channel_num, start=1):
        p[f"attn_norm{i}_w"] = jnp.ones((c,), jnp.float32)
        p[f"attn_norm{i}_b"] = jnp.zeros((c,), jnp.float32)
        p[f"ffn_norm{i}_w"] = jnp.ones((c,), jnp.float32)
        p[f"ffn_norm{i}_b"] = jnp.zeros((c,), jnp.float32)
        p[f"wq{i}"] = jnp.stack([lin(c, c) for _ in range(num_heads)])      # (H, C, C)
        p[f"wout{i}"] = lin(c, c)                                           # (C, C)
        p[f"ffn{i}_w1"] = lin(4 * c, c)                                     # (4C, C)
        p[f"ffn{i}_b1"] = jnp.zeros((4 * c,), jnp.float32)
        p[f"ffn{i}_w2"] = lin(c, 4 * c)                                     # (C, 4C)
        p[f"ffn{i}_b2"] = jnp.zeros((c,), jnp.float32)
    p["attn_norm_w"] = jnp.ones((KV,), jnp.float32)
    p["attn_norm_b"] = jnp.zeros((KV,), jnp.float32)
    p["wk"] = jnp.stack([lin(KV, KV) for _ in range(num_heads)])            # (H, KV, KV)
    p["wv"] = jnp.stack([lin(KV, KV) for _ in range(num_heads)])
    return p


def pack_params(p, channel_num, num_heads):
    """Pack weights block-diagonally / per-head lane-padded for the fused kernel.

    Matmul weights are stored in bf16 (accumulation stays f32 in-kernel);
    normalization params, biases and the segment masks stay f32.
    """
    C = list(channel_num)
    KV = sum(C)
    H = num_heads
    HID = 4 * KV
    offs = np.cumsum([0] + C)
    assert KV <= _QPAD

    seg = np.zeros((KV, _NBP), np.float32)
    invc = np.zeros((1, _NBP), np.float32)
    for i, c in enumerate(C):
        seg[offs[i]:offs[i + 1], i] = 1.0
        invc[0, i] = 1.0 / c

    g_attn = np.concatenate([np.asarray(p[f"attn_norm{i+1}_w"]) for i in range(4)]).reshape(1, KV)
    b_attn = np.concatenate([np.asarray(p[f"attn_norm{i+1}_b"]) for i in range(4)]).reshape(1, KV)
    g_ffn = np.concatenate([np.asarray(p[f"ffn_norm{i+1}_w"]) for i in range(4)]).reshape(1, KV)
    b_ffn = np.concatenate([np.asarray(p[f"ffn_norm{i+1}_b"]) for i in range(4)]).reshape(1, KV)
    g_all = np.asarray(p["attn_norm_w"]).reshape(1, KV)
    b_all = np.asarray(p["attn_norm_b"]).reshape(1, KV)

    # Q weights packed across heads: (KV, H*QPAD), block-diag within each head slab
    wq = np.zeros((KV, H * _QPAD), np.float32)
    for h in range(H):
        for i in range(4):
            r0, r1 = offs[i], offs[i + 1]
            wq[r0:r1, h * _QPAD + r0: h * _QPAD + r1] = np.asarray(p[f"wq{i+1}"][h]).T

    # K|V weights interleaved per head: (KV, 2*H*QPAD), each head's K then V slab
    wkv = np.zeros((KV, 2 * H * _QPAD), np.float32)
    for h in range(H):
        base = 2 * h * _QPAD
        wkv[:, base: base + KV] = np.asarray(p["wk"][h]).T
        wkv[:, base + _QPAD: base + _QPAD + KV] = np.asarray(p["wv"][h]).T

    wout = np.zeros((KV, KV), np.float32)
    w1 = np.zeros((KV, HID), np.float32)
    b1 = np.zeros((1, HID), np.float32)
    w2 = np.zeros((HID, KV), np.float32)
    b2 = np.zeros((1, KV), np.float32)
    for i in range(4):
        r0, r1 = offs[i], offs[i + 1]
        h0, h1 = 4 * r0, 4 * r1
        wout[r0:r1, r0:r1] = np.asarray(p[f"wout{i+1}"]).T
        w1[r0:r1, h0:h1] = np.asarray(p[f"ffn{i+1}_w1"]).T
        b1[0, h0:h1] = np.asarray(p[f"ffn{i+1}_b1"])
        w2[h0:h1, r0:r1] = np.asarray(p[f"ffn{i+1}_w2"]).T
        b2[0, r0:r1] = np.asarray(p[f"ffn{i+1}_b2"])

    f32_arrs = dict(seg=seg, invc=invc, g_attn=g_attn, b_attn=b_attn,
                    g_all=g_all, b_all=b_all, g_ffn=g_ffn, b_ffn=b_ffn,
                    b1=b1, b2=b2)
    bf16_arrs = dict(wq=wq, wkv=wkv, wout=wout, w1=w1, w2=w2)

    packed = {k: jnp.asarray(v, jnp.float32) for k, v in f32_arrs.items()}
    packed.update({k: jnp.asarray(v, jnp.bfloat16) for k, v in bf16_arrs.items()})
    return packed


if __name__ == "__main__":
    channel_num = (16, 32, 48, 64)   # KV_size = 160 (original config uses 960)
    num_heads = 4
    B, N = 2, 8

    key = jax.random.PRNGKey(0)
    k1, k2, k3, k4, kp = jax.random.split(key, 5)
    emb1 = jax.random.normal(k1, (B, N, channel_num[0]), jnp.float32)
    emb2 = jax.random.normal(k2, (B, N, channel_num[1]), jnp.float32)
    emb3 = jax.random.normal(k3, (B, N, channel_num[2]), jnp.float32)
    emb4 = jax.random.normal(k4, (B, N, channel_num[3]), jnp.float32)

    params = init_params(kp, channel_num, num_heads)
    packed = pack_params(params, channel_num, num_heads)

    fwd = jax.jit(functools.partial(block_vit_forward, num_heads=num_heads))
    x1, x2, x3, x4, weights = fwd(packed, emb1, emb2, emb3, emb4)
    jax.block_until_ready((x1, x2, x3, x4))

    assert x1.shape == emb1.shape and x2.shape == emb2.shape
    assert x3.shape == emb3.shape and x4.shape == emb4.shape
    assert weights is None
    assert all(bool(jnp.all(jnp.isfinite(t))) for t in (x1, x2, x3, x4))
    print("KERNEL_OK")
</pallas_src>

<mosaic_0001>
module attributes {stable_mosaic.version = 11 : i64} {
  func.func @_block_vit_kernel(%arg0: i32, %arg1: memref<1x8x160xf32, #tpu.memory_space<vmem>>, %arg2: memref<160x8xf32, #tpu.memory_space<vmem>>, %arg3: memref<1x8xf32, #tpu.memory_space<vmem>>, %arg4: memref<1x160xf32, #tpu.memory_space<vmem>>, %arg5: memref<1x160xf32, #tpu.memory_space<vmem>>, %arg6: memref<1x160xf32, #tpu.memory_space<vmem>>, %arg7: memref<1x160xf32, #tpu.memory_space<vmem>>, %arg8: memref<1x160xf32, #tpu.memory_space<vmem>>, %arg9: memref<1x160xf32, #tpu.memory_space<vmem>>, %arg10: memref<160x1024xbf16, #tpu.memory_space<vmem>>, %arg11: memref<160x2048xbf16, #tpu.memory_space<vmem>>, %arg12: memref<160x160xbf16, #tpu.memory_space<vmem>>, %arg13: memref<160x640xbf16, #tpu.memory_space<vmem>>, %arg14: memref<1x640xf32, #tpu.memory_space<vmem>>, %arg15: memref<640x160xbf16, #tpu.memory_space<vmem>>, %arg16: memref<1x160xf32, #tpu.memory_space<vmem>>, %arg17: memref<1x8x160xf32, #tpu.memory_space<vmem>>) attributes {dimension_semantics = [#tpu.dimension_semantics<parallel>], iteration_bounds = array<i64: 2>, scalar_prefetch = 0 : i64, scratch_operands = 0 : i64, tpu.core_type = #tpu.core_type<tc>, window_params = [{transform_indices = @transform_0, window_bounds = array<i64: 1, 8, 160>}, {pipeline_mode = #tpu.pipeline_mode<synchronous>, transform_indices = @transform_1, window_bounds = array<i64: 160, 8>}, {pipeline_mode = #tpu.pipeline_mode<synchronous>, transform_indices = @transform_2, window_bounds = array<i64: 1, 8>}, {pipeline_mode = #tpu.pipeline_mode<synchronous>, transform_indices = @transform_3, window_bounds = array<i64: 1, 160>}, {pipeline_mode = #tpu.pipeline_mode<synchronous>, transform_indices = @transform_4, window_bounds = array<i64: 1, 160>}, {pipeline_mode = #tpu.pipeline_mode<synchronous>, transform_indices = @transform_5, window_bounds = array<i64: 1, 160>}, {pipeline_mode = #tpu.pipeline_mode<synchronous>, transform_indices = @transform_6, window_bounds = array<i64: 1, 160>}, {pipeline_mode = #tpu.pipeline_mode<synchronous>, transform_indices = @transform_7, window_bounds = array<i64: 1, 160>}, {pipeline_mode = #tpu.pipeline_mode<synchronous>, transform_indices = @transform_8, window_bounds = array<i64: 1, 160>}, {pipeline_mode = #tpu.pipeline_mode<synchronous>, transform_indices = @transform_9, window_bounds = array<i64: 160, 1024>}, {pipeline_mode = #tpu.pipeline_mode<synchronous>, transform_indices = @transform_10, window_bounds = array<i64: 160, 2048>}, {pipeline_mode = #tpu.pipeline_mode<synchronous>, transform_indices = @transform_11, window_bounds = array<i64: 160, 160>}, {pipeline_mode = #tpu.pipeline_mode<synchronous>, transform_indices = @transform_12, window_bounds = array<i64: 160, 640>}, {pipeline_mode = #tpu.pipeline_mode<synchronous>, transform_indices = @transform_13, window_bounds = array<i64: 1, 640>}, {pipeline_mode = #tpu.pipeline_mode<synchronous>, transform_indices = @transform_14, window_bounds = array<i64: 640, 160>}, {pipeline_mode = #tpu.pipeline_mode<synchronous>, transform_indices = @transform_15, window_bounds = array<i64: 1, 160>}, {transform_indices = @transform_16, window_bounds = array<i64: 1, 8, 160>}]} {
    %c0 = arith.constant 0 : index
    %c0_0 = arith.constant 0 : index
    %c0_1 = arith.constant 0 : index
    %0 = vector.load %arg1[%c0, %c0_0, %c0_1] : memref<1x8x160xf32, #tpu.memory_space<vmem>>, vector<1x8x160xf32>
    %1 = vector.shape_cast %0 : vector<1x8x160xf32> to vector<8x160xf32>
    %c0_2 = arith.constant 0 : index
    %c0_3 = arith.constant 0 : index
    %2 = vector.load %arg2[%c0_2, %c0_3] : memref<160x8xf32, #tpu.memory_space<vmem>>, vector<160x8xf32>
    %c0_4 = arith.constant 0 : index
    %c0_5 = arith.constant 0 : index
    %3 = vector.load %arg3[%c0_4, %c0_5] : memref<1x8xf32, #tpu.memory_space<vmem>>, vector<1x8xf32>
    %c0_6 = arith.constant 0 : index
    %c0_7 = arith.constant 0 : index
    %4 = vector.load %arg4[%c0_6, %c0_7] : memref<1x160xf32, #tpu.memory_space<vmem>>, vector<1x160xf32>
    %c0_8 = arith.constant 0 : index
    %c0_9 = arith.constant 0 : index
    %5 = vector.load %arg5[%c0_8, %c0_9] : memref<1x160xf32, #tpu.memory_space<vmem>>, vector<1x160xf32>
    %cst = arith.constant dense<0.000000e+00> : vector<8x8xf32>
    %6 = tpu.matmul %1, %2, %cst {dimension_numbers = #tpu.dot_dimension_numbers<[1], [0], [0], [1], [0, 0, 1, 1], [], []>} : vector<8x160xf32>, vector<160x8xf32>, vector<8x8xf32> -> vector<8x8xf32>
    %7 = arith.mulf %1, %1 : vector<8x160xf32>
    %cst_10 = arith.constant dense<0.000000e+00> : vector<8x8xf32>
    %8 = tpu.matmul %7, %2, %cst_10 {dimension_numbers = #tpu.dot_dimension_numbers<[1], [0], [0], [1], [0, 0, 1, 1], [], []>} : vector<8x160xf32>, vector<160x8xf32>, vector<8x8xf32> -> vector<8x8xf32>
    %9 = vector.broadcast %3 : vector<1x8xf32> to vector<8x8xf32>
    %10 = arith.mulf %6, %9 : vector<8x8xf32>
    %11 = vector.broadcast %3 : vector<1x8xf32> to vector<8x8xf32>
    %12 = arith.mulf %8, %11 : vector<8x8xf32>
    %13 = arith.mulf %10, %10 : vector<8x8xf32>
    %14 = arith.subf %12, %13 : vector<8x8xf32>
    %cst_11 = arith.constant 0.000000e+00 : f32
    %15 = vector.broadcast %cst_11 : f32 to vector<8x8xf32>
    %16 = arith.maximumf %14, %15 : vector<8x8xf32>
    %cst_12 = arith.constant 9.99999997E-7 : f32
    %17 = vector.broadcast %cst_12 : f32 to vector<8x8xf32>
    %18 = arith.addf %16, %17 : vector<8x8xf32>
    %19 = math.rsqrt %18 : vector<8x8xf32>
    %cst_13 = arith.constant dense<0.000000e+00> : vector<8x160xf32>
    %20 = tpu.matmul %10, %2, %cst_13 {dimension_numbers = #tpu.dot_dimension_numbers<[1], [1], [0], [0], [0, 0, 1, 0], [], []>} : vector<8x8xf32>, vector<160x8xf32>, vector<8x160xf32> -> vector<8x160xf32>
    %cst_14 = arith.constant dense<0.000000e+00> : vector<8x160xf32>
    %21 = tpu.matmul %19, %2, %cst_14 {dimension_numbers = #tpu.dot_dimension_numbers<[1], [1], [0], [0], [0, 0, 1, 0], [], []>} : vector<8x8xf32>, vector<160x8xf32>, vector<8x160xf32> -> vector<8x160xf32>
    %22 = arith.subf %1, %20 : vector<8x160xf32>
    %23 = arith.mulf %22, %21 : vector<8x160xf32>
    %24 = vector.broadcast %4 : vector<1x160xf32> to vector<8x160xf32>
    %25 = arith.mulf %23, %24 : vector<8x160xf32>
    %26 = vector.broadcast %5 : vector<1x160xf32> to vector<8x160xf32>
    %27 = arith.addf %25, %26 : vector<8x160xf32>
    %c0_15 = arith.constant 0 : index
    %c0_16 = arith.constant 0 : index
    %28 = vector.load %arg6[%c0_15, %c0_16] : memref<1x160xf32, #tpu.memory_space<vmem>>, vector<1x160xf32>
    %c0_17 = arith.constant 0 : index
    %c0_18 = arith.constant 0 : index
    %29 = vector.load %arg7[%c0_17, %c0_18] : memref<1x160xf32, #tpu.memory_space<vmem>>, vector<1x160xf32>
    %cst_19 = arith.constant dense<0.000000e+00> : vector<8xf32>
    %30 = vector.multi_reduction <add>, %1, %cst_19 [1] : vector<8x160xf32> to vector<8xf32>
    %31 = vector.shape_cast %30 : vector<8xf32> to vector<8x1xf32>
    %cst_20 = arith.constant 1.600000e+02 : f32
    %32 = vector.broadcast %cst_20 : f32 to vector<8x1xf32>
    %33 = arith.divf %31, %32 : vector<8x1xf32>
    %34 = arith.mulf %1, %1 : vector<8x160xf32>
    %cst_21 = arith.constant dense<0.000000e+00> : vector<8xf32>
    %35 = vector.multi_reduction <add>, %34, %cst_21 [1] : vector<8x160xf32> to vector<8xf32>
    %36 = vector.shape_cast %35 : vector<8xf32> to vector<8x1xf32>
    %cst_22 = arith.constant 1.600000e+02 : f32
    %37 = vector.broadcast %cst_22 : f32 to vector<8x1xf32>
    %38 = arith.divf %36, %37 : vector<8x1xf32>
    %39 = arith.mulf %33, %33 : vector<8x1xf32>
    %40 = arith.subf %38, %39 : vector<8x1xf32>
    %cst_23 = arith.constant 0.000000e+00 : f32
    %41 = vector.broadcast %cst_23 : f32 to vector<8x1xf32>
    %42 = arith.maximumf %40, %41 : vector<8x1xf32>
    %43 = vector.broadcast %33 : vector<8x1xf32> to vector<8x160xf32>
    %44 = arith.subf %1, %43 : vector<8x160xf32>
    %cst_24 = arith.constant 9.99999997E-7 : f32
    %45 = vector.broadcast %cst_24 : f32 to vector<8x1xf32>
    %46 = arith.addf %42, %45 : vector<8x1xf32>
    %47 = math.rsqrt %46 : vector<8x1xf32>
    %48 = vector.broadcast %47 : vector<8x1xf32> to vector<8x160xf32>
    %49 = arith.mulf %44, %48 : vector<8x160xf32>
    %50 = vector.broadcast %28 : vector<1x160xf32> to vector<8x160xf32>
    %51 = arith.mulf %49, %50 : vector<8x160xf32>
    %52 = vector.broadcast %29 : vector<1x160xf32> to vector<8x160xf32>
    %53 = arith.addf %51, %52 : vector<8x160xf32>
    %54 = arith.truncf %27 : vector<8x160xf32> to vector<8x160xbf16>
    %c0_25 = arith.constant 0 : index
    %c0_26 = arith.constant 0 : index
    %55 = vector.load %arg10[%c0_25, %c0_26] : memref<160x1024xbf16, #tpu.memory_space<vmem>>, vector<160x1024xbf16>
    %cst_27 = arith.constant dense<0.000000e+00> : vector<8x1024xf32>
    %56 = tpu.matmul %54, %55, %cst_27 {dimension_numbers = #tpu.dot_dimension_numbers<[1], [0], [0], [1], [0, 0, 1, 1], [], []>} : vector<8x160xbf16>, vector<160x1024xbf16>, vector<8x1024xf32> -> vector<8x1024xf32>
    %57 = arith.truncf %56 : vector<8x1024xf32> to vector<8x1024xbf16>
    %58 = arith.truncf %53 : vector<8x160xf32> to vector<8x160xbf16>
    %c0_28 = arith.constant 0 : index
    %c0_29 = arith.constant 0 : index
    %59 = vector.load %arg11[%c0_28, %c0_29] : memref<160x2048xbf16, #tpu.memory_space<vmem>>, vector<160x2048xbf16>
    %cst_30 = arith.constant dense<0.000000e+00> : vector<8x2048xf32>
    %60 = tpu.matmul %58, %59, %cst_30 {dimension_numbers = #tpu.dot_dimension_numbers<[1], [0], [0], [1], [0, 0, 1, 1], [], []>} : vector<8x160xbf16>, vector<160x2048xbf16>, vector<8x2048xf32> -> vector<8x2048xf32>
    %61 = arith.truncf %60 : vector<8x2048xf32> to vector<8x2048xbf16>
    %cst_31 = arith.constant 0.000000e+00 : f32
    %62 = vector.broadcast %cst_31 : f32 to vector<16x8xf32>
    %cst_32 = arith.constant 0.000000e+00 : f32
    %63 = vector.broadcast %cst_32 : f32 to vector<32x8xf32>
    %cst_33 = arith.constant 0.000000e+00 : f32
    %64 = vector.broadcast %cst_33 : f32 to vector<48x8xf32>
    %cst_34 = arith.constant 0.000000e+00 : f32
    %65 = vector.broadcast %cst_34 : f32 to vector<64x8xf32>
    %66 = vector.extract_strided_slice %57 {offsets = [0, 0], sizes = [8, 160], strides = [1, 1]} : vector<8x1024xbf16> to vector<8x160xbf16>
    %67 = vector.extract_strided_slice %61 {offsets = [0, 0], sizes = [8, 160], strides = [1, 1]} : vector<8x2048xbf16> to vector<8x160xbf16>
    %68 = vector.extract_strided_slice %61 {offsets = [0, 256], sizes = [8, 160], strides = [1, 1]} : vector<8x2048xbf16> to vector<8x160xbf16>
    %cst_35 = arith.constant dense<0.000000e+00> : vector<160x160xf32>
    %69 = tpu.matmul %66, %67, %cst_35 {dimension_numbers = #tpu.dot_dimension_numbers<[0], [0], [1], [1], [0, 1, 1, 1], [], []>} : vector<8x160xbf16>, vector<8x160xbf16>, vector<160x160xf32> -> vector<160x160xf32>
    %cst_36 = arith.constant 0.0790569409 : f32
    %70 = vector.broadcast %cst_36 : f32 to vector<160x160xf32>
    %71 = arith.mulf %69, %70 : vector<160x160xf32>
    %72 = vector.extract_strided_slice %71 {offsets = [0, 0], sizes = [16, 160], strides = [1, 1]} : vector<160x160xf32> to vector<16x160xf32>
    %cst_37 = arith.constant dense<0.000000e+00> : vector<16xf32>
    %73 = vector.multi_reduction <add>, %72, %cst_37 [1] : vector<16x160xf32> to vector<16xf32>
    %74 = vector.shape_cast %73 : vector<16xf32> to vector<16x1xf32>
    %cst_38 = arith.constant dense<0.000000e+00> : vector<1xf32>
    %75 = vector.multi_reduction <add>, %74, %cst_38 [0] : vector<16x1xf32> to vector<1xf32>
    %76 = vector.shape_cast %75 : vector<1xf32> to vector<1x1xf32>
    %cst_39 = arith.constant 3.906250e-04 : f32
    %77 = vector.broadcast %cst_39 : f32 to vector<1x1xf32>
    %78 = arith.mulf %76, %77 : vector<1x1xf32>
    %79 = vector.broadcast %78 : vector<1x1xf32> to vector<16x160xf32>
    %80 = arith.subf %72, %79 : vector<16x160xf32>
    %81 = arith.mulf %80, %80 : vector<16x160xf32>
    %cst_40 = arith.constant dense<0.000000e+00> : vector<16xf32>
    %82 = vector.multi_reduction <add>, %81, %cst_40 [1] : vector<16x160xf32> to vector<16xf32>
    %83 = vector.shape_cast %82 : vector<16xf32> to vector<16x1xf32>
    %cst_41 = arith.constant dense<0.000000e+00> : vector<1xf32>
    %84 = vector.multi_reduction <add>, %83, %cst_41 [0] : vector<16x1xf32> to vector<1xf32>
    %85 = vector.shape_cast %84 : vector<1xf32> to vector<1x1xf32>
    %cst_42 = arith.constant 3.906250e-04 : f32
    %86 = vector.broadcast %cst_42 : f32 to vector<1x1xf32>
    %87 = arith.mulf %85, %86 : vector<1x1xf32>
    %cst_43 = arith.constant 9.99999974E-6 : f32
    %88 = vector.broadcast %cst_43 : f32 to vector<1x1xf32>
    %89 = arith.addf %87, %88 : vector<1x1xf32>
    %90 = math.rsqrt %89 : vector<1x1xf32>
    %91 = vector.broadcast %90 : vector<1x1xf32> to vector<16x160xf32>
    %92 = arith.mulf %80, %91 : vector<16x160xf32>
    %cst_44 = arith.constant dense<0xFF800000> : vector<16xf32>
    %93 = vector.multi_reduction <maximumf>, %92, %cst_44 [1] : vector<16x160xf32> to vector<16xf32>
    %94 = vector.shape_cast %93 : vector<16xf32> to vector<16x1xf32>
    %95 = vector.broadcast %94 : vector<16x1xf32> to vector<16x160xf32>
    %96 = arith.subf %92, %95 : vector<16x160xf32>
    %97 = math.exp %96 : vector<16x160xf32>
    %cst_45 = arith.constant dense<0.000000e+00> : vector<16xf32>
    %98 = vector.multi_reduction <add>, %97, %cst_45 [1] : vector<16x160xf32> to vector<16xf32>
    %99 = vector.shape_cast %98 : vector<16xf32> to vector<16x1xf32>
    %100 = tpu.reciprocal %99 {approx = true} : vector<16x1xf32> -> vector<16x1xf32>
    %101 = vector.broadcast %100 : vector<16x1xf32> to vector<16x160xf32>
    %102 = arith.mulf %97, %101 : vector<16x160xf32>
    %103 = arith.truncf %102 : vector<16x160xf32> to vector<16x160xbf16>
    %cst_46 = arith.constant dense<0.000000e+00> : vector<16x8xf32>
    %104 = tpu.matmul %103, %68, %cst_46 {dimension_numbers = #tpu.dot_dimension_numbers<[1], [1], [0], [0], [0, 0, 1, 0], [], []>} : vector<16x160xbf16>, vector<8x160xbf16>, vector<16x8xf32> -> vector<16x8xf32>
    %105 = arith.addf %62, %104 : vector<16x8xf32>
    %106 = vector.extract_strided_slice %71 {offsets = [16, 0], sizes = [32, 160], strides = [1, 1]} : vector<160x160xf32> to vector<32x160xf32>
    %cst_47 = arith.constant dense<0.000000e+00> : vector<32xf32>
    %107 = vector.multi_reduction <add>, %106, %cst_47 [1] : vector<32x160xf32> to vector<32xf32>
    %108 = vector.shape_cast %107 : vector<32xf32> to vector<32x1xf32>
    %cst_48 = arith.constant dense<0.000000e+00> : vector<1xf32>
    %109 = vector.multi_reduction <add>, %108, %cst_48 [0] : vector<32x1xf32> to vector<1xf32>
    %110 = vector.shape_cast %109 : vector<1xf32> to vector<1x1xf32>
    %cst_49 = arith.constant 1.95312503E-4 : f32
    %111 = vector.broadcast %cst_49 : f32 to vector<1x1xf32>
    %112 = arith.mulf %110, %111 : vector<1x1xf32>
    %113 = vector.broadcast %112 : vector<1x1xf32> to vector<32x160xf32>
    %114 = arith.subf %106, %113 : vector<32x160xf32>
    %115 = arith.mulf %114, %114 : vector<32x160xf32>
    %cst_50 = arith.constant dense<0.000000e+00> : vector<32xf32>
    %116 = vector.multi_reduction <add>, %115, %cst_50 [1] : vector<32x160xf32> to vector<32xf32>
    %117 = vector.shape_cast %116 : vector<32xf32> to vector<32x1xf32>
    %cst_51 = arith.constant dense<0.000000e+00> : vector<1xf32>
    %118 = vector.multi_reduction <add>, %117, %cst_51 [0] : vector<32x1xf32> to vector<1xf32>
    %119 = vector.shape_cast %118 : vector<1xf32> to vector<1x1xf32>
    %cst_52 = arith.constant 1.95312503E-4 : f32
    %120 = vector.broadcast %cst_52 : f32 to vector<1x1xf32>
    %121 = arith.mulf %119, %120 : vector<1x1xf32>
    %cst_53 = arith.constant 9.99999974E-6 : f32
    %122 = vector.broadcast %cst_53 : f32 to vector<1x1xf32>
    %123 = arith.addf %121, %122 : vector<1x1xf32>
    %124 = math.rsqrt %123 : vector<1x1xf32>
    %125 = vector.broadcast %124 : vector<1x1xf32> to vector<32x160xf32>
    %126 = arith.mulf %114, %125 : vector<32x160xf32>
    %cst_54 = arith.constant dense<0xFF800000> : vector<32xf32>
    %127 = vector.multi_reduction <maximumf>, %126, %cst_54 [1] : vector<32x160xf32> to vector<32xf32>
    %128 = vector.shape_cast %127 : vector<32xf32> to vector<32x1xf32>
    %129 = vector.broadcast %128 : vector<32x1xf32> to vector<32x160xf32>
    %130 = arith.subf %126, %129 : vector<32x160xf32>
    %131 = math.exp %130 : vector<32x160xf32>
    %cst_55 = arith.constant dense<0.000000e+00> : vector<32xf32>
    %132 = vector.multi_reduction <add>, %131, %cst_55 [1] : vector<32x160xf32> to vector<32xf32>
    %133 = vector.shape_cast %132 : vector<32xf32> to vector<32x1xf32>
    %134 = tpu.reciprocal %133 {approx = true} : vector<32x1xf32> -> vector<32x1xf32>
    %135 = vector.broadcast %134 : vector<32x1xf32> to vector<32x160xf32>
    %136 = arith.mulf %131, %135 : vector<32x160xf32>
    %137 = arith.truncf %136 : vector<32x160xf32> to vector<32x160xbf16>
    %cst_56 = arith.constant dense<0.000000e+00> : vector<32x8xf32>
    %138 = tpu.matmul %137, %68, %cst_56 {dimension_numbers = #tpu.dot_dimension_numbers<[1], [1], [0], [0], [0, 0, 1, 0], [], []>} : vector<32x160xbf16>, vector<8x160xbf16>, vector<32x8xf32> -> vector<32x8xf32>
    %139 = arith.addf %63, %138 : vector<32x8xf32>
    %140 = vector.extract_strided_slice %71 {offsets = [48, 0], sizes = [48, 160], strides = [1, 1]} : vector<160x160xf32> to vector<48x160xf32>
    %cst_57 = arith.constant dense<0.000000e+00> : vector<48xf32>
    %141 = vector.multi_reduction <add>, %140, %cst_57 [1] : vector<48x160xf32> to vector<48xf32>
    %142 = vector.shape_cast %141 : vector<48xf32> to vector<48x1xf32>
    %cst_58 = arith.constant dense<0.000000e+00> : vector<1xf32>
    %143 = vector.multi_reduction <add>, %142, %cst_58 [0] : vector<48x1xf32> to vector<1xf32>
    %144 = vector.shape_cast %143 : vector<1xf32> to vector<1x1xf32>
    %cst_59 = arith.constant 1.3020834E-4 : f32
    %145 = vector.broadcast %cst_59 : f32 to vector<1x1xf32>
    %146 = arith.mulf %144, %145 : vector<1x1xf32>
    %147 = vector.broadcast %146 : vector<1x1xf32> to vector<48x160xf32>
    %148 = arith.subf %140, %147 : vector<48x160xf32>
    %149 = arith.mulf %148, %148 : vector<48x160xf32>
    %cst_60 = arith.constant dense<0.000000e+00> : vector<48xf32>
    %150 = vector.multi_reduction <add>, %149, %cst_60 [1] : vector<48x160xf32> to vector<48xf32>
    %151 = vector.shape_cast %150 : vector<48xf32> to vector<48x1xf32>
    %cst_61 = arith.constant dense<0.000000e+00> : vector<1xf32>
    %152 = vector.multi_reduction <add>, %151, %cst_61 [0] : vector<48x1xf32> to vector<1xf32>
    %153 = vector.shape_cast %152 : vector<1xf32> to vector<1x1xf32>
    %cst_62 = arith.constant 1.3020834E-4 : f32
    %154 = vector.broadcast %cst_62 : f32 to vector<1x1xf32>
    %155 = arith.mulf %153, %154 : vector<1x1xf32>
    %cst_63 = arith.constant 9.99999974E-6 : f32
    %156 = vector.broadcast %cst_63 : f32 to vector<1x1xf32>
    %157 = arith.addf %155, %156 : vector<1x1xf32>
    %158 = math.rsqrt %157 : vector<1x1xf32>
    %159 = vector.broadcast %158 : vector<1x1xf32> to vector<48x160xf32>
    %160 = arith.mulf %148, %159 : vector<48x160xf32>
    %cst_64 = arith.constant dense<0xFF800000> : vector<48xf32>
    %161 = vector.multi_reduction <maximumf>, %160, %cst_64 [1] : vector<48x160xf32> to vector<48xf32>
    %162 = vector.shape_cast %161 : vector<48xf32> to vector<48x1xf32>
    %163 = vector.broadcast %162 : vector<48x1xf32> to vector<48x160xf32>
    %164 = arith.subf %160, %163 : vector<48x160xf32>
    %165 = math.exp %164 : vector<48x160xf32>
    %cst_65 = arith.constant dense<0.000000e+00> : vector<48xf32>
    %166 = vector.multi_reduction <add>, %165, %cst_65 [1] : vector<48x160xf32> to vector<48xf32>
    %167 = vector.shape_cast %166 : vector<48xf32> to vector<48x1xf32>
    %168 = tpu.reciprocal %167 {approx = true} : vector<48x1xf32> -> vector<48x1xf32>
    %169 = vector.broadcast %168 : vector<48x1xf32> to vector<48x160xf32>
    %170 = arith.mulf %165, %169 : vector<48x160xf32>
    %171 = arith.truncf %170 : vector<48x160xf32> to vector<48x160xbf16>
    %cst_66 = arith.constant dense<0.000000e+00> : vector<48x8xf32>
    %172 = tpu.matmul %171, %68, %cst_66 {dimension_numbers = #tpu.dot_dimension_numbers<[1], [1], [0], [0], [0, 0, 1, 0], [], []>} : vector<48x160xbf16>, vector<8x160xbf16>, vector<48x8xf32> -> vector<48x8xf32>
    %173 = arith.addf %64, %172 : vector<48x8xf32>
    %174 = vector.extract_strided_slice %71 {offsets = [96, 0], sizes = [64, 160], strides = [1, 1]} : vector<160x160xf32> to vector<64x160xf32>
    %cst_67 = arith.constant dense<0.000000e+00> : vector<64xf32>
    %175 = vector.multi_reduction <add>, %174, %cst_67 [1] : vector<64x160xf32> to vector<64xf32>
    %176 = vector.shape_cast %175 : vector<64xf32> to vector<64x1xf32>
    %cst_68 = arith.constant dense<0.000000e+00> : vector<1xf32>
    %177 = vector.multi_reduction <add>, %176, %cst_68 [0] : vector<64x1xf32> to vector<1xf32>
    %178 = vector.shape_cast %177 : vector<1xf32> to vector<1x1xf32>
    %cst_69 = arith.constant 9.76562514E-5 : f32
    %179 = vector.broadcast %cst_69 : f32 to vector<1x1xf32>
    %180 = arith.mulf %178, %179 : vector<1x1xf32>
    %181 = vector.broadcast %180 : vector<1x1xf32> to vector<64x160xf32>
    %182 = arith.subf %174, %181 : vector<64x160xf32>
    %183 = arith.mulf %182, %182 : vector<64x160xf32>
    %cst_70 = arith.constant dense<0.000000e+00> : vector<64xf32>
    %184 = vector.multi_reduction <add>, %183, %cst_70 [1] : vector<64x160xf32> to vector<64xf32>
    %185 = vector.shape_cast %184 : vector<64xf32> to vector<64x1xf32>
    %cst_71 = arith.constant dense<0.000000e+00> : vector<1xf32>
    %186 = vector.multi_reduction <add>, %185, %cst_71 [0] : vector<64x1xf32> to vector<1xf32>
    %187 = vector.shape_cast %186 : vector<1xf32> to vector<1x1xf32>
    %cst_72 = arith.constant 9.76562514E-5 : f32
    %188 = vector.broadcast %cst_72 : f32 to vector<1x1xf32>
    %189 = arith.mulf %187, %188 : vector<1x1xf32>
    %cst_73 = arith.constant 9.99999974E-6 : f32
    %190 = vector.broadcast %cst_73 : f32 to vector<1x1xf32>
    %191 = arith.addf %189, %190 : vector<1x1xf32>
    %192 = math.rsqrt %191 : vector<1x1xf32>
    %193 = vector.broadcast %192 : vector<1x1xf32> to vector<64x160xf32>
    %194 = arith.mulf %182, %193 : vector<64x160xf32>
    %cst_74 = arith.constant dense<0xFF800000> : vector<64xf32>
    %195 = vector.multi_reduction <maximumf>, %194, %cst_74 [1] : vector<64x160xf32> to vector<64xf32>
    %196 = vector.shape_cast %195 : vector<64xf32> to vector<64x1xf32>
    %197 = vector.broadcast %196 : vector<64x1xf32> to vector<64x160xf32>
    %198 = arith.subf %194, %197 : vector<64x160xf32>
    %199 = math.exp %198 : vector<64x160xf32>
    %cst_75 = arith.constant dense<0.000000e+00> : vector<64xf32>
    %200 = vector.multi_reduction <add>, %199, %cst_75 [1] : vector<64x160xf32> to vector<64xf32>
    %201 = vector.shape_cast %200 : vector<64xf32> to vector<64x1xf32>
    %202 = tpu.reciprocal %201 {approx = true} : vector<64x1xf32> -> vector<64x1xf32>
    %203 = vector.broadcast %202 : vector<64x1xf32> to vector<64x160xf32>
    %204 = arith.mulf %199, %203 : vector<64x160xf32>
    %205 = arith.truncf %204 : vector<64x160xf32> to vector<64x160xbf16>
    %cst_76 = arith.constant dense<0.000000e+00> : vector<64x8xf32>
    %206 = tpu.matmul %205, %68, %cst_76 {dimension_numbers = #tpu.dot_dimension_numbers<[1], [1], [0], [0], [0, 0, 1, 0], [], []>} : vector<64x160xbf16>, vector<8x160xbf16>, vector<64x8xf32> -> vector<64x8xf32>
    %207 = arith.addf %65, %206 : vector<64x8xf32>
    %208 = vector.extract_strided_slice %57 {offsets = [0, 256], sizes = [8, 160], strides = [1, 1]} : vector<8x1024xbf16> to vector<8x160xbf16>
    %209 = vector.extract_strided_slice %61 {offsets = [0, 512], sizes = [8, 160], strides = [1, 1]} : vector<8x2048xbf16> to vector<8x160xbf16>
    %210 = vector.extract_strided_slice %61 {offsets = [0, 768], sizes = [8, 160], strides = [1, 1]} : vector<8x2048xbf16> to vector<8x160xbf16>
    %cst_77 = arith.constant dense<0.000000e+00> : vector<160x160xf32>
    %211 = tpu.matmul %208, %209, %cst_77 {dimension_numbers = #tpu.dot_dimension_numbers<[0], [0], [1], [1], [0, 1, 1, 1], [], []>} : vector<8x160xbf16>, vector<8x160xbf16>, vector<160x160xf32> -> vector<160x160xf32>
    %cst_78 = arith.constant 0.0790569409 : f32
    %212 = vector.broadcast %cst_78 : f32 to vector<160x160xf32>
    %213 = arith.mulf %211, %212 : vector<160x160xf32>
    %214 = vector.extract_strided_slice %213 {offsets = [0, 0], sizes = [16, 160], strides = [1, 1]} : vector<160x160xf32> to vector<16x160xf32>
    %cst_79 = arith.constant dense<0.000000e+00> : vector<16xf32>
    %215 = vector.multi_reduction <add>, %214, %cst_79 [1] : vector<16x160xf32> to vector<16xf32>
    %216 = vector.shape_cast %215 : vector<16xf32> to vector<16x1xf32>
    %cst_80 = arith.constant dense<0.000000e+00> : vector<1xf32>
    %217 = vector.multi_reduction <add>, %216, %cst_80 [0] : vector<16x1xf32> to vector<1xf32>
    %218 = vector.shape_cast %217 : vector<1xf32> to vector<1x1xf32>
    %cst_81 = arith.constant 3.906250e-04 : f32
    %219 = vector.broadcast %cst_81 : f32 to vector<1x1xf32>
    %220 = arith.mulf %218, %219 : vector<1x1xf32>
    %221 = vector.broadcast %220 : vector<1x1xf32> to vector<16x160xf32>
    %222 = arith.subf %214, %221 : vector<16x160xf32>
    %223 = arith.mulf %222, %222 : vector<16x160xf32>
    %cst_82 = arith.constant dense<0.000000e+00> : vector<16xf32>
    %224 = vector.multi_reduction <add>, %223, %cst_82 [1] : vector<16x160xf32> to vector<16xf32>
    %225 = vector.shape_cast %224 : vector<16xf32> to vector<16x1xf32>
    %cst_83 = arith.constant dense<0.000000e+00> : vector<1xf32>
    %226 = vector.multi_reduction <add>, %225, %cst_83 [0] : vector<16x1xf32> to vector<1xf32>
    %227 = vector.shape_cast %226 : vector<1xf32> to vector<1x1xf32>
    %cst_84 = arith.constant 3.906250e-04 : f32
    %228 = vector.broadcast %cst_84 : f32 to vector<1x1xf32>
    %229 = arith.mulf %227, %228 : vector<1x1xf32>
    %cst_85 = arith.constant 9.99999974E-6 : f32
    %230 = vector.broadcast %cst_85 : f32 to vector<1x1xf32>
    %231 = arith.addf %229, %230 : vector<1x1xf32>
    %232 = math.rsqrt %231 : vector<1x1xf32>
    %233 = vector.broadcast %232 : vector<1x1xf32> to vector<16x160xf32>
    %234 = arith.mulf %222, %233 : vector<16x160xf32>
    %cst_86 = arith.constant dense<0xFF800000> : vector<16xf32>
    %235 = vector.multi_reduction <maximumf>, %234, %cst_86 [1] : vector<16x160xf32> to vector<16xf32>
    %236 = vector.shape_cast %235 : vector<16xf32> to vector<16x1xf32>
    %237 = vector.broadcast %236 : vector<16x1xf32> to vector<16x160xf32>
    %238 = arith.subf %234, %237 : vector<16x160xf32>
    %239 = math.exp %238 : vector<16x160xf32>
    %cst_87 = arith.constant dense<0.000000e+00> : vector<16xf32>
    %240 = vector.multi_reduction <add>, %239, %cst_87 [1] : vector<16x160xf32> to vector<16xf32>
    %241 = vector.shape_cast %240 : vector<16xf32> to vector<16x1xf32>
    %242 = tpu.reciprocal %241 {approx = true} : vector<16x1xf32> -> vector<16x1xf32>
    %243 = vector.broadcast %242 : vector<16x1xf32> to vector<16x160xf32>
    %244 = arith.mulf %239, %243 : vector<16x160xf32>
    %245 = arith.truncf %244 : vector<16x160xf32> to vector<16x160xbf16>
    %cst_88 = arith.constant dense<0.000000e+00> : vector<16x8xf32>
    %246 = tpu.matmul %245, %210, %cst_88 {dimension_numbers = #tpu.dot_dimension_numbers<[1], [1], [0], [0], [0, 0, 1, 0], [], []>} : vector<16x160xbf16>, vector<8x160xbf16>, vector<16x8xf32> -> vector<16x8xf32>
    %247 = arith.addf %105, %246 : vector<16x8xf32>
    %248 = vector.extract_strided_slice %213 {offsets = [16, 0], sizes = [32, 160], strides = [1, 1]} : vector<160x160xf32> to vector<32x160xf32>
    %cst_89 = arith.constant dense<0.000000e+00> : vector<32xf32>
    %249 = vector.multi_reduction <add>, %248, %cst_89 [1] : vector<32x160xf32> to vector<32xf32>
    %250 = vector.shape_cast %249 : vector<32xf32> to vector<32x1xf32>
    %cst_90 = arith.constant dense<0.000000e+00> : vector<1xf32>
    %251 = vector.multi_reduction <add>, %250, %cst_90 [0] : vector<32x1xf32> to vector<1xf32>
    %252 = vector.shape_cast %251 : vector<1xf32> to vector<1x1xf32>
    %cst_91 = arith.constant 1.95312503E-4 : f32
    %253 = vector.broadcast %cst_91 : f32 to vector<1x1xf32>
    %254 = arith.mulf %252, %253 : vector<1x1xf32>
    %255 = vector.broadcast %254 : vector<1x1xf32> to vector<32x160xf32>
    %256 = arith.subf %248, %255 : vector<32x160xf32>
    %257 = arith.mulf %256, %256 : vector<32x160xf32>
    %cst_92 = arith.constant dense<0.000000e+00> : vector<32xf32>
    %258 = vector.multi_reduction <add>, %257, %cst_92 [1] : vector<32x160xf32> to vector<32xf32>
    %259 = vector.shape_cast %258 : vector<32xf32> to vector<32x1xf32>
    %cst_93 = arith.constant dense<0.000000e+00> : vector<1xf32>
    %260 = vector.multi_reduction <add>, %259, %cst_93 [0] : vector<32x1xf32> to vector<1xf32>
    %261 = vector.shape_cast %260 : vector<1xf32> to vector<1x1xf32>
    %cst_94 = arith.constant 1.95312503E-4 : f32
    %262 = vector.broadcast %cst_94 : f32 to vector<1x1xf32>
    %263 = arith.mulf %261, %262 : vector<1x1xf32>
    %cst_95 = arith.constant 9.99999974E-6 : f32
    %264 = vector.broadcast %cst_95 : f32 to vector<1x1xf32>
    %265 = arith.addf %263, %264 : vector<1x1xf32>
    %266 = math.rsqrt %265 : vector<1x1xf32>
    %267 = vector.broadcast %266 : vector<1x1xf32> to vector<32x160xf32>
    %268 = arith.mulf %256, %267 : vector<32x160xf32>
    %cst_96 = arith.constant dense<0xFF800000> : vector<32xf32>
    %269 = vector.multi_reduction <maximumf>, %268, %cst_96 [1] : vector<32x160xf32> to vector<32xf32>
    %270 = vector.shape_cast %269 : vector<32xf32> to vector<32x1xf32>
    %271 = vector.broadcast %270 : vector<32x1xf32> to vector<32x160xf32>
    %272 = arith.subf %268, %271 : vector<32x160xf32>
    %273 = math.exp %272 : vector<32x160xf32>
    %cst_97 = arith.constant dense<0.000000e+00> : vector<32xf32>
    %274 = vector.multi_reduction <add>, %273, %cst_97 [1] : vector<32x160xf32> to vector<32xf32>
    %275 = vector.shape_cast %274 : vector<32xf32> to vector<32x1xf32>
    %276 = tpu.reciprocal %275 {approx = true} : vector<32x1xf32> -> vector<32x1xf32>
    %277 = vector.broadcast %276 : vector<32x1xf32> to vector<32x160xf32>
    %278 = arith.mulf %273, %277 : vector<32x160xf32>
    %279 = arith.truncf %278 : vector<32x160xf32> to vector<32x160xbf16>
    %cst_98 = arith.constant dense<0.000000e+00> : vector<32x8xf32>
    %280 = tpu.matmul %279, %210, %cst_98 {dimension_numbers = #tpu.dot_dimension_numbers<[1], [1], [0], [0], [0, 0, 1, 0], [], []>} : vector<32x160xbf16>, vector<8x160xbf16>, vector<32x8xf32> -> vector<32x8xf32>
    %281 = arith.addf %139, %280 : vector<32x8xf32>
    %282 = vector.extract_strided_slice %213 {offsets = [48, 0], sizes = [48, 160], strides = [1, 1]} : vector<160x160xf32> to vector<48x160xf32>
    %cst_99 = arith.constant dense<0.000000e+00> : vector<48xf32>
    %283 = vector.multi_reduction <add>, %282, %cst_99 [1] : vector<48x160xf32> to vector<48xf32>
    %284 = vector.shape_cast %283 : vector<48xf32> to vector<48x1xf32>
    %cst_100 = arith.constant dense<0.000000e+00> : vector<1xf32>
    %285 = vector.multi_reduction <add>, %284, %cst_100 [0] : vector<48x1xf32> to vector<1xf32>
    %286 = vector.shape_cast %285 : vector<1xf32> to vector<1x1xf32>
    %cst_101 = arith.constant 1.3020834E-4 : f32
    %287 = vector.broadcast %cst_101 : f32 to vector<1x1xf32>
    %288 = arith.mulf %286, %287 : vector<1x1xf32>
    %289 = vector.broadcast %288 : vector<1x1xf32> to vector<48x160xf32>
    %290 = arith.subf %282, %289 : vector<48x160xf32>
    %291 = arith.mulf %290, %290 : vector<48x160xf32>
    %cst_102 = arith.constant dense<0.000000e+00> : vector<48xf32>
    %292 = vector.multi_reduction <add>, %291, %cst_102 [1] : vector<48x160xf32> to vector<48xf32>
    %293 = vector.shape_cast %292 : vector<48xf32> to vector<48x1xf32>
    %cst_103 = arith.constant dense<0.000000e+00> : vector<1xf32>
    %294 = vector.multi_reduction <add>, %293, %cst_103 [0] : vector<48x1xf32> to vector<1xf32>
    %295 = vector.shape_cast %294 : vector<1xf32> to vector<1x1xf32>
    %cst_104 = arith.constant 1.3020834E-4 : f32
    %296 = vector.broadcast %cst_104 : f32 to vector<1x1xf32>
    %297 = arith.mulf %295, %296 : vector<1x1xf32>
    %cst_105 = arith.constant 9.99999974E-6 : f32
    %298 = vector.broadcast %cst_105 : f32 to vector<1x1xf32>
    %299 = arith.addf %297, %298 : vector<1x1xf32>
    %300 = math.rsqrt %299 : vector<1x1xf32>
    %301 = vector.broadcast %300 : vector<1x1xf32> to vector<48x160xf32>
    %302 = arith.mulf %290, %301 : vector<48x160xf32>
    %cst_106 = arith.constant dense<0xFF800000> : vector<48xf32>
    %303 = vector.multi_reduction <maximumf>, %302, %cst_106 [1] : vector<48x160xf32> to vector<48xf32>
    %304 = vector.shape_cast %303 : vector<48xf32> to vector<48x1xf32>
    %305 = vector.broadcast %304 : vector<48x1xf32> to vector<48x160xf32>
    %306 = arith.subf %302, %305 : vector<48x160xf32>
    %307 = math.exp %306 : vector<48x160xf32>
    %cst_107 = arith.constant dense<0.000000e+00> : vector<48xf32>
    %308 = vector.multi_reduction <add>, %307, %cst_107 [1] : vector<48x160xf32> to vector<48xf32>
    %309 = vector.shape_cast %308 : vector<48xf32> to vector<48x1xf32>
    %310 = tpu.reciprocal %309 {approx = true} : vector<48x1xf32> -> vector<48x1xf32>
    %311 = vector.broadcast %310 : vector<48x1xf32> to vector<48x160xf32>
    %312 = arith.mulf %307, %311 : vector<48x160xf32>
    %313 = arith.truncf %312 : vector<48x160xf32> to vector<48x160xbf16>
    %cst_108 = arith.constant dense<0.000000e+00> : vector<48x8xf32>
    %314 = tpu.matmul %313, %210, %cst_108 {dimension_numbers = #tpu.dot_dimension_numbers<[1], [1], [0], [0], [0, 0, 1, 0], [], []>} : vector<48x160xbf16>, vector<8x160xbf16>, vector<48x8xf32> -> vector<48x8xf32>
    %315 = arith.addf %173, %314 : vector<48x8xf32>
    %316 = vector.extract_strided_slice %213 {offsets = [96, 0], sizes = [64, 160], strides = [1, 1]} : vector<160x160xf32> to vector<64x160xf32>
    %cst_109 = arith.constant dense<0.000000e+00> : vector<64xf32>
    %317 = vector.multi_reduction <add>, %316, %cst_109 [1] : vector<64x160xf32> to vector<64xf32>
    %318 = vector.shape_cast %317 : vector<64xf32> to vector<64x1xf32>
    %cst_110 = arith.constant dense<0.000000e+00> : vector<1xf32>
    %319 = vector.multi_reduction <add>, %318, %cst_110 [0] : vector<64x1xf32> to vector<1xf32>
    %320 = vector.shape_cast %319 : vector<1xf32> to vector<1x1xf32>
    %cst_111 = arith.constant 9.76562514E-5 : f32
    %321 = vector.broadcast %cst_111 : f32 to vector<1x1xf32>
    %322 = arith.mulf %320, %321 : vector<1x1xf32>
    %323 = vector.broadcast %322 : vector<1x1xf32> to vector<64x160xf32>
    %324 = arith.subf %316, %323 : vector<64x160xf32>
    %325 = arith.mulf %324, %324 : vector<64x160xf32>
    %cst_112 = arith.constant dense<0.000000e+00> : vector<64xf32>
    %326 = vector.multi_reduction <add>, %325, %cst_112 [1] : vector<64x160xf32> to vector<64xf32>
    %327 = vector.shape_cast %326 : vector<64xf32> to vector<64x1xf32>
    %cst_113 = arith.constant dense<0.000000e+00> : vector<1xf32>
    %328 = vector.multi_reduction <add>, %327, %cst_113 [0] : vector<64x1xf32> to vector<1xf32>
    %329 = vector.shape_cast %328 : vector<1xf32> to vector<1x1xf32>
    %cst_114 = arith.constant 9.76562514E-5 : f32
    %330 = vector.broadcast %cst_114 : f32 to vector<1x1xf32>
    %331 = arith.mulf %329, %330 : vector<1x1xf32>
    %cst_115 = arith.constant 9.99999974E-6 : f32
    %332 = vector.broadcast %cst_115 : f32 to vector<1x1xf32>
    %333 = arith.addf %331, %332 : vector<1x1xf32>
    %334 = math.rsqrt %333 : vector<1x1xf32>
    %335 = vector.broadcast %334 : vector<1x1xf32> to vector<64x160xf32>
    %336 = arith.mulf %324, %335 : vector<64x160xf32>
    %cst_116 = arith.constant dense<0xFF800000> : vector<64xf32>
    %337 = vector.multi_reduction <maximumf>, %336, %cst_116 [1] : vector<64x160xf32> to vector<64xf32>
    %338 = vector.shape_cast %337 : vector<64xf32> to vector<64x1xf32>
    %339 = vector.broadcast %338 : vector<64x1xf32> to vector<64x160xf32>
    %340 = arith.subf %336, %339 : vector<64x160xf32>
    %341 = math.exp %340 : vector<64x160xf32>
    %cst_117 = arith.constant dense<0.000000e+00> : vector<64xf32>
    %342 = vector.multi_reduction <add>, %341, %cst_117 [1] : vector<64x160xf32> to vector<64xf32>
    %343 = vector.shape_cast %342 : vector<64xf32> to vector<64x1xf32>
    %344 = tpu.reciprocal %343 {approx = true} : vector<64x1xf32> -> vector<64x1xf32>
    %345 = vector.broadcast %344 : vector<64x1xf32> to vector<64x160xf32>
    %346 = arith.mulf %341, %345 : vector<64x160xf32>
    %347 = arith.truncf %346 : vector<64x160xf32> to vector<64x160xbf16>
    %cst_118 = arith.constant dense<0.000000e+00> : vector<64x8xf32>
    %348 = tpu.matmul %347, %210, %cst_118 {dimension_numbers = #tpu.dot_dimension_numbers<[1], [1], [0], [0], [0, 0, 1, 0], [], []>} : vector<64x160xbf16>, vector<8x160xbf16>, vector<64x8xf32> -> vector<64x8xf32>
    %349 = arith.addf %207, %348 : vector<64x8xf32>
    %350 = vector.extract_strided_slice %57 {offsets = [0, 512], sizes = [8, 160], strides = [1, 1]} : vector<8x1024xbf16> to vector<8x160xbf16>
    %351 = vector.extract_strided_slice %61 {offsets = [0, 1024], sizes = [8, 160], strides = [1, 1]} : vector<8x2048xbf16> to vector<8x160xbf16>
    %352 = vector.extract_strided_slice %61 {offsets = [0, 1280], sizes = [8, 160], strides = [1, 1]} : vector<8x2048xbf16> to vector<8x160xbf16>
    %cst_119 = arith.constant dense<0.000000e+00> : vector<160x160xf32>
    %353 = tpu.matmul %350, %351, %cst_119 {dimension_numbers = #tpu.dot_dimension_numbers<[0], [0], [1], [1], [0, 1, 1, 1], [], []>} : vector<8x160xbf16>, vector<8x160xbf16>, vector<160x160xf32> -> vector<160x160xf32>
    %cst_120 = arith.constant 0.0790569409 : f32
    %354 = vector.broadcast %cst_120 : f32 to vector<160x160xf32>
    %355 = arith.mulf %353, %354 : vector<160x160xf32>
    %356 = vector.extract_strided_slice %355 {offsets = [0, 0], sizes = [16, 160], strides = [1, 1]} : vector<160x160xf32> to vector<16x160xf32>
    %cst_121 = arith.constant dense<0.000000e+00> : vector<16xf32>
    %357 = vector.multi_reduction <add>, %356, %cst_121 [1] : vector<16x160xf32> to vector<16xf32>
    %358 = vector.shape_cast %357 : vector<16xf32> to vector<16x1xf32>
    %cst_122 = arith.constant dense<0.000000e+00> : vector<1xf32>
    %359 = vector.multi_reduction <add>, %358, %cst_122 [0] : vector<16x1xf32> to vector<1xf32>
    %360 = vector.shape_cast %359 : vector<1xf32> to vector<1x1xf32>
    %cst_123 = arith.constant 3.906250e-04 : f32
    %361 = vector.broadcast %cst_123 : f32 to vector<1x1xf32>
    %362 = arith.mulf %360, %361 : vector<1x1xf32>
    %363 = vector.broadcast %362 : vector<1x1xf32> to vector<16x160xf32>
    %364 = arith.subf %356, %363 : vector<16x160xf32>
    %365 = arith.mulf %364, %364 : vector<16x160xf32>
    %cst_124 = arith.constant dense<0.000000e+00> : vector<16xf32>
    %366 = vector.multi_reduction <add>, %365, %cst_124 [1] : vector<16x160xf32> to vector<16xf32>
    %367 = vector.shape_cast %366 : vector<16xf32> to vector<16x1xf32>
    %cst_125 = arith.constant dense<0.000000e+00> : vector<1xf32>
    %368 = vector.multi_reduction <add>, %367, %cst_125 [0] : vector<16x1xf32> to vector<1xf32>
    %369 = vector.shape_cast %368 : vector<1xf32> to vector<1x1xf32>
    %cst_126 = arith.constant 3.906250e-04 : f32
    %370 = vector.broadcast %cst_126 : f32 to vector<1x1xf32>
    %371 = arith.mulf %369, %370 : vector<1x1xf32>
    %cst_127 = arith.constant 9.99999974E-6 : f32
    %372 = vector.broadcast %cst_127 : f32 to vector<1x1xf32>
    %373 = arith.addf %371, %372 : vector<1x1xf32>
    %374 = math.rsqrt %373 : vector<1x1xf32>
    %375 = vector.broadcast %374 : vector<1x1xf32> to vector<16x160xf32>
    %376 = arith.mulf %364, %375 : vector<16x160xf32>
    %cst_128 = arith.constant dense<0xFF800000> : vector<16xf32>
    %377 = vector.multi_reduction <maximumf>, %376, %cst_128 [1] : vector<16x160xf32> to vector<16xf32>
    %378 = vector.shape_cast %377 : vector<16xf32> to vector<16x1xf32>
    %379 = vector.broadcast %378 : vector<16x1xf32> to vector<16x160xf32>
    %380 = arith.subf %376, %379 : vector<16x160xf32>
    %381 = math.exp %380 : vector<16x160xf32>
    %cst_129 = arith.constant dense<0.000000e+00> : vector<16xf32>
    %382 = vector.multi_reduction <add>, %381, %cst_129 [1] : vector<16x160xf32> to vector<16xf32>
    %383 = vector.shape_cast %382 : vector<16xf32> to vector<16x1xf32>
    %384 = tpu.reciprocal %383 {approx = true} : vector<16x1xf32> -> vector<16x1xf32>
    %385 = vector.broadcast %384 : vector<16x1xf32> to vector<16x160xf32>
    %386 = arith.mulf %381, %385 : vector<16x160xf32>
    %387 = arith.truncf %386 : vector<16x160xf32> to vector<16x160xbf16>
    %cst_130 = arith.constant dense<0.000000e+00> : vector<16x8xf32>
    %388 = tpu.matmul %387, %352, %cst_130 {dimension_numbers = #tpu.dot_dimension_numbers<[1], [1], [0], [0], [0, 0, 1, 0], [], []>} : vector<16x160xbf16>, vector<8x160xbf16>, vector<16x8xf32> -> vector<16x8xf32>
    %389 = arith.addf %247, %388 : vector<16x8xf32>
    %390 = vector.extract_strided_slice %355 {offsets = [16, 0], sizes = [32, 160], strides = [1, 1]} : vector<160x160xf32> to vector<32x160xf32>
    %cst_131 = arith.constant dense<0.000000e+00> : vector<32xf32>
    %391 = vector.multi_reduction <add>, %390, %cst_131 [1] : vector<32x160xf32> to vector<32xf32>
    %392 = vector.shape_cast %391 : vector<32xf32> to vector<32x1xf32>
    %cst_132 = arith.constant dense<0.000000e+00> : vector<1xf32>
    %393 = vector.multi_reduction <add>, %392, %cst_132 [0] : vector<32x1xf32> to vector<1xf32>
    %394 = vector.shape_cast %393 : vector<1xf32> to vector<1x1xf32>
    %cst_133 = arith.constant 1.95312503E-4 : f32
    %395 = vector.broadcast %cst_133 : f32 to vector<1x1xf32>
    %396 = arith.mulf %394, %395 : vector<1x1xf32>
    %397 = vector.broadcast %396 : vector<1x1xf32> to vector<32x160xf32>
    %398 = arith.subf %390, %397 : vector<32x160xf32>
    %399 = arith.mulf %398, %398 : vector<32x160xf32>
    %cst_134 = arith.constant dense<0.000000e+00> : vector<32xf32>
    %400 = vector.multi_reduction <add>, %399, %cst_134 [1] : vector<32x160xf32> to vector<32xf32>
    %401 = vector.shape_cast %400 : vector<32xf32> to vector<32x1xf32>
    %cst_135 = arith.constant dense<0.000000e+00> : vector<1xf32>
    %402 = vector.multi_reduction <add>, %401, %cst_135 [0] : vector<32x1xf32> to vector<1xf32>
    %403 = vector.shape_cast %402 : vector<1xf32> to vector<1x1xf32>
    %cst_136 = arith.constant 1.95312503E-4 : f32
    %404 = vector.broadcast %cst_136 : f32 to vector<1x1xf32>
    %405 = arith.mulf %403, %404 : vector<1x1xf32>
    %cst_137 = arith.constant 9.99999974E-6 : f32
    %406 = vector.broadcast %cst_137 : f32 to vector<1x1xf32>
    %407 = arith.addf %405, %406 : vector<1x1xf32>
    %408 = math.rsqrt %407 : vector<1x1xf32>
    %409 = vector.broadcast %408 : vector<1x1xf32> to vector<32x160xf32>
    %410 = arith.mulf %398, %409 : vector<32x160xf32>
    %cst_138 = arith.constant dense<0xFF800000> : vector<32xf32>
    %411 = vector.multi_reduction <maximumf>, %410, %cst_138 [1] : vector<32x160xf32> to vector<32xf32>
    %412 = vector.shape_cast %411 : vector<32xf32> to vector<32x1xf32>
    %413 = vector.broadcast %412 : vector<32x1xf32> to vector<32x160xf32>
    %414 = arith.subf %410, %413 : vector<32x160xf32>
    %415 = math.exp %414 : vector<32x160xf32>
    %cst_139 = arith.constant dense<0.000000e+00> : vector<32xf32>
    %416 = vector.multi_reduction <add>, %415, %cst_139 [1] : vector<32x160xf32> to vector<32xf32>
    %417 = vector.shape_cast %416 : vector<32xf32> to vector<32x1xf32>
    %418 = tpu.reciprocal %417 {approx = true} : vector<32x1xf32> -> vector<32x1xf32>
    %419 = vector.broadcast %418 : vector<32x1xf32> to vector<32x160xf32>
    %420 = arith.mulf %415, %419 : vector<32x160xf32>
    %421 = arith.truncf %420 : vector<32x160xf32> to vector<32x160xbf16>
    %cst_140 = arith.constant dense<0.000000e+00> : vector<32x8xf32>
    %422 = tpu.matmul %421, %352, %cst_140 {dimension_numbers = #tpu.dot_dimension_numbers<[1], [1], [0], [0], [0, 0, 1, 0], [], []>} : vector<32x160xbf16>, vector<8x160xbf16>, vector<32x8xf32> -> vector<32x8xf32>
    %423 = arith.addf %281, %422 : vector<32x8xf32>
    %424 = vector.extract_strided_slice %355 {offsets = [48, 0], sizes = [48, 160], strides = [1, 1]} : vector<160x160xf32> to vector<48x160xf32>
    %cst_141 = arith.constant dense<0.000000e+00> : vector<48xf32>
    %425 = vector.multi_reduction <add>, %424, %cst_141 [1] : vector<48x160xf32> to vector<48xf32>
    %426 = vector.shape_cast %425 : vector<48xf32> to vector<48x1xf32>
    %cst_142 = arith.constant dense<0.000000e+00> : vector<1xf32>
    %427 = vector.multi_reduction <add>, %426, %cst_142 [0] : vector<48x1xf32> to vector<1xf32>
    %428 = vector.shape_cast %427 : vector<1xf32> to vector<1x1xf32>
    %cst_143 = arith.constant 1.3020834E-4 : f32
    %429 = vector.broadcast %cst_143 : f32 to vector<1x1xf32>
    %430 = arith.mulf %428, %429 : vector<1x1xf32>
    %431 = vector.broadcast %430 : vector<1x1xf32> to vector<48x160xf32>
    %432 = arith.subf %424, %431 : vector<48x160xf32>
    %433 = arith.mulf %432, %432 : vector<48x160xf32>
    %cst_144 = arith.constant dense<0.000000e+00> : vector<48xf32>
    %434 = vector.multi_reduction <add>, %433, %cst_144 [1] : vector<48x160xf32> to vector<48xf32>
    %435 = vector.shape_cast %434 : vector<48xf32> to vector<48x1xf32>
    %cst_145 = arith.constant dense<0.000000e+00> : vector<1xf32>
    %436 = vector.multi_reduction <add>, %435, %cst_145 [0] : vector<48x1xf32> to vector<1xf32>
    %437 = vector.shape_cast %436 : vector<1xf32> to vector<1x1xf32>
    %cst_146 = arith.constant 1.3020834E-4 : f32
    %438 = vector.broadcast %cst_146 : f32 to vector<1x1xf32>
    %439 = arith.mulf %437, %438 : vector<1x1xf32>
    %cst_147 = arith.constant 9.99999974E-6 : f32
    %440 = vector.broadcast %cst_147 : f32 to vector<1x1xf32>
    %441 = arith.addf %439, %440 : vector<1x1xf32>
    %442 = math.rsqrt %441 : vector<1x1xf32>
    %443 = vector.broadcast %442 : vector<1x1xf32> to vector<48x160xf32>
    %444 = arith.mulf %432, %443 : vector<48x160xf32>
    %cst_148 = arith.constant dense<0xFF800000> : vector<48xf32>
    %445 = vector.multi_reduction <maximumf>, %444, %cst_148 [1] : vector<48x160xf32> to vector<48xf32>
    %446 = vector.shape_cast %445 : vector<48xf32> to vector<48x1xf32>
    %447 = vector.broadcast %446 : vector<48x1xf32> to vector<48x160xf32>
    %448 = arith.subf %444, %447 : vector<48x160xf32>
    %449 = math.exp %448 : vector<48x160xf32>
    %cst_149 = arith.constant dense<0.000000e+00> : vector<48xf32>
    %450 = vector.multi_reduction <add>, %449, %cst_149 [1] : vector<48x160xf32> to vector<48xf32>
    %451 = vector.shape_cast %450 : vector<48xf32> to vector<48x1xf32>
    %452 = tpu.reciprocal %451 {approx = true} : vector<48x1xf32> -> vector<48x1xf32>
    %453 = vector.broadcast %452 : vector<48x1xf32> to vector<48x160xf32>
    %454 = arith.mulf %449, %453 : vector<48x160xf32>
    %455 = arith.truncf %454 : vector<48x160xf32> to vector<48x160xbf16>
    %cst_150 = arith.constant dense<0.000000e+00> : vector<48x8xf32>
    %456 = tpu.matmul %455, %352, %cst_150 {dimension_numbers = #tpu.dot_dimension_numbers<[1], [1], [0], [0], [0, 0, 1, 0], [], []>} : vector<48x160xbf16>, vector<8x160xbf16>, vector<48x8xf32> -> vector<48x8xf32>
    %457 = arith.addf %315, %456 : vector<48x8xf32>
    %458 = vector.extract_strided_slice %355 {offsets = [96, 0], sizes = [64, 160], strides = [1, 1]} : vector<160x160xf32> to vector<64x160xf32>
    %cst_151 = arith.constant dense<0.000000e+00> : vector<64xf32>
    %459 = vector.multi_reduction <add>, %458, %cst_151 [1] : vector<64x160xf32> to vector<64xf32>
    %460 = vector.shape_cast %459 : vector<64xf32> to vector<64x1xf32>
    %cst_152 = arith.constant dense<0.000000e+00> : vector<1xf32>
    %461 = vector.multi_reduction <add>, %460, %cst_152 [0] : vector<64x1xf32> to vector<1xf32>
    %462 = vector.shape_cast %461 : vector<1xf32> to vector<1x1xf32>
    %cst_153 = arith.constant 9.76562514E-5 : f32
    %463 = vector.broadcast %cst_153 : f32 to vector<1x1xf32>
    %464 = arith.mulf %462, %463 : vector<1x1xf32>
    %465 = vector.broadcast %464 : vector<1x1xf32> to vector<64x160xf32>
    %466 = arith.subf %458, %465 : vector<64x160xf32>
    %467 = arith.mulf %466, %466 : vector<64x160xf32>
    %cst_154 = arith.constant dense<0.000000e+00> : vector<64xf32>
    %468 = vector.multi_reduction <add>, %467, %cst_154 [1] : vector<64x160xf32> to vector<64xf32>
    %469 = vector.shape_cast %468 : vector<64xf32> to vector<64x1xf32>
    %cst_155 = arith.constant dense<0.000000e+00> : vector<1xf32>
    %470 = vector.multi_reduction <add>, %469, %cst_155 [0] : vector<64x1xf32> to vector<1xf32>
    %471 = vector.shape_cast %470 : vector<1xf32> to vector<1x1xf32>
    %cst_156 = arith.constant 9.76562514E-5 : f32
    %472 = vector.broadcast %cst_156 : f32 to vector<1x1xf32>
    %473 = arith.mulf %471, %472 : vector<1x1xf32>
    %cst_157 = arith.constant 9.99999974E-6 : f32
    %474 = vector.broadcast %cst_157 : f32 to vector<1x1xf32>
    %475 = arith.addf %473, %474 : vector<1x1xf32>
    %476 = math.rsqrt %475 : vector<1x1xf32>
    %477 = vector.broadcast %476 : vector<1x1xf32> to vector<64x160xf32>
    %478 = arith.mulf %466, %477 : vector<64x160xf32>
    %cst_158 = arith.constant dense<0xFF800000> : vector<64xf32>
    %479 = vector.multi_reduction <maximumf>, %478, %cst_158 [1] : vector<64x160xf32> to vector<64xf32>
    %480 = vector.shape_cast %479 : vector<64xf32> to vector<64x1xf32>
    %481 = vector.broadcast %480 : vector<64x1xf32> to vector<64x160xf32>
    %482 = arith.subf %478, %481 : vector<64x160xf32>
    %483 = math.exp %482 : vector<64x160xf32>
    %cst_159 = arith.constant dense<0.000000e+00> : vector<64xf32>
    %484 = vector.multi_reduction <add>, %483, %cst_159 [1] : vector<64x160xf32> to vector<64xf32>
    %485 = vector.shape_cast %484 : vector<64xf32> to vector<64x1xf32>
    %486 = tpu.reciprocal %485 {approx = true} : vector<64x1xf32> -> vector<64x1xf32>
    %487 = vector.broadcast %486 : vector<64x1xf32> to vector<64x160xf32>
    %488 = arith.mulf %483, %487 : vector<64x160xf32>
    %489 = arith.truncf %488 : vector<64x160xf32> to vector<64x160xbf16>
    %cst_160 = arith.constant dense<0.000000e+00> : vector<64x8xf32>
    %490 = tpu.matmul %489, %352, %cst_160 {dimension_numbers = #tpu.dot_dimension_numbers<[1], [1], [0], [0], [0, 0, 1, 0], [], []>} : vector<64x160xbf16>, vector<8x160xbf16>, vector<64x8xf32> -> vector<64x8xf32>
    %491 = arith.addf %349, %490 : vector<64x8xf32>
    %492 = vector.extract_strided_slice %57 {offsets = [0, 768], sizes = [8, 160], strides = [1, 1]} : vector<8x1024xbf16> to vector<8x160xbf16>
    %493 = vector.extract_strided_slice %61 {offsets = [0, 1536], sizes = [8, 160], strides = [1, 1]} : vector<8x2048xbf16> to vector<8x160xbf16>
    %494 = vector.extract_strided_slice %61 {offsets = [0, 1792], sizes = [8, 160], strides = [1, 1]} : vector<8x2048xbf16> to vector<8x160xbf16>
    %cst_161 = arith.constant dense<0.000000e+00> : vector<160x160xf32>
    %495 = tpu.matmul %492, %493, %cst_161 {dimension_numbers = #tpu.dot_dimension_numbers<[0], [0], [1], [1], [0, 1, 1, 1], [], []>} : vector<8x160xbf16>, vector<8x160xbf16>, vector<160x160xf32> -> vector<160x160xf32>
    %cst_162 = arith.constant 0.0790569409 : f32
    %496 = vector.broadcast %cst_162 : f32 to vector<160x160xf32>
    %497 = arith.mulf %495, %496 : vector<160x160xf32>
    %498 = vector.extract_strided_slice %497 {offsets = [0, 0], sizes = [16, 160], strides = [1, 1]} : vector<160x160xf32> to vector<16x160xf32>
    %cst_163 = arith.constant dense<0.000000e+00> : vector<16xf32>
    %499 = vector.multi_reduction <add>, %498, %cst_163 [1] : vector<16x160xf32> to vector<16xf32>
    %500 = vector.shape_cast %499 : vector<16xf32> to vector<16x1xf32>
    %cst_164 = arith.constant dense<0.000000e+00> : vector<1xf32>
    %501 = vector.multi_reduction <add>, %500, %cst_164 [0] : vector<16x1xf32> to vector<1xf32>
    %502 = vector.shape_cast %501 : vector<1xf32> to vector<1x1xf32>
    %cst_165 = arith.constant 3.906250e-04 : f32
    %503 = vector.broadcast %cst_165 : f32 to vector<1x1xf32>
    %504 = arith.mulf %502, %503 : vector<1x1xf32>
    %505 = vector.broadcast %504 : vector<1x1xf32> to vector<16x160xf32>
    %506 = arith.subf %498, %505 : vector<16x160xf32>
    %507 = arith.mulf %506, %506 : vector<16x160xf32>
    %cst_166 = arith.constant dense<0.000000e+00> : vector<16xf32>
    %508 = vector.multi_reduction <add>, %507, %cst_166 [1] : vector<16x160xf32> to vector<16xf32>
    %509 = vector.shape_cast %508 : vector<16xf32> to vector<16x1xf32>
    %cst_167 = arith.constant dense<0.000000e+00> : vector<1xf32>
    %510 = vector.multi_reduction <add>, %509, %cst_167 [0] : vector<16x1xf32> to vector<1xf32>
    %511 = vector.shape_cast %510 : vector<1xf32> to vector<1x1xf32>
    %cst_168 = arith.constant 3.906250e-04 : f32
    %512 = vector.broadcast %cst_168 : f32 to vector<1x1xf32>
    %513 = arith.mulf %511, %512 : vector<1x1xf32>
    %cst_169 = arith.constant 9.99999974E-6 : f32
    %514 = vector.broadcast %cst_169 : f32 to vector<1x1xf32>
    %515 = arith.addf %513, %514 : vector<1x1xf32>
    %516 = math.rsqrt %515 : vector<1x1xf32>
    %517 = vector.broadcast %516 : vector<1x1xf32> to vector<16x160xf32>
    %518 = arith.mulf %506, %517 : vector<16x160xf32>
    %cst_170 = arith.constant dense<0xFF800000> : vector<16xf32>
    %519 = vector.multi_reduction <maximumf>, %518, %cst_170 [1] : vector<16x160xf32> to vector<16xf32>
    %520 = vector.shape_cast %519 : vector<16xf32> to vector<16x1xf32>
    %521 = vector.broadcast %520 : vector<16x1xf32> to vector<16x160xf32>
    %522 = arith.subf %518, %521 : vector<16x160xf32>
    %523 = math.exp %522 : vector<16x160xf32>
    %cst_171 = arith.constant dense<0.000000e+00> : vector<16xf32>
    %524 = vector.multi_reduction <add>, %523, %cst_171 [1] : vector<16x160xf32> to vector<16xf32>
    %525 = vector.shape_cast %524 : vector<16xf32> to vector<16x1xf32>
    %526 = tpu.reciprocal %525 {approx = true} : vector<16x1xf32> -> vector<16x1xf32>
    %527 = vector.broadcast %526 : vector<16x1xf32> to vector<16x160xf32>
    %528 = arith.mulf %523, %527 : vector<16x160xf32>
    %529 = arith.truncf %528 : vector<16x160xf32> to vector<16x160xbf16>
    %cst_172 = arith.constant dense<0.000000e+00> : vector<16x8xf32>
    %530 = tpu.matmul %529, %494, %cst_172 {dimension_numbers = #tpu.dot_dimension_numbers<[1], [1], [0], [0], [0, 0, 1, 0], [], []>} : vector<16x160xbf16>, vector<8x160xbf16>, vector<16x8xf32> -> vector<16x8xf32>
    %531 = arith.addf %389, %530 : vector<16x8xf32>
    %532 = vector.extract_strided_slice %497 {offsets = [16, 0], sizes = [32, 160], strides = [1, 1]} : vector<160x160xf32> to vector<32x160xf32>
    %cst_173 = arith.constant dense<0.000000e+00> : vector<32xf32>
    %533 = vector.multi_reduction <add>, %532, %cst_173 [1] : vector<32x160xf32> to vector<32xf32>
    %534 = vector.shape_cast %533 : vector<32xf32> to vector<32x1xf32>
    %cst_174 = arith.constant dense<0.000000e+00> : vector<1xf32>
    %535 = vector.multi_reduction <add>, %534, %cst_174 [0] : vector<32x1xf32> to vector<1xf32>
    %536 = vector.shape_cast %535 : vector<1xf32> to vector<1x1xf32>
    %cst_175 = arith.constant 1.95312503E-4 : f32
    %537 = vector.broadcast %cst_175 : f32 to vector<1x1xf32>
    %538 = arith.mulf %536, %537 : vector<1x1xf32>
    %539 = vector.broadcast %538 : vector<1x1xf32> to vector<32x160xf32>
    %540 = arith.subf %532, %539 : vector<32x160xf32>
    %541 = arith.mulf %540, %540 : vector<32x160xf32>
    %cst_176 = arith.constant dense<0.000000e+00> : vector<32xf32>
    %542 = vector.multi_reduction <add>, %541, %cst_176 [1] : vector<32x160xf32> to vector<32xf32>
    %543 = vector.shape_cast %542 : vector<32xf32> to vector<32x1xf32>
    %cst_177 = arith.constant dense<0.000000e+00> : vector<1xf32>
    %544 = vector.multi_reduction <add>, %543, %cst_177 [0] : vector<32x1xf32> to vector<1xf32>
    %545 = vector.shape_cast %544 : vector<1xf32> to vector<1x1xf32>
    %cst_178 = arith.constant 1.95312503E-4 : f32
    %546 = vector.broadcast %cst_178 : f32 to vector<1x1xf32>
    %547 = arith.mulf %545, %546 : vector<1x1xf32>
    %cst_179 = arith.constant 9.99999974E-6 : f32
    %548 = vector.broadcast %cst_179 : f32 to vector<1x1xf32>
    %549 = arith.addf %547, %548 : vector<1x1xf32>
    %550 = math.rsqrt %549 : vector<1x1xf32>
    %551 = vector.broadcast %550 : vector<1x1xf32> to vector<32x160xf32>
    %552 = arith.mulf %540, %551 : vector<32x160xf32>
    %cst_180 = arith.constant dense<0xFF800000> : vector<32xf32>
    %553 = vector.multi_reduction <maximumf>, %552, %cst_180 [1] : vector<32x160xf32> to vector<32xf32>
    %554 = vector.shape_cast %553 : vector<32xf32> to vector<32x1xf32>
    %555 = vector.broadcast %554 : vector<32x1xf32> to vector<32x160xf32>
    %556 = arith.subf %552, %555 : vector<32x160xf32>
    %557 = math.exp %556 : vector<32x160xf32>
    %cst_181 = arith.constant dense<0.000000e+00> : vector<32xf32>
    %558 = vector.multi_reduction <add>, %557, %cst_181 [1] : vector<32x160xf32> to vector<32xf32>
    %559 = vector.shape_cast %558 : vector<32xf32> to vector<32x1xf32>
    %560 = tpu.reciprocal %559 {approx = true} : vector<32x1xf32> -> vector<32x1xf32>
    %561 = vector.broadcast %560 : vector<32x1xf32> to vector<32x160xf32>
    %562 = arith.mulf %557, %561 : vector<32x160xf32>
    %563 = arith.truncf %562 : vector<32x160xf32> to vector<32x160xbf16>
    %cst_182 = arith.constant dense<0.000000e+00> : vector<32x8xf32>
    %564 = tpu.matmul %563, %494, %cst_182 {dimension_numbers = #tpu.dot_dimension_numbers<[1], [1], [0], [0], [0, 0, 1, 0], [], []>} : vector<32x160xbf16>, vector<8x160xbf16>, vector<32x8xf32> -> vector<32x8xf32>
    %565 = arith.addf %423, %564 : vector<32x8xf32>
    %566 = vector.extract_strided_slice %497 {offsets = [48, 0], sizes = [48, 160], strides = [1, 1]} : vector<160x160xf32> to vector<48x160xf32>
    %cst_183 = arith.constant dense<0.000000e+00> : vector<48xf32>
    %567 = vector.multi_reduction <add>, %566, %cst_183 [1] : vector<48x160xf32> to vector<48xf32>
    %568 = vector.shape_cast %567 : vector<48xf32> to vector<48x1xf32>
    %cst_184 = arith.constant dense<0.000000e+00> : vector<1xf32>
    %569 = vector.multi_reduction <add>, %568, %cst_184 [0] : vector<48x1xf32> to vector<1xf32>
    %570 = vector.shape_cast %569 : vector<1xf32> to vector<1x1xf32>
    %cst_185 = arith.constant 1.3020834E-4 : f32
    %571 = vector.broadcast %cst_185 : f32 to vector<1x1xf32>
    %572 = arith.mulf %570, %571 : vector<1x1xf32>
    %573 = vector.broadcast %572 : vector<1x1xf32> to vector<48x160xf32>
    %574 = arith.subf %566, %573 : vector<48x160xf32>
    %575 = arith.mulf %574, %574 : vector<48x160xf32>
    %cst_186 = arith.constant dense<0.000000e+00> : vector<48xf32>
    %576 = vector.multi_reduction <add>, %575, %cst_186 [1] : vector<48x160xf32> to vector<48xf32>
    %577 = vector.shape_cast %576 : vector<48xf32> to vector<48x1xf32>
    %cst_187 = arith.constant dense<0.000000e+00> : vector<1xf32>
    %578 = vector.multi_reduction <add>, %577, %cst_187 [0] : vector<48x1xf32> to vector<1xf32>
    %579 = vector.shape_cast %578 : vector<1xf32> to vector<1x1xf32>
    %cst_188 = arith.constant 1.3020834E-4 : f32
    %580 = vector.broadcast %cst_188 : f32 to vector<1x1xf32>
    %581 = arith.mulf %579, %580 : vector<1x1xf32>
    %cst_189 = arith.constant 9.99999974E-6 : f32
    %582 = vector.broadcast %cst_189 : f32 to vector<1x1xf32>
    %583 = arith.addf %581, %582 : vector<1x1xf32>
    %584 = math.rsqrt %583 : vector<1x1xf32>
    %585 = vector.broadcast %584 : vector<1x1xf32> to vector<48x160xf32>
    %586 = arith.mulf %574, %585 : vector<48x160xf32>
    %cst_190 = arith.constant dense<0xFF800000> : vector<48xf32>
    %587 = vector.multi_reduction <maximumf>, %586, %cst_190 [1] : vector<48x160xf32> to vector<48xf32>
    %588 = vector.shape_cast %587 : vector<48xf32> to vector<48x1xf32>
    %589 = vector.broadcast %588 : vector<48x1xf32> to vector<48x160xf32>
    %590 = arith.subf %586, %589 : vector<48x160xf32>
    %591 = math.exp %590 : vector<48x160xf32>
    %cst_191 = arith.constant dense<0.000000e+00> : vector<48xf32>
    %592 = vector.multi_reduction <add>, %591, %cst_191 [1] : vector<48x160xf32> to vector<48xf32>
    %593 = vector.shape_cast %592 : vector<48xf32> to vector<48x1xf32>
    %594 = tpu.reciprocal %593 {approx = true} : vector<48x1xf32> -> vector<48x1xf32>
    %595 = vector.broadcast %594 : vector<48x1xf32> to vector<48x160xf32>
    %596 = arith.mulf %591, %595 : vector<48x160xf32>
    %597 = arith.truncf %596 : vector<48x160xf32> to vector<48x160xbf16>
    %cst_192 = arith.constant dense<0.000000e+00> : vector<48x8xf32>
    %598 = tpu.matmul %597, %494, %cst_192 {dimension_numbers = #tpu.dot_dimension_numbers<[1], [1], [0], [0], [0, 0, 1, 0], [], []>} : vector<48x160xbf16>, vector<8x160xbf16>, vector<48x8xf32> -> vector<48x8xf32>
    %599 = arith.addf %457, %598 : vector<48x8xf32>
    %600 = vector.extract_strided_slice %497 {offsets = [96, 0], sizes = [64, 160], strides = [1, 1]} : vector<160x160xf32> to vector<64x160xf32>
    %cst_193 = arith.constant dense<0.000000e+00> : vector<64xf32>
    %601 = vector.multi_reduction <add>, %600, %cst_193 [1] : vector<64x160xf32> to vector<64xf32>
    %602 = vector.shape_cast %601 : vector<64xf32> to vector<64x1xf32>
    %cst_194 = arith.constant dense<0.000000e+00> : vector<1xf32>
    %603 = vector.multi_reduction <add>, %602, %cst_194 [0] : vector<64x1xf32> to vector<1xf32>
    %604 = vector.shape_cast %603 : vector<1xf32> to vector<1x1xf32>
    %cst_195 = arith.constant 9.76562514E-5 : f32
    %605 = vector.broadcast %cst_195 : f32 to vector<1x1xf32>
    %606 = arith.mulf %604, %605 : vector<1x1xf32>
    %607 = vector.broadcast %606 : vector<1x1xf32> to vector<64x160xf32>
    %608 = arith.subf %600, %607 : vector<64x160xf32>
    %609 = arith.mulf %608, %608 : vector<64x160xf32>
    %cst_196 = arith.constant dense<0.000000e+00> : vector<64xf32>
    %610 = vector.multi_reduction <add>, %609, %cst_196 [1] : vector<64x160xf32> to vector<64xf32>
    %611 = vector.shape_cast %610 : vector<64xf32> to vector<64x1xf32>
    %cst_197 = arith.constant dense<0.000000e+00> : vector<1xf32>
    %612 = vector.multi_reduction <add>, %611, %cst_197 [0] : vector<64x1xf32> to vector<1xf32>
    %613 = vector.shape_cast %612 : vector<1xf32> to vector<1x1xf32>
    %cst_198 = arith.constant 9.76562514E-5 : f32
    %614 = vector.broadcast %cst_198 : f32 to vector<1x1xf32>
    %615 = arith.mulf %613, %614 : vector<1x1xf32>
    %cst_199 = arith.constant 9.99999974E-6 : f32
    %616 = vector.broadcast %cst_199 : f32 to vector<1x1xf32>
    %617 = arith.addf %615, %616 : vector<1x1xf32>
    %618 = math.rsqrt %617 : vector<1x1xf32>
    %619 = vector.broadcast %618 : vector<1x1xf32> to vector<64x160xf32>
    %620 = arith.mulf %608, %619 : vector<64x160xf32>
    %cst_200 = arith.constant dense<0xFF800000> : vector<64xf32>
    %621 = vector.multi_reduction <maximumf>, %620, %cst_200 [1] : vector<64x160xf32> to vector<64xf32>
    %622 = vector.shape_cast %621 : vector<64xf32> to vector<64x1xf32>
    %623 = vector.broadcast %622 : vector<64x1xf32> to vector<64x160xf32>
    %624 = arith.subf %620, %623 : vector<64x160xf32>
    %625 = math.exp %624 : vector<64x160xf32>
    %cst_201 = arith.constant dense<0.000000e+00> : vector<64xf32>
    %626 = vector.multi_reduction <add>, %625, %cst_201 [1] : vector<64x160xf32> to vector<64xf32>
    %627 = vector.shape_cast %626 : vector<64xf32> to vector<64x1xf32>
    %628 = tpu.reciprocal %627 {approx = true} : vector<64x1xf32> -> vector<64x1xf32>
    %629 = vector.broadcast %628 : vector<64x1xf32> to vector<64x160xf32>
    %630 = arith.mulf %625, %629 : vector<64x160xf32>
    %631 = arith.truncf %630 : vector<64x160xf32> to vector<64x160xbf16>
    %cst_202 = arith.constant dense<0.000000e+00> : vector<64x8xf32>
    %632 = tpu.matmul %631, %494, %cst_202 {dimension_numbers = #tpu.dot_dimension_numbers<[1], [1], [0], [0], [0, 0, 1, 0], [], []>} : vector<64x160xbf16>, vector<8x160xbf16>, vector<64x8xf32> -> vector<64x8xf32>
    %633 = arith.addf %491, %632 : vector<64x8xf32>
    %634 = tpu.concatenate %531, %565, %599, %633 in 0 : vector<16x8xf32>, vector<32x8xf32>, vector<48x8xf32>, vector<64x8xf32> -> vector<160x8xf32>
    %cst_203 = arith.constant 2.500000e-01 : f32
    %635 = vector.broadcast %cst_203 : f32 to vector<160x8xf32>
    %636 = arith.mulf %634, %635 : vector<160x8xf32>
    %637 = arith.truncf %636 : vector<160x8xf32> to vector<160x8xbf16>
    %c0_204 = arith.constant 0 : index
    %c0_205 = arith.constant 0 : index
    %638 = vector.load %arg12[%c0_204, %c0_205] : memref<160x160xbf16, #tpu.memory_space<vmem>>, vector<160x160xbf16>
    %cst_206 = arith.constant dense<0.000000e+00> : vector<8x160xf32>
    %639 = tpu.matmul %637, %638, %cst_206 {dimension_numbers = #tpu.dot_dimension_numbers<[0], [0], [1], [1], [0, 1, 1, 1], [], []>} : vector<160x8xbf16>, vector<160x160xbf16>, vector<8x160xf32> -> vector<8x160xf32>
    %640 = arith.addf %1, %639 : vector<8x160xf32>
    %c0_207 = arith.constant 0 : index
    %c0_208 = arith.constant 0 : index
    %641 = vector.load %arg8[%c0_207, %c0_208] : memref<1x160xf32, #tpu.memory_space<vmem>>, vector<1x160xf32>
    %c0_209 = arith.constant 0 : index
    %c0_210 = arith.constant 0 : index
    %642 = vector.load %arg9[%c0_209, %c0_210] : memref<1x160xf32, #tpu.memory_space<vmem>>, vector<1x160xf32>
    %cst_211 = arith.constant dense<0.000000e+00> : vector<8x8xf32>
    %643 = tpu.matmul %640, %2, %cst_211 {dimension_numbers = #tpu.dot_dimension_numbers<[1], [0], [0], [1], [0, 0, 1, 1], [], []>} : vector<8x160xf32>, vector<160x8xf32>, vector<8x8xf32> -> vector<8x8xf32>
    %644 = arith.mulf %640, %640 : vector<8x160xf32>
    %cst_212 = arith.constant dense<0.000000e+00> : vector<8x8xf32>
    %645 = tpu.matmul %644, %2, %cst_212 {dimension_numbers = #tpu.dot_dimension_numbers<[1], [0], [0], [1], [0, 0, 1, 1], [], []>} : vector<8x160xf32>, vector<160x8xf32>, vector<8x8xf32> -> vector<8x8xf32>
    %646 = vector.broadcast %3 : vector<1x8xf32> to vector<8x8xf32>
    %647 = arith.mulf %643, %646 : vector<8x8xf32>
    %648 = vector.broadcast %3 : vector<1x8xf32> to vector<8x8xf32>
    %649 = arith.mulf %645, %648 : vector<8x8xf32>
    %650 = arith.mulf %647, %647 : vector<8x8xf32>
    %651 = arith.subf %649, %650 : vector<8x8xf32>
    %cst_213 = arith.constant 0.000000e+00 : f32
    %652 = vector.broadcast %cst_213 : f32 to vector<8x8xf32>
    %653 = arith.maximumf %651, %652 : vector<8x8xf32>
    %cst_214 = arith.constant 9.99999997E-7 : f32
    %654 = vector.broadcast %cst_214 : f32 to vector<8x8xf32>
    %655 = arith.addf %653, %654 : vector<8x8xf32>
    %656 = math.rsqrt %655 : vector<8x8xf32>
    %cst_215 = arith.constant dense<0.000000e+00> : vector<8x160xf32>
    %657 = tpu.matmul %647, %2, %cst_215 {dimension_numbers = #tpu.dot_dimension_numbers<[1], [1], [0], [0], [0, 0, 1, 0], [], []>} : vector<8x8xf32>, vector<160x8xf32>, vector<8x160xf32> -> vector<8x160xf32>
    %cst_216 = arith.constant dense<0.000000e+00> : vector<8x160xf32>
    %658 = tpu.matmul %656, %2, %cst_216 {dimension_numbers = #tpu.dot_dimension_numbers<[1], [1], [0], [0], [0, 0, 1, 0], [], []>} : vector<8x8xf32>, vector<160x8xf32>, vector<8x160xf32> -> vector<8x160xf32>
    %659 = arith.subf %640, %657 : vector<8x160xf32>
    %660 = arith.mulf %659, %658 : vector<8x160xf32>
    %661 = vector.broadcast %641 : vector<1x160xf32> to vector<8x160xf32>
    %662 = arith.mulf %660, %661 : vector<8x160xf32>
    %663 = vector.broadcast %642 : vector<1x160xf32> to vector<8x160xf32>
    %664 = arith.addf %662, %663 : vector<8x160xf32>
    %665 = arith.truncf %664 : vector<8x160xf32> to vector<8x160xbf16>
    %c0_217 = arith.constant 0 : index
    %c0_218 = arith.constant 0 : index
    %666 = vector.load %arg13[%c0_217, %c0_218] : memref<160x640xbf16, #tpu.memory_space<vmem>>, vector<160x640xbf16>
    %cst_219 = arith.constant dense<0.000000e+00> : vector<8x640xf32>
    %667 = tpu.matmul %665, %666, %cst_219 {dimension_numbers = #tpu.dot_dimension_numbers<[1], [0], [0], [1], [0, 0, 1, 1], [], []>} : vector<8x160xbf16>, vector<160x640xbf16>, vector<8x640xf32> -> vector<8x640xf32>
    %c0_220 = arith.constant 0 : index
    %c0_221 = arith.constant 0 : index
    %668 = vector.load %arg14[%c0_220, %c0_221] : memref<1x640xf32, #tpu.memory_space<vmem>>, vector<1x640xf32>
    %669 = vector.broadcast %668 : vector<1x640xf32> to vector<8x640xf32>
    %670 = arith.addf %667, %669 : vector<8x640xf32>
    %cst_222 = arith.constant 5.000000e-01 : f32
    %671 = vector.broadcast %cst_222 : f32 to vector<8x640xf32>
    %672 = arith.mulf %671, %670 : vector<8x640xf32>
    %673 = arith.mulf %670, %670 : vector<8x640xf32>
    %674 = arith.mulf %673, %670 : vector<8x640xf32>
    %cst_223 = arith.constant 4.471500e-02 : f32
    %675 = vector.broadcast %cst_223 : f32 to vector<8x640xf32>
    %676 = arith.mulf %675, %674 : vector<8x640xf32>
    %677 = arith.addf %670, %676 : vector<8x640xf32>
    %cst_224 = arith.constant 0.797884583 : f32
    %678 = vector.broadcast %cst_224 : f32 to vector<8x640xf32>
    %679 = arith.mulf %678, %677 : vector<8x640xf32>
    %680 = math.tanh %679 : vector<8x640xf32>
    %cst_225 = arith.constant 1.000000e+00 : f32
    %681 = vector.broadcast %cst_225 : f32 to vector<8x640xf32>
    %682 = arith.addf %681, %680 : vector<8x640xf32>
    %683 = arith.mulf %672, %682 : vector<8x640xf32>
    %684 = arith.truncf %683 : vector<8x640xf32> to vector<8x640xbf16>
    %c0_226 = arith.constant 0 : index
    %c0_227 = arith.constant 0 : index
    %685 = vector.load %arg15[%c0_226, %c0_227] : memref<640x160xbf16, #tpu.memory_space<vmem>>, vector<640x160xbf16>
    %cst_228 = arith.constant dense<0.000000e+00> : vector<8x160xf32>
    %686 = tpu.matmul %684, %685, %cst_228 {dimension_numbers = #tpu.dot_dimension_numbers<[1], [0], [0], [1], [0, 0, 1, 1], [], []>} : vector<8x640xbf16>, vector<640x160xbf16>, vector<8x160xf32> -> vector<8x160xf32>
    %c0_229 = arith.constant 0 : index
    %c0_230 = arith.constant 0 : index
    %687 = vector.load %arg16[%c0_229, %c0_230] : memref<1x160xf32, #tpu.memory_space<vmem>>, vector<1x160xf32>
    %688 = vector.broadcast %687 : vector<1x160xf32> to vector<8x160xf32>
    %689 = arith.addf %686, %688 : vector<8x160xf32>
    %690 = arith.addf %689, %640 : vector<8x160xf32>
    %c0_231 = arith.constant 0 : index
    %c0_232 = arith.constant 0 : index
    %c0_233 = arith.constant 0 : index
    %691 = vector.load %arg17[%c0_231, %c0_232, %c0_233] : memref<1x8x160xf32, #tpu.memory_space<vmem>>, vector<1x8x160xf32>
    %692 = vector.shape_cast %691 : vector<1x8x160xf32> to vector<8x160xf32>
    %693 = vector.shape_cast %690 : vector<8x160xf32> to vector<1x8x160xf32>
    tpu.vector_store %arg17[%c0_231, %c0_232, %c0_233], %693 {strides = array<i32>} : memref<1x8x160xf32, #tpu.memory_space<vmem>>, vector<1x8x160xf32>,
    return
  }
  func.func @transform_0(%arg0: i32) -> (i32, i32, i32) {
    %c0_i32 = arith.constant 0 : i32
    %c0_i32_0 = arith.constant 0 : i32
    %c0_i32_1 = arith.constant 0 : i32
    return %arg0, %c0_i32, %c0_i32_0 : i32, i32, i32
  }
  func.func @transform_1(%arg0: i32) -> (i32, i32) {
    %c0_i32 = arith.constant 0 : i32
    %c0_i32_0 = arith.constant 0 : i32
    %c0_i32_1 = arith.constant 0 : i32
    return %c0_i32, %c0_i32_0 : i32, i32
  }
  func.func @transform_2(%arg0: i32) -> (i32, i32) {
    %c0_i32 = arith.constant 0 : i32
    %c0_i32_0 = arith.constant 0 : i32
    %c0_i32_1 = arith.constant 0 : i32
    return %c0_i32, %c0_i32_0 : i32, i32
  }
  func.func @transform_3(%arg0: i32) -> (i32, i32) {
    %c0_i32 = arith.constant 0 : i32
    %c0_i32_0 = arith.constant 0 : i32
    %c0_i32_1 = arith.constant 0 : i32
    return %c0_i32, %c0_i32_0 : i32, i32
  }
  func.func @transform_4(%arg0: i32) -> (i32, i32) {
    %c0_i32 = arith.constant 0 : i32
    %c0_i32_0 = arith.constant 0 : i32
    %c0_i32_1 = arith.constant 0 : i32
    return %c0_i32, %c0_i32_0 : i32, i32
  }
  func.func @transform_5(%arg0: i32) -> (i32, i32) {
    %c0_i32 = arith.constant 0 : i32
    %c0_i32_0 = arith.constant 0 : i32
    %c0_i32_1 = arith.constant 0 : i32
    return %c0_i32, %c0_i32_0 : i32, i32
  }
  func.func @transform_6(%arg0: i32) -> (i32, i32) {
    %c0_i32 = arith.constant 0 : i32
    %c0_i32_0 = arith.constant 0 : i32
    %c0_i32_1 = arith.constant 0 : i32
    return %c0_i32, %c0_i32_0 : i32, i32
  }
  func.func @transform_7(%arg0: i32) -> (i32, i32) {
    %c0_i32 = arith.constant 0 : i32
    %c0_i32_0 = arith.constant 0 : i32
    %c0_i32_1 = arith.constant 0 : i32
    return %c0_i32, %c0_i32_0 : i32, i32
  }
  func.func @transform_8(%arg0: i32) -> (i32, i32) {
    %c0_i32 = arith.constant 0 : i32
    %c0_i32_0 = arith.constant 0 : i32
    %c0_i32_1 = arith.constant 0 : i32
    return %c0_i32, %c0_i32_0 : i32, i32
  }
  func.func @transform_9(%arg0: i32) -> (i32, i32) {
    %c0_i32 = arith.constant 0 : i32
    %c0_i32_0 = arith.constant 0 : i32
    %c0_i32_1 = arith.constant 0 : i32
    return %c0_i32, %c0_i32_0 : i32, i32
  }
  func.func @transform_10(%arg0: i32) -> (i32, i32) {
    %c0_i32 = arith.constant 0 : i32
    %c0_i32_0 = arith.constant 0 : i32
    %c0_i32_1 = arith.constant 0 : i32
    return %c0_i32, %c0_i32_0 : i32, i32
  }
  func.func @transform_11(%arg0: i32) -> (i32, i32) {
    %c0_i32 = arith.constant 0 : i32
    %c0_i32_0 = arith.constant 0 : i32
    %c0_i32_1 = arith.constant 0 : i32
    return %c0_i32, %c0_i32_0 : i32, i32
  }
  func.func @transform_12(%arg0: i32) -> (i32, i32) {
    %c0_i32 = arith.constant 0 : i32
    %c0_i32_0 = arith.constant 0 : i32
    %c0_i32_1 = arith.constant 0 : i32
    return %c0_i32, %c0_i32_0 : i32, i32
  }
  func.func @transform_13(%arg0: i32) -> (i32, i32) {
    %c0_i32 = arith.constant 0 : i32
    %c0_i32_0 = arith.constant 0 : i32
    %c0_i32_1 = arith.constant 0 : i32
    return %c0_i32, %c0_i32_0 : i32, i32
  }
  func.func @transform_14(%arg0: i32) -> (i32, i32) {
    %c0_i32 = arith.constant 0 : i32
    %c0_i32_0 = arith.constant 0 : i32
    %c0_i32_1 = arith.constant 0 : i32
    return %c0_i32, %c0_i32_0 : i32, i32
  }
  func.func @transform_15(%arg0: i32) -> (i32, i32) {
    %c0_i32 = arith.constant 0 : i32
    %c0_i32_0 = arith.constant 0 : i32
    %c0_i32_1 = arith.constant 0 : i32
    return %c0_i32, %c0_i32_0 : i32, i32
  }
  func.func @transform_16(%arg0: i32) -> (i32, i32, i32) {
    %c0_i32 = arith.constant 0 : i32
    %c0_i32_0 = arith.constant 0 : i32
    %c0_i32_1 = arith.constant 0 : i32
    return %arg0, %c0_i32, %c0_i32_0 : i32, i32, i32
  }
}

</mosaic_0001>

<llo_original>
// kernel: block_vit_forward.1
$region0: #{block_vit_forward.1}
  #allocation0 [shape = 'u32[]', space=smem, size = 0x4, offset = 0x4, fixed_abs, tag = 'smem constant byte address 0x4 - core index']
  #allocation1 [shape = 'u32[144,128]{1,0:T(1,128)}', space=vmem, size = 0x12000, scoped, tag = 'internal scratch']
  %s0 = inlined_call_operand.vmem [shape: f32[2,8,160], index: 0, kind: input, shape index: {}]
  %s1 = inlined_call_operand.vmem [shape: f32[160,8], index: 1, kind: input, shape index: {}]
  %s2 = inlined_call_operand.vmem [shape: f32[1,8], index: 2, kind: input, shape index: {}]
  %s3 = inlined_call_operand.vmem [shape: f32[1,160], index: 3, kind: input, shape index: {}]
  %s4 = inlined_call_operand.vmem [shape: f32[1,160], index: 4, kind: input, shape index: {}]
  %s5 = inlined_call_operand.vmem [shape: f32[1,160], index: 5, kind: input, shape index: {}]
  %s6 = inlined_call_operand.vmem [shape: f32[1,160], index: 6, kind: input, shape index: {}]
  %s7 = inlined_call_operand.vmem [shape: f32[1,160], index: 7, kind: input, shape index: {}]
  %s8 = inlined_call_operand.vmem [shape: f32[1,160], index: 8, kind: input, shape index: {}]
  %s9 = inlined_call_operand.hbm [shape: bf16[160,1024], index: 9, kind: input, shape index: {}]
  %s10 = inlined_call_operand.vmem [shape: bf16[160,2048], index: 10, kind: input, shape index: {}]
  %s11 = inlined_call_operand.hbm [shape: bf16[160,160], index: 11, kind: input, shape index: {}]
  %s12 = inlined_call_operand.hbm [shape: bf16[160,640], index: 12, kind: input, shape index: {}]
  %s13 = inlined_call_operand.vmem [shape: f32[1,640], index: 13, kind: input, shape index: {}]
  %s14 = inlined_call_operand.vmem [shape: bf16[640,160], index: 14, kind: input, shape index: {}]
  %s15 = inlined_call_operand.vmem [shape: f32[1,160], index: 15, kind: input, shape index: {}]
  %s16 = inlined_call_operand.vmem [shape: f32[2,8,160], index: 16, kind: output, shape index: {}]
  %s17 = sld [smem:[#allocation0]]
  $region109: #{block_vit_forward.1} parent=0
    _
  %s19 = ssub.s32 1, %s17
  %s20 = scalar_select 0, %s19, %s17
  $region1: #{block_vit_forward.1} parent=0
    #allocation2 [shape = 'u8[327680]{0}', space=vmem, size = 0x50000, scoped, tag = 'input window, operand 9, single buffered']
    #allocation3 [shape = 's32[2]{0}', space=sflag, size = 0x8, scoped, tag = 'scoped memory for block_vit_forward.1']
    #allocation4 [shape = 'u8[81920]{0}', space=vmem, size = 0x14000, scoped, tag = 'input window, operand 11, single buffered']
    #allocation5 [shape = 's32[1]{0}', space=sflag, size = 0x4, scoped, tag = 'scoped memory for block_vit_forward.1']
    #allocation6 [shape = 'u8[204800]{0}', space=vmem, size = 0x32000, scoped, tag = 'input window, operand 12, single buffered']
    %21 = vsyncpa [#allocation3], 0
    %22 = vsyncpa [#allocation5], 0
    loop: start=0, step=1, limit=4
    $region2: #{block_vit_forward.1} parent=1 // loop_pre_header
      _
    $region3: #{block_vit_forward.1} parent=1 // loop_header
      %s24 = sphi 0, %s28
      %p25 = scmp.ge.s32.totalorder %s24, 4
      %s34 = sphi 0, %s36
      %s37 = sphi 0, %s34
      %s38 = sphi 0, %s37
      %s54 = sphi 0, %s38
      %s58 = sphi 0, %s58
      %s60 = sphi 0, %s58
      %s61 = sphi 0, %s60
      %s75 = sphi 0, %s61
      %s79 = sphi 0, %s79
      %s81 = sphi 0, %s79
      %s82 = sphi 0, %s81
      %s96 = sphi 0, %s82
      %s100 = sphi 0, %s100
      %s102 = sphi 0, %s100
      %s103 = sphi 0, %s102
      %s117 = sphi 0, %s103
      %s121 = sphi 0, %s121
      %s123 = sphi 0, %s121
      %s124 = sphi 0, %s123
      %s138 = sphi 0, %s124
      %s142 = sphi 0, %s142
      %s144 = sphi 0, %s142
      %s145 = sphi 0, %s144
      %s159 = sphi 0, %s145
      %s163 = sphi 0, %s163
      %s165 = sphi 0, %s163
      %s166 = sphi 0, %s165
      %s180 = sphi 0, %s166
      %s184 = sphi 0, %s184
      %s186 = sphi 0, %s184
      %s187 = sphi 0, %s186
      %s201 = sphi 0, %s187
      %s205 = sphi 0, %s205
      %s207 = sphi 0, %s205
      %s208 = sphi 0, %s207
      %s222 = sphi 0, %s208
      %s226 = sphi 0, %s226
      %s228 = sphi 0, %s226
      %s229 = sphi 0, %s228
      %s243 = sphi 0, %s229
      %s247 = sphi 0, %s247
      %s249 = sphi 0, %s247
      %s250 = sphi 0, %s249
      %s264 = sphi 0, %s250
      %s268 = sphi 0, %s268
      %s270 = sphi 0, %s268
      %s271 = sphi 0, %s270
      %s285 = sphi 0, %s271
      %s289 = sphi 0, %s289
      %s291 = sphi 0, %s289
      %s292 = sphi 0, %s291
      %s306 = sphi 0, %s292
      %s310 = sphi 0, %s310
      %s312 = sphi 0, %s310
      %s313 = sphi 0, %s312
      %s327 = sphi 0, %s313
      %s331 = sphi 0, %s331
      %s333 = sphi 0, %s331
      %s334 = sphi 0, %s333
      %s348 = sphi 0, %s334
      %s352 = sphi 0, %s352
      %s354 = sphi 0, %s352
      %s355 = sphi 0, %s354
      %s369 = sphi 0, %s355
      %s375 = sphi 0, %s377
      %s378 = sphi 0, %s375
      %s379 = sphi 0, %s378
      %s395 = sphi 0, %s379
    $region4: #{block_vit_forward.1} parent=1 // loop_header_branch
      %27 = sbr.rel (%p25) target = $region8
    $region5: #{block_vit_forward.1} parent=1 // loop_body
      %s29 = ssub.s32 %s24, 1
      %s30 = ssub.s32 %s24, 2
      %s31 = sadd.s32 %s24, 1
      %s32 = ssub.s32 %s24, %s31
      %p33 = scmp.eq.s32.totalorder %s32, 0
      %s35 = sadd.s32 %s34, 1
      %s36 = scalar_select %p33, %s34, %s35
      %p39 = pneg %p33
      %p40 = scmp.eq.s32.totalorder %s24, 1
      %p41 = por %p39, %p40
      %p42 = scmp.ne.s32.totalorder %s34, %s37
      %p43 = scmp.eq.s32.totalorder %s24, 0
      %p44 = por %p42, %p43
      %p45 = scmp.ne.s32.totalorder %s34, %s37
      %p46 = scmp.eq.s32.totalorder %s29, 1
      %p47 = por %p45, %p46
      %p48 = scmp.ne.s32.totalorder %s37, %s38
      %p49 = scmp.eq.s32.totalorder %s29, 0
      %p50 = por %p48, %p49
      %p51 = scmp.ne.s32.totalorder %s37, %s38
      %p52 = scmp.eq.s32.totalorder %s30, 1
      %p53 = por %p51, %p52
      %p55 = scmp.ne.s32.totalorder %s38, %s54
      %p56 = scmp.eq.s32.totalorder %s30, 0
      %p57 = por %p55, %p56
      %s59 = sadd.s32 %s58, 1
      %p62 = scmp.eq.s32.totalorder %s24, 1
      %p63 = scmp.ne.s32.totalorder %s58, %s60
      %p64 = scmp.eq.s32.totalorder %s24, 0
      %p65 = por %p63, %p64
      %p66 = scmp.ne.s32.totalorder %s58, %s60
      %p67 = scmp.eq.s32.totalorder %s29, 1
      %p68 = por %p66, %p67
      %p69 = scmp.ne.s32.totalorder %s60, %s61
      %p70 = scmp.eq.s32.totalorder %s29, 0
      %p71 = por %p69, %p70
      %p72 = scmp.ne.s32.totalorder %s60, %s61
      %p73 = scmp.eq.s32.totalorder %s30, 1
      %p74 = por %p72, %p73
      %p76 = scmp.ne.s32.totalorder %s61, %s75
      %p77 = scmp.eq.s32.totalorder %s30, 0
      %p78 = por %p76, %p77
      %s80 = sadd.s32 %s79, 1
      %p83 = scmp.eq.s32.totalorder %s24, 1
      %p84 = scmp.ne.s32.totalorder %s79, %s81
      %p85 = scmp.eq.s32.totalorder %s24, 0
      %p86 = por %p84, %p85
      %p87 = scmp.ne.s32.totalorder %s79, %s81
      %p88 = scmp.eq.s32.totalorder %s29, 1
      %p89 = por %p87, %p88
      %p90 = scmp.ne.s32.totalorder %s81, %s82
      %p91 = scmp.eq.s32.totalorder %s29, 0
      %p92 = por %p90, %p91
      %p93 = scmp.ne.s32.totalorder %s81, %s82
      %p94 = scmp.eq.s32.totalorder %s30, 1
      %p95 = por %p93, %p94
      %p97 = scmp.ne.s32.totalorder %s82, %s96
      %p98 = scmp.eq.s32.totalorder %s30, 0
      %p99 = por %p97, %p98
      %s101 = sadd.s32 %s100, 1
      %p104 = scmp.eq.s32.totalorder %s24, 1
      %p105 = scmp.ne.s32.totalorder %s100, %s102
      %p106 = scmp.eq.s32.totalorder %s24, 0
      %p107 = por %p105, %p106
      %p108 = scmp.ne.s32.totalorder %s100, %s102
      %p109 = scmp.eq.s32.totalorder %s29, 1
      %p110 = por %p108, %p109
      %p111 = scmp.ne.s32.totalorder %s102, %s103
      %p112 = scmp.eq.s32.totalorder %s29, 0
      %p113 = por %p111, %p112
      %p114 = scmp.ne.s32.totalorder %s102, %s103
      %p115 = scmp.eq.s32.totalorder %s30, 1
      %p116 = por %p114, %p115
      %p118 = scmp.ne.s32.totalorder %s103, %s117
      %p119 = scmp.eq.s32.totalorder %s30, 0
      %p120 = por %p118, %p119
      %s122 = sadd.s32 %s121, 1
      %p125 = scmp.eq.s32.totalorder %s24, 1
      %p126 = scmp.ne.s32.totalorder %s121, %s123
      %p127 = scmp.eq.s32.totalorder %s24, 0
      %p128 = por %p126, %p127
      %p129 = scmp.ne.s32.totalorder %s121, %s123
      %p130 = scmp.eq.s32.totalorder %s29, 1
      %p131 = por %p129, %p130
      %p132 = scmp.ne.s32.totalorder %s123, %s124
      %p133 = scmp.eq.s32.totalorder %s29, 0
      %p134 = por %p132, %p133
      %p135 = scmp.ne.s32.totalorder %s123, %s124
      %p136 = scmp.eq.s32.totalorder %s30, 1
      %p137 = por %p135, %p136
      %p139 = scmp.ne.s32.totalorder %s124, %s138
      %p140 = scmp.eq.s32.totalorder %s30, 0
      %p141 = por %p139, %p140
      %s143 = sadd.s32 %s142, 1
      %p146 = scmp.eq.s32.totalorder %s24, 1
      %p147 = scmp.ne.s32.totalorder %s142, %s144
      %p148 = scmp.eq.s32.totalorder %s24, 0
      %p149 = por %p147, %p148
      %p150 = scmp.ne.s32.totalorder %s142, %s144
      %p151 = scmp.eq.s32.totalorder %s29, 1
      %p152 = por %p150, %p151
      %p153 = scmp.ne.s32.totalorder %s144, %s145
      %p154 = scmp.eq.s32.totalorder %s29, 0
      %p155 = por %p153, %p154
      %p156 = scmp.ne.s32.totalorder %s144, %s145
      %p157 = scmp.eq.s32.totalorder %s30, 1
      %p158 = por %p156, %p157
      %p160 = scmp.ne.s32.totalorder %s145, %s159
      %p161 = scmp.eq.s32.totalorder %s30, 0
      %p162 = por %p160, %p161
      %s164 = sadd.s32 %s163, 1
      %p167 = scmp.eq.s32.totalorder %s24, 1
      %p168 = scmp.ne.s32.totalorder %s163, %s165
      %p169 = scmp.eq.s32.totalorder %s24, 0
      %p170 = por %p168, %p169
      %p171 = scmp.ne.s32.totalorder %s163, %s165
      %p172 = scmp.eq.s32.totalorder %s29, 1
      %p173 = por %p171, %p172
      %p174 = scmp.ne.s32.totalorder %s165, %s166
      %p175 = scmp.eq.s32.totalorder %s29, 0
      %p176 = por %p174, %p175
      %p177 = scmp.ne.s32.totalorder %s165, %s166
      %p178 = scmp.eq.s32.totalorder %s30, 1
      %p179 = por %p177, %p178
      %p181 = scmp.ne.s32.totalorder %s166, %s180
      %p182 = scmp.eq.s32.totalorder %s30, 0
      %p183 = por %p181, %p182
      %s185 = sadd.s32 %s184, 1
      %p188 = scmp.eq.s32.totalorder %s24, 1
      %p189 = scmp.ne.s32.totalorder %s184, %s186
      %p190 = scmp.eq.s32.totalorder %s24, 0
      %p191 = por %p189, %p190
      %p192 = scmp.ne.s32.totalorder %s184, %s186
      %p193 = scmp.eq.s32.totalorder %s29, 1
      %p194 = por %p192, %p193
      %p195 = scmp.ne.s32.totalorder %s186, %s187
      %p196 = scmp.eq.s32.totalorder %s29, 0
      %p197 = por %p195, %p196
      %p198 = scmp.ne.s32.totalorder %s186, %s187
      %p199 = scmp.eq.s32.totalorder %s30, 1
      %p200 = por %p198, %p199
      %p202 = scmp.ne.s32.totalorder %s187, %s201
      %p203 = scmp.eq.s32.totalorder %s30, 0
      %p204 = por %p202, %p203
      %s206 = sadd.s32 %s205, 1
      %p209 = scmp.eq.s32.totalorder %s24, 1
      %p210 = scmp.ne.s32.totalorder %s205, %s207
      %p211 = scmp.eq.s32.totalorder %s24, 0
      %p212 = por %p210, %p211
      %p213 = scmp.ne.s32.totalorder %s205, %s207
      %p214 = scmp.eq.s32.totalorder %s29, 1
      %p215 = por %p213, %p214
      %p216 = scmp.ne.s32.totalorder %s207, %s208
      %p217 = scmp.eq.s32.totalorder %s29, 0
      %p218 = por %p216, %p217
      %p219 = scmp.ne.s32.totalorder %s207, %s208
      %p220 = scmp.eq.s32.totalorder %s30, 1
      %p221 = por %p219, %p220
      %p223 = scmp.ne.s32.totalorder %s208, %s222
      %p224 = scmp.eq.s32.totalorder %s30, 0
      %p225 = por %p223, %p224
      %s227 = sadd.s32 %s226, 1
      %p230 = scmp.eq.s32.totalorder %s24, 1
      %p231 = scmp.ne.s32.totalorder %s226, %s228
      %p232 = scmp.eq.s32.totalorder %s24, 0
      %p233 = por %p231, %p232
      %p234 = scmp.ne.s32.totalorder %s226, %s228
      %p235 = scmp.eq.s32.totalorder %s29, 1
      %p236 = por %p234, %p235
      %p237 = scmp.ne.s32.totalorder %s228, %s229
      %p238 = scmp.eq.s32.totalorder %s29, 0
      %p239 = por %p237, %p238
      %p240 = scmp.ne.s32.totalorder %s228, %s229
      %p241 = scmp.eq.s32.totalorder %s30, 1
      %p242 = por %p240, %p241
      %p244 = scmp.ne.s32.totalorder %s229, %s243
      %p245 = scmp.eq.s32.totalorder %s30, 0
      %p246 = por %p244, %p245
      %s248 = sadd.s32 %s247, 1
      %p251 = scmp.eq.s32.totalorder %s24, 1
      %p252 = scmp.ne.s32.totalorder %s247, %s249
      %p253 = scmp.eq.s32.totalorder %s24, 0
      %p254 = por %p252, %p253
      %p255 = scmp.ne.s32.totalorder %s247, %s249
      %p256 = scmp.eq.s32.totalorder %s29, 1
      %p257 = por %p255, %p256
      %p258 = scmp.ne.s32.totalorder %s249, %s250
      %p259 = scmp.eq.s32.totalorder %s29, 0
      %p260 = por %p258, %p259
      %p261 = scmp.ne.s32.totalorder %s249, %s250
      %p262 = scmp.eq.s32.totalorder %s30, 1
      %p263 = por %p261, %p262
      %p265 = scmp.ne.s32.totalorder %s250, %s264
      %p266 = scmp.eq.s32.totalorder %s30, 0
      %p267 = por %p265, %p266
      %s269 = sadd.s32 %s268, 1
      %p272 = scmp.eq.s32.totalorder %s24, 1
      %p273 = scmp.ne.s32.totalorder %s268, %s270
      %p274 = scmp.eq.s32.totalorder %s24, 0
      %p275 = por %p273, %p274
      %p276 = scmp.ne.s32.totalorder %s268, %s270
      %p277 = scmp.eq.s32.totalorder %s29, 1
      %p278 = por %p276, %p277
      %p279 = scmp.ne.s32.totalorder %s270, %s271
      %p280 = scmp.eq.s32.totalorder %s29, 0
      %p281 = por %p279, %p280
      %p282 = scmp.ne.s32.totalorder %s270, %s271
      %p283 = scmp.eq.s32.totalorder %s30, 1
      %p284 = por %p282, %p283
      %p286 = scmp.ne.s32.totalorder %s271, %s285
      %p287 = scmp.eq.s32.totalorder %s30, 0
      %p288 = por %p286, %p287
      %s290 = sadd.s32 %s289, 1
      %p293 = scmp.eq.s32.totalorder %s24, 1
      %p294 = scmp.ne.s32.totalorder %s289, %s291
      %p295 = scmp.eq.s32.totalorder %s24, 0
      %p296 = por %p294, %p295
      %p297 = scmp.ne.s32.totalorder %s289, %s291
      %p298 = scmp.eq.s32.totalorder %s29, 1
      %p299 = por %p297, %p298
      %p300 = scmp.ne.s32.totalorder %s291, %s292
      %p301 = scmp.eq.s32.totalorder %s29, 0
      %p302 = por %p300, %p301
      %p303 = scmp.ne.s32.totalorder %s291, %s292
      %p304 = scmp.eq.s32.totalorder %s30, 1
      %p305 = por %p303, %p304
      %p307 = scmp.ne.s32.totalorder %s292, %s306
      %p308 = scmp.eq.s32.totalorder %s30, 0
      %p309 = por %p307, %p308
      %s311 = sadd.s32 %s310, 1
      %p314 = scmp.eq.s32.totalorder %s24, 1
      %p315 = scmp.ne.s32.totalorder %s310, %s312
      %p316 = scmp.eq.s32.totalorder %s24, 0
      %p317 = por %p315, %p316
      %p318 = scmp.ne.s32.totalorder %s310, %s312
      %p319 = scmp.eq.s32.totalorder %s29, 1
      %p320 = por %p318, %p319
      %p321 = scmp.ne.s32.totalorder %s312, %s313
      %p322 = scmp.eq.s32.totalorder %s29, 0
      %p323 = por %p321, %p322
      %p324 = scmp.ne.s32.totalorder %s312, %s313
      %p325 = scmp.eq.s32.totalorder %s30, 1
      %p326 = por %p324, %p325
      %p328 = scmp.ne.s32.totalorder %s313, %s327
      %p329 = scmp.eq.s32.totalorder %s30, 0
      %p330 = por %p328, %p329
      %s332 = sadd.s32 %s331, 1
      %p335 = scmp.eq.s32.totalorder %s24, 1
      %p336 = scmp.ne.s32.totalorder %s331, %s333
      %p337 = scmp.eq.s32.totalorder %s24, 0
      %p338 = por %p336, %p337
      %p339 = scmp.ne.s32.totalorder %s331, %s333
      %p340 = scmp.eq.s32.totalorder %s29, 1
      %p341 = por %p339, %p340
      %p342 = scmp.ne.s32.totalorder %s333, %s334
      %p343 = scmp.eq.s32.totalorder %s29, 0
      %p344 = por %p342, %p343
      %p345 = scmp.ne.s32.totalorder %s333, %s334
      %p346 = scmp.eq.s32.totalorder %s30, 1
      %p347 = por %p345, %p346
      %p349 = scmp.ne.s32.totalorder %s334, %s348
      %p350 = scmp.eq.s32.totalorder %s30, 0
      %p351 = por %p349, %p350
      %s353 = sadd.s32 %s352, 1
      %p356 = scmp.eq.s32.totalorder %s24, 1
      %p357 = scmp.ne.s32.totalorder %s352, %s354
      %p358 = scmp.eq.s32.totalorder %s24, 0
      %p359 = por %p357, %p358
      %p360 = scmp.ne.s32.totalorder %s352, %s354
      %p361 = scmp.eq.s32.totalorder %s29, 1
      %p362 = por %p360, %p361
      %p363 = scmp.ne.s32.totalorder %s354, %s355
      %p364 = scmp.eq.s32.totalorder %s29, 0
      %p365 = por %p363, %p364
      %p366 = scmp.ne.s32.totalorder %s354, %s355
      %p367 = scmp.eq.s32.totalorder %s30, 1
      %p368 = por %p366, %p367
      %p370 = scmp.ne.s32.totalorder %s355, %s369
      %p371 = scmp.eq.s32.totalorder %s30, 0
      %p372 = por %p370, %p371
      %s373 = ssub.s32 %s24, %s31
      %p374 = scmp.eq.s32.totalorder %s373, 0
      %s376 = sadd.s32 %s375, 1
      %s377 = scalar_select %p374, %s375, %s376
      %p380 = pneg %p374
      %p381 = scmp.eq.s32.totalorder %s24, 1
      %p382 = por %p380, %p381
      %p383 = scmp.ne.s32.totalorder %s375, %s378
      %p384 = scmp.eq.s32.totalorder %s24, 0
      %p385 = por %p383, %p384
      %p386 = scmp.ne.s32.totalorder %s375, %s378
      %p387 = scmp.eq.s32.totalorder %s29, 1
      %p388 = por %p386, %p387
      %p389 = scmp.ne.s32.totalorder %s378, %s379
      %p390 = scmp.eq.s32.totalorder %s29, 0
      %p391 = por %p389, %p390
      %p392 = scmp.ne.s32.totalorder %s378, %s379
      %p393 = scmp.eq.s32.totalorder %s30, 1
      %p394 = por %p392, %p393
      %p396 = scmp.ne.s32.totalorder %s379, %s395
      %p397 = scmp.eq.s32.totalorder %s30, 0
      %p398 = por %p396, %p397
      %p399 = scmp.le.s32.totalorder 1, %s24
      %p400 = scmp.lt.s32.totalorder %s24, 3
      %p401 = pnand %p399, %p400
      %p402 = pneg %p401
      // Predicated region
      $region9: #{block_vit_forward.1} parent=5 // pred_check
        _
      $region10: #{block_vit_forward.1} parent=5 // pred_check_branch
        %404 = sbr.rel (%p401) target = $region12
      $region11: #{block_vit_forward.1} parent=5 // pred_region
        %s405 = ssub.s32 %s24, 1
        // Predicated region
        $region13: #{block_vit_forward.1} parent=11 // pred_check
          %p406 = pneg %p71
        $region14: #{block_vit_forward.1} parent=11 // pred_check_branch
          %408 = sbr.rel (%p406) target = $region16
        $region15: #{block_vit_forward.1} parent=11 // pred_region
          _
        $region16: #{block_vit_forward.1} parent=11 // pred_fallthru
          _
        // Predicated region
        $region17: #{block_vit_forward.1} parent=11 // pred_check
          %p409 = pneg %p92
        $region18: #{block_vit_forward.1} parent=11 // pred_check_branch
          %411 = sbr.rel (%p409) target = $region20
        $region19: #{block_vit_forward.1} parent=11 // pred_region
          _
        $region20: #{block_vit_forward.1} parent=11 // pred_fallthru
          _
        // Predicated region
        $region21: #{block_vit_forward.1} parent=11 // pred_check
          %p412 = pneg %p113
        $region22: #{block_vit_forward.1} parent=11 // pred_check_branch
          %414 = sbr.rel (%p412) target = $region24
        $region23: #{block_vit_forward.1} parent=11 // pred_region
          _
        $region24: #{block_vit_forward.1} parent=11 // pred_fallthru
          _
        // Predicated region
        $region25: #{block_vit_forward.1} parent=11 // pred_check
          %p415 = pneg %p134
        $region26: #{block_vit_forward.1} parent=11 // pred_check_branch
          %417 = sbr.rel (%p415) target = $region28
        $region27: #{block_vit_forward.1} parent=11 // pred_region
          _
        $region28: #{block_vit_forward.1} parent=11 // pred_fallthru
          _
        // Predicated region
        $region29: #{block_vit_forward.1} parent=11 // pred_check
          %p418 = pneg %p155
        $region30: #{block_vit_forward.1} parent=11 // pred_check_branch
          %420 = sbr.rel (%p418) target = $region32
        $region31: #{block_vit_forward.1} parent=11 // pred_region
          _
        $region32: #{block_vit_forward.1} parent=11 // pred_fallthru
          _
        // Predicated region
        $region33: #{block_vit_forward.1} parent=11 // pred_check
          %p421 = pneg %p176
        $region34: #{block_vit_forward.1} parent=11 // pred_check_branch
          %423 = sbr.rel (%p421) target = $region36
        $region35: #{block_vit_forward.1} parent=11 // pred_region
          _
        $region36: #{block_vit_forward.1} parent=11 // pred_fallthru
          _
        // Predicated region
        $region37: #{block_vit_forward.1} parent=11 // pred_check
          %p424 = pneg %p197
        $region38: #{block_vit_forward.1} parent=11 // pred_check_branch
          %426 = sbr.rel (%p424) target = $region40
        $region39: #{block_vit_forward.1} parent=11 // pred_region
          _
        $region40: #{block_vit_forward.1} parent=11 // pred_fallthru
          _
        // Predicated region
        $region41: #{block_vit_forward.1} parent=11 // pred_check
          %p427 = pneg %p218
        $region42: #{block_vit_forward.1} parent=11 // pred_check_branch
          %429 = sbr.rel (%p427) target = $region44
        $region43: #{block_vit_forward.1} parent=11 // pred_region
          _
        $region44: #{block_vit_forward.1} parent=11 // pred_fallthru
          _
        // Predicated region
        $region45: #{block_vit_forward.1} parent=11 // pred_check
          %p430 = pneg %p239
        $region46: #{block_vit_forward.1} parent=11 // pred_check_branch
          %432 = sbr.rel (%p430) target = $region48
        $region47: #{block_vit_forward.1} parent=11 // pred_region
          %s434 = ssub.s32 10240, 10240
          %435 = vsyncadd [#allocation3], %s434
          %s436 = sshll.u32 [#allocation2], 4
          %s437 = int_to_ptr.vmem [resolvable:$true] %s436
          %442 = dma.hbm_to_vmem [thread:$0]  %s9, 10240, %s437, [#allocation3], 512, 512, 32
        $region48: #{block_vit_forward.1} parent=11 // pred_fallthru
          _
        // Predicated region
        $region49: #{block_vit_forward.1} parent=11 // pred_check
          %p443 = pneg %p260
        $region50: #{block_vit_forward.1} parent=11 // pred_check_branch
          %445 = sbr.rel (%p443) target = $region52
        $region51: #{block_vit_forward.1} parent=11 // pred_region
          _
        $region52: #{block_vit_forward.1} parent=11 // pred_fallthru
          _
        // Predicated region
        $region53: #{block_vit_forward.1} parent=11 // pred_check
          %p446 = pneg %p281
        $region54: #{block_vit_forward.1} parent=11 // pred_check_branch
          %448 = sbr.rel (%p446) target = $region56
        $region55: #{block_vit_forward.1} parent=11 // pred_region
          %s450 = ssub.s32 2560, 2560
          %451 = vsyncadd [#allocation5], %s450
          %s452 = sshll.u32 [#allocation4], 4
          %s453 = int_to_ptr.vmem [resolvable:$true] %s452
          %458 = dma.hbm_to_vmem [thread:$0]  %s11, 2560, %s453, [#allocation5], 128, 128, 8
        $region56: #{block_vit_forward.1} parent=11 // pred_fallthru
          _
        // Predicated region
        $region57: #{block_vit_forward.1} parent=11 // pred_check
          %p459 = pneg %p302
        $region58: #{block_vit_forward.1} parent=11 // pred_check_branch
          %461 = sbr.rel (%p459) target = $region60
        $region59: #{block_vit_forward.1} parent=11 // pred_region
          %s463 = ssub.s32 6400, 6400
          %464 = vsyncadd [#allocation5], %s463
          %s465 = sshll.u32 [#allocation6], 4
          %s466 = int_to_ptr.vmem [resolvable:$true] %s465
          %471 = dma.hbm_to_vmem [thread:$0]  %s12, 6400, %s466, [#allocation5], 320, 320, 20
        $region60: #{block_vit_forward.1} parent=11 // pred_fallthru
          _
        // Predicated region
        $region61: #{block_vit_forward.1} parent=11 // pred_check
          %p472 = pneg %p323
        $region62: #{block_vit_forward.1} parent=11 // pred_check_branch
          %474 = sbr.rel (%p472) target = $region64
        $region63: #{block_vit_forward.1} parent=11 // pred_region
          _
        $region64: #{block_vit_forward.1} parent=11 // pred_fallthru
          _
        // Predicated region
        $region65: #{block_vit_forward.1} parent=11 // pred_check
          %p475 = pneg %p344
        $region66: #{block_vit_forward.1} parent=11 // pred_check_branch
          %477 = sbr.rel (%p475) target = $region68
        $region67: #{block_vit_forward.1} parent=11 // pred_region
          _
        $region68: #{block_vit_forward.1} parent=11 // pred_fallthru
          _
        // Predicated region
        $region69: #{block_vit_forward.1} parent=11 // pred_check
          %p478 = pneg %p365
        $region70: #{block_vit_forward.1} parent=11 // pred_check_branch
          %480 = sbr.rel (%p478) target = $region72
        $region71: #{block_vit_forward.1} parent=11 // pred_region
          _
        $region72: #{block_vit_forward.1} parent=11 // pred_fallthru
          _
      $region12: #{block_vit_forward.1} parent=5 // pred_fallthru
        _
      %p481 = scmp.lt.s32.totalorder %s24, 2
      // Predicated region
      $region73: #{block_vit_forward.1} parent=5 // pred_check
        %p482 = pneg %p481
      $region74: #{block_vit_forward.1} parent=5 // pred_check_branch
        %484 = sbr.rel (%p482) target = $region76
      $region75: #{block_vit_forward.1} parent=5 // pred_region
        // Predicated region
        $region77: #{block_vit_forward.1} parent=75 // pred_check
          %p485 = pneg %p44
        $region78: #{block_vit_forward.1} parent=75 // pred_check_branch
          %487 = sbr.rel (%p485) target = $region80
        $region79: #{block_vit_forward.1} parent=75 // pred_region
          %p488 = scmp.lt.s32.totalorder %s24, 1
          %s489 = scalar_select %p488, %s24, 1
          %s490 = smul.addr %s489, 2
          %s491 = smul.addr %s490, 8
          %s492 = scalar_lea.vmem %s0, %s491
        $region80: #{block_vit_forward.1} parent=75 // pred_fallthru
          _
      $region76: #{block_vit_forward.1} parent=5 // pred_fallthru
        _
      %p493 = scmp.le.s32.totalorder 1, %s24
      %p494 = scmp.lt.s32.totalorder %s24, 3
      %p495 = pnand %p493, %p494
      %p496 = pneg %p495
      // Predicated region
      $region81: #{block_vit_forward.1} parent=5 // pred_check
        _
      $region82: #{block_vit_forward.1} parent=5 // pred_check_branch
        %498 = sbr.rel (%p495) target = $region84
      $region83: #{block_vit_forward.1} parent=5 // pred_region
        %s499 = ssub.s32 %s24, 1
        // Predicated region
        $region85: #{block_vit_forward.1} parent=83 // pred_check
          %p500 = pneg %p239
        $region86: #{block_vit_forward.1} parent=83 // pred_check_branch
          %502 = sbr.rel (%p500) target = $region88
        $region87: #{block_vit_forward.1} parent=83 // pred_region
          %503 = dma.done [#allocation3], 10240
        $region88: #{block_vit_forward.1} parent=83 // pred_fallthru
          _
        // Predicated region
        $region89: #{block_vit_forward.1} parent=83 // pred_check
          %p504 = pneg %p281
        $region90: #{block_vit_forward.1} parent=83 // pred_check_branch
          %506 = sbr.rel (%p504) target = $region92
        $region91: #{block_vit_forward.1} parent=83 // pred_region
          %507 = dma.done [#allocation5], 2560
        $region92: #{block_vit_forward.1} parent=83 // pred_fallthru
          _
        // Predicated region
        $region93: #{block_vit_forward.1} parent=83 // pred_check
          %p508 = pneg %p302
        $region94: #{block_vit_forward.1} parent=83 // pred_check_branch
          %510 = sbr.rel (%p508) target = $region96
        $region95: #{block_vit_forward.1} parent=83 // pred_region
          %511 = dma.done [#allocation5], 6400
        $region96: #{block_vit_forward.1} parent=83 // pred_fallthru
          _
        %p512 = scmp.lt.s32.totalorder %s29, 1
        %s513 = scalar_select %p512, %s29, 1
        %s514 = smul.addr %s513, 2
        %s515 = smul.addr %s514, 8
        %s516 = scalar_lea.vmem %s0, %s515
        %p517 = pneg %p50
        %p518 = pneg %p47
        %p519 = pneg %p71
        %p520 = pneg %p68
        %p521 = pneg %p92
        %p522 = pneg %p89
        %p523 = pneg %p113
        %p524 = pneg %p110
        %p525 = pneg %p134
        %p526 = pneg %p131
        %p527 = pneg %p155
        %p528 = pneg %p152
        %p529 = pneg %p176
        %p530 = pneg %p173
        %p531 = pneg %p197
        %p532 = pneg %p194
        %p533 = pneg %p218
        %p534 = pneg %p215
        %p535 = pneg %p239
        %p536 = pneg %p236
        %p537 = pneg %p260
        %p538 = pneg %p257
        %p539 = pneg %p281
        %p540 = pneg %p278
        %p541 = pneg %p302
        %p542 = pneg %p299
        %p543 = pneg %p323
        %p544 = pneg %p320
        %p545 = pneg %p344
        %p546 = pneg %p341
        %p547 = pneg %p365
        %p548 = pneg %p362
        %p549 = pneg %p391
        %p550 = pneg %p388
        %p551 = scmp.lt.s32.totalorder %s29, 1
        %s552 = scalar_select %p551, %s29, 1
        %s553 = smul.addr %s552, 2
        %s554 = smul.addr %s553, 8
        %s555 = scalar_lea.vmem %s16, %s554
        %p556 = scmp.lt.s32.totalorder %s29, 1
        %s557 = scalar_select %p556, %s29, 1
        %s558 = smul.addr %s557, 2
        %s559 = smul.addr %s558, 8
        %s560 = scalar_lea.vmem %s0, %s559
        %p561 = scmp.lt.s32.totalorder %s29, 1
        %s562 = scalar_select %p561, %s29, 1
        %s563 = smul.addr %s562, 2
        %s564 = smul.addr %s563, 8
        %s565 = scalar_lea.vmem %s16, %s564
        %v567 = vld [vmem:[%s560] sm:$0xff]
        %v568 = vld [vmem:[%s560 + $0x8] sm:$0xff]
        %v569 = vld [vmem:[%s1] sm:$0xff]
        %v570 = vld [vmem:[%s1 + $0x8] sm:$0xff]
        %v571 = vld [vmem:[%s1 + $0x10] sm:$0xff]
        %v572 = vld [vmem:[%s1 + $0x18] sm:$0xff]
        %v573 = vld [vmem:[%s1 + $0x20] sm:$0xff]
        %v574 = vld [vmem:[%s1 + $0x28] sm:$0xff]
        %v575 = vld [vmem:[%s1 + $0x30] sm:$0xff]
        %v576 = vld [vmem:[%s1 + $0x38] sm:$0xff]
        %v577 = vld [vmem:[%s1 + $0x40] sm:$0xff]
        %v578 = vld [vmem:[%s1 + $0x48] sm:$0xff]
        %v579 = vld [vmem:[%s1 + $0x50] sm:$0xff]
        %v580 = vld [vmem:[%s1 + $0x58] sm:$0xff]
        %v581 = vld [vmem:[%s1 + $0x60] sm:$0xff]
        %v582 = vld [vmem:[%s1 + $0x68] sm:$0xff]
        %v583 = vld [vmem:[%s1 + $0x70] sm:$0xff]
        %v584 = vld [vmem:[%s1 + $0x78] sm:$0xff]
        %v585 = vld [vmem:[%s1 + $0x80] sm:$0xff]
        %v586 = vld [vmem:[%s1 + $0x88] sm:$0xff]
        %v587 = vld [vmem:[%s1 + $0x90] sm:$0xff]
        %v588 = vld [vmem:[%s1 + $0x98] sm:$0xff]
        %v589 = vld [vmem:[%s2] sm:$0x1]
        %v590 = vld [vmem:[%s3] sm:$0x3]
        %v591 = vld [vmem:[%s4] sm:$0x3]
        %vm592 = vcmask 261120
        %v594 = vsel %vm592, %v568, 0
        %596 = vmatprep.subr.mxu0 0.0
        %597 = vmatpush1.msra.mxu0 %v569
        %598 = vmatprep.subr.mxu0 0.0
        %599 = vmatpush1.msra.mxu0 %v570
        %600 = vmatprep.subr.mxu0 0.0
        %601 = vmatpush1.msra.mxu0 %v571
        %602 = vmatprep.subr.mxu0 0.0
        %603 = vmatpush1.msra.mxu0 %v572
        %604 = vmatprep.subr.mxu0 0.0
        %605 = vmatpush1.msra.mxu0 %v573
        %606 = vmatprep.subr.mxu0 0.0
        %607 = vmatpush1.msra.mxu0 %v574
        %608 = vmatprep.subr.mxu0 0.0
        %609 = vmatpush1.msra.mxu0 %v575
        %610 = vmatprep.subr.mxu0 0.0
        %611 = vmatpush1.msra.mxu0 %v576
        %612 = vmatprep.subr.mxu0 0.0
        %613 = vmatpush1.msra.mxu0 %v577
        %614 = vmatprep.subr.mxu0 0.0
        %615 = vmatpush1.msra.mxu0 %v578
        %616 = vmatprep.subr.mxu0 0.0
        %617 = vmatpush1.msra.mxu0 %v579
        %618 = vmatprep.subr.mxu0 0.0
        %619 = vmatpush1.msra.mxu0 %v580
        %620 = vmatprep.subr.mxu0 0.0
        %621 = vmatpush1.msra.mxu0 %v581
        %622 = vmatprep.subr.mxu0 0.0
        %623 = vmatpush1.msra.mxu0 %v582
        %624 = vmatprep.subr.mxu0 0.0
        %625 = vmatpush1.msra.mxu0 %v583
        %626 = vmatprep.subr.mxu0 0.0
        %627 = vmatpush1.msra.mxu0 %v584
        %628 = vmatprep.subr.mxu0 0.0
        %629 = vmatpush1.msra.mxu0 %v585
        %630 = vmatprep.subr.mxu0 0.0
        %631 = vmatpush1.msra.mxu0 %v586
        %632 = vmatprep.subr.mxu0 0.0
        %633 = vmatpush1.msra.mxu0 %v587
        %634 = vmatprep.subr.mxu0 0.0
        %635 = vmatpush1.msra.mxu0 %v588
        %636 = vmatprep.subr.mxu0 0.0
        %637 = vmatpush1.msra.mxu0 0.0
        %638 = vmatprep.subr.mxu0 0.0
        %639 = vmatpush1.msra.mxu0 0.0
        %640 = vmatprep.subr.mxu0 0.0
        %641 = vmatpush1.msra.mxu0 0.0
        %642 = vmatprep.subr.mxu0 0.0
        %643 = vmatpush1.msra.mxu0 0.0
        %644 = vmatprep.subr.mxu0 0.0
        %645 = vmatpush1.msra.mxu0 0.0
        %646 = vmatprep.subr.mxu0 0.0
        %647 = vmatpush1.msra.mxu0 0.0
        %648 = vmatprep.subr.mxu0 0.0
        %649 = vmatpush1.msra.mxu0 0.0
        %650 = vmatprep.subr.mxu0 0.0
        %651 = vmatpush1.msra.mxu0 0.0
        %652 = vmatprep.subr.mxu0 0.0
        %653 = vmatpush1.msra.mxu0 0.0
        %654 = vmatprep.subr.mxu0 0.0
        %655 = vmatpush1.msra.mxu0 0.0
        %656 = vmatprep.subr.mxu0 0.0
        %657 = vmatpush1.msra.mxu0 0.0
        %658 = vmatprep.subr.mxu0 0.0
        %659 = vmatpush1.msra.mxu0 0.0
        %660 = vmatprep.mubr.f32.mxu0 %v594
        %661 = vmatmul.mubr.f32.gmra.mrb[0].mxu0 %v567
        %v662 = vpop.f32.mrb[0].mxu0
        %v663 = vadd.f32 0.0, %v662
        %v664 = vpop.f32.mrb[0].mxu0
        %665 = vdwg.mxu0
        %v666 = vmul.f32 %v567, %v567
        %v667 = vmul.f32 %v568, %v568
        %v669 = vsel %vm592, %v667, 0
        %671 = vmatprep.subr.mxu0 0.0
        %672 = vmatpush1.msra.mxu0 %v569
        %673 = vmatprep.subr.mxu0 0.0
        %674 = vmatpush1.msra.mxu0 %v570
        %675 = vmatprep.subr.mxu0 0.0
        %676 = vmatpush1.msra.mxu0 %v571
        %677 = vmatprep.subr.mxu0 0.0
        %678 = vmatpush1.msra.mxu0 %v572
        %679 = vmatprep.subr.mxu0 0.0
        %680 = vmatpush1.msra.mxu0 %v573
        %681 = vmatprep.subr.mxu0 0.0
        %682 = vmatpush1.msra.mxu0 %v574
        %683 = vmatprep.subr.mxu0 0.0
        %684 = vmatpush1.msra.mxu0 %v575
        %685 = vmatprep.subr.mxu0 0.0
        %686 = vmatpush1.msra.mxu0 %v576
        %687 = vmatprep.subr.mxu0 0.0
        %688 = vmatpush1.msra.mxu0 %v577
        %689 = vmatprep.subr.mxu0 0.0
        %690 = vmatpush1.msra.mxu0 %v578
        %691 = vmatprep.subr.mxu0 0.0
        %692 = vmatpush1.msra.mxu0 %v579
        %693 = vmatprep.subr.mxu0 0.0
        %694 = vmatpush1.msra.mxu0 %v580
        %695 = vmatprep.subr.mxu0 0.0
        %696 = vmatpush1.msra.mxu0 %v581
        %697 = vmatprep.subr.mxu0 0.0
        %698 = vmatpush1.msra.mxu0 %v582
        %699 = vmatprep.subr.mxu0 0.0
        %700 = vmatpush1.msra.mxu0 %v583
        %701 = vmatprep.subr.mxu0 0.0
        %702 = vmatpush1.msra.mxu0 %v584
        %703 = vmatprep.subr.mxu0 0.0
        %704 = vmatpush1.msra.mxu0 %v585
        %705 = vmatprep.subr.mxu0 0.0
        %706 = vmatpush1.msra.mxu0 %v586
        %707 = vmatprep.subr.mxu0 0.0
        %708 = vmatpush1.msra.mxu0 %v587
        %709 = vmatprep.subr.mxu0 0.0
        %710 = vmatpush1.msra.mxu0 %v588
        %711 = vmatprep.subr.mxu0 0.0
        %712 = vmatpush1.msra.mxu0 0.0
        %713 = vmatprep.subr.mxu0 0.0
        %714 = vmatpush1.msra.mxu0 0.0
        %715 = vmatprep.subr.mxu0 0.0
        %716 = vmatpush1.msra.mxu0 0.0
        %717 = vmatprep.subr.mxu0 0.0
        %718 = vmatpush1.msra.mxu0 0.0
        %719 = vmatprep.subr.mxu0 0.0
        %720 = vmatpush1.msra.mxu0 0.0
        %721 = vmatprep.subr.mxu0 0.0
        %722 = vmatpush1.msra.mxu0 0.0
        %723 = vmatprep.subr.mxu0 0.0
        %724 = vmatpush1.msra.mxu0 0.0
        %725 = vmatprep.subr.mxu0 0.0
        %726 = vmatpush1.msra.mxu0 0.0
        %727 = vmatprep.subr.mxu0 0.0
        %728 = vmatpush1.msra.mxu0 0.0
        %729 = vmatprep.subr.mxu0 0.0
        %730 = vmatpush1.msra.mxu0 0.0
        %731 = vmatprep.subr.mxu0 0.0
        %732 = vmatpush1.msra.mxu0 0.0
        %733 = vmatprep.subr.mxu0 0.0
        %734 = vmatpush1.msra.mxu0 0.0
        %735 = vmatprep.mubr.f32.mxu0 %v669
        %736 = vmatmul.mubr.f32.gmra.mrb[0].mxu0 %v666
        %v737 = vpop.f32.mrb[0].mxu0
        %v738 = vadd.f32 0.0, %v737
        %v739 = vpop.f32.mrb[0].mxu0
        %740 = vdwg.mxu0
        %v742 = vlaneseq
        %v743 = vshrl.u32 %v742, 7
        %v744 = vsub.s32 0, %v743
        %v745 = vrot.slane %v589, %v744
        %v747 = vmul.f32 %v663, %v745
        %v748 = vmul.f32 %v738, %v745
        %v749 = vmul.f32 %v747, %v747
        %v750 = vsub.f32 %v748, %v749
        %v751 = vmax.f32 %v750, 0.0
        %v752 = vadd.f32 %v751, 1e-06
        %v753 = vrsqrt.pop %v752
        %vm754 = vcmask 64512
        %v756 = vsel %vm754, %v747, 0
        %v759 = vsel %vm754, %v569, 0
        %v762 = vsel %vm754, %v570, 0
        %v765 = vsel %vm754, %v571, 0
        %v768 = vsel %vm754, %v572, 0
        %v771 = vsel %vm754, %v573, 0
        %v774 = vsel %vm754, %v574, 0
        %v777 = vsel %vm754, %v575, 0
        %v780 = vsel %vm754, %v576, 0
        %v783 = vsel %vm754, %v577, 0
        %v786 = vsel %vm754, %v578, 0
        %v789 = vsel %vm754, %v579, 0
        %v792 = vsel %vm754, %v580, 0
        %v795 = vsel %vm754, %v581, 0
        %v798 = vsel %vm754, %v582, 0
        %v801 = vsel %vm754, %v583, 0
        %v804 = vsel %vm754, %v584, 0
        %v807 = vsel %vm754, %v585, 0
        %v810 = vsel %vm754, %v586, 0
        %v813 = vsel %vm754, %v587, 0
        %v816 = vsel %vm754, %v588, 0
        %818 = vmatprep.subr.mxu0 0.0
        %819 = vmatpush1.xpose.msra.mxu0 %v759
        %820 = vmatprep.subr.mxu0 0.0
        %821 = vmatpush1.xpose.msra.mxu0 %v762
        %822 = vmatprep.subr.mxu0 0.0
        %823 = vmatpush1.xpose.msra.mxu0 %v765
        %824 = vmatprep.subr.mxu0 0.0
        %825 = vmatpush1.xpose.msra.mxu0 %v768
        %826 = vmatprep.subr.mxu0 0.0
        %827 = vmatpush1.xpose.msra.mxu0 %v771
        %828 = vmatprep.subr.mxu0 0.0
        %829 = vmatpush1.xpose.msra.mxu0 %v774
        %830 = vmatprep.subr.mxu0 0.0
        %831 = vmatpush1.xpose.msra.mxu0 %v777
        %832 = vmatprep.subr.mxu0 0.0
        %833 = vmatpush1.xpose.msra.mxu0 %v780
        %834 = vmatprep.subr.mxu0 0.0
        %835 = vmatpush1.xpose.msra.mxu0 %v783
        %836 = vmatprep.subr.mxu0 0.0
        %837 = vmatpush1.xpose.msra.mxu0 %v786
        %838 = vmatprep.subr.mxu0 0.0
        %839 = vmatpush1.xpose.msra.mxu0 %v789
        %840 = vmatprep.subr.mxu0 0.0
        %841 = vmatpush1.xpose.msra.mxu0 %v792
        %842 = vmatprep.subr.mxu0 0.0
        %843 = vmatpush1.xpose.msra.mxu0 %v795
        %844 = vmatprep.subr.mxu0 0.0
        %845 = vmatpush1.xpose.msra.mxu0 %v798
        %846 = vmatprep.subr.mxu0 0.0
        %847 = vmatpush1.xpose.msra.mxu0 %v801
        %848 = vmatprep.subr.mxu0 0.0
        %849 = vmatpush1.xpose.msra.mxu0 %v804
        %850 = vmatprep.subr.mxu0 0.0
        %851 = vmatpush1.xpose.msra.mxu0 %v807
        %852 = vmatprep.subr.mxu0 0.0
        %853 = vmatpush1.xpose.msra.mxu0 %v810
        %854 = vmatprep.subr.mxu0 0.0
        %855 = vmatpush1.xpose.msra.mxu0 %v813
        %856 = vmatprep.subr.mxu0 0.0
        %857 = vmatpush1.xpose.msra.mxu0 %v816
        %858 = vmatprep.subr.mxu0 0.0
        %859 = vmatpush1.xpose.msra.mxu0 0.0
        %860 = vmatprep.subr.mxu0 0.0
        %861 = vmatpush1.xpose.msra.mxu0 0.0
        %862 = vmatprep.subr.mxu0 0.0
        %863 = vmatpush1.xpose.msra.mxu0 0.0
        %864 = vmatprep.subr.mxu0 0.0
        %865 = vmatpush1.xpose.msra.mxu0 0.0
        %866 = vmatprep.subr.mxu0 0.0
        %867 = vmatpush1.xpose.msra.mxu0 0.0
        %868 = vmatprep.subr.mxu0 0.0
        %869 = vmatpush1.xpose.msra.mxu0 0.0
        %870 = vmatprep.subr.mxu0 0.0
        %871 = vmatpush1.xpose.msra.mxu0 0.0
        %872 = vmatprep.subr.mxu0 0.0
        %873 = vmatpush1.xpose.msra.mxu0 0.0
        %874 = vmatprep.subr.mxu0 0.0
        %875 = vmatpush1.xpose.msra.mxu0 0.0
        %876 = vmatprep.subr.mxu0 0.0
        %877 = vmatpush1.xpose.msra.mxu0 0.0
        %878 = vmatprep.subr.mxu0 0.0
        %879 = vmatpush1.xpose.msra.mxu0 0.0
        %880 = vmatprep.subr.mxu0 0.0
        %881 = vmatpush1.xpose.msra.mxu0 0.0
        %882 = vmatprep.mubr.f32.mxu0 0.0
        %883 = vmatmul.mubr.f32.gmra.mrb[0].mxu0 %v756
        %v884 = vpop.f32.mrb[0].mxu0
        %v885 = vadd.f32 0.0, %v884
        %v886 = vpop.f32.mrb[0].mxu0
        %v887 = vadd.f32 0.0, %v886
        %888 = vdwg.mxu0
        %v890 = vsel %vm754, %v753, 0
        %892 = vmatprep.subr.mxu0 0.0
        %893 = vmatpush1.xpose.msra.mxu0 %v759
        %894 = vmatprep.subr.mxu0 0.0
        %895 = vmatpush1.xpose.msra.mxu0 %v762
        %896 = vmatprep.subr.mxu0 0.0
        %897 = vmatpush1.xpose.msra.mxu0 %v765
        %898 = vmatprep.subr.mxu0 0.0
        %899 = vmatpush1.xpose.msra.mxu0 %v768
        %900 = vmatprep.subr.mxu0 0.0
        %901 = vmatpush1.xpose.msra.mxu0 %v771
        %902 = vmatprep.subr.mxu0 0.0
        %903 = vmatpush1.xpose.msra.mxu0 %v774
        %904 = vmatprep.subr.mxu0 0.0
        %905 = vmatpush1.xpose.msra.mxu0 %v777
        %906 = vmatprep.subr.mxu0 0.0
        %907 = vmatpush1.xpose.msra.mxu0 %v780
        %908 = vmatprep.subr.mxu0 0.0
        %909 = vmatpush1.xpose.msra.mxu0 %v783
        %910 = vmatprep.subr.mxu0 0.0
        %911 = vmatpush1.xpose.msra.mxu0 %v786
        %912 = vmatprep.subr.mxu0 0.0
        %913 = vmatpush1.xpose.msra.mxu0 %v789
        %914 = vmatprep.subr.mxu0 0.0
        %915 = vmatpush1.xpose.msra.mxu0 %v792
        %916 = vmatprep.subr.mxu0 0.0
        %917 = vmatpush1.xpose.msra.mxu0 %v795
        %918 = vmatprep.subr.mxu0 0.0
        %919 = vmatpush1.xpose.msra.mxu0 %v798
        %920 = vmatprep.subr.mxu0 0.0
        %921 = vmatpush1.xpose.msra.mxu0 %v801
        %922 = vmatprep.subr.mxu0 0.0
        %923 = vmatpush1.xpose.msra.mxu0 %v804
        %924 = vmatprep.subr.mxu0 0.0
        %925 = vmatpush1.xpose.msra.mxu0 %v807
        %926 = vmatprep.subr.mxu0 0.0
        %927 = vmatpush1.xpose.msra.mxu0 %v810
        %928 = vmatprep.subr.mxu0 0.0
        %929 = vmatpush1.xpose.msra.mxu0 %v813
        %930 = vmatprep.subr.mxu0 0.0
        %931 = vmatpush1.xpose.msra.mxu0 %v816
        %932 = vmatprep.subr.mxu0 0.0
        %933 = vmatpush1.xpose.msra.mxu0 0.0
        %934 = vmatprep.subr.mxu0 0.0
        %935 = vmatpush1.xpose.msra.mxu0 0.0
        %936 = vmatprep.subr.mxu0 0.0
        %937 = vmatpush1.xpose.msra.mxu0 0.0
        %938 = vmatprep.subr.mxu0 0.0
        %939 = vmatpush1.xpose.msra.mxu0 0.0
        %940 = vmatprep.subr.mxu0 0.0
        %941 = vmatpush1.xpose.msra.mxu0 0.0
        %942 = vmatprep.subr.mxu0 0.0
        %943 = vmatpush1.xpose.msra.mxu0 0.0
        %944 = vmatprep.subr.mxu0 0.0
        %945 = vmatpush1.xpose.msra.mxu0 0.0
        %946 = vmatprep.subr.mxu0 0.0
        %947 = vmatpush1.xpose.msra.mxu0 0.0
        %948 = vmatprep.subr.mxu0 0.0
        %949 = vmatpush1.xpose.msra.mxu0 0.0
        %950 = vmatprep.subr.mxu0 0.0
        %951 = vmatpush1.xpose.msra.mxu0 0.0
        %952 = vmatprep.subr.mxu0 0.0
        %953 = vmatpush1.xpose.msra.mxu0 0.0
        %954 = vmatprep.subr.mxu0 0.0
        %955 = vmatpush1.xpose.msra.mxu0 0.0
        %956 = vmatprep.mubr.f32.mxu0 0.0
        %957 = vmatmul.mubr.f32.gmra.mrb[0].mxu0 %v890
        %v958 = vpop.f32.mrb[0].mxu0
        %v959 = vadd.f32 0.0, %v958
        %v960 = vpop.f32.mrb[0].mxu0
        %v961 = vadd.f32 0.0, %v960
        %962 = vdwg.mxu0
        %v963 = vsub.f32 %v567, %v885
        %v964 = vsub.f32 %v568, %v887
        %v965 = vmul.f32 %v963, %v959
        %v966 = vmul.f32 %v964, %v961
        %v968 = vlaneseq
        %v969 = vshrl.u32 %v968, 7
        %v970 = vsub.s32 0, %v969
        %v971 = vrot.slane %v590, %v970
        %v972 = vlaneseq
        %v973 = vshrl.u32 %v972, 7
        %v974 = vsub.s32 1, %v973
        %v975 = vrot.slane %v590, %v974
        %v978 = vmul.f32 %v965, %v971
        %v979 = vmul.f32 %v966, %v975
        %v981 = vlaneseq
        %v982 = vshrl.u32 %v981, 7
        %v983 = vsub.s32 0, %v982
        %v984 = vrot.slane %v591, %v983
        %v985 = vlaneseq
        %v986 = vshrl.u32 %v985, 7
        %v987 = vsub.s32 1, %v986
        %v988 = vrot.slane %v591, %v987
        %v991 = vadd.f32 %v978, %v984
        %v992 = vadd.f32 %v979, %v988
        %v993 = vld [vmem:[%s5] sm:$0x3]
        %v994 = vld [vmem:[%s6] sm:$0x3]
        %v995 = vsel %vm592, %v568, 0.0
        %v996 = vadd.f32 %v567, %v995
        %997 = vadd.xlane.f32.xlu0 %v996
        %v998 = vpop.xlane.xlu0 %997
        %v999 = vrcp.pop 160.0
        %v1000 = vmul.f32 %v998, %v999
        %v1001 = vsel %vm592, %v667, 0.0
        %v1002 = vadd.f32 %v666, %v1001
        %1003 = vadd.xlane.f32.xlu0 %v1002
        %v1004 = vpop.xlane.xlu0 %1003
        %v1005 = vmul.f32 %v1004, %v999
        %v1006 = vmul.f32 %v1000, %v1000
        %v1007 = vsub.f32 %v1005, %v1006
        %v1008 = vmax.f32 %v1007, 0.0
        %v1009 = vsub.f32 %v567, %v1000
        %v1010 = vsub.f32 %v568, %v1000
        %v1011 = vadd.f32 %v1008, 1e-06
        %v1012 = vrsqrt.pop %v1011
        %v1013 = vmul.f32 %v1009, %v1012
        %v1014 = vmul.f32 %v1010, %v1012
        %v1016 = vlaneseq
        %v1017 = vshrl.u32 %v1016, 7
        %v1018 = vsub.s32 0, %v1017
        %v1019 = vrot.slane %v993, %v1018
        %v1020 = vlaneseq
        %v1021 = vshrl.u32 %v1020, 7
        %v1022 = vsub.s32 1, %v1021
        %v1023 = vrot.slane %v993, %v1022
        %v1026 = vmul.f32 %v1013, %v1019
        %v1027 = vmul.f32 %v1014, %v1023
        %v1029 = vlaneseq
        %v1030 = vshrl.u32 %v1029, 7
        %v1031 = vsub.s32 0, %v1030
        %v1032 = vrot.slane %v994, %v1031
        %v1033 = vlaneseq
        %v1034 = vshrl.u32 %v1033, 7
        %v1035 = vsub.s32 1, %v1034
        %v1036 = vrot.slane %v994, %v1035
        %v1039 = vadd.f32 %v1026, %v1032
        %v1040 = vadd.f32 %v1027, %v1036
        %v1041 = vpack.c.bf16 %v991, %v991
        %v1042 = vpack.c.bf16 %v992, %v992
        %v1043 = vld [vmem:[#allocation2] sm:$0xff]
        %v1044 = vld [vmem:[#allocation2 + $0x8] sm:$0xff]
        %v1045 = vld [vmem:[#allocation2 + $0x10] sm:$0xff]
        %v1046 = vld [vmem:[#allocation2 + $0x18] sm:$0xff]
        %v1047 = vld [vmem:[#allocation2 + $0x20] sm:$0xff]
        %v1048 = vld [vmem:[#allocation2 + $0x28] sm:$0xff]
        %v1049 = vld [vmem:[#allocation2 + $0x30] sm:$0xff]
        %v1050 = vld [vmem:[#allocation2 + $0x38] sm:$0xff]
        %v1051 = vld [vmem:[#allocation2 + $0x40] sm:$0xff]
        %v1052 = vld [vmem:[#allocation2 + $0x48] sm:$0xff]
        %v1053 = vld [vmem:[#allocation2 + $0x50] sm:$0xff]
        %v1054 = vld [vmem:[#allocation2 + $0x58] sm:$0xff]
        %v1055 = vld [vmem:[#allocation2 + $0x60] sm:$0xff]
        %v1056 = vld [vmem:[#allocation2 + $0x68] sm:$0xff]
        %v1057 = vld [vmem:[#allocation2 + $0x70] sm:$0xff]
        %v1058 = vld [vmem:[#allocation2 + $0x78] sm:$0xff]
        %v1059 = vld [vmem:[#allocation2 + $0x80] sm:$0xff]
        %v1060 = vld [vmem:[#allocation2 + $0x88] sm:$0xff]
        %v1061 = vld [vmem:[#allocation2 + $0x90] sm:$0xff]
        %v1062 = vld [vmem:[#allocation2 + $0x98] sm:$0xff]
        %v1063 = vld [vmem:[#allocation2 + $0xa0] sm:$0xff]
        %v1064 = vld [vmem:[#allocation2 + $0xa8] sm:$0xff]
        %v1065 = vld [vmem:[#allocation2 + $0xb0] sm:$0xff]
        %v1066 = vld [vmem:[#allocation2 + $0xb8] sm:$0xff]
        %v1067 = vld [vmem:[#allocation2 + $0xc0] sm:$0xff]
        %v1068 = vld [vmem:[#allocation2 + $0xc8] sm:$0xff]
        %v1069 = vld [vmem:[#allocation2 + $0xd0] sm:$0xff]
        %v1070 = vld [vmem:[#allocation2 + $0xd8] sm:$0xff]
        %v1071 = vld [vmem:[#allocation2 + $0xe0] sm:$0xff]
        %v1072 = vld [vmem:[#allocation2 + $0xe8] sm:$0xff]
        %v1073 = vld [vmem:[#allocation2 + $0xf0] sm:$0xff]
        %v1074 = vld [vmem:[#allocation2 + $0xf8] sm:$0xff]
        %v1075 = vld [vmem:[#allocation2 + $0x100] sm:$0xff]
        %v1076 = vld [vmem:[#allocation2 + $0x108] sm:$0xff]
        %v1077 = vld [vmem:[#allocation2 + $0x110] sm:$0xff]
        %v1078 = vld [vmem:[#allocation2 + $0x118] sm:$0xff]
        %v1079 = vld [vmem:[#allocation2 + $0x120] sm:$0xff]
        %v1080 = vld [vmem:[#allocation2 + $0x128] sm:$0xff]
        %v1081 = vld [vmem:[#allocation2 + $0x130] sm:$0xff]
        %v1082 = vld [vmem:[#allocation2 + $0x138] sm:$0xff]
        %v1083 = vld [vmem:[#allocation2 + $0x140] sm:$0xff]
        %v1084 = vld [vmem:[#allocation2 + $0x148] sm:$0xff]
        %v1085 = vld [vmem:[#allocation2 + $0x150] sm:$0xff]
        %v1086 = vld [vmem:[#allocation2 + $0x158] sm:$0xff]
        %v1087 = vld [vmem:[#allocation2 + $0x160] sm:$0xff]
        %v1088 = vld [vmem:[#allocation2 + $0x168] sm:$0xff]
        %v1089 = vld [vmem:[#allocation2 + $0x170] sm:$0xff]
        %v1090 = vld [vmem:[#allocation2 + $0x178] sm:$0xff]
        %v1091 = vld [vmem:[#allocation2 + $0x180] sm:$0xff]
        %v1092 = vld [vmem:[#allocation2 + $0x188] sm:$0xff]
        %v1093 = vld [vmem:[#allocation2 + $0x190] sm:$0xff]
        %v1094 = vld [vmem:[#allocation2 + $0x198] sm:$0xff]
        %v1095 = vld [vmem:[#allocation2 + $0x1a0] sm:$0xff]
        %v1096 = vld [vmem:[#allocation2 + $0x1a8] sm:$0xff]
        %v1097 = vld [vmem:[#allocation2 + $0x1b0] sm:$0xff]
        %v1098 = vld [vmem:[#allocation2 + $0x1b8] sm:$0xff]
        %v1099 = vld [vmem:[#allocation2 + $0x1c0] sm:$0xff]
        %v1100 = vld [vmem:[#allocation2 + $0x1c8] sm:$0xff]
        %v1101 = vld [vmem:[#allocation2 + $0x1d0] sm:$0xff]
        %v1102 = vld [vmem:[#allocation2 + $0x1d8] sm:$0xff]
        %v1103 = vld [vmem:[#allocation2 + $0x1e0] sm:$0xff]
        %v1104 = vld [vmem:[#allocation2 + $0x1e8] sm:$0xff]
        %v1105 = vld [vmem:[#allocation2 + $0x1f0] sm:$0xff]
        %v1106 = vld [vmem:[#allocation2 + $0x1f8] sm:$0xff]
        %v1107 = vld [vmem:[#allocation2 + $0x200] sm:$0xff]
        %v1108 = vld [vmem:[#allocation2 + $0x208] sm:$0xff]
        %v1109 = vld [vmem:[#allocation2 + $0x210] sm:$0xff]
        %v1110 = vld [vmem:[#allocation2 + $0x218] sm:$0xff]
        %v1111 = vld [vmem:[#allocation2 + $0x220] sm:$0xff]
        %v1112 = vld [vmem:[#allocation2 + $0x228] sm:$0xff]
        %v1113 = vld [vmem:[#allocation2 + $0x230] sm:$0xff]
        %v1114 = vld [vmem:[#allocation2 + $0x238] sm:$0xff]
        %v1115 = vld [vmem:[#allocation2 + $0x240] sm:$0xff]
        %v1116 = vld [vmem:[#allocation2 + $0x248] sm:$0xff]
        %v1117 = vld [vmem:[#allocation2 + $0x250] sm:$0xff]
        %v1118 = vld [vmem:[#allocation2 + $0x258] sm:$0xff]
        %v1119 = vld [vmem:[#allocation2 + $0x260] sm:$0xff]
        %v1120 = vld [vmem:[#allocation2 + $0x268] sm:$0xff]
        %v1121 = vld [vmem:[#allocation2 + $0x270] sm:$0xff]
        %v1122 = vld [vmem:[#allocation2 + $0x278] sm:$0xff]
        %v1203 = vunpack.c.l.b16 %v1043
        %v1204 = vunpack.c.h.b16 %v1043
        %v1205 = vunpack.c.l.b16 %v1044
        %v1206 = vunpack.c.h.b16 %v1044
        %v1207 = vunpack.c.l.b16 %v1045
        %v1208 = vunpack.c.h.b16 %v1045
        %v1209 = vunpack.c.l.b16 %v1046
        %v1210 = vunpack.c.h.b16 %v1046
        %v1211 = vunpack.c.l.b16 %v1047
        %v1212 = vunpack.c.h.b16 %v1047
        %v1213 = vunpack.c.l.b16 %v1048
        %v1214 = vunpack.c.h.b16 %v1048
        %v1215 = vunpack.c.l.b16 %v1049
        %v1216 = vunpack.c.h.b16 %v1049
        %v1217 = vunpack.c.l.b16 %v1050
        %v1218 = vunpack.c.h.b16 %v1050
        %v1219 = vunpack.c.l.b16 %v1051
        %v1220 = vunpack.c.h.b16 %v1051
        %v1221 = vunpack.c.l.b16 %v1052
        %v1222 = vunpack.c.h.b16 %v1052
        %v1223 = vunpack.c.l.b16 %v1053
        %v1224 = vunpack.c.h.b16 %v1053
        %v1225 = vunpack.c.l.b16 %v1054
        %v1226 = vunpack.c.h.b16 %v1054
        %v1227 = vunpack.c.l.b16 %v1055
        %v1228 = vunpack.c.h.b16 %v1055
        %v1229 = vunpack.c.l.b16 %v1056
        %v1230 = vunpack.c.h.b16 %v1056
        %v1231 = vunpack.c.l.b16 %v1057
        %v1232 = vunpack.c.h.b16 %v1057
        %v1233 = vunpack.c.l.b16 %v1058
        %v1234 = vunpack.c.h.b16 %v1058
        %v1235 = vunpack.c.l.b16 %v1059
        %v1236 = vunpack.c.h.b16 %v1059
        %v1237 = vunpack.c.l.b16 %v1060
        %v1238 = vunpack.c.h.b16 %v1060
        %v1239 = vunpack.c.l.b16 %v1061
        %v1240 = vunpack.c.h.b16 %v1061
        %v1241 = vunpack.c.l.b16 %v1062
        %v1242 = vunpack.c.h.b16 %v1062
        %v1243 = vunpack.c.l.b16 %v1063
        %v1244 = vunpack.c.h.b16 %v1063
        %v1245 = vunpack.c.l.b16 %v1064
        %v1246 = vunpack.c.h.b16 %v1064
        %v1247 = vunpack.c.l.b16 %v1065
        %v1248 = vunpack.c.h.b16 %v1065
        %v1249 = vunpack.c.l.b16 %v1066
        %v1250 = vunpack.c.h.b16 %v1066
        %v1251 = vunpack.c.l.b16 %v1067
        %v1252 = vunpack.c.h.b16 %v1067
        %v1253 = vunpack.c.l.b16 %v1068
        %v1254 = vunpack.c.h.b16 %v1068
        %v1255 = vunpack.c.l.b16 %v1069
        %v1256 = vunpack.c.h.b16 %v1069
        %v1257 = vunpack.c.l.b16 %v1070
        %v1258 = vunpack.c.h.b16 %v1070
        %v1259 = vunpack.c.l.b16 %v1071
        %v1260 = vunpack.c.h.b16 %v1071
        %v1261 = vunpack.c.l.b16 %v1072
        %v1262 = vunpack.c.h.b16 %v1072
        %v1263 = vunpack.c.l.b16 %v1073
        %v1264 = vunpack.c.h.b16 %v1073
        %v1265 = vunpack.c.l.b16 %v1074
        %v1266 = vunpack.c.h.b16 %v1074
        %v1267 = vunpack.c.l.b16 %v1075
        %v1268 = vunpack.c.h.b16 %v1075
        %v1269 = vunpack.c.l.b16 %v1076
        %v1270 = vunpack.c.h.b16 %v1076
        %v1271 = vunpack.c.l.b16 %v1077
        %v1272 = vunpack.c.h.b16 %v1077
        %v1273 = vunpack.c.l.b16 %v1078
        %v1274 = vunpack.c.h.b16 %v1078
        %v1275 = vunpack.c.l.b16 %v1079
        %v1276 = vunpack.c.h.b16 %v1079
        %v1277 = vunpack.c.l.b16 %v1080
        %v1278 = vunpack.c.h.b16 %v1080
        %v1279 = vunpack.c.l.b16 %v1081
        %v1280 = vunpack.c.h.b16 %v1081
        %v1281 = vunpack.c.l.b16 %v1082
        %v1282 = vunpack.c.h.b16 %v1082
        %v1283 = vunpack.c.l.b16 %v1083
        %v1284 = vunpack.c.h.b16 %v1083
        %v1285 = vunpack.c.l.b16 %v1084
        %v1286 = vunpack.c.h.b16 %v1084
        %v1287 = vunpack.c.l.b16 %v1085
        %v1288 = vunpack.c.h.b16 %v1085
        %v1289 = vunpack.c.l.b16 %v1086
        %v1290 = vunpack.c.h.b16 %v1086
        %v1291 = vunpack.c.l.b16 %v1087
        %v1292 = vunpack.c.h.b16 %v1087
        %v1293 = vunpack.c.l.b16 %v1088
        %v1294 = vunpack.c.h.b16 %v1088
        %v1295 = vunpack.c.l.b16 %v1089
        %v1296 = vunpack.c.h.b16 %v1089
        %v1297 = vunpack.c.l.b16 %v1090
        %v1298 = vunpack.c.h.b16 %v1090
        %v1299 = vunpack.c.l.b16 %v1091
        %v1300 = vunpack.c.h.b16 %v1091
        %v1301 = vunpack.c.l.b16 %v1092
        %v1302 = vunpack.c.h.b16 %v1092
        %v1303 = vunpack.c.l.b16 %v1093
        %v1304 = vunpack.c.h.b16 %v1093
        %v1305 = vunpack.c.l.b16 %v1094
        %v1306 = vunpack.c.h.b16 %v1094
        %v1307 = vunpack.c.l.b16 %v1095
        %v1308 = vunpack.c.h.b16 %v1095
        %v1309 = vunpack.c.l.b16 %v1096
        %v1310 = vunpack.c.h.b16 %v1096
        %v1311 = vunpack.c.l.b16 %v1097
        %v1312 = vunpack.c.h.b16 %v1097
        %v1313 = vunpack.c.l.b16 %v1098
        %v1314 = vunpack.c.h.b16 %v1098
        %v1315 = vunpack.c.l.b16 %v1099
        %v1316 = vunpack.c.h.b16 %v1099
        %v1317 = vunpack.c.l.b16 %v1100
        %v1318 = vunpack.c.h.b16 %v1100
        %v1319 = vunpack.c.l.b16 %v1101
        %v1320 = vunpack.c.h.b16 %v1101
        %v1321 = vunpack.c.l.b16 %v1102
        %v1322 = vunpack.c.h.b16 %v1102
        %v1323 = vunpack.c.l.b16 %v1103
        %v1324 = vunpack.c.h.b16 %v1103
        %v1325 = vunpack.c.l.b16 %v1104
        %v1326 = vunpack.c.h.b16 %v1104
        %v1327 = vunpack.c.l.b16 %v1105
        %v1328 = vunpack.c.h.b16 %v1105
        %v1329 = vunpack.c.l.b16 %v1106
        %v1330 = vunpack.c.h.b16 %v1106
        %v1331 = vunpack.c.l.b16 %v1107
        %v1332 = vunpack.c.h.b16 %v1107
        %v1333 = vunpack.c.l.b16 %v1108
        %v1334 = vunpack.c.h.b16 %v1108
        %v1335 = vunpack.c.l.b16 %v1109
        %v1336 = vunpack.c.h.b16 %v1109
        %v1337 = vunpack.c.l.b16 %v1110
        %v1338 = vunpack.c.h.b16 %v1110
        %v1339 = vunpack.c.l.b16 %v1111
        %v1340 = vunpack.c.h.b16 %v1111
        %v1341 = vunpack.c.l.b16 %v1112
        %v1342 = vunpack.c.h.b16 %v1112
        %v1343 = vunpack.c.l.b16 %v1113
        %v1344 = vunpack.c.h.b16 %v1113
        %v1345 = vunpack.c.l.b16 %v1114
        %v1346 = vunpack.c.h.b16 %v1114
        %v1347 = vunpack.c.l.b16 %v1115
        %v1348 = vunpack.c.h.b16 %v1115
        %v1349 = vunpack.c.l.b16 %v1116
        %v1350 = vunpack.c.h.b16 %v1116
        %v1351 = vunpack.c.l.b16 %v1117
        %v1352 = vunpack.c.h.b16 %v1117
        %v1353 = vunpack.c.l.b16 %v1118
        %v1354 = vunpack.c.h.b16 %v1118
        %v1355 = vunpack.c.l.b16 %v1119
        %v1356 = vunpack.c.h.b16 %v1119
        %v1357 = vunpack.c.l.b16 %v1120
        %v1358 = vunpack.c.h.b16 %v1120
        %v1359 = vunpack.c.l.b16 %v1121
        %v1360 = vunpack.c.h.b16 %v1121
        %v1361 = vunpack.c.l.b16 %v1122
        %v1362 = vunpack.c.h.b16 %v1122
        %v1363 = vpack.c.b16 %v1211, %v1203
        %v1364 = vpack.c.b16 %v1212, %v1204
        %v1365 = vpack.c.b16 %v1213, %v1205
        %v1366 = vpack.c.b16 %v1214, %v1206
        %v1367 = vpack.c.b16 %v1215, %v1207
        %v1368 = vpack.c.b16 %v1216, %v1208
        %v1369 = vpack.c.b16 %v1217, %v1209
        %v1370 = vpack.c.b16 %v1218, %v1210
        %v1371 = vpack.c.b16 %v1227, %v1219
        %v1372 = vpack.c.b16 %v1228, %v1220
        %v1373 = vpack.c.b16 %v1229, %v1221
        %v1374 = vpack.c.b16 %v1230, %v1222
        %v1375 = vpack.c.b16 %v1231, %v1223
        %v1376 = vpack.c.b16 %v1232, %v1224
        %v1377 = vpack.c.b16 %v1233, %v1225
        %v1378 = vpack.c.b16 %v1234, %v1226
        %v1379 = vpack.c.b16 %v1243, %v1235
        %v1380 = vpack.c.b16 %v1244, %v1236
        %v1381 = vpack.c.b16 %v1245, %v1237
        %v1382 = vpack.c.b16 %v1246, %v1238
        %v1383 = vpack.c.b16 %v1247, %v1239
        %v1384 = vpack.c.b16 %v1248, %v1240
        %v1385 = vpack.c.b16 %v1249, %v1241
        %v1386 = vpack.c.b16 %v1250, %v1242
        %v1387 = vpack.c.b16 %v1259, %v1251
        %v1388 = vpack.c.b16 %v1260, %v1252
        %v1389 = vpack.c.b16 %v1261, %v1253
        %v1390 = vpack.c.b16 %v1262, %v1254
        %v1391 = vpack.c.b16 %v1263, %v1255
        %v1392 = vpack.c.b16 %v1264, %v1256
        %v1393 = vpack.c.b16 %v1265, %v1257
        %v1394 = vpack.c.b16 %v1266, %v1258
        %v1395 = vpack.c.b16 %v1275, %v1267
        %v1396 = vpack.c.b16 %v1276, %v1268
        %v1397 = vpack.c.b16 %v1277, %v1269
        %v1398 = vpack.c.b16 %v1278, %v1270
        %v1399 = vpack.c.b16 %v1279, %v1271
        %v1400 = vpack.c.b16 %v1280, %v1272
        %v1401 = vpack.c.b16 %v1281, %v1273
        %v1402 = vpack.c.b16 %v1282, %v1274
        %v1403 = vpack.c.b16 %v1291, %v1283
        %v1404 = vpack.c.b16 %v1292, %v1284
        %v1405 = vpack.c.b16 %v1293, %v1285
        %v1406 = vpack.c.b16 %v1294, %v1286
        %v1407 = vpack.c.b16 %v1295, %v1287
        %v1408 = vpack.c.b16 %v1296, %v1288
        %v1409 = vpack.c.b16 %v1297, %v1289
        %v1410 = vpack.c.b16 %v1298, %v1290
        %v1411 = vpack.c.b16 %v1307, %v1299
        %v1412 = vpack.c.b16 %v1308, %v1300
        %v1413 = vpack.c.b16 %v1309, %v1301
        %v1414 = vpack.c.b16 %v1310, %v1302
        %v1415 = vpack.c.b16 %v1311, %v1303
        %v1416 = vpack.c.b16 %v1312, %v1304
        %v1417 = vpack.c.b16 %v1313, %v1305
        %v1418 = vpack.c.b16 %v1314, %v1306
        %v1419 = vpack.c.b16 %v1323, %v1315
        %v1420 = vpack.c.b16 %v1324, %v1316
        %v1421 = vpack.c.b16 %v1325, %v1317
        %v1422 = vpack.c.b16 %v1326, %v1318
        %v1423 = vpack.c.b16 %v1327, %v1319
        %v1424 = vpack.c.b16 %v1328, %v1320
        %v1425 = vpack.c.b16 %v1329, %v1321
        %v1426 = vpack.c.b16 %v1330, %v1322
        %v1427 = vpack.c.b16 %v1339, %v1331
        %v1428 = vpack.c.b16 %v1340, %v1332
        %v1429 = vpack.c.b16 %v1341, %v1333
        %v1430 = vpack.c.b16 %v1342, %v1334
        %v1431 = vpack.c.b16 %v1343, %v1335
        %v1432 = vpack.c.b16 %v1344, %v1336
        %v1433 = vpack.c.b16 %v1345, %v1337
        %v1434 = vpack.c.b16 %v1346, %v1338
        %v1435 = vpack.c.b16 %v1355, %v1347
        %v1436 = vpack.c.b16 %v1356, %v1348
        %v1437 = vpack.c.b16 %v1357, %v1349
        %v1438 = vpack.c.b16 %v1358, %v1350
        %v1439 = vpack.c.b16 %v1359, %v1351
        %v1440 = vpack.c.b16 %v1360, %v1352
        %v1441 = vpack.c.b16 %v1361, %v1353
        %v1442 = vpack.c.b16 %v1362, %v1354
        %v1524 = vsel %vm592, %v1042, 0
        %1526 = vmatprep.subr.bf16.mxu0 %v1364
        %1527 = vmatpush1.bf16.msra.mxu0 %v1363
        %1528 = vmatprep.subr.bf16.mxu0 %v1372
        %1529 = vmatpush1.bf16.msra.mxu0 %v1371
        %1530 = vmatprep.subr.bf16.mxu0 %v1380
        %1531 = vmatpush1.bf16.msra.mxu0 %v1379
        %1532 = vmatprep.subr.bf16.mxu0 %v1388
        %1533 = vmatpush1.bf16.msra.mxu0 %v1387
        %1534 = vmatprep.subr.bf16.mxu0 %v1396
        %1535 = vmatpush1.bf16.msra.mxu0 %v1395
        %1536 = vmatprep.subr.bf16.mxu0 %v1404
        %1537 = vmatpush1.bf16.msra.mxu0 %v1403
        %1538 = vmatprep.subr.bf16.mxu0 %v1412
        %1539 = vmatpush1.bf16.msra.mxu0 %v1411
        %1540 = vmatprep.subr.bf16.mxu0 %v1420
        %1541 = vmatpush1.bf16.msra.mxu0 %v1419
        %1542 = vmatprep.subr.bf16.mxu0 %v1428
        %1543 = vmatpush1.bf16.msra.mxu0 %v1427
        %1544 = vmatprep.subr.bf16.mxu0 %v1436
        %1545 = vmatpush1.bf16.msra.mxu0 %v1435
        %1546 = vmatprep.subr.bf16.mxu0 0
        %1547 = vmatpush1.bf16.msra.mxu0 0
        %1548 = vmatprep.subr.bf16.mxu0 0
        %1549 = vmatpush1.bf16.msra.mxu0 0
        %1550 = vmatprep.subr.bf16.mxu0 0
        %1551 = vmatpush1.bf16.msra.mxu0 0
        %1552 = vmatprep.subr.bf16.mxu0 0
        %1553 = vmatpush1.bf16.msra.mxu0 0
        %1554 = vmatprep.subr.bf16.mxu0 0
        %1555 = vmatpush1.bf16.msra.mxu0 0
        %1556 = vmatprep.subr.bf16.mxu0 0
        %1557 = vmatpush1.bf16.msra.mxu0 0
        %1558 = vmatprep.mubr.bf16.mxu0 %v1524
        %1559 = vmatmul.mubr.bf16.gmra.mrb[0].mxu0 %v1041
        %v1560 = vpop.f32.mrb[0].mxu0
        %v1561 = vadd.f32 0.0, %v1560
        %v1562 = vpop.f32.mrb[0].mxu0
        %v1563 = vadd.f32 0.0, %v1562
        %v1564 = vpop.f32.mrb[0].mxu0
        %v1565 = vpop.f32.mrb[0].mxu0
        %1566 = vdwg.mxu0
        %1567 = vmatprep.subr.bf16.mxu0 %v1366
        %1568 = vmatpush1.bf16.msra.mxu0 %v1365
        %1569 = vmatprep.subr.bf16.mxu0 %v1374
        %1570 = vmatpush1.bf16.msra.mxu0 %v1373
        %1571 = vmatprep.subr.bf16.mxu0 %v1382
        %1572 = vmatpush1.bf16.msra.mxu0 %v1381
        %1573 = vmatprep.subr.bf16.mxu0 %v1390
        %1574 = vmatpush1.bf16.msra.mxu0 %v1389
        %1575 = vmatprep.subr.bf16.mxu0 %v1398
        %1576 = vmatpush1.bf16.msra.mxu0 %v1397
        %1577 = vmatprep.subr.bf16.mxu0 %v1406
        %1578 = vmatpush1.bf16.msra.mxu0 %v1405
        %1579 = vmatprep.subr.bf16.mxu0 %v1414
        %1580 = vmatpush1.bf16.msra.mxu0 %v1413
        %1581 = vmatprep.subr.bf16.mxu0 %v1422
        %1582 = vmatpush1.bf16.msra.mxu0 %v1421
        %1583 = vmatprep.subr.bf16.mxu0 %v1430
        %1584 = vmatpush1.bf16.msra.mxu0 %v1429
        %1585 = vmatprep.subr.bf16.mxu0 %v1438
        %1586 = vmatpush1.bf16.msra.mxu0 %v1437
        %1587 = vmatprep.subr.bf16.mxu0 0
        %1588 = vmatpush1.bf16.msra.mxu0 0
        %1589 = vmatprep.subr.bf16.mxu0 0
        %1590 = vmatpush1.bf16.msra.mxu0 0
        %1591 = vmatprep.subr.bf16.mxu0 0
        %1592 = vmatpush1.bf16.msra.mxu0 0
        %1593 = vmatprep.subr.bf16.mxu0 0
        %1594 = vmatpush1.bf16.msra.mxu0 0
        %1595 = vmatprep.subr.bf16.mxu0 0
        %1596 = vmatpush1.bf16.msra.mxu0 0
        %1597 = vmatprep.subr.bf16.mxu0 0
        %1598 = vmatpush1.bf16.msra.mxu0 0
        %1599 = vmatprep.mubr.bf16.mxu0 %v1524
        %1600 = vmatmul.mubr.bf16.gmra.mrb[0].mxu0 %v1041
        %v1601 = vpop.f32.mrb[0].mxu0
        %v1602 = vadd.f32 0.0, %v1601
        %v1603 = vpop.f32.mrb[0].mxu0
        %v1604 = vadd.f32 0.0, %v1603
        %v1605 = vpop.f32.mrb[0].mxu0
        %v1606 = vpop.f32.mrb[0].mxu0
        %1607 = vdwg.mxu0
        %1608 = vmatprep.subr.bf16.mxu0 %v1368
        %1609 = vmatpush1.bf16.msra.mxu0 %v1367
        %1610 = vmatprep.subr.bf16.mxu0 %v1376
        %1611 = vmatpush1.bf16.msra.mxu0 %v1375
        %1612 = vmatprep.subr.bf16.mxu0 %v1384
        %1613 = vmatpush1.bf16.msra.mxu0 %v1383
        %1614 = vmatprep.subr.bf16.mxu0 %v1392
        %1615 = vmatpush1.bf16.msra.mxu0 %v1391
        %1616 = vmatprep.subr.bf16.mxu0 %v1400
        %1617 = vmatpush1.bf16.msra.mxu0 %v1399
        %1618 = vmatprep.subr.bf16.mxu0 %v1408
        %1619 = vmatpush1.bf16.msra.mxu0 %v1407
        %1620 = vmatprep.subr.bf16.mxu0 %v1416
        %1621 = vmatpush1.bf16.msra.mxu0 %v1415
        %1622 = vmatprep.subr.bf16.mxu0 %v1424
        %1623 = vmatpush1.bf16.msra.mxu0 %v1423
        %1624 = vmatprep.subr.bf16.mxu0 %v1432
        %1625 = vmatpush1.bf16.msra.mxu0 %v1431
        %1626 = vmatprep.subr.bf16.mxu0 %v1440
        %1627 = vmatpush1.bf16.msra.mxu0 %v1439
        %1628 = vmatprep.subr.bf16.mxu0 0
        %1629 = vmatpush1.bf16.msra.mxu0 0
        %1630 = vmatprep.subr.bf16.mxu0 0
        %1631 = vmatpush1.bf16.msra.mxu0 0
        %1632 = vmatprep.subr.bf16.mxu0 0
        %1633 = vmatpush1.bf16.msra.mxu0 0
        %1634 = vmatprep.subr.bf16.mxu0 0
        %1635 = vmatpush1.bf16.msra.mxu0 0
        %1636 = vmatprep.subr.bf16.mxu0 0
        %1637 = vmatpush1.bf16.msra.mxu0 0
        %1638 = vmatprep.subr.bf16.mxu0 0
        %1639 = vmatpush1.bf16.msra.mxu0 0
        %1640 = vmatprep.mubr.bf16.mxu0 %v1524
        %1641 = vmatmul.mubr.bf16.gmra.mrb[0].mxu0 %v1041
        %v1642 = vpop.f32.mrb[0].mxu0
        %v1643 = vadd.f32 0.0, %v1642
        %v1644 = vpop.f32.mrb[0].mxu0
        %v1645 = vadd.f32 0.0, %v1644
        %v1646 = vpop.f32.mrb[0].mxu0
        %v1647 = vpop.f32.mrb[0].mxu0
        %1648 = vdwg.mxu0
        %1649 = vmatprep.subr.bf16.mxu0 %v1370
        %1650 = vmatpush1.bf16.msra.mxu0 %v1369
        %1651 = vmatprep.subr.bf16.mxu0 %v1378
        %1652 = vmatpush1.bf16.msra.mxu0 %v1377
        %1653 = vmatprep.subr.bf16.mxu0 %v1386
        %1654 = vmatpush1.bf16.msra.mxu0 %v1385
        %1655 = vmatprep.subr.bf16.mxu0 %v1394
        %1656 = vmatpush1.bf16.msra.mxu0 %v1393
        %1657 = vmatprep.subr.bf16.mxu0 %v1402
        %1658 = vmatpush1.bf16.msra.mxu0 %v1401
        %1659 = vmatprep.subr.bf16.mxu0 %v1410
        %1660 = vmatpush1.bf16.msra.mxu0 %v1409
        %1661 = vmatprep.subr.bf16.mxu0 %v1418
        %1662 = vmatpush1.bf16.msra.mxu0 %v1417
        %1663 = vmatprep.subr.bf16.mxu0 %v1426
        %1664 = vmatpush1.bf16.msra.mxu0 %v1425
        %1665 = vmatprep.subr.bf16.mxu0 %v1434
        %1666 = vmatpush1.bf16.msra.mxu0 %v1433
        %1667 = vmatprep.subr.bf16.mxu0 %v1442
        %1668 = vmatpush1.bf16.msra.mxu0 %v1441
        %1669 = vmatprep.subr.bf16.mxu0 0
        %1670 = vmatpush1.bf16.msra.mxu0 0
        %1671 = vmatprep.subr.bf16.mxu0 0
        %1672 = vmatpush1.bf16.msra.mxu0 0
        %1673 = vmatprep.subr.bf16.mxu0 0
        %1674 = vmatpush1.bf16.msra.mxu0 0
        %1675 = vmatprep.subr.bf16.mxu0 0
        %1676 = vmatpush1.bf16.msra.mxu0 0
        %1677 = vmatprep.subr.bf16.mxu0 0
        %1678 = vmatpush1.bf16.msra.mxu0 0
        %1679 = vmatprep.subr.bf16.mxu0 0
        %1680 = vmatpush1.bf16.msra.mxu0 0
        %1681 = vmatprep.mubr.bf16.mxu0 %v1524
        %1682 = vmatmul.mubr.bf16.gmra.mrb[0].mxu0 %v1041
        %v1683 = vpop.f32.mrb[0].mxu0
        %v1684 = vadd.f32 0.0, %v1683
        %v1685 = vpop.f32.mrb[0].mxu0
        %v1686 = vadd.f32 0.0, %v1685
        %v1687 = vpop.f32.mrb[0].mxu0
        %v1688 = vpop.f32.mrb[0].mxu0
        %1689 = vdwg.mxu0
        %v1690 = vpack.c.bf16 %v1561, %v1561
        %v1691 = vpack.c.bf16 %v1563, %v1563
        %v1692 = vpack.c.bf16 %v1602, %v1602
        %v1693 = vpack.c.bf16 %v1604, %v1604
        %v1694 = vpack.c.bf16 %v1643, %v1643
        %v1695 = vpack.c.bf16 %v1645, %v1645
        %v1696 = vpack.c.bf16 %v1684, %v1684
        %v1697 = vpack.c.bf16 %v1686, %v1686
        %v1698 = vpack.c.bf16 %v1039, %v1039
        %v1699 = vpack.c.bf16 %v1040, %v1040
        %v1700 = vld [vmem:[%s10] sm:$0xff]
        %v1701 = vld [vmem:[%s10 + $0x8] sm:$0xff]
        %v1702 = vld [vmem:[%s10 + $0x10] sm:$0xff]
        %v1703 = vld [vmem:[%s10 + $0x18] sm:$0xff]
        %v1704 = vld [vmem:[%s10 + $0x20] sm:$0xff]
        %v1705 = vld [vmem:[%s10 + $0x28] sm:$0xff]
        %v1706 = vld [vmem:[%s10 + $0x30] sm:$0xff]
        %v1707 = vld [vmem:[%s10 + $0x38] sm:$0xff]
        %v1708 = vld [vmem:[%s10 + $0x40] sm:$0xff]
        %v1709 = vld [vmem:[%s10 + $0x48] sm:$0xff]
        %v1710 = vld [vmem:[%s10 + $0x50] sm:$0xff]
        %v1711 = vld [vmem:[%s10 + $0x58] sm:$0xff]
        %v1712 = vld [vmem:[%s10 + $0x60] sm:$0xff]
        %v1713 = vld [vmem:[%s10 + $0x68] sm:$0xff]
        %v1714 = vld [vmem:[%s10 + $0x70] sm:$0xff]
        %v1715 = vld [vmem:[%s10 + $0x78] sm:$0xff]
        %v1716 = vld [vmem:[%s10 + $0x80] sm:$0xff]
        %v1717 = vld [vmem:[%s10 + $0x88] sm:$0xff]
        %v1718 = vld [vmem:[%s10 + $0x90] sm:$0xff]
        %v1719 = vld [vmem:[%s10 + $0x98] sm:$0xff]
        %v1720 = vld [vmem:[%s10 + $0xa0] sm:$0xff]
        %v1721 = vld [vmem:[%s10 + $0xa8] sm:$0xff]
        %v1722 = vld [vmem:[%s10 + $0xb0] sm:$0xff]
        %v1723 = vld [vmem:[%s10 + $0xb8] sm:$0xff]
        %v1724 = vld [vmem:[%s10 + $0xc0] sm:$0xff]
        %v1725 = vld [vmem:[%s10 + $0xc8] sm:$0xff]
        %v1726 = vld [vmem:[%s10 + $0xd0] sm:$0xff]
        %v1727 = vld [vmem:[%s10 + $0xd8] sm:$0xff]
        %v1728 = vld [vmem:[%s10 + $0xe0] sm:$0xff]
        %v1729 = vld [vmem:[%s10 + $0xe8] sm:$0xff]
        %v1730 = vld [vmem:[%s10 + $0xf0] sm:$0xff]
        %v1731 = vld [vmem:[%s10 + $0xf8] sm:$0xff]
        %v1732 = vld [vmem:[%s10 + $0x100] sm:$0xff]
        %v1733 = vld [vmem:[%s10 + $0x108] sm:$0xff]
        %v1734 = vld [vmem:[%s10 + $0x110] sm:$0xff]
        %v1735 = vld [vmem:[%s10 + $0x118] sm:$0xff]
        %v1736 = vld [vmem:[%s10 + $0x120] sm:$0xff]
        %v1737 = vld [vmem:[%s10 + $0x128] sm:$0xff]
        %v1738 = vld [vmem:[%s10 + $0x130] sm:$0xff]
        %v1739 = vld [vmem:[%s10 + $0x138] sm:$0xff]
        %v1740 = vld [vmem:[%s10 + $0x140] sm:$0xff]
        %v1741 = vld [vmem:[%s10 + $0x148] sm:$0xff]
        %v1742 = vld [vmem:[%s10 + $0x150] sm:$0xff]
        %v1743 = vld [vmem:[%s10 + $0x158] sm:$0xff]
        %v1744 = vld [vmem:[%s10 + $0x160] sm:$0xff]
        %v1745 = vld [vmem:[%s10 + $0x168] sm:$0xff]
        %v1746 = vld [vmem:[%s10 + $0x170] sm:$0xff]
        %v1747 = vld [vmem:[%s10 + $0x178] sm:$0xff]
        %v1748 = vld [vmem:[%s10 + $0x180] sm:$0xff]
        %v1749 = vld [vmem:[%s10 + $0x188] sm:$0xff]
        %v1750 = vld [vmem:[%s10 + $0x190] sm:$0xff]
        %v1751 = vld [vmem:[%s10 + $0x198] sm:$0xff]
        %v1752 = vld [vmem:[%s10 + $0x1a0] sm:$0xff]
        %v1753 = vld [vmem:[%s10 + $0x1a8] sm:$0xff]
        %v1754 = vld [vmem:[%s10 + $0x1b0] sm:$0xff]
        %v1755 = vld [vmem:[%s10 + $0x1b8] sm:$0xff]
        %v1756 = vld [vmem:[%s10 + $0x1c0] sm:$0xff]
        %v1757 = vld [vmem:[%s10 + $0x1c8] sm:$0xff]
        %v1758 = vld [vmem:[%s10 + $0x1d0] sm:$0xff]
        %v1759 = vld [vmem:[%s10 + $0x1d8] sm:$0xff]
        %v1760 = vld [vmem:[%s10 + $0x1e0] sm:$0xff]
        %v1761 = vld [vmem:[%s10 + $0x1e8] sm:$0xff]
        %v1762 = vld [vmem:[%s10 + $0x1f0] sm:$0xff]
        %v1763 = vld [vmem:[%s10 + $0x1f8] sm:$0xff]
        %v1764 = vld [vmem:[%s10 + $0x200] sm:$0xff]
        %v1765 = vld [vmem:[%s10 + $0x208] sm:$0xff]
        %v1766 = vld [vmem:[%s10 + $0x210] sm:$0xff]
        %v1767 = vld [vmem:[%s10 + $0x218] sm:$0xff]
        %v1768 = vld [vmem:[%s10 + $0x220] sm:$0xff]
        %v1769 = vld [vmem:[%s10 + $0x228] sm:$0xff]
        %v1770 = vld [vmem:[%s10 + $0x230] sm:$0xff]
        %v1771 = vld [vmem:[%s10 + $0x238] sm:$0xff]
        %v1772 = vld [vmem:[%s10 + $0x240] sm:$0xff]
        %v1773 = vld [vmem:[%s10 + $0x248] sm:$0xff]
        %v1774 = vld [vmem:[%s10 + $0x250] sm:$0xff]
        %v1775 = vld [vmem:[%s10 + $0x258] sm:$0xff]
        %v1776 = vld [vmem:[%s10 + $0x260] sm:$0xff]
        %v1777 = vld [vmem:[%s10 + $0x268] sm:$0xff]
        %v1778 = vld [vmem:[%s10 + $0x270] sm:$0xff]
        %v1779 = vld [vmem:[%s10 + $0x278] sm:$0xff]
        %v1780 = vld [vmem:[%s10 + $0x280] sm:$0xff]
        %v1781 = vld [vmem:[%s10 + $0x288] sm:$0xff]
        %v1782 = vld [vmem:[%s10 + $0x290] sm:$0xff]
        %v1783 = vld [vmem:[%s10 + $0x298] sm:$0xff]
        %v1784 = vld [vmem:[%s10 + $0x2a0] sm:$0xff]
        %v1785 = vld [vmem:[%s10 + $0x2a8] sm:$0xff]
        %v1786 = vld [vmem:[%s10 + $0x2b0] sm:$0xff]
        %v1787 = vld [vmem:[%s10 + $0x2b8] sm:$0xff]
        %v1788 = vld [vmem:[%s10 + $0x2c0] sm:$0xff]
        %v1789 = vld [vmem:[%s10 + $0x2c8] sm:$0xff]
        %v1790 = vld [vmem:[%s10 + $0x2d0] sm:$0xff]
        %v1791 = vld [vmem:[%s10 + $0x2d8] sm:$0xff]
        %v1792 = vld [vmem:[%s10 + $0x2e0] sm:$0xff]
        %v1793 = vld [vmem:[%s10 + $0x2e8] sm:$0xff]
        %v1794 = vld [vmem:[%s10 + $0x2f0] sm:$0xff]
        %v1795 = vld [vmem:[%s10 + $0x2f8] sm:$0xff]
        %v1796 = vld [vmem:[%s10 + $0x300] sm:$0xff]
        %v1797 = vld [vmem:[%s10 + $0x308] sm:$0xff]
        %v1798 = vld [vmem:[%s10 + $0x310] sm:$0xff]
        %v1799 = vld [vmem:[%s10 + $0x318] sm:$0xff]
        %v1800 = vld [vmem:[%s10 + $0x320] sm:$0xff]
        %v1801 = vld [vmem:[%s10 + $0x328] sm:$0xff]
        %v1802 = vld [vmem:[%s10 + $0x330] sm:$0xff]
        %v1803 = vld [vmem:[%s10 + $0x338] sm:$0xff]
        %v1804 = vld [vmem:[%s10 + $0x340] sm:$0xff]
        %v1805 = vld [vmem:[%s10 + $0x348] sm:$0xff]
        %v1806 = vld [vmem:[%s10 + $0x350] sm:$0xff]
        %v1807 = vld [vmem:[%s10 + $0x358] sm:$0xff]
        %v1808 = vld [vmem:[%s10 + $0x360] sm:$0xff]
        %v1809 = vld [vmem:[%s10 + $0x368] sm:$0xff]
        %v1810 = vld [vmem:[%s10 + $0x370] sm:$0xff]
        %v1811 = vld [vmem:[%s10 + $0x378] sm:$0xff]
        %v1812 = vld [vmem:[%s10 + $0x380] sm:$0xff]
        %v1813 = vld [vmem:[%s10 + $0x388] sm:$0xff]
        %v1814 = vld [vmem:[%s10 + $0x390] sm:$0xff]
        %v1815 = vld [vmem:[%s10 + $0x398] sm:$0xff]
        %v1816 = vld [vmem:[%s10 + $0x3a0] sm:$0xff]
        %v1817 = vld [vmem:[%s10 + $0x3a8] sm:$0xff]
        %v1818 = vld [vmem:[%s10 + $0x3b0] sm:$0xff]
        %v1819 = vld [vmem:[%s10 + $0x3b8] sm:$0xff]
        %v1820 = vld [vmem:[%s10 + $0x3c0] sm:$0xff]
        %v1821 = vld [vmem:[%s10 + $0x3c8] sm:$0xff]
        %v1822 = vld [vmem:[%s10 + $0x3d0] sm:$0xff]
        %v1823 = vld [vmem:[%s10 + $0x3d8] sm:$0xff]
        %v1824 = vld [vmem:[%s10 + $0x3e0] sm:$0xff]
        %v1825 = vld [vmem:[%s10 + $0x3e8] sm:$0xff]
        %v1826 = vld [vmem:[%s10 + $0x3f0] sm:$0xff]
        %v1827 = vld [vmem:[%s10 + $0x3f8] sm:$0xff]
        %v1828 = vld [vmem:[%s10 + $0x400] sm:$0xff]
        %v1829 = vld [vmem:[%s10 + $0x408] sm:$0xff]
        %v1830 = vld [vmem:[%s10 + $0x410] sm:$0xff]
        %v1831 = vld [vmem:[%s10 + $0x418] sm:$0xff]
        %v1832 = vld [vmem:[%s10 + $0x420] sm:$0xff]
        %v1833 = vld [vmem:[%s10 + $0x428] sm:$0xff]
        %v1834 = vld [vmem:[%s10 + $0x430] sm:$0xff]
        %v1835 = vld [vmem:[%s10 + $0x438] sm:$0xff]
        %v1836 = vld [vmem:[%s10 + $0x440] sm:$0xff]
        %v1837 = vld [vmem:[%s10 + $0x448] sm:$0xff]
        %v1838 = vld [vmem:[%s10 + $0x450] sm:$0xff]
        %v1839 = vld [vmem:[%s10 + $0x458] sm:$0xff]
        %v1840 = vld [vmem:[%s10 + $0x460] sm:$0xff]
        %v1841 = vld [vmem:[%s10 + $0x468] sm:$0xff]
        %v1842 = vld [vmem:[%s10 + $0x470] sm:$0xff]
        %v1843 = vld [vmem:[%s10 + $0x478] sm:$0xff]
        %v1844 = vld [vmem:[%s10 + $0x480] sm:$0xff]
        %v1845 = vld [vmem:[%s10 + $0x488] sm:$0xff]
        %v1846 = vld [vmem:[%s10 + $0x490] sm:$0xff]
        %v1847 = vld [vmem:[%s10 + $0x498] sm:$0xff]
        %v1848 = vld [vmem:[%s10 + $0x4a0] sm:$0xff]
        %v1849 = vld [vmem:[%s10 + $0x4a8] sm:$0xff]
        %v1850 = vld [vmem:[%s10 + $0x4b0] sm:$0xff]
        %v1851 = vld [vmem:[%s10 + $0x4b8] sm:$0xff]
        %v1852 = vld [vmem:[%s10 + $0x4c0] sm:$0xff]
        %v1853 = vld [vmem:[%s10 + $0x4c8] sm:$0xff]
        %v1854 = vld [vmem:[%s10 + $0x4d0] sm:$0xff]
        %v1855 = vld [vmem:[%s10 + $0x4d8] sm:$0xff]
        %v1856 = vld [vmem:[%s10 + $0x4e0] sm:$0xff]
        %v1857 = vld [vmem:[%s10 + $0x4e8] sm:$0xff]
        %v1858 = vld [vmem:[%s10 + $0x4f0] sm:$0xff]
        %v1859 = vld [vmem:[%s10 + $0x4f8] sm:$0xff]
        %v2020 = vunpack.c.l.b16 %v1700
        %v2021 = vunpack.c.h.b16 %v1700
        %v2022 = vunpack.c.l.b16 %v1701
        %v2023 = vunpack.c.h.b16 %v1701
        %v2024 = vunpack.c.l.b16 %v1702
        %v2025 = vunpack.c.h.b16 %v1702
        %v2026 = vunpack.c.l.b16 %v1703
        %v2027 = vunpack.c.h.b16 %v1703
        %v2028 = vunpack.c.l.b16 %v1704
        %v2029 = vunpack.c.h.b16 %v1704
        %v2030 = vunpack.c.l.b16 %v1705
        %v2031 = vunpack.c.h.b16 %v1705
        %v2032 = vunpack.c.l.b16 %v1706
        %v2033 = vunpack.c.h.b16 %v1706
        %v2034 = vunpack.c.l.b16 %v1707
        %v2035 = vunpack.c.h.b16 %v1707
        %v2036 = vunpack.c.l.b16 %v1708
        %v2037 = vunpack.c.h.b16 %v1708
        %v2038 = vunpack.c.l.b16 %v1709
        %v2039 = vunpack.c.h.b16 %v1709
        %v2040 = vunpack.c.l.b16 %v1710
        %v2041 = vunpack.c.h.b16 %v1710
        %v2042 = vunpack.c.l.b16 %v1711
        %v2043 = vunpack.c.h.b16 %v1711
        %v2044 = vunpack.c.l.b16 %v1712
        %v2045 = vunpack.c.h.b16 %v1712
        %v2046 = vunpack.c.l.b16 %v1713
        %v2047 = vunpack.c.h.b16 %v1713
        %v2048 = vunpack.c.l.b16 %v1714
        %v2049 = vunpack.c.h.b16 %v1714
        %v2050 = vunpack.c.l.b16 %v1715
        %v2051 = vunpack.c.h.b16 %v1715
        %v2052 = vunpack.c.l.b16 %v1716
        %v2053 = vunpack.c.h.b16 %v1716
        %v2054 = vunpack.c.l.b16 %v1717
        %v2055 = vunpack.c.h.b16 %v1717
        %v2056 = vunpack.c.l.b16 %v1718
        %v2057 = vunpack.c.h.b16 %v1718
        %v2058 = vunpack.c.l.b16 %v1719
        %v2059 = vunpack.c.h.b16 %v1719
        %v2060 = vunpack.c.l.b16 %v1720
        %v2061 = vunpack.c.h.b16 %v1720
        %v2062 = vunpack.c.l.b16 %v1721
        %v2063 = vunpack.c.h.b16 %v1721
        %v2064 = vunpack.c.l.b16 %v1722
        %v2065 = vunpack.c.h.b16 %v1722
        %v2066 = vunpack.c.l.b16 %v1723
        %v2067 = vunpack.c.h.b16 %v1723
        %v2068 = vunpack.c.l.b16 %v1724
        %v2069 = vunpack.c.h.b16 %v1724
        %v2070 = vunpack.c.l.b16 %v1725
        %v2071 = vunpack.c.h.b16 %v1725
        %v2072 = vunpack.c.l.b16 %v1726
        %v2073 = vunpack.c.h.b16 %v1726
        %v2074 = vunpack.c.l.b16 %v1727
        %v2075 = vunpack.c.h.b16 %v1727
        %v2076 = vunpack.c.l.b16 %v1728
        %v2077 = vunpack.c.h.b16 %v1728
        %v2078 = vunpack.c.l.b16 %v1729
        %v2079 = vunpack.c.h.b16 %v1729
        %v2080 = vunpack.c.l.b16 %v1730
        %v2081 = vunpack.c.h.b16 %v1730
        %v2082 = vunpack.c.l.b16 %v1731
        %v2083 = vunpack.c.h.b16 %v1731
        %v2084 = vunpack.c.l.b16 %v1732
        %v2085 = vunpack.c.h.b16 %v1732
        %v2086 = vunpack.c.l.b16 %v1733
        %v2087 = vunpack.c.h.b16 %v1733
        %v2088 = vunpack.c.l.b16 %v1734
        %v2089 = vunpack.c.h.b16 %v1734
        %v2090 = vunpack.c.l.b16 %v1735
        %v2091 = vunpack.c.h.b16 %v1735
        %v2092 = vunpack.c.l.b16 %v1736
        %v2093 = vunpack.c.h.b16 %v1736
        %v2094 = vunpack.c.l.b16 %v1737
        %v2095 = vunpack.c.h.b16 %v1737
        %v2096 = vunpack.c.l.b16 %v1738
        %v2097 = vunpack.c.h.b16 %v1738
        %v2098 = vunpack.c.l.b16 %v1739
        %v2099 = vunpack.c.h.b16 %v1739
        %v2100 = vunpack.c.l.b16 %v1740
        %v2101 = vunpack.c.h.b16 %v1740
        %v2102 = vunpack.c.l.b16 %v1741
        %v2103 = vunpack.c.h.b16 %v1741
        %v2104 = vunpack.c.l.b16 %v1742
        %v2105 = vunpack.c.h.b16 %v1742
        %v2106 = vunpack.c.l.b16 %v1743
        %v2107 = vunpack.c.h.b16 %v1743
        %v2108 = vunpack.c.l.b16 %v1744
        %v2109 = vunpack.c.h.b16 %v1744
        %v2110 = vunpack.c.l.b16 %v1745
        %v2111 = vunpack.c.h.b16 %v1745
        %v2112 = vunpack.c.l.b16 %v1746
        %v2113 = vunpack.c.h.b16 %v1746
        %v2114 = vunpack.c.l.b16 %v1747
        %v2115 = vunpack.c.h.b16 %v1747
        %v2116 = vunpack.c.l.b16 %v1748
        %v2117 = vunpack.c.h.b16 %v1748
        %v2118 = vunpack.c.l.b16 %v1749
        %v2119 = vunpack.c.h.b16 %v1749
        %v2120 = vunpack.c.l.b16 %v1750
        %v2121 = vunpack.c.h.b16 %v1750
        %v2122 = vunpack.c.l.b16 %v1751
        %v2123 = vunpack.c.h.b16 %v1751
        %v2124 = vunpack.c.l.b16 %v1752
        %v2125 = vunpack.c.h.b16 %v1752
        %v2126 = vunpack.c.l.b16 %v1753
        %v2127 = vunpack.c.h.b16 %v1753
        %v2128 = vunpack.c.l.b16 %v1754
        %v2129 = vunpack.c.h.b16 %v1754
        %v2130 = vunpack.c.l.b16 %v1755
        %v2131 = vunpack.c.h.b16 %v1755
        %v2132 = vunpack.c.l.b16 %v1756
        %v2133 = vunpack.c.h.b16 %v1756
        %v2134 = vunpack.c.l.b16 %v1757
        %v2135 = vunpack.c.h.b16 %v1757
        %v2136 = vunpack.c.l.b16 %v1758
        %v2137 = vunpack.c.h.b16 %v1758
        %v2138 = vunpack.c.l.b16 %v1759
        %v2139 = vunpack.c.h.b16 %v1759
        %v2140 = vunpack.c.l.b16 %v1760
        %v2141 = vunpack.c.h.b16 %v1760
        %v2142 = vunpack.c.l.b16 %v1761
        %v2143 = vunpack.c.h.b16 %v1761
        %v2144 = vunpack.c.l.b16 %v1762
        %v2145 = vunpack.c.h.b16 %v1762
        %v2146 = vunpack.c.l.b16 %v1763
        %v2147 = vunpack.c.h.b16 %v1763
        %v2148 = vunpack.c.l.b16 %v1764
        %v2149 = vunpack.c.h.b16 %v1764
        %v2150 = vunpack.c.l.b16 %v1765
        %v2151 = vunpack.c.h.b16 %v1765
        %v2152 = vunpack.c.l.b16 %v1766
        %v2153 = vunpack.c.h.b16 %v1766
        %v2154 = vunpack.c.l.b16 %v1767
        %v2155 = vunpack.c.h.b16 %v1767
        %v2156 = vunpack.c.l.b16 %v1768
        %v2157 = vunpack.c.h.b16 %v1768
        %v2158 = vunpack.c.l.b16 %v1769
        %v2159 = vunpack.c.h.b16 %v1769
        %v2160 = vunpack.c.l.b16 %v1770
        %v2161 = vunpack.c.h.b16 %v1770
        %v2162 = vunpack.c.l.b16 %v1771
        %v2163 = vunpack.c.h.b16 %v1771
        %v2164 = vunpack.c.l.b16 %v1772
        %v2165 = vunpack.c.h.b16 %v1772
        %v2166 = vunpack.c.l.b16 %v1773
        %v2167 = vunpack.c.h.b16 %v1773
        %v2168 = vunpack.c.l.b16 %v1774
        %v2169 = vunpack.c.h.b16 %v1774
        %v2170 = vunpack.c.l.b16 %v1775
        %v2171 = vunpack.c.h.b16 %v1775
        %v2172 = vunpack.c.l.b16 %v1776
        %v2173 = vunpack.c.h.b16 %v1776
        %v2174 = vunpack.c.l.b16 %v1777
        %v2175 = vunpack.c.h.b16 %v1777
        %v2176 = vunpack.c.l.b16 %v1778
        %v2177 = vunpack.c.h.b16 %v1778
        %v2178 = vunpack.c.l.b16 %v1779
        %v2179 = vunpack.c.h.b16 %v1779
        %v2180 = vunpack.c.l.b16 %v1780
        %v2181 = vunpack.c.h.b16 %v1780
        %v2182 = vunpack.c.l.b16 %v1781
        %v2183 = vunpack.c.h.b16 %v1781
        %v2184 = vunpack.c.l.b16 %v1782
        %v2185 = vunpack.c.h.b16 %v1782
        %v2186 = vunpack.c.l.b16 %v1783
        %v2187 = vunpack.c.h.b16 %v1783
        %v2188 = vunpack.c.l.b16 %v1784
        %v2189 = vunpack.c.h.b16 %v1784
        %v2190 = vunpack.c.l.b16 %v1785
        %v2191 = vunpack.c.h.b16 %v1785
        %v2192 = vunpack.c.l.b16 %v1786
        %v2193 = vunpack.c.h.b16 %v1786
        %v2194 = vunpack.c.l.b16 %v1787
        %v2195 = vunpack.c.h.b16 %v1787
        %v2196 = vunpack.c.l.b16 %v1788
        %v2197 = vunpack.c.h.b16 %v1788
        %v2198 = vunpack.c.l.b16 %v1789
        %v2199 = vunpack.c.h.b16 %v1789
        %v2200 = vunpack.c.l.b16 %v1790
        %v2201 = vunpack.c.h.b16 %v1790
        %v2202 = vunpack.c.l.b16 %v1791
        %v2203 = vunpack.c.h.b16 %v1791
        %v2204 = vunpack.c.l.b16 %v1792
        %v2205 = vunpack.c.h.b16 %v1792
        %v2206 = vunpack.c.l.b16 %v1793
        %v2207 = vunpack.c.h.b16 %v1793
        %v2208 = vunpack.c.l.b16 %v1794
        %v2209 = vunpack.c.h.b16 %v1794
        %v2210 = vunpack.c.l.b16 %v1795
        %v2211 = vunpack.c.h.b16 %v1795
        %v2212 = vunpack.c.l.b16 %v1796
        %v2213 = vunpack.c.h.b16 %v1796
        %v2214 = vunpack.c.l.b16 %v1797
        %v2215 = vunpack.c.h.b16 %v1797
        %v2216 = vunpack.c.l.b16 %v1798
        %v2217 = vunpack.c.h.b16 %v1798
        %v2218 = vunpack.c.l.b16 %v1799
        %v2219 = vunpack.c.h.b16 %v1799
        %v2220 = vunpack.c.l.b16 %v1800
        %v2221 = vunpack.c.h.b16 %v1800
        %v2222 = vunpack.c.l.b16 %v1801
        %v2223 = vunpack.c.h.b16 %v1801
        %v2224 = vunpack.c.l.b16 %v1802
        %v2225 = vunpack.c.h.b16 %v1802
        %v2226 = vunpack.c.l.b16 %v1803
        %v2227 = vunpack.c.h.b16 %v1803
        %v2228 = vunpack.c.l.b16 %v1804
        %v2229 = vunpack.c.h.b16 %v1804
        %v2230 = vunpack.c.l.b16 %v1805
        %v2231 = vunpack.c.h.b16 %v1805
        %v2232 = vunpack.c.l.b16 %v1806
        %v2233 = vunpack.c.h.b16 %v1806
        %v2234 = vunpack.c.l.b16 %v1807
        %v2235 = vunpack.c.h.b16 %v1807
        %v2236 = vunpack.c.l.b16 %v1808
        %v2237 = vunpack.c.h.b16 %v1808
        %v2238 = vunpack.c.l.b16 %v1809
        %v2239 = vunpack.c.h.b16 %v1809
        %v2240 = vunpack.c.l.b16 %v1810
        %v2241 = vunpack.c.h.b16 %v1810
        %v2242 = vunpack.c.l.b16 %v1811
        %v2243 = vunpack.c.h.b16 %v1811
        %v2244 = vunpack.c.l.b16 %v1812
        %v2245 = vunpack.c.h.b16 %v1812
        %v2246 = vunpack.c.l.b16 %v1813
        %v2247 = vunpack.c.h.b16 %v1813
        %v2248 = vunpack.c.l.b16 %v1814
        %v2249 = vunpack.c.h.b16 %v1814
        %v2250 = vunpack.c.l.b16 %v1815
        %v2251 = vunpack.c.h.b16 %v1815
        %v2252 = vunpack.c.l.b16 %v1816
        %v2253 = vunpack.c.h.b16 %v1816
        %v2254 = vunpack.c.l.b16 %v1817
        %v2255 = vunpack.c.h.b16 %v1817
        %v2256 = vunpack.c.l.b16 %v1818
        %v2257 = vunpack.c.h.b16 %v1818
        %v2258 = vunpack.c.l.b16 %v1819
        %v2259 = vunpack.c.h.b16 %v1819
        %v2260 = vunpack.c.l.b16 %v1820
        %v2261 = vunpack.c.h.b16 %v1820
        %v2262 = vunpack.c.l.b16 %v1821
        %v2263 = vunpack.c.h.b16 %v1821
        %v2264 = vunpack.c.l.b16 %v1822
        %v2265 = vunpack.c.h.b16 %v1822
        %v2266 = vunpack.c.l.b16 %v1823
        %v2267 = vunpack.c.h.b16 %v1823
        %v2268 = vunpack.c.l.b16 %v1824
        %v2269 = vunpack.c.h.b16 %v1824
        %v2270 = vunpack.c.l.b16 %v1825
        %v2271 = vunpack.c.h.b16 %v1825
        %v2272 = vunpack.c.l.b16 %v1826
        %v2273 = vunpack.c.h.b16 %v1826
        %v2274 = vunpack.c.l.b16 %v1827
        %v2275 = vunpack.c.h.b16 %v1827
        %v2276 = vunpack.c.l.b16 %v1828
        %v2277 = vunpack.c.h.b16 %v1828
        %v2278 = vunpack.c.l.b16 %v1829
        %v2279 = vunpack.c.h.b16 %v1829
        %v2280 = vunpack.c.l.b16 %v1830
        %v2281 = vunpack.c.h.b16 %v1830
        %v2282 = vunpack.c.l.b16 %v1831
        %v2283 = vunpack.c.h.b16 %v1831
        %v2284 = vunpack.c.l.b16 %v1832
        %v2285 = vunpack.c.h.b16 %v1832
        %v2286 = vunpack.c.l.b16 %v1833
        %v2287 = vunpack.c.h.b16 %v1833
        %v2288 = vunpack.c.l.b16 %v1834
        %v2289 = vunpack.c.h.b16 %v1834
        %v2290 = vunpack.c.l.b16 %v1835
        %v2291 = vunpack.c.h.b16 %v1835
        %v2292 = vunpack.c.l.b16 %v1836
        %v2293 = vunpack.c.h.b16 %v1836
        %v2294 = vunpack.c.l.b16 %v1837
        %v2295 = vunpack.c.h.b16 %v1837
        %v2296 = vunpack.c.l.b16 %v1838
        %v2297 = vunpack.c.h.b16 %v1838
        %v2298 = vunpack.c.l.b16 %v1839
        %v2299 = vunpack.c.h.b16 %v1839
        %v2300 = vunpack.c.l.b16 %v1840
        %v2301 = vunpack.c.h.b16 %v1840
        %v2302 = vunpack.c.l.b16 %v1841
        %v2303 = vunpack.c.h.b16 %v1841
        %v2304 = vunpack.c.l.b16 %v1842
        %v2305 = vunpack.c.h.b16 %v1842
        %v2306 = vunpack.c.l.b16 %v1843
        %v2307 = vunpack.c.h.b16 %v1843
        %v2308 = vunpack.c.l.b16 %v1844
        %v2309 = vunpack.c.h.b16 %v1844
        %v2310 = vunpack.c.l.b16 %v1845
        %v2311 = vunpack.c.h.b16 %v1845
        %v2312 = vunpack.c.l.b16 %v1846
        %v2313 = vunpack.c.h.b16 %v1846
        %v2314 = vunpack.c.l.b16 %v1847
        %v2315 = vunpack.c.h.b16 %v1847
        %v2316 = vunpack.c.l.b16 %v1848
        %v2317 = vunpack.c.h.b16 %v1848
        %v2318 = vunpack.c.l.b16 %v1849
        %v2319 = vunpack.c.h.b16 %v1849
        %v2320 = vunpack.c.l.b16 %v1850
        %v2321 = vunpack.c.h.b16 %v1850
        %v2322 = vunpack.c.l.b16 %v1851
        %v2323 = vunpack.c.h.b16 %v1851
        %v2324 = vunpack.c.l.b16 %v1852
        %v2325 = vunpack.c.h.b16 %v1852
        %v2326 = vunpack.c.l.b16 %v1853
        %v2327 = vunpack.c.h.b16 %v1853
        %v2328 = vunpack.c.l.b16 %v1854
        %v2329 = vunpack.c.h.b16 %v1854
        %v2330 = vunpack.c.l.b16 %v1855
        %v2331 = vunpack.c.h.b16 %v1855
        %v2332 = vunpack.c.l.b16 %v1856
        %v2333 = vunpack.c.h.b16 %v1856
        %v2334 = vunpack.c.l.b16 %v1857
        %v2335 = vunpack.c.h.b16 %v1857
        %v2336 = vunpack.c.l.b16 %v1858
        %v2337 = vunpack.c.h.b16 %v1858
        %v2338 = vunpack.c.l.b16 %v1859
        %v2339 = vunpack.c.h.b16 %v1859
        %v2340 = vpack.c.b16 %v2036, %v2020
        %v2341 = vpack.c.b16 %v2037, %v2021
        %v2342 = vpack.c.b16 %v2038, %v2022
        %v2343 = vpack.c.b16 %v2039, %v2023
        %v2344 = vpack.c.b16 %v2040, %v2024
        %v2345 = vpack.c.b16 %v2041, %v2025
        %v2346 = vpack.c.b16 %v2042, %v2026
        %v2347 = vpack.c.b16 %v2043, %v2027
        %v2348 = vpack.c.b16 %v2044, %v2028
        %v2349 = vpack.c.b16 %v2045, %v2029
        %v2350 = vpack.c.b16 %v2046, %v2030
        %v2351 = vpack.c.b16 %v2047, %v2031
        %v2352 = vpack.c.b16 %v2048, %v2032
        %v2353 = vpack.c.b16 %v2049, %v2033
        %v2354 = vpack.c.b16 %v2050, %v2034
        %v2355 = vpack.c.b16 %v2051, %v2035
        %v2356 = vpack.c.b16 %v2068, %v2052
        %v2357 = vpack.c.b16 %v2069, %v2053
        %v2358 = vpack.c.b16 %v2070, %v2054
        %v2359 = vpack.c.b16 %v2071, %v2055
        %v2360 = vpack.c.b16 %v2072, %v2056
        %v2361 = vpack.c.b16 %v2073, %v2057
        %v2362 = vpack.c.b16 %v2074, %v2058
        %v2363 = vpack.c.b16 %v2075, %v2059
        %v2364 = vpack.c.b16 %v2076, %v2060
        %v2365 = vpack.c.b16 %v2077, %v2061
        %v2366 = vpack.c.b16 %v2078, %v2062
        %v2367 = vpack.c.b16 %v2079, %v2063
        %v2368 = vpack.c.b16 %v2080, %v2064
        %v2369 = vpack.c.b16 %v2081, %v2065
        %v2370 = vpack.c.b16 %v2082, %v2066
        %v2371 = vpack.c.b16 %v2083, %v2067
        %v2372 = vpack.c.b16 %v2100, %v2084
        %v2373 = vpack.c.b16 %v2101, %v2085
        %v2374 = vpack.c.b16 %v2102, %v2086
        %v2375 = vpack.c.b16 %v2103, %v2087
        %v2376 = vpack.c.b16 %v2104, %v2088
        %v2377 = vpack.c.b16 %v2105, %v2089
        %v2378 = vpack.c.b16 %v2106, %v2090
        %v2379 = vpack.c.b16 %v2107, %v2091
        %v2380 = vpack.c.b16 %v2108, %v2092
        %v2381 = vpack.c.b16 %v2109, %v2093
        %v2382 = vpack.c.b16 %v2110, %v2094
        %v2383 = vpack.c.b16 %v2111, %v2095
        %v2384 = vpack.c.b16 %v2112, %v2096
        %v2385 = vpack.c.b16 %v2113, %v2097
        %v2386 = vpack.c.b16 %v2114, %v2098
        %v2387 = vpack.c.b16 %v2115, %v2099
        %v2388 = vpack.c.b16 %v2132, %v2116
        %v2389 = vpack.c.b16 %v2133, %v2117
        %v2390 = vpack.c.b16 %v2134, %v2118
        %v2391 = vpack.c.b16 %v2135, %v2119
        %v2392 = vpack.c.b16 %v2136, %v2120
        %v2393 = vpack.c.b16 %v2137, %v2121
        %v2394 = vpack.c.b16 %v2138, %v2122
        %v2395 = vpack.c.b16 %v2139, %v2123
        %v2396 = vpack.c.b16 %v2140, %v2124
        %v2397 = vpack.c.b16 %v2141, %v2125
        %v2398 = vpack.c.b16 %v2142, %v2126
        %v2399 = vpack.c.b16 %v2143, %v2127
        %v2400 = vpack.c.b16 %v2144, %v2128
        %v2401 = vpack.c.b16 %v2145, %v2129
        %v2402 = vpack.c.b16 %v2146, %v2130
        %v2403 = vpack.c.b16 %v2147, %v2131
        %v2404 = vpack.c.b16 %v2164, %v2148
        %v2405 = vpack.c.b16 %v2165, %v2149
        %v2406 = vpack.c.b16 %v2166, %v2150
        %v2407 = vpack.c.b16 %v2167, %v2151
        %v2408 = vpack.c.b16 %v2168, %v2152
        %v2409 = vpack.c.b16 %v2169, %v2153
        %v2410 = vpack.c.b16 %v2170, %v2154
        %v2411 = vpack.c.b16 %v2171, %v2155
        %v2412 = vpack.c.b16 %v2172, %v2156
        %v2413 = vpack.c.b16 %v2173, %v2157
        %v2414 = vpack.c.b16 %v2174, %v2158
        %v2415 = vpack.c.b16 %v2175, %v2159
        %v2416 = vpack.c.b16 %v2176, %v2160
        %v2417 = vpack.c.b16 %v2177, %v2161
        %v2418 = vpack.c.b16 %v2178, %v2162
        %v2419 = vpack.c.b16 %v2179, %v2163
        %v2420 = vpack.c.b16 %v2196, %v2180
        %v2421 = vpack.c.b16 %v2197, %v2181
        %v2422 = vpack.c.b16 %v2198, %v2182
        %v2423 = vpack.c.b16 %v2199, %v2183
        %v2424 = vpack.c.b16 %v2200, %v2184
        %v2425 = vpack.c.b16 %v2201, %v2185
        %v2426 = vpack.c.b16 %v2202, %v2186
        %v2427 = vpack.c.b16 %v2203, %v2187
        %v2428 = vpack.c.b16 %v2204, %v2188
        %v2429 = vpack.c.b16 %v2205, %v2189
        %v2430 = vpack.c.b16 %v2206, %v2190
        %v2431 = vpack.c.b16 %v2207, %v2191
        %v2432 = vpack.c.b16 %v2208, %v2192
        %v2433 = vpack.c.b16 %v2209, %v2193
        %v2434 = vpack.c.b16 %v2210, %v2194
        %v2435 = vpack.c.b16 %v2211, %v2195
        %v2436 = vpack.c.b16 %v2228, %v2212
        %v2437 = vpack.c.b16 %v2229, %v2213
        %v2438 = vpack.c.b16 %v2230, %v2214
        %v2439 = vpack.c.b16 %v2231, %v2215
        %v2440 = vpack.c.b16 %v2232, %v2216
        %v2441 = vpack.c.b16 %v2233, %v2217
        %v2442 = vpack.c.b16 %v2234, %v2218
        %v2443 = vpack.c.b16 %v2235, %v2219
        %v2444 = vpack.c.b16 %v2236, %v2220
        %v2445 = vpack.c.b16 %v2237, %v2221
        %v2446 = vpack.c.b16 %v2238, %v2222
        %v2447 = vpack.c.b16 %v2239, %v2223
        %v2448 = vpack.c.b16 %v2240, %v2224
        %v2449 = vpack.c.b16 %v2241, %v2225
        %v2450 = vpack.c.b16 %v2242, %v2226
        %v2451 = vpack.c.b16 %v2243, %v2227
        %v2452 = vpack.c.b16 %v2260, %v2244
        %v2453 = vpack.c.b16 %v2261, %v2245
        %v2454 = vpack.c.b16 %v2262, %v2246
        %v2455 = vpack.c.b16 %v2263, %v2247
        %v2456 = vpack.c.b16 %v2264, %v2248
        %v2457 = vpack.c.b16 %v2265, %v2249
        %v2458 = vpack.c.b16 %v2266, %v2250
        %v2459 = vpack.c.b16 %v2267, %v2251
        %v2460 = vpack.c.b16 %v2268, %v2252
        %v2461 = vpack.c.b16 %v2269, %v2253
        %v2462 = vpack.c.b16 %v2270, %v2254
        %v2463 = vpack.c.b16 %v2271, %v2255
        %v2464 = vpack.c.b16 %v2272, %v2256
        %v2465 = vpack.c.b16 %v2273, %v2257
        %v2466 = vpack.c.b16 %v2274, %v2258
        %v2467 = vpack.c.b16 %v2275, %v2259
        %v2468 = vpack.c.b16 %v2292, %v2276
        %v2469 = vpack.c.b16 %v2293, %v2277
        %v2470 = vpack.c.b16 %v2294, %v2278
        %v2471 = vpack.c.b16 %v2295, %v2279
        %v2472 = vpack.c.b16 %v2296, %v2280
        %v2473 = vpack.c.b16 %v2297, %v2281
        %v2474 = vpack.c.b16 %v2298, %v2282
        %v2475 = vpack.c.b16 %v2299, %v2283
        %v2476 = vpack.c.b16 %v2300, %v2284
        %v2477 = vpack.c.b16 %v2301, %v2285
        %v2478 = vpack.c.b16 %v2302, %v2286
        %v2479 = vpack.c.b16 %v2303, %v2287
        %v2480 = vpack.c.b16 %v2304, %v2288
        %v2481 = vpack.c.b16 %v2305, %v2289
        %v2482 = vpack.c.b16 %v2306, %v2290
        %v2483 = vpack.c.b16 %v2307, %v2291
        %v2484 = vpack.c.b16 %v2324, %v2308
        %v2485 = vpack.c.b16 %v2325, %v2309
        %v2486 = vpack.c.b16 %v2326, %v2310
        %v2487 = vpack.c.b16 %v2327, %v2311
        %v2488 = vpack.c.b16 %v2328, %v2312
        %v2489 = vpack.c.b16 %v2329, %v2313
        %v2490 = vpack.c.b16 %v2330, %v2314
        %v2491 = vpack.c.b16 %v2331, %v2315
        %v2492 = vpack.c.b16 %v2332, %v2316
        %v2493 = vpack.c.b16 %v2333, %v2317
        %v2494 = vpack.c.b16 %v2334, %v2318
        %v2495 = vpack.c.b16 %v2335, %v2319
        %v2496 = vpack.c.b16 %v2336, %v2320
        %v2497 = vpack.c.b16 %v2337, %v2321
        %v2498 = vpack.c.b16 %v2338, %v2322
        %v2499 = vpack.c.b16 %v2339, %v2323
        %v2661 = vsel %vm592, %v1699, 0
        %2663 = vmatprep.subr.bf16.mxu0 %v2341
        %2664 = vmatpush1.bf16.msra.mxu0 %v2340
        %2665 = vmatprep.subr.bf16.mxu0 %v2357
        %2666 = vmatpush1.bf16.msra.mxu0 %v2356
        %2667 = vmatprep.subr.bf16.mxu0 %v2373
        %2668 = vmatpush1.bf16.msra.mxu0 %v2372
        %2669 = vmatprep.subr.bf16.mxu0 %v2389
        %2670 = vmatpush1.bf16.msra.mxu0 %v2388
        %2671 = vmatprep.subr.bf16.mxu0 %v2405
        %2672 = vmatpush1.bf16.msra.mxu0 %v2404
        %2673 = vmatprep.subr.bf16.mxu0 %v2421
        %2674 = vmatpush1.bf16.msra.mxu0 %v2420
        %2675 = vmatprep.subr.bf16.mxu0 %v2437
        %2676 = vmatpush1.bf16.msra.mxu0 %v2436
        %2677 = vmatprep.subr.bf16.mxu0 %v2453
        %2678 = vmatpush1.bf16.msra.mxu0 %v2452
        %2679 = vmatprep.subr.bf16.mxu0 %v2469
        %2680 = vmatpush1.bf16.msra.mxu0 %v2468
        %2681 = vmatprep.subr.bf16.mxu0 %v2485
        %2682 = vmatpush1.bf16.msra.mxu0 %v2484
        %2683 = vmatprep.subr.bf16.mxu0 0
        %2684 = vmatpush1.bf16.msra.mxu0 0
        %2685 = vmatprep.subr.bf16.mxu0 0
        %2686 = vmatpush1.bf16.msra.mxu0 0
        %2687 = vmatprep.subr.bf16.mxu0 0
        %2688 = vmatpush1.bf16.msra.mxu0 0
        %2689 = vmatprep.subr.bf16.mxu0 0
        %2690 = vmatpush1.bf16.msra.mxu0 0
        %2691 = vmatprep.subr.bf16.mxu0 0
        %2692 = vmatpush1.bf16.msra.mxu0 0
        %2693 = vmatprep.subr.bf16.mxu0 0
        %2694 = vmatpush1.bf16.msra.mxu0 0
        %2695 = vmatprep.mubr.bf16.mxu0 %v2661
        %2696 = vmatmul.mubr.bf16.gmra.mrb[0].mxu0 %v1698
        %v2697 = vpop.f32.mrb[0].mxu0
        %v2698 = vadd.f32 0.0, %v2697
        %v2699 = vpop.f32.mrb[0].mxu0
        %v2700 = vadd.f32 0.0, %v2699
        %v2701 = vpop.f32.mrb[0].mxu0
        %v2702 = vpop.f32.mrb[0].mxu0
        %2703 = vdwg.mxu0
        %2704 = vmatprep.subr.bf16.mxu0 %v2343
        %2705 = vmatpush1.bf16.msra.mxu0 %v2342
        %2706 = vmatprep.subr.bf16.mxu0 %v2359
        %2707 = vmatpush1.bf16.msra.mxu0 %v2358
        %2708 = vmatprep.subr.bf16.mxu0 %v2375
        %2709 = vmatpush1.bf16.msra.mxu0 %v2374
        %2710 = vmatprep.subr.bf16.mxu0 %v2391
        %2711 = vmatpush1.bf16.msra.mxu0 %v2390
        %2712 = vmatprep.subr.bf16.mxu0 %v2407
        %2713 = vmatpush1.bf16.msra.mxu0 %v2406
        %2714 = vmatprep.subr.bf16.mxu0 %v2423
        %2715 = vmatpush1.bf16.msra.mxu0 %v2422
        %2716 = vmatprep.subr.bf16.mxu0 %v2439
        %2717 = vmatpush1.bf16.msra.mxu0 %v2438
        %2718 = vmatprep.subr.bf16.mxu0 %v2455
        %2719 = vmatpush1.bf16.msra.mxu0 %v2454
        %2720 = vmatprep.subr.bf16.mxu0 %v2471
        %2721 = vmatpush1.bf16.msra.mxu0 %v2470
        %2722 = vmatprep.subr.bf16.mxu0 %v2487
        %2723 = vmatpush1.bf16.msra.mxu0 %v2486
        %2724 = vmatprep.subr.bf16.mxu0 0
        %2725 = vmatpush1.bf16.msra.mxu0 0
        %2726 = vmatprep.subr.bf16.mxu0 0
        %2727 = vmatpush1.bf16.msra.mxu0 0
        %2728 = vmatprep.subr.bf16.mxu0 0
        %2729 = vmatpush1.bf16.msra.mxu0 0
        %2730 = vmatprep.subr.bf16.mxu0 0
        %2731 = vmatpush1.bf16.msra.mxu0 0
        %2732 = vmatprep.subr.bf16.mxu0 0
        %2733 = vmatpush1.bf16.msra.mxu0 0
        %2734 = vmatprep.subr.bf16.mxu0 0
        %2735 = vmatpush1.bf16.msra.mxu0 0
        %2736 = vmatprep.mubr.bf16.mxu0 %v2661
        %2737 = vmatmul.mubr.bf16.gmra.mrb[0].mxu0 %v1698
        %v2738 = vpop.f32.mrb[0].mxu0
        %v2739 = vadd.f32 0.0, %v2738
        %v2740 = vpop.f32.mrb[0].mxu0
        %v2741 = vadd.f32 0.0, %v2740
        %v2742 = vpop.f32.mrb[0].mxu0
        %v2743 = vpop.f32.mrb[0].mxu0
        %2744 = vdwg.mxu0
        %2745 = vmatprep.subr.bf16.mxu0 %v2345
        %2746 = vmatpush1.bf16.msra.mxu0 %v2344
        %2747 = vmatprep.subr.bf16.mxu0 %v2361
        %2748 = vmatpush1.bf16.msra.mxu0 %v2360
        %2749 = vmatprep.subr.bf16.mxu0 %v2377
        %2750 = vmatpush1.bf16.msra.mxu0 %v2376
        %2751 = vmatprep.subr.bf16.mxu0 %v2393
        %2752 = vmatpush1.bf16.msra.mxu0 %v2392
        %2753 = vmatprep.subr.bf16.mxu0 %v2409
        %2754 = vmatpush1.bf16.msra.mxu0 %v2408
        %2755 = vmatprep.subr.bf16.mxu0 %v2425
        %2756 = vmatpush1.bf16.msra.mxu0 %v2424
        %2757 = vmatprep.subr.bf16.mxu0 %v2441
        %2758 = vmatpush1.bf16.msra.mxu0 %v2440
        %2759 = vmatprep.subr.bf16.mxu0 %v2457
        %2760 = vmatpush1.bf16.msra.mxu0 %v2456
        %2761 = vmatprep.subr.bf16.mxu0 %v2473
        %2762 = vmatpush1.bf16.msra.mxu0 %v2472
        %2763 = vmatprep.subr.bf16.mxu0 %v2489
        %2764 = vmatpush1.bf16.msra.mxu0 %v2488
        %2765 = vmatprep.subr.bf16.mxu0 0
        %2766 = vmatpush1.bf16.msra.mxu0 0
        %2767 = vmatprep.subr.bf16.mxu0 0
        %2768 = vmatpush1.bf16.msra.mxu0 0
        %2769 = vmatprep.subr.bf16.mxu0 0
        %2770 = vmatpush1.bf16.msra.mxu0 0
        %2771 = vmatprep.subr.bf16.mxu0 0
        %2772 = vmatpush1.bf16.msra.mxu0 0
        %2773 = vmatprep.subr.bf16.mxu0 0
        %2774 = vmatpush1.bf16.msra.mxu0 0
        %2775 = vmatprep.subr.bf16.mxu0 0
        %2776 = vmatpush1.bf16.msra.mxu0 0
        %2777 = vmatprep.mubr.bf16.mxu0 %v2661
        %2778 = vmatmul.mubr.bf16.gmra.mrb[0].mxu0 %v1698
        %v2779 = vpop.f32.mrb[0].mxu0
        %v2780 = vadd.f32 0.0, %v2779
        %v2781 = vpop.f32.mrb[0].mxu0
        %v2782 = vadd.f32 0.0, %v2781
        %v2783 = vpop.f32.mrb[0].mxu0
        %v2784 = vpop.f32.mrb[0].mxu0
        %2785 = vdwg.mxu0
        %2786 = vmatprep.subr.bf16.mxu0 %v2347
        %2787 = vmatpush1.bf16.msra.mxu0 %v2346
        %2788 = vmatprep.subr.bf16.mxu0 %v2363
        %2789 = vmatpush1.bf16.msra.mxu0 %v2362
        %2790 = vmatprep.subr.bf16.mxu0 %v2379
        %2791 = vmatpush1.bf16.msra.mxu0 %v2378
        %2792 = vmatprep.subr.bf16.mxu0 %v2395
        %2793 = vmatpush1.bf16.msra.mxu0 %v2394
        %2794 = vmatprep.subr.bf16.mxu0 %v2411
        %2795 = vmatpush1.bf16.msra.mxu0 %v2410
        %2796 = vmatprep.subr.bf16.mxu0 %v2427
        %2797 = vmatpush1.bf16.msra.mxu0 %v2426
        %2798 = vmatprep.subr.bf16.mxu0 %v2443
        %2799 = vmatpush1.bf16.msra.mxu0 %v2442
        %2800 = vmatprep.subr.bf16.mxu0 %v2459
        %2801 = vmatpush1.bf16.msra.mxu0 %v2458
        %2802 = vmatprep.subr.bf16.mxu0 %v2475
        %2803 = vmatpush1.bf16.msra.mxu0 %v2474
        %2804 = vmatprep.subr.bf16.mxu0 %v2491
        %2805 = vmatpush1.bf16.msra.mxu0 %v2490
        %2806 = vmatprep.subr.bf16.mxu0 0
        %2807 = vmatpush1.bf16.msra.mxu0 0
        %2808 = vmatprep.subr.bf16.mxu0 0
        %2809 = vmatpush1.bf16.msra.mxu0 0
        %2810 = vmatprep.subr.bf16.mxu0 0
        %2811 = vmatpush1.bf16.msra.mxu0 0
        %2812 = vmatprep.subr.bf16.mxu0 0
        %2813 = vmatpush1.bf16.msra.mxu0 0
        %2814 = vmatprep.subr.bf16.mxu0 0
        %2815 = vmatpush1.bf16.msra.mxu0 0
        %2816 = vmatprep.subr.bf16.mxu0 0
        %2817 = vmatpush1.bf16.msra.mxu0 0
        %2818 = vmatprep.mubr.bf16.mxu0 %v2661
        %2819 = vmatmul.mubr.bf16.gmra.mrb[0].mxu0 %v1698
        %v2820 = vpop.f32.mrb[0].mxu0
        %v2821 = vadd.f32 0.0, %v2820
        %v2822 = vpop.f32.mrb[0].mxu0
        %v2823 = vadd.f32 0.0, %v2822
        %v2824 = vpop.f32.mrb[0].mxu0
        %v2825 = vpop.f32.mrb[0].mxu0
        %2826 = vdwg.mxu0
        %2827 = vmatprep.subr.bf16.mxu0 %v2349
        %2828 = vmatpush1.bf16.msra.mxu0 %v2348
        %2829 = vmatprep.subr.bf16.mxu0 %v2365
        %2830 = vmatpush1.bf16.msra.mxu0 %v2364
        %2831 = vmatprep.subr.bf16.mxu0 %v2381
        %2832 = vmatpush1.bf16.msra.mxu0 %v2380
        %2833 = vmatprep.subr.bf16.mxu0 %v2397
        %2834 = vmatpush1.bf16.msra.mxu0 %v2396
        %2835 = vmatprep.subr.bf16.mxu0 %v2413
        %2836 = vmatpush1.bf16.msra.mxu0 %v2412
        %2837 = vmatprep.subr.bf16.mxu0 %v2429
        %2838 = vmatpush1.bf16.msra.mxu0 %v2428
        %2839 = vmatprep.subr.bf16.mxu0 %v2445
        %2840 = vmatpush1.bf16.msra.mxu0 %v2444
        %2841 = vmatprep.subr.bf16.mxu0 %v2461
        %2842 = vmatpush1.bf16.msra.mxu0 %v2460
        %2843 = vmatprep.subr.bf16.mxu0 %v2477
        %2844 = vmatpush1.bf16.msra.mxu0 %v2476
        %2845 = vmatprep.subr.bf16.mxu0 %v2493
        %2846 = vmatpush1.bf16.msra.mxu0 %v2492
        %2847 = vmatprep.subr.bf16.mxu0 0
        %2848 = vmatpush1.bf16.msra.mxu0 0
        %2849 = vmatprep.subr.bf16.mxu0 0
        %2850 = vmatpush1.bf16.msra.mxu0 0
        %2851 = vmatprep.subr.bf16.mxu0 0
        %2852 = vmatpush1.bf16.msra.mxu0 0
        %2853 = vmatprep.subr.bf16.mxu0 0
        %2854 = vmatpush1.bf16.msra.mxu0 0
        %2855 = vmatprep.subr.bf16.mxu0 0
        %2856 = vmatpush1.bf16.msra.mxu0 0
        %2857 = vmatprep.subr.bf16.mxu0 0
        %2858 = vmatpush1.bf16.msra.mxu0 0
        %2859 = vmatprep.mubr.bf16.mxu0 %v2661
        %2860 = vmatmul.mubr.bf16.gmra.mrb[0].mxu0 %v1698
        %v2861 = vpop.f32.mrb[0].mxu0
        %v2862 = vadd.f32 0.0, %v2861
        %v2863 = vpop.f32.mrb[0].mxu0
        %v2864 = vadd.f32 0.0, %v2863
        %v2865 = vpop.f32.mrb[0].mxu0
        %v2866 = vpop.f32.mrb[0].mxu0
        %2867 = vdwg.mxu0
        %2868 = vmatprep.subr.bf16.mxu0 %v2351
        %2869 = vmatpush1.bf16.msra.mxu0 %v2350
        %2870 = vmatprep.subr.bf16.mxu0 %v2367
        %2871 = vmatpush1.bf16.msra.mxu0 %v2366
        %2872 = vmatprep.subr.bf16.mxu0 %v2383
        %2873 = vmatpush1.bf16.msra.mxu0 %v2382
        %2874 = vmatprep.subr.bf16.mxu0 %v2399
        %2875 = vmatpush1.bf16.msra.mxu0 %v2398
        %2876 = vmatprep.subr.bf16.mxu0 %v2415
        %2877 = vmatpush1.bf16.msra.mxu0 %v2414
        %2878 = vmatprep.subr.bf16.mxu0 %v2431
        %2879 = vmatpush1.bf16.msra.mxu0 %v2430
        %2880 = vmatprep.subr.bf16.mxu0 %v2447
        %2881 = vmatpush1.bf16.msra.mxu0 %v2446
        %2882 = vmatprep.subr.bf16.mxu0 %v2463
        %2883 = vmatpush1.bf16.msra.mxu0 %v2462
        %2884 = vmatprep.subr.bf16.mxu0 %v2479
        %2885 = vmatpush1.bf16.msra.mxu0 %v2478
        %2886 = vmatprep.subr.bf16.mxu0 %v2495
        %2887 = vmatpush1.bf16.msra.mxu0 %v2494
        %2888 = vmatprep.subr.bf16.mxu0 0
        %2889 = vmatpush1.bf16.msra.mxu0 0
        %2890 = vmatprep.subr.bf16.mxu0 0
        %2891 = vmatpush1.bf16.msra.mxu0 0
        %2892 = vmatprep.subr.bf16.mxu0 0
        %2893 = vmatpush1.bf16.msra.mxu0 0
        %2894 = vmatprep.subr.bf16.mxu0 0
        %2895 = vmatpush1.bf16.msra.mxu0 0
        %2896 = vmatprep.subr.bf16.mxu0 0
        %2897 = vmatpush1.bf16.msra.mxu0 0
        %2898 = vmatprep.subr.bf16.mxu0 0
        %2899 = vmatpush1.bf16.msra.mxu0 0
        %2900 = vmatprep.mubr.bf16.mxu0 %v2661
        %2901 = vmatmul.mubr.bf16.gmra.mrb[0].mxu0 %v1698
        %v2902 = vpop.f32.mrb[0].mxu0
        %v2903 = vadd.f32 0.0, %v2902
        %v2904 = vpop.f32.mrb[0].mxu0
        %v2905 = vadd.f32 0.0, %v2904
        %v2906 = vpop.f32.mrb[0].mxu0
        %v2907 = vpop.f32.mrb[0].mxu0
        %2908 = vdwg.mxu0
        %2909 = vmatprep.subr.bf16.mxu0 %v2353
        %2910 = vmatpush1.bf16.msra.mxu0 %v2352
        %2911 = vmatprep.subr.bf16.mxu0 %v2369
        %2912 = vmatpush1.bf16.msra.mxu0 %v2368
        %2913 = vmatprep.subr.bf16.mxu0 %v2385
        %2914 = vmatpush1.bf16.msra.mxu0 %v2384
        %2915 = vmatprep.subr.bf16.mxu0 %v2401
        %2916 = vmatpush1.bf16.msra.mxu0 %v2400
        %2917 = vmatprep.subr.bf16.mxu0 %v2417
        %2918 = vmatpush1.bf16.msra.mxu0 %v2416
        %2919 = vmatprep.subr.bf16.mxu0 %v2433
        %2920 = vmatpush1.bf16.msra.mxu0 %v2432
        %2921 = vmatprep.subr.bf16.mxu0 %v2449
        %2922 = vmatpush1.bf16.msra.mxu0 %v2448
        %2923 = vmatprep.subr.bf16.mxu0 %v2465
        %2924 = vmatpush1.bf16.msra.mxu0 %v2464
        %2925 = vmatprep.subr.bf16.mxu0 %v2481
        %2926 = vmatpush1.bf16.msra.mxu0 %v2480
        %2927 = vmatprep.subr.bf16.mxu0 %v2497
        %2928 = vmatpush1.bf16.msra.mxu0 %v2496
        %2929 = vmatprep.subr.bf16.mxu0 0
        %2930 = vmatpush1.bf16.msra.mxu0 0
        %2931 = vmatprep.subr.bf16.mxu0 0
        %2932 = vmatpush1.bf16.msra.mxu0 0
        %2933 = vmatprep.subr.bf16.mxu0 0
        %2934 = vmatpush1.bf16.msra.mxu0 0
        %2935 = vmatprep.subr.bf16.mxu0 0
        %2936 = vmatpush1.bf16.msra.mxu0 0
        %2937 = vmatprep.subr.bf16.mxu0 0
        %2938 = vmatpush1.bf16.msra.mxu0 0
        %2939 = vmatprep.subr.bf16.mxu0 0
        %2940 = vmatpush1.bf16.msra.mxu0 0
        %2941 = vmatprep.mubr.bf16.mxu0 %v2661
        %2942 = vmatmul.mubr.bf16.gmra.mrb[0].mxu0 %v1698
        %v2943 = vpop.f32.mrb[0].mxu0
        %v2944 = vadd.f32 0.0, %v2943
        %v2945 = vpop.f32.mrb[0].mxu0
        %v2946 = vadd.f32 0.0, %v2945
        %v2947 = vpop.f32.mrb[0].mxu0
        %v2948 = vpop.f32.mrb[0].mxu0
        %2949 = vdwg.mxu0
        %2950 = vmatprep.subr.bf16.mxu0 %v2355
        %2951 = vmatpush1.bf16.msra.mxu0 %v2354
        %2952 = vmatprep.subr.bf16.mxu0 %v2371
        %2953 = vmatpush1.bf16.msra.mxu0 %v2370
        %2954 = vmatprep.subr.bf16.mxu0 %v2387
        %2955 = vmatpush1.bf16.msra.mxu0 %v2386
        %2956 = vmatprep.subr.bf16.mxu0 %v2403
        %2957 = vmatpush1.bf16.msra.mxu0 %v2402
        %2958 = vmatprep.subr.bf16.mxu0 %v2419
        %2959 = vmatpush1.bf16.msra.mxu0 %v2418
        %2960 = vmatprep.subr.bf16.mxu0 %v2435
        %2961 = vmatpush1.bf16.msra.mxu0 %v2434
        %2962 = vmatprep.subr.bf16.mxu0 %v2451
        %2963 = vmatpush1.bf16.msra.mxu0 %v2450
        %2964 = vmatprep.subr.bf16.mxu0 %v2467
        %2965 = vmatpush1.bf16.msra.mxu0 %v2466
        %2966 = vmatprep.subr.bf16.mxu0 %v2483
        %2967 = vmatpush1.bf16.msra.mxu0 %v2482
        %2968 = vmatprep.subr.bf16.mxu0 %v2499
        %2969 = vmatpush1.bf16.msra.mxu0 %v2498
        %2970 = vmatprep.subr.bf16.mxu0 0
        %2971 = vmatpush1.bf16.msra.mxu0 0
        %2972 = vmatprep.subr.bf16.mxu0 0
        %2973 = vmatpush1.bf16.msra.mxu0 0
        %2974 = vmatprep.subr.bf16.mxu0 0
        %2975 = vmatpush1.bf16.msra.mxu0 0
        %2976 = vmatprep.subr.bf16.mxu0 0
        %2977 = vmatpush1.bf16.msra.mxu0 0
        %2978 = vmatprep.subr.bf16.mxu0 0
        %2979 = vmatpush1.bf16.msra.mxu0 0
        %2980 = vmatprep.subr.bf16.mxu0 0
        %2981 = vmatpush1.bf16.msra.mxu0 0
        %2982 = vmatprep.mubr.bf16.mxu0 %v2661
        %2983 = vmatmul.mubr.bf16.gmra.mrb[0].mxu0 %v1698
        %v2984 = vpop.f32.mrb[0].mxu0
        %v2985 = vadd.f32 0.0, %v2984
        %v2986 = vpop.f32.mrb[0].mxu0
        %v2987 = vadd.f32 0.0, %v2986
        %v2988 = vpop.f32.mrb[0].mxu0
        %v2989 = vpop.f32.mrb[0].mxu0
        %2990 = vdwg.mxu0
        %v2991 = vpack.c.bf16 %v2698, %v2698
        %v2992 = vpack.c.bf16 %v2700, %v2700
        %v2993 = vpack.c.bf16 %v2739, %v2739
        %v2994 = vpack.c.bf16 %v2741, %v2741
        %v2995 = vpack.c.bf16 %v2780, %v2780
        %v2996 = vpack.c.bf16 %v2782, %v2782
        %v2997 = vpack.c.bf16 %v2821, %v2821
        %v2998 = vpack.c.bf16 %v2823, %v2823
        %v2999 = vpack.c.bf16 %v2862, %v2862
        %v3000 = vpack.c.bf16 %v2864, %v2864
        %v3001 = vpack.c.bf16 %v2903, %v2903
        %v3002 = vpack.c.bf16 %v2905, %v2905
        %v3003 = vpack.c.bf16 %v2944, %v2944
        %v3004 = vpack.c.bf16 %v2946, %v2946
        %v3005 = vpack.c.bf16 %v2985, %v2985
        %v3006 = vpack.c.bf16 %v2987, %v2987
        %3007 = vxpose.xlu0.c.b16.start [1/8] %v1690, 128
        %3008 = vxpose.xlu0.c.b16.cont [2/8] 0, 128
        %3009 = vxpose.xlu0.c.b16.cont [3/8] 0, 128
        %3010 = vxpose.xlu0.c.b16.cont [4/8] 0, 128
        %3011 = vxpose.xlu0.c.b16.cont [5/8] 0, 128
        %3012 = vxpose.xlu0.c.b16.cont [6/8] 0, 128
        %3013 = vxpose.xlu0.c.b16.cont [7/8] 0, 128
        %3014 = vxpose.xlu0.c.b16.end [8/8] 0, 128
        %v3015 = vpop.trf.xlu0
        %v3016 = vpop.trf.xlu0
        %v3017 = vpop.trf.xlu0
        %v3018 = vpop.trf.xlu0
        %v3019 = vpop.trf.xlu0
        %v3020 = vpop.trf.xlu0
        %v3021 = vpop.trf.xlu0
        %v3022 = vpop.trf.xlu0
        %3023 = vxpose.xlu0.c.b16.start [1/8] %v1691, 128
        %3024 = vxpose.xlu0.c.b16.cont [2/8] 0, 128
        %3025 = vxpose.xlu0.c.b16.cont [3/8] 0, 128
        %3026 = vxpose.xlu0.c.b16.cont [4/8] 0, 128
        %3027 = vxpose.xlu0.c.b16.cont [5/8] 0, 128
        %3028 = vxpose.xlu0.c.b16.cont [6/8] 0, 128
        %3029 = vxpose.xlu0.c.b16.cont [7/8] 0, 128
        %3030 = vxpose.xlu0.c.b16.end [8/8] 0, 128
        %v3031 = vpop.trf.xlu0
        %v3032 = vpop.trf.xlu0
        %v3033 = vpop.trf.xlu0
        %v3034 = vpop.trf.xlu0
        %v3035 = vpop.trf.xlu0
        %v3036 = vpop.trf.xlu0
        %v3037 = vpop.trf.xlu0
        %v3038 = vpop.trf.xlu0
        %v3040 = vsel %vm754, %v3015, 0
        %v3043 = vsel %vm754, %v3016, 0
        %v3046 = vsel %vm754, %v3017, 0
        %v3049 = vsel %vm754, %v3018, 0
        %v3052 = vsel %vm754, %v3019, 0
        %v3055 = vsel %vm754, %v3020, 0
        %v3058 = vsel %vm754, %v3021, 0
        %v3061 = vsel %vm754, %v3022, 0
        %v3064 = vsel %vm754, %v3031, 0
        %v3067 = vsel %vm754, %v3032, 0
        %vm3069 = vcmask 1043456
        %v3071 = vsel %vm3069, %v2991, 0
        %v3074 = vsel %vm3069, %v2992, 0
        %3076 = vmatprep.subr.bf16.mxu0 %v3074
        %3077 = vmatpush1.bf16.msra.mxu0 %v3071
        %3078 = vmatprep.subr.bf16.mxu0 0
        %3079 = vmatpush1.bf16.msra.mxu0 0
        %3080 = vmatprep.subr.bf16.mxu0 0
        %3081 = vmatpush1.bf16.msra.mxu0 0
        %3082 = vmatprep.subr.bf16.mxu0 0
        %3083 = vmatpush1.bf16.msra.mxu0 0
        %3084 = vmatprep.subr.bf16.mxu0 0
        %3085 = vmatpush1.bf16.msra.mxu0 0
        %3086 = vmatprep.subr.bf16.mxu0 0
        %3087 = vmatpush1.bf16.msra.mxu0 0
        %3088 = vmatprep.subr.bf16.mxu0 0
        %3089 = vmatpush1.bf16.msra.mxu0 0
        %3090 = vmatprep.subr.bf16.mxu0 0
        %3091 = vmatpush1.bf16.msra.mxu0 0
        %3092 = vmatprep.subr.bf16.mxu0 0
        %3093 = vmatpush1.bf16.msra.mxu0 0
        %3094 = vmatprep.subr.bf16.mxu0 0
        %3095 = vmatpush1.bf16.msra.mxu0 0
        %3096 = vmatprep.subr.bf16.mxu0 0
        %3097 = vmatpush1.bf16.msra.mxu0 0
        %3098 = vmatprep.subr.bf16.mxu0 0
        %3099 = vmatpush1.bf16.msra.mxu0 0
        %3100 = vmatprep.subr.bf16.mxu0 0
        %3101 = vmatpush1.bf16.msra.mxu0 0
        %3102 = vmatprep.subr.bf16.mxu0 0
        %3103 = vmatpush1.bf16.msra.mxu0 0
        %3104 = vmatprep.subr.bf16.mxu0 0
        %3105 = vmatpush1.bf16.msra.mxu0 0
        %3106 = vmatprep.subr.bf16.mxu0 0
        %3107 = vmatpush1.bf16.msra.mxu0 0
        %3108 = vmatprep.mubr.bf16.mxu0 0
        %3109 = vmatmul.mubr.bf16.gmra.mrb[0].mxu0 %v3040
        %v3110 = vpop.f32.mrb[0].mxu0
        %v3111 = vadd.f32 0.0, %v3110
        %v3112 = vpop.f32.mrb[0].mxu0
        %v3113 = vadd.f32 0.0, %v3112
        %v3114 = vpop.f32.mrb[0].mxu0
        %v3115 = vadd.f32 0.0, %v3114
        %v3116 = vpop.f32.mrb[0].mxu0
        %v3117 = vadd.f32 0.0, %v3116
        %3118 = vmatprep.mubr.bf16.mxu0 0
        %3119 = vmatmul.mubr.bf16.gmra.mrb[0].mxu0 %v3043
        %v3120 = vpop.f32.mrb[0].mxu0
        %v3121 = vadd.f32 0.0, %v3120
        %v3122 = vpop.f32.mrb[0].mxu0
        %v3123 = vadd.f32 0.0, %v3122
        %v3124 = vpop.f32.mrb[0].mxu0
        %v3125 = vadd.f32 0.0, %v3124
        %v3126 = vpop.f32.mrb[0].mxu0
        %v3127 = vadd.f32 0.0, %v3126
        %3128 = vmatprep.mubr.bf16.mxu0 0
        %3129 = vmatmul.mubr.bf16.gmra.mrb[0].mxu0 %v3046
        %v3130 = vpop.f32.mrb[0].mxu0
        %v3131 = vadd.f32 0.0, %v3130
        %v3132 = vpop.f32.mrb[0].mxu0
        %v3133 = vadd.f32 0.0, %v3132
        %v3134 = vpop.f32.mrb[0].mxu0
        %v3135 = vadd.f32 0.0, %v3134
        %v3136 = vpop.f32.mrb[0].mxu0
        %v3137 = vadd.f32 0.0, %v3136
        %3138 = vmatprep.mubr.bf16.mxu0 0
        %3139 = vmatmul.mubr.bf16.gmra.mrb[0].mxu0 %v3049
        %v3140 = vpop.f32.mrb[0].mxu0
        %v3141 = vadd.f32 0.0, %v3140
        %v3142 = vpop.f32.mrb[0].mxu0
        %v3143 = vadd.f32 0.0, %v3142
        %v3144 = vpop.f32.mrb[0].mxu0
        %v3145 = vadd.f32 0.0, %v3144
        %v3146 = vpop.f32.mrb[0].mxu0
        %v3147 = vadd.f32 0.0, %v3146
        %3148 = vmatprep.mubr.bf16.mxu0 0
        %3149 = vmatmul.mubr.bf16.gmra.mrb[0].mxu0 %v3052
        %v3150 = vpop.f32.mrb[0].mxu0
        %v3151 = vadd.f32 0.0, %v3150
        %v3152 = vpop.f32.mrb[0].mxu0
        %v3153 = vadd.f32 0.0, %v3152
        %v3154 = vpop.f32.mrb[0].mxu0
        %v3155 = vadd.f32 0.0, %v3154
        %v3156 = vpop.f32.mrb[0].mxu0
        %v3157 = vadd.f32 0.0, %v3156
        %3158 = vmatprep.mubr.bf16.mxu0 0
        %3159 = vmatmul.mubr.bf16.gmra.mrb[0].mxu0 %v3055
        %v3160 = vpop.f32.mrb[0].mxu0
        %v3161 = vadd.f32 0.0, %v3160
        %v3162 = vpop.f32.mrb[0].mxu0
        %v3163 = vadd.f32 0.0, %v3162
        %v3164 = vpop.f32.mrb[0].mxu0
        %v3165 = vadd.f32 0.0, %v3164
        %v3166 = vpop.f32.mrb[0].mxu0
        %v3167 = vadd.f32 0.0, %v3166
        %3168 = vmatprep.mubr.bf16.mxu0 0
        %3169 = vmatmul.mubr.bf16.gmra.mrb[0].mxu0 %v3058
        %v3170 = vpop.f32.mrb[0].mxu0
        %v3171 = vadd.f32 0.0, %v3170
        %v3172 = vpop.f32.mrb[0].mxu0
        %v3173 = vadd.f32 0.0, %v3172
        %v3174 = vpop.f32.mrb[0].mxu0
        %v3175 = vadd.f32 0.0, %v3174
        %v3176 = vpop.f32.mrb[0].mxu0
        %v3177 = vadd.f32 0.0, %v3176
        %3178 = vmatprep.mubr.bf16.mxu0 0
        %3179 = vmatmul.mubr.bf16.gmra.mrb[0].mxu0 %v3061
        %v3180 = vpop.f32.mrb[0].mxu0
        %v3181 = vadd.f32 0.0, %v3180
        %v3182 = vpop.f32.mrb[0].mxu0
        %v3183 = vadd.f32 0.0, %v3182
        %v3184 = vpop.f32.mrb[0].mxu0
        %v3185 = vadd.f32 0.0, %v3184
        %v3186 = vpop.f32.mrb[0].mxu0
        %v3187 = vadd.f32 0.0, %v3186
        %3188 = vmatprep.mubr.bf16.mxu0 0
        %3189 = vmatmul.mubr.bf16.gmra.mrb[0].mxu0 %v3064
        %v3190 = vpop.f32.mrb[0].mxu0
        %v3191 = vadd.f32 0.0, %v3190
        %v3192 = vpop.f32.mrb[0].mxu0
        %v3193 = vadd.f32 0.0, %v3192
        %v3194 = vpop.f32.mrb[0].mxu0
        %v3195 = vadd.f32 0.0, %v3194
        %v3196 = vpop.f32.mrb[0].mxu0
        %v3197 = vadd.f32 0.0, %v3196
        %3198 = vmatprep.mubr.bf16.mxu0 0
        %3199 = vmatmul.mubr.bf16.gmra.mrb[0].mxu0 %v3067
        %v3200 = vpop.f32.mrb[0].mxu0
        %v3201 = vadd.f32 0.0, %v3200
        %v3202 = vpop.f32.mrb[0].mxu0
        %v3203 = vadd.f32 0.0, %v3202
        %v3204 = vpop.f32.mrb[0].mxu0
        %v3205 = vadd.f32 0.0, %v3204
        %v3206 = vpop.f32.mrb[0].mxu0
        %v3207 = vadd.f32 0.0, %v3206
        %3208 = vdwg.mxu0
        %v3209 = vmul.f32 %v3111, 0.07905694
        %v3210 = vmul.f32 %v3113, 0.07905694
        %v3211 = vmul.f32 %v3115, 0.07905694
        %v3212 = vmul.f32 %v3117, 0.07905694
        %v3213 = vmul.f32 %v3121, 0.07905694
        %v3214 = vmul.f32 %v3123, 0.07905694
        %v3215 = vmul.f32 %v3125, 0.07905694
        %v3216 = vmul.f32 %v3127, 0.07905694
        %v3217 = vmul.f32 %v3131, 0.07905694
        %v3218 = vmul.f32 %v3133, 0.07905694
        %v3219 = vmul.f32 %v3135, 0.07905694
        %v3220 = vmul.f32 %v3137, 0.07905694
        %v3221 = vmul.f32 %v3141, 0.07905694
        %v3222 = vmul.f32 %v3143, 0.07905694
        %v3223 = vmul.f32 %v3145, 0.07905694
        %v3224 = vmul.f32 %v3147, 0.07905694
        %v3225 = vmul.f32 %v3151, 0.07905694
        %v3226 = vmul.f32 %v3153, 0.07905694
        %v3227 = vmul.f32 %v3155, 0.07905694
        %v3228 = vmul.f32 %v3157, 0.07905694
        %v3229 = vmul.f32 %v3161, 0.07905694
        %v3230 = vmul.f32 %v3163, 0.07905694
        %v3231 = vmul.f32 %v3165, 0.07905694
        %v3232 = vmul.f32 %v3167, 0.07905694
        %v3233 = vmul.f32 %v3171, 0.07905694
        %v3234 = vmul.f32 %v3173, 0.07905694
        %v3235 = vmul.f32 %v3175, 0.07905694
        %v3236 = vmul.f32 %v3177, 0.07905694
        %v3237 = vmul.f32 %v3181, 0.07905694
        %v3238 = vmul.f32 %v3183, 0.07905694
        %v3239 = vmul.f32 %v3185, 0.07905694
        %v3240 = vmul.f32 %v3187, 0.07905694
        %v3241 = vmul.f32 %v3191, 0.07905694
        %v3242 = vmul.f32 %v3193, 0.07905694
        %v3243 = vmul.f32 %v3195, 0.07905694
        %v3244 = vmul.f32 %v3197, 0.07905694
        %v3245 = vmul.f32 %v3201, 0.07905694
        %v3246 = vmul.f32 %v3203, 0.07905694
        %v3247 = vmul.f32 %v3205, 0.07905694
        %v3248 = vmul.f32 %v3207, 0.07905694
        %v3249 = vsel %vm592, %v3210, 0.0
        %v3250 = vadd.f32 %v3209, %v3249
        %3251 = vadd.xlane.f32.xlu0 %v3250
        %v3252 = vpop.xlane.xlu0 %3251
        %v3253 = vsel %vm592, %v3212, 0.0
        %v3254 = vadd.f32 %v3211, %v3253
        %3255 = vadd.xlane.f32.xlu0 %v3254
        %v3256 = vpop.xlane.xlu0 %3255
        %v3257 = vadd.f32 %v3252, %v3256
        %v3258 = vrot.slane %v3257, 4
        %v3259 = vadd.f32 %v3257, %v3258
        %v3260 = vrot.slane %v3259, 2
        %v3261 = vadd.f32 %v3259, %v3260
        %v3262 = vrot.slane %v3261, 1
        %v3263 = vadd.f32 %v3261, %v3262
        %v3264 = vmul.f32 %v3263, 0.000390625
        %v3265 = vsub.f32 %v3209, %v3264
        %v3266 = vsub.f32 %v3210, %v3264
        %v3267 = vsub.f32 %v3211, %v3264
        %v3268 = vsub.f32 %v3212, %v3264
        %v3269 = vmul.f32 %v3265, %v3265
        %v3270 = vmul.f32 %v3266, %v3266
        %v3271 = vmul.f32 %v3267, %v3267
        %v3272 = vmul.f32 %v3268, %v3268
        %v3273 = vsel %vm592, %v3270, 0.0
        %v3274 = vadd.f32 %v3269, %v3273
        %3275 = vadd.xlane.f32.xlu0 %v3274
        %v3276 = vpop.xlane.xlu0 %3275
        %v3277 = vsel %vm592, %v3272, 0.0
        %v3278 = vadd.f32 %v3271, %v3277
        %3279 = vadd.xlane.f32.xlu0 %v3278
        %v3280 = vpop.xlane.xlu0 %3279
        %v3281 = vadd.f32 %v3276, %v3280
        %v3282 = vrot.slane %v3281, 4
        %v3283 = vadd.f32 %v3281, %v3282
        %v3284 = vrot.slane %v3283, 2
        %v3285 = vadd.f32 %v3283, %v3284
        %v3286 = vrot.slane %v3285, 1
        %v3287 = vadd.f32 %v3285, %v3286
        %v3288 = vmul.f32 %v3287, 0.000390625
        %v3289 = vadd.f32 %v3288, 1e-05
        %v3290 = vrsqrt.pop %v3289
        %v3291 = vmul.f32 %v3265, %v3290
        %v3292 = vmul.f32 %v3266, %v3290
        %v3293 = vmul.f32 %v3267, %v3290
        %v3294 = vmul.f32 %v3268, %v3290
        %v3295 = vsel %vm592, %v3292, -inf
        %v3296 = vmax.f32 %v3291, %v3295
        %3297 = vmax.xlane.f32.xlu0 %v3296
        %v3298 = vpop.xlane.xlu0 %3297
        %v3299 = vsel %vm592, %v3294, -inf
        %v3300 = vmax.f32 %v3293, %v3299
        %3301 = vmax.xlane.f32.xlu0 %v3300
        %v3302 = vpop.xlane.xlu0 %3301
        %v3303 = vsub.f32 %v3291, %v3298
        %v3304 = vsub.f32 %v3292, %v3298
        %v3305 = vsub.f32 %v3293, %v3302
        %v3306 = vsub.f32 %v3294, %v3302
        %v3307 = vmul.f32 %v3303, 1.442695
        %v3308 = vpow.pop %v3307
        %v3309 = vmul.f32 %v3304, 1.442695
        %v3310 = vpow.pop %v3309
        %v3311 = vmul.f32 %v3305, 1.442695
        %v3312 = vpow.pop %v3311
        %v3313 = vmul.f32 %v3306, 1.442695
        %v3314 = vpow.pop %v3313
        %v3315 = vsel %vm592, %v3310, 0.0
        %v3316 = vadd.f32 %v3308, %v3315
        %3317 = vadd.xlane.f32.xlu0 %v3316
        %v3318 = vpop.xlane.xlu0 %3317
        %v3319 = vsel %vm592, %v3314, 0.0
        %v3320 = vadd.f32 %v3312, %v3319
        %3321 = vadd.xlane.f32.xlu0 %v3320
        %v3322 = vpop.xlane.xlu0 %3321
        %v3323 = vrcp.pop %v3318
        %v3324 = vrcp.pop %v3322
        %v3325 = vmul.f32 %v3308, %v3323
        %v3326 = vmul.f32 %v3310, %v3323
        %v3327 = vmul.f32 %v3312, %v3324
        %v3328 = vmul.f32 %v3314, %v3324
        %v3329 = vpack.c.bf16 %v3327, %v3325
        %v3330 = vpack.c.bf16 %v3328, %v3326
        %v3331 = vsel %vm592, %v3214, 0.0
        %v3332 = vadd.f32 %v3213, %v3331
        %3333 = vadd.xlane.f32.xlu0 %v3332
        %v3334 = vpop.xlane.xlu0 %3333
        %v3335 = vsel %vm592, %v3216, 0.0
        %v3336 = vadd.f32 %v3215, %v3335
        %3337 = vadd.xlane.f32.xlu0 %v3336
        %v3338 = vpop.xlane.xlu0 %3337
        %v3339 = vsel %vm592, %v3218, 0.0
        %v3340 = vadd.f32 %v3217, %v3339
        %3341 = vadd.xlane.f32.xlu0 %v3340
        %v3342 = vpop.xlane.xlu0 %3341
        %v3343 = vsel %vm592, %v3220, 0.0
        %v3344 = vadd.f32 %v3219, %v3343
        %3345 = vadd.xlane.f32.xlu0 %v3344
        %v3346 = vpop.xlane.xlu0 %3345
        %v3347 = vadd.f32 %v3334, %v3338
        %v3348 = vadd.f32 %v3347, %v3342
        %v3349 = vadd.f32 %v3348, %v3346
        %v3350 = vrot.slane %v3349, 4
        %v3351 = vadd.f32 %v3349, %v3350
        %v3352 = vrot.slane %v3351, 2
        %v3353 = vadd.f32 %v3351, %v3352
        %v3354 = vrot.slane %v3353, 1
        %v3355 = vadd.f32 %v3353, %v3354
        %v3356 = vmul.f32 %v3355, 0.0001953125
        %v3357 = vsub.f32 %v3213, %v3356
        %v3358 = vsub.f32 %v3214, %v3356
        %v3359 = vsub.f32 %v3215, %v3356
        %v3360 = vsub.f32 %v3216, %v3356
        %v3361 = vsub.f32 %v3217, %v3356
        %v3362 = vsub.f32 %v3218, %v3356
        %v3363 = vsub.f32 %v3219, %v3356
        %v3364 = vsub.f32 %v3220, %v3356
        %v3365 = vmul.f32 %v3357, %v3357
        %v3366 = vmul.f32 %v3358, %v3358
        %v3367 = vmul.f32 %v3359, %v3359
        %v3368 = vmul.f32 %v3360, %v3360
        %v3369 = vmul.f32 %v3361, %v3361
        %v3370 = vmul.f32 %v3362, %v3362
        %v3371 = vmul.f32 %v3363, %v3363
        %v3372 = vmul.f32 %v3364, %v3364
        %v3373 = vsel %vm592, %v3366, 0.0
        %v3374 = vadd.f32 %v3365, %v3373
        %3375 = vadd.xlane.f32.xlu0 %v3374
        %v3376 = vpop.xlane.xlu0 %3375
        %v3377 = vsel %vm592, %v3368, 0.0
        %v3378 = vadd.f32 %v3367, %v3377
        %3379 = vadd.xlane.f32.xlu0 %v3378
        %v3380 = vpop.xlane.xlu0 %3379
        %v3381 = vsel %vm592, %v3370, 0.0
        %v3382 = vadd.f32 %v3369, %v3381
        %3383 = vadd.xlane.f32.xlu0 %v3382
        %v3384 = vpop.xlane.xlu0 %3383
        %v3385 = vsel %vm592, %v3372, 0.0
        %v3386 = vadd.f32 %v3371, %v3385
        %3387 = vadd.xlane.f32.xlu0 %v3386
        %v3388 = vpop.xlane.xlu0 %3387
        %v3389 = vadd.f32 %v3376, %v3380
        %v3390 = vadd.f32 %v3389, %v3384
        %v3391 = vadd.f32 %v3390, %v3388
        %v3392 = vrot.slane %v3391, 4
        %v3393 = vadd.f32 %v3391, %v3392
        %v3394 = vrot.slane %v3393, 2
        %v3395 = vadd.f32 %v3393, %v3394
        %v3396 = vrot.slane %v3395, 1
        %v3397 = vadd.f32 %v3395, %v3396
        %v3398 = vmul.f32 %v3397, 0.0001953125
        %v3399 = vadd.f32 %v3398, 1e-05
        %v3400 = vrsqrt.pop %v3399
        %v3401 = vmul.f32 %v3357, %v3400
        %v3402 = vmul.f32 %v3358, %v3400
        %v3403 = vmul.f32 %v3359, %v3400
        %v3404 = vmul.f32 %v3360, %v3400
        %v3405 = vmul.f32 %v3361, %v3400
        %v3406 = vmul.f32 %v3362, %v3400
        %v3407 = vmul.f32 %v3363, %v3400
        %v3408 = vmul.f32 %v3364, %v3400
        %v3409 = vsel %vm592, %v3402, -inf
        %v3410 = vmax.f32 %v3401, %v3409
        %3411 = vmax.xlane.f32.xlu0 %v3410
        %v3412 = vpop.xlane.xlu0 %3411
        %v3413 = vsel %vm592, %v3404, -inf
        %v3414 = vmax.f32 %v3403, %v3413
        %3415 = vmax.xlane.f32.xlu0 %v3414
        %v3416 = vpop.xlane.xlu0 %3415
        %v3417 = vsel %vm592, %v3406, -inf
        %v3418 = vmax.f32 %v3405, %v3417
        %3419 = vmax.xlane.f32.xlu0 %v3418
        %v3420 = vpop.xlane.xlu0 %3419
        %v3421 = vsel %vm592, %v3408, -inf
        %v3422 = vmax.f32 %v3407, %v3421
        %3423 = vmax.xlane.f32.xlu0 %v3422
        %v3424 = vpop.xlane.xlu0 %3423
        %v3425 = vsub.f32 %v3401, %v3412
        %v3426 = vsub.f32 %v3402, %v3412
        %v3427 = vsub.f32 %v3403, %v3416
        %v3428 = vsub.f32 %v3404, %v3416
        %v3429 = vsub.f32 %v3405, %v3420
        %v3430 = vsub.f32 %v3406, %v3420
        %v3431 = vsub.f32 %v3407, %v3424
        %v3432 = vsub.f32 %v3408, %v3424
        %v3433 = vmul.f32 %v3425, 1.442695
        %v3434 = vpow.pop %v3433
        %v3435 = vmul.f32 %v3426, 1.442695
        %v3436 = vpow.pop %v3435
        %v3437 = vmul.f32 %v3427, 1.442695
        %v3438 = vpow.pop %v3437
        %v3439 = vmul.f32 %v3428, 1.442695
        %v3440 = vpow.pop %v3439
        %v3441 = vmul.f32 %v3429, 1.442695
        %v3442 = vpow.pop %v3441
        %v3443 = vmul.f32 %v3430, 1.442695
        %v3444 = vpow.pop %v3443
        %v3445 = vmul.f32 %v3431, 1.442695
        %v3446 = vpow.pop %v3445
        %v3447 = vmul.f32 %v3432, 1.442695
        %v3448 = vpow.pop %v3447
        %v3449 = vsel %vm592, %v3436, 0.0
        %v3450 = vadd.f32 %v3434, %v3449
        %3451 = vadd.xlane.f32.xlu0 %v3450
        %v3452 = vpop.xlane.xlu0 %3451
        %v3453 = vsel %vm592, %v3440, 0.0
        %v3454 = vadd.f32 %v3438, %v3453
        %3455 = vadd.xlane.f32.xlu0 %v3454
        %v3456 = vpop.xlane.xlu0 %3455
        %v3457 = vsel %vm592, %v3444, 0.0
        %v3458 = vadd.f32 %v3442, %v3457
        %3459 = vadd.xlane.f32.xlu0 %v3458
        %v3460 = vpop.xlane.xlu0 %3459
        %v3461 = vsel %vm592, %v3448, 0.0
        %v3462 = vadd.f32 %v3446, %v3461
        %3463 = vadd.xlane.f32.xlu0 %v3462
        %v3464 = vpop.xlane.xlu0 %3463
        %v3465 = vrcp.pop %v3452
        %v3466 = vrcp.pop %v3456
        %v3467 = vrcp.pop %v3460
        %v3468 = vrcp.pop %v3464
        %v3469 = vmul.f32 %v3434, %v3465
        %v3470 = vmul.f32 %v3436, %v3465
        %v3471 = vmul.f32 %v3438, %v3466
        %v3472 = vmul.f32 %v3440, %v3466
        %v3473 = vmul.f32 %v3442, %v3467
        %v3474 = vmul.f32 %v3444, %v3467
        %v3475 = vmul.f32 %v3446, %v3468
        %v3476 = vmul.f32 %v3448, %v3468
        %v3477 = vpack.c.bf16 %v3471, %v3469
        %v3478 = vpack.c.bf16 %v3472, %v3470
        %v3479 = vpack.c.bf16 %v3475, %v3473
        %v3480 = vpack.c.bf16 %v3476, %v3474
        %v3481 = vsel %vm592, %v3222, 0.0
        %v3482 = vadd.f32 %v3221, %v3481
        %3483 = vadd.xlane.f32.xlu0 %v3482
        %v3484 = vpop.xlane.xlu0 %3483
        %v3485 = vsel %vm592, %v3224, 0.0
        %v3486 = vadd.f32 %v3223, %v3485
        %3487 = vadd.xlane.f32.xlu0 %v3486
        %v3488 = vpop.xlane.xlu0 %3487
        %v3489 = vsel %vm592, %v3226, 0.0
        %v3490 = vadd.f32 %v3225, %v3489
        %3491 = vadd.xlane.f32.xlu0 %v3490
        %v3492 = vpop.xlane.xlu0 %3491
        %v3493 = vsel %vm592, %v3228, 0.0
        %v3494 = vadd.f32 %v3227, %v3493
        %3495 = vadd.xlane.f32.xlu0 %v3494
        %v3496 = vpop.xlane.xlu0 %3495
        %v3497 = vsel %vm592, %v3230, 0.0
        %v3498 = vadd.f32 %v3229, %v3497
        %3499 = vadd.xlane.f32.xlu0 %v3498
        %v3500 = vpop.xlane.xlu0 %3499
        %v3501 = vsel %vm592, %v3232, 0.0
        %v3502 = vadd.f32 %v3231, %v3501
        %3503 = vadd.xlane.f32.xlu0 %v3502
        %v3504 = vpop.xlane.xlu0 %3503
        %v3505 = vadd.f32 %v3484, %v3488
        %v3506 = vadd.f32 %v3505, %v3492
        %v3507 = vadd.f32 %v3506, %v3496
        %v3508 = vadd.f32 %v3507, %v3500
        %v3509 = vadd.f32 %v3508, %v3504
        %v3510 = vrot.slane %v3509, 4
        %v3511 = vadd.f32 %v3509, %v3510
        %v3512 = vrot.slane %v3511, 2
        %v3513 = vadd.f32 %v3511, %v3512
        %v3514 = vrot.slane %v3513, 1
        %v3515 = vadd.f32 %v3513, %v3514
        %v3516 = vmul.f32 %v3515, 0.00013020834
        %v3517 = vsub.f32 %v3221, %v3516
        %v3518 = vsub.f32 %v3222, %v3516
        %v3519 = vsub.f32 %v3223, %v3516
        %v3520 = vsub.f32 %v3224, %v3516
        %v3521 = vsub.f32 %v3225, %v3516
        %v3522 = vsub.f32 %v3226, %v3516
        %v3523 = vsub.f32 %v3227, %v3516
        %v3524 = vsub.f32 %v3228, %v3516
        %v3525 = vsub.f32 %v3229, %v3516
        %v3526 = vsub.f32 %v3230, %v3516
        %v3527 = vsub.f32 %v3231, %v3516
        %v3528 = vsub.f32 %v3232, %v3516
        %v3529 = vmul.f32 %v3517, %v3517
        %v3530 = vmul.f32 %v3518, %v3518
        %v3531 = vmul.f32 %v3519, %v3519
        %v3532 = vmul.f32 %v3520, %v3520
        %v3533 = vmul.f32 %v3521, %v3521
        %v3534 = vmul.f32 %v3522, %v3522
        %v3535 = vmul.f32 %v3523, %v3523
        %v3536 = vmul.f32 %v3524, %v3524
        %v3537 = vmul.f32 %v3525, %v3525
        %v3538 = vmul.f32 %v3526, %v3526
        %v3539 = vmul.f32 %v3527, %v3527
        %v3540 = vmul.f32 %v3528, %v3528
        %v3541 = vsel %vm592, %v3530, 0.0
        %v3542 = vadd.f32 %v3529, %v3541
        %3543 = vadd.xlane.f32.xlu0 %v3542
        %v3544 = vpop.xlane.xlu0 %3543
        %v3545 = vsel %vm592, %v3532, 0.0
        %v3546 = vadd.f32 %v3531, %v3545
        %3547 = vadd.xlane.f32.xlu0 %v3546
        %v3548 = vpop.xlane.xlu0 %3547
        %v3549 = vsel %vm592, %v3534, 0.0
        %v3550 = vadd.f32 %v3533, %v3549
        %3551 = vadd.xlane.f32.xlu0 %v3550
        %v3552 = vpop.xlane.xlu0 %3551
        %v3553 = vsel %vm592, %v3536, 0.0
        %v3554 = vadd.f32 %v3535, %v3553
        %3555 = vadd.xlane.f32.xlu0 %v3554
        %v3556 = vpop.xlane.xlu0 %3555
        %v3557 = vsel %vm592, %v3538, 0.0
        %v3558 = vadd.f32 %v3537, %v3557
        %3559 = vadd.xlane.f32.xlu0 %v3558
        %v3560 = vpop.xlane.xlu0 %3559
        %v3561 = vsel %vm592, %v3540, 0.0
        %v3562 = vadd.f32 %v3539, %v3561
        %3563 = vadd.xlane.f32.xlu0 %v3562
        %v3564 = vpop.xlane.xlu0 %3563
        %v3565 = vadd.f32 %v3544, %v3548
        %v3566 = vadd.f32 %v3565, %v3552
        %v3567 = vadd.f32 %v3566, %v3556
        %v3568 = vadd.f32 %v3567, %v3560
        %v3569 = vadd.f32 %v3568, %v3564
        %v3570 = vrot.slane %v3569, 4
        %v3571 = vadd.f32 %v3569, %v3570
        %v3572 = vrot.slane %v3571, 2
        %v3573 = vadd.f32 %v3571, %v3572
        %v3574 = vrot.slane %v3573, 1
        %v3575 = vadd.f32 %v3573, %v3574
        %v3576 = vmul.f32 %v3575, 0.00013020834
        %v3577 = vadd.f32 %v3576, 1e-05
        %v3578 = vrsqrt.pop %v3577
        %v3579 = vmul.f32 %v3517, %v3578
        %v3580 = vmul.f32 %v3518, %v3578
        %v3581 = vmul.f32 %v3519, %v3578
        %v3582 = vmul.f32 %v3520, %v3578
        %v3583 = vmul.f32 %v3521, %v3578
        %v3584 = vmul.f32 %v3522, %v3578
        %v3585 = vmul.f32 %v3523, %v3578
        %v3586 = vmul.f32 %v3524, %v3578
        %v3587 = vmul.f32 %v3525, %v3578
        %v3588 = vmul.f32 %v3526, %v3578
        %v3589 = vmul.f32 %v3527, %v3578
        %v3590 = vmul.f32 %v3528, %v3578
        %v3591 = vsel %vm592, %v3580, -inf
        %v3592 = vmax.f32 %v3579, %v3591
        %3593 = vmax.xlane.f32.xlu0 %v3592
        %v3594 = vpop.xlane.xlu0 %3593
        %v3595 = vsel %vm592, %v3582, -inf
        %v3596 = vmax.f32 %v3581, %v3595
        %3597 = vmax.xlane.f32.xlu0 %v3596
        %v3598 = vpop.xlane.xlu0 %3597
        %v3599 = vsel %vm592, %v3584, -inf
        %v3600 = vmax.f32 %v3583, %v3599
        %3601 = vmax.xlane.f32.xlu0 %v3600
        %v3602 = vpop.xlane.xlu0 %3601
        %v3603 = vsel %vm592, %v3586, -inf
        %v3604 = vmax.f32 %v3585, %v3603
        %3605 = vmax.xlane.f32.xlu0 %v3604
        %v3606 = vpop.xlane.xlu0 %3605
        %v3607 = vsel %vm592, %v3588, -inf
        %v3608 = vmax.f32 %v3587, %v3607
        %3609 = vmax.xlane.f32.xlu0 %v3608
        %v3610 = vpop.xlane.xlu0 %3609
        %v3611 = vsel %vm592, %v3590, -inf
        %v3612 = vmax.f32 %v3589, %v3611
        %3613 = vmax.xlane.f32.xlu0 %v3612
        %v3614 = vpop.xlane.xlu0 %3613
        %v3615 = vsub.f32 %v3579, %v3594
        %v3616 = vsub.f32 %v3580, %v3594
        %v3617 = vsub.f32 %v3581, %v3598
        %v3618 = vsub.f32 %v3582, %v3598
        %v3619 = vsub.f32 %v3583, %v3602
        %v3620 = vsub.f32 %v3584, %v3602
        %v3621 = vsub.f32 %v3585, %v3606
        %v3622 = vsub.f32 %v3586, %v3606
        %v3623 = vsub.f32 %v3587, %v3610
        %v3624 = vsub.f32 %v3588, %v3610
        %v3625 = vsub.f32 %v3589, %v3614
        %v3626 = vsub.f32 %v3590, %v3614
        %v3627 = vmul.f32 %v3615, 1.442695
        %v3628 = vpow.pop %v3627
        %v3629 = vmul.f32 %v3616, 1.442695
        %v3630 = vpow.pop %v3629
        %v3631 = vmul.f32 %v3617, 1.442695
        %v3632 = vpow.pop %v3631
        %v3633 = vmul.f32 %v3618, 1.442695
        %v3634 = vpow.pop %v3633
        %v3635 = vmul.f32 %v3619, 1.442695
        %v3636 = vpow.pop %v3635
        %v3637 = vmul.f32 %v3620, 1.442695
        %v3638 = vpow.pop %v3637
        %v3639 = vmul.f32 %v3621, 1.442695
        %v3640 = vpow.pop %v3639
        %v3641 = vmul.f32 %v3622, 1.442695
        %v3642 = vpow.pop %v3641
        %v3643 = vmul.f32 %v3623, 1.442695
        %v3644 = vpow.pop %v3643
        %v3645 = vmul.f32 %v3624, 1.442695
        %v3646 = vpow.pop %v3645
        %v3647 = vmul.f32 %v3625, 1.442695
        %v3648 = vpow.pop %v3647
        %v3649 = vmul.f32 %v3626, 1.442695
        %v3650 = vpow.pop %v3649
        %v3651 = vsel %vm592, %v3630, 0.0
        %v3652 = vadd.f32 %v3628, %v3651
        %3653 = vadd.xlane.f32.xlu0 %v3652
        %v3654 = vpop.xlane.xlu0 %3653
        %v3655 = vsel %vm592, %v3634, 0.0
        %v3656 = vadd.f32 %v3632, %v3655
        %3657 = vadd.xlane.f32.xlu0 %v3656
        %v3658 = vpop.xlane.xlu0 %3657
        %v3659 = vsel %vm592, %v3638, 0.0
        %v3660 = vadd.f32 %v3636, %v3659
        %3661 = vadd.xlane.f32.xlu0 %v3660
        %v3662 = vpop.xlane.xlu0 %3661
        %v3663 = vsel %vm592, %v3642, 0.0
        %v3664 = vadd.f32 %v3640, %v3663
        %3665 = vadd.xlane.f32.xlu0 %v3664
        %v3666 = vpop.xlane.xlu0 %3665
        %v3667 = vsel %vm592, %v3646, 0.0
        %v3668 = vadd.f32 %v3644, %v3667
        %3669 = vadd.xlane.f32.xlu0 %v3668
        %v3670 = vpop.xlane.xlu0 %3669
        %v3671 = vsel %vm592, %v3650, 0.0
        %v3672 = vadd.f32 %v3648, %v3671
        %3673 = vadd.xlane.f32.xlu0 %v3672
        %v3674 = vpop.xlane.xlu0 %3673
        %v3675 = vrcp.pop %v3654
        %v3676 = vrcp.pop %v3658
        %v3677 = vrcp.pop %v3662
        %v3678 = vrcp.pop %v3666
        %v3679 = vrcp.pop %v3670
        %v3680 = vrcp.pop %v3674
        %v3681 = vmul.f32 %v3628, %v3675
        %v3682 = vmul.f32 %v3630, %v3675
        %v3683 = vmul.f32 %v3632, %v3676
        %v3684 = vmul.f32 %v3634, %v3676
        %v3685 = vmul.f32 %v3636, %v3677
        %v3686 = vmul.f32 %v3638, %v3677
        %v3687 = vmul.f32 %v3640, %v3678
        %v3688 = vmul.f32 %v3642, %v3678
        %v3689 = vmul.f32 %v3644, %v3679
        %v3690 = vmul.f32 %v3646, %v3679
        %v3691 = vmul.f32 %v3648, %v3680
        %v3692 = vmul.f32 %v3650, %v3680
        %v3693 = vpack.c.bf16 %v3683, %v3681
        %v3694 = vpack.c.bf16 %v3684, %v3682
        %v3695 = vpack.c.bf16 %v3687, %v3685
        %v3696 = vpack.c.bf16 %v3688, %v3686
        %v3697 = vpack.c.bf16 %v3691, %v3689
        %v3698 = vpack.c.bf16 %v3692, %v3690
        %v3699 = vsel %vm592, %v3234, 0.0
        %v3700 = vadd.f32 %v3233, %v3699
        %3701 = vadd.xlane.f32.xlu0 %v3700
        %v3702 = vpop.xlane.xlu0 %3701
        %v3703 = vsel %vm592, %v3236, 0.0
        %v3704 = vadd.f32 %v3235, %v3703
        %3705 = vadd.xlane.f32.xlu0 %v3704
        %v3706 = vpop.xlane.xlu0 %3705
        %v3707 = vsel %vm592, %v3238, 0.0
        %v3708 = vadd.f32 %v3237, %v3707
        %3709 = vadd.xlane.f32.xlu0 %v3708
        %v3710 = vpop.xlane.xlu0 %3709
        %v3711 = vsel %vm592, %v3240, 0.0
        %v3712 = vadd.f32 %v3239, %v3711
        %3713 = vadd.xlane.f32.xlu0 %v3712
        %v3714 = vpop.xlane.xlu0 %3713
        %v3715 = vsel %vm592, %v3242, 0.0
        %v3716 = vadd.f32 %v3241, %v3715
        %3717 = vadd.xlane.f32.xlu0 %v3716
        %v3718 = vpop.xlane.xlu0 %3717
        %v3719 = vsel %vm592, %v3244, 0.0
        %v3720 = vadd.f32 %v3243, %v3719
        %3721 = vadd.xlane.f32.xlu0 %v3720
        %v3722 = vpop.xlane.xlu0 %3721
        %v3723 = vsel %vm592, %v3246, 0.0
        %v3724 = vadd.f32 %v3245, %v3723
        %3725 = vadd.xlane.f32.xlu0 %v3724
        %v3726 = vpop.xlane.xlu0 %3725
        %v3727 = vsel %vm592, %v3248, 0.0
        %v3728 = vadd.f32 %v3247, %v3727
        %3729 = vadd.xlane.f32.xlu0 %v3728
        %v3730 = vpop.xlane.xlu0 %3729
        %v3731 = vadd.f32 %v3702, %v3706
        %v3732 = vadd.f32 %v3731, %v3710
        %v3733 = vadd.f32 %v3732, %v3714
        %v3734 = vadd.f32 %v3733, %v3718
        %v3735 = vadd.f32 %v3734, %v3722
        %v3736 = vadd.f32 %v3735, %v3726
        %v3737 = vadd.f32 %v3736, %v3730
        %v3738 = vrot.slane %v3737, 4
        %v3739 = vadd.f32 %v3737, %v3738
        %v3740 = vrot.slane %v3739, 2
        %v3741 = vadd.f32 %v3739, %v3740
        %v3742 = vrot.slane %v3741, 1
        %v3743 = vadd.f32 %v3741, %v3742
        %v3744 = vmul.f32 %v3743, 9.765625e-05
        %v3745 = vsub.f32 %v3233, %v3744
        %v3746 = vsub.f32 %v3234, %v3744
        %v3747 = vsub.f32 %v3235, %v3744
        %v3748 = vsub.f32 %v3236, %v3744
        %v3749 = vsub.f32 %v3237, %v3744
        %v3750 = vsub.f32 %v3238, %v3744
        %v3751 = vsub.f32 %v3239, %v3744
        %v3752 = vsub.f32 %v3240, %v3744
        %v3753 = vsub.f32 %v3241, %v3744
        %v3754 = vsub.f32 %v3242, %v3744
        %v3755 = vsub.f32 %v3243, %v3744
        %v3756 = vsub.f32 %v3244, %v3744
        %v3757 = vsub.f32 %v3245, %v3744
        %v3758 = vsub.f32 %v3246, %v3744
        %v3759 = vsub.f32 %v3247, %v3744
        %v3760 = vsub.f32 %v3248, %v3744
        %v3761 = vmul.f32 %v3745, %v3745
        %v3762 = vmul.f32 %v3746, %v3746
        %v3763 = vmul.f32 %v3747, %v3747
        %v3764 = vmul.f32 %v3748, %v3748
        %v3765 = vmul.f32 %v3749, %v3749
        %v3766 = vmul.f32 %v3750, %v3750
        %v3767 = vmul.f32 %v3751, %v3751
        %v3768 = vmul.f32 %v3752, %v3752
        %v3769 = vmul.f32 %v3753, %v3753
        %v3770 = vmul.f32 %v3754, %v3754
        %v3771 = vmul.f32 %v3755, %v3755
        %v3772 = vmul.f32 %v3756, %v3756
        %v3773 = vmul.f32 %v3757, %v3757
        %v3774 = vmul.f32 %v3758, %v3758
        %v3775 = vmul.f32 %v3759, %v3759
        %v3776 = vmul.f32 %v3760, %v3760
        %v3777 = vsel %vm592, %v3762, 0.0
        %v3778 = vadd.f32 %v3761, %v3777
        %3779 = vadd.xlane.f32.xlu0 %v3778
        %v3780 = vpop.xlane.xlu0 %3779
        %v3781 = vsel %vm592, %v3764, 0.0
        %v3782 = vadd.f32 %v3763, %v3781
        %3783 = vadd.xlane.f32.xlu0 %v3782
        %v3784 = vpop.xlane.xlu0 %3783
        %v3785 = vsel %vm592, %v3766, 0.0
        %v3786 = vadd.f32 %v3765, %v3785
        %3787 = vadd.xlane.f32.xlu0 %v3786
        %v3788 = vpop.xlane.xlu0 %3787
        %v3789 = vsel %vm592, %v3768, 0.0
        %v3790 = vadd.f32 %v3767, %v3789
        %3791 = vadd.xlane.f32.xlu0 %v3790
        %v3792 = vpop.xlane.xlu0 %3791
        %v3793 = vsel %vm592, %v3770, 0.0
        %v3794 = vadd.f32 %v3769, %v3793
        %3795 = vadd.xlane.f32.xlu0 %v3794
        %v3796 = vpop.xlane.xlu0 %3795
        %v3797 = vsel %vm592, %v3772, 0.0
        %v3798 = vadd.f32 %v3771, %v3797
        %3799 = vadd.xlane.f32.xlu0 %v3798
        %v3800 = vpop.xlane.xlu0 %3799
        %v3801 = vsel %vm592, %v3774, 0.0
        %v3802 = vadd.f32 %v3773, %v3801
        %3803 = vadd.xlane.f32.xlu0 %v3802
        %v3804 = vpop.xlane.xlu0 %3803
        %v3805 = vsel %vm592, %v3776, 0.0
        %v3806 = vadd.f32 %v3775, %v3805
        %3807 = vadd.xlane.f32.xlu0 %v3806
        %v3808 = vpop.xlane.xlu0 %3807
        %v3809 = vadd.f32 %v3780, %v3784
        %v3810 = vadd.f32 %v3809, %v3788
        %v3811 = vadd.f32 %v3810, %v3792
        %v3812 = vadd.f32 %v3811, %v3796
        %v3813 = vadd.f32 %v3812, %v3800
        %v3814 = vadd.f32 %v3813, %v3804
        %v3815 = vadd.f32 %v3814, %v3808
        %v3816 = vrot.slane %v3815, 4
        %v3817 = vadd.f32 %v3815, %v3816
        %v3818 = vrot.slane %v3817, 2
        %v3819 = vadd.f32 %v3817, %v3818
        %v3820 = vrot.slane %v3819, 1
        %v3821 = vadd.f32 %v3819, %v3820
        %v3822 = vmul.f32 %v3821, 9.765625e-05
        %v3823 = vadd.f32 %v3822, 1e-05
        %v3824 = vrsqrt.pop %v3823
        %v3825 = vmul.f32 %v3745, %v3824
        %v3826 = vmul.f32 %v3746, %v3824
        %v3827 = vmul.f32 %v3747, %v3824
        %v3828 = vmul.f32 %v3748, %v3824
        %v3829 = vmul.f32 %v3749, %v3824
        %v3830 = vmul.f32 %v3750, %v3824
        %v3831 = vmul.f32 %v3751, %v3824
        %v3832 = vmul.f32 %v3752, %v3824
        %v3833 = vmul.f32 %v3753, %v3824
        %v3834 = vmul.f32 %v3754, %v3824
        %v3835 = vmul.f32 %v3755, %v3824
        %v3836 = vmul.f32 %v3756, %v3824
        %v3837 = vmul.f32 %v3757, %v3824
        %v3838 = vmul.f32 %v3758, %v3824
        %v3839 = vmul.f32 %v3759, %v3824
        %v3840 = vmul.f32 %v3760, %v3824
        %v3841 = vsel %vm592, %v3826, -inf
        %v3842 = vmax.f32 %v3825, %v3841
        %3843 = vmax.xlane.f32.xlu0 %v3842
        %v3844 = vpop.xlane.xlu0 %3843
        %v3845 = vsel %vm592, %v3828, -inf
        %v3846 = vmax.f32 %v3827, %v3845
        %3847 = vmax.xlane.f32.xlu0 %v3846
        %v3848 = vpop.xlane.xlu0 %3847
        %v3849 = vsel %vm592, %v3830, -inf
        %v3850 = vmax.f32 %v3829, %v3849
        %3851 = vmax.xlane.f32.xlu0 %v3850
        %v3852 = vpop.xlane.xlu0 %3851
        %v3853 = vsel %vm592, %v3832, -inf
        %v3854 = vmax.f32 %v3831, %v3853
        %3855 = vmax.xlane.f32.xlu0 %v3854
        %v3856 = vpop.xlane.xlu0 %3855
        %v3857 = vsel %vm592, %v3834, -inf
        %v3858 = vmax.f32 %v3833, %v3857
        %3859 = vmax.xlane.f32.xlu0 %v3858
        %v3860 = vpop.xlane.xlu0 %3859
        %v3861 = vsel %vm592, %v3836, -inf
        %v3862 = vmax.f32 %v3835, %v3861
        %3863 = vmax.xlane.f32.xlu0 %v3862
        %v3864 = vpop.xlane.xlu0 %3863
        %v3865 = vsel %vm592, %v3838, -inf
        %v3866 = vmax.f32 %v3837, %v3865
        %3867 = vmax.xlane.f32.xlu0 %v3866
        %v3868 = vpop.xlane.xlu0 %3867
        %v3869 = vsel %vm592, %v3840, -inf
        %v3870 = vmax.f32 %v3839, %v3869
        %3871 = vmax.xlane.f32.xlu0 %v3870
        %v3872 = vpop.xlane.xlu0 %3871
        %v3873 = vsub.f32 %v3825, %v3844
        %v3874 = vsub.f32 %v3826, %v3844
        %v3875 = vsub.f32 %v3827, %v3848
        %v3876 = vsub.f32 %v3828, %v3848
        %v3877 = vsub.f32 %v3829, %v3852
        %v3878 = vsub.f32 %v3830, %v3852
        %v3879 = vsub.f32 %v3831, %v3856
        %v3880 = vsub.f32 %v3832, %v3856
        %v3881 = vsub.f32 %v3833, %v3860
        %v3882 = vsub.f32 %v3834, %v3860
        %v3883 = vsub.f32 %v3835, %v3864
        %v3884 = vsub.f32 %v3836, %v3864
        %v3885 = vsub.f32 %v3837, %v3868
        %v3886 = vsub.f32 %v3838, %v3868
        %v3887 = vsub.f32 %v3839, %v3872
        %v3888 = vsub.f32 %v3840, %v3872
        %v3889 = vmul.f32 %v3873, 1.442695
        %v3890 = vpow.pop %v3889
        %v3891 = vmul.f32 %v3874, 1.442695
        %v3892 = vpow.pop %v3891
        %v3893 = vmul.f32 %v3875, 1.442695
        %v3894 = vpow.pop %v3893
        %v3895 = vmul.f32 %v3876, 1.442695
        %v3896 = vpow.pop %v3895
        %v3897 = vmul.f32 %v3877, 1.442695
        %v3898 = vpow.pop %v3897
        %v3899 = vmul.f32 %v3878, 1.442695
        %v3900 = vpow.pop %v3899
        %v3901 = vmul.f32 %v3879, 1.442695
        %v3902 = vpow.pop %v3901
        %v3903 = vmul.f32 %v3880, 1.442695
        %v3904 = vpow.pop %v3903
        %v3905 = vmul.f32 %v3881, 1.442695
        %v3906 = vpow.pop %v3905
        %v3907 = vmul.f32 %v3882, 1.442695
        %v3908 = vpow.pop %v3907
        %v3909 = vmul.f32 %v3883, 1.442695
        %v3910 = vpow.pop %v3909
        %v3911 = vmul.f32 %v3884, 1.442695
        %v3912 = vpow.pop %v3911
        %v3913 = vmul.f32 %v3885, 1.442695
        %v3914 = vpow.pop %v3913
        %v3915 = vmul.f32 %v3886, 1.442695
        %v3916 = vpow.pop %v3915
        %v3917 = vmul.f32 %v3887, 1.442695
        %v3918 = vpow.pop %v3917
        %v3919 = vmul.f32 %v3888, 1.442695
        %v3920 = vpow.pop %v3919
        %v3921 = vsel %vm592, %v3892, 0.0
        %v3922 = vadd.f32 %v3890, %v3921
        %3923 = vadd.xlane.f32.xlu0 %v3922
        %v3924 = vpop.xlane.xlu0 %3923
        %v3925 = vsel %vm592, %v3896, 0.0
        %v3926 = vadd.f32 %v3894, %v3925
        %3927 = vadd.xlane.f32.xlu0 %v3926
        %v3928 = vpop.xlane.xlu0 %3927
        %v3929 = vsel %vm592, %v3900, 0.0
        %v3930 = vadd.f32 %v3898, %v3929
        %3931 = vadd.xlane.f32.xlu0 %v3930
        %v3932 = vpop.xlane.xlu0 %3931
        %v3933 = vsel %vm592, %v3904, 0.0
        %v3934 = vadd.f32 %v3902, %v3933
        %3935 = vadd.xlane.f32.xlu0 %v3934
        %v3936 = vpop.xlane.xlu0 %3935
        %v3937 = vsel %vm592, %v3908, 0.0
        %v3938 = vadd.f32 %v3906, %v3937
        %3939 = vadd.xlane.f32.xlu0 %v3938
        %v3940 = vpop.xlane.xlu0 %3939
        %v3941 = vsel %vm592, %v3912, 0.0
        %v3942 = vadd.f32 %v3910, %v3941
        %3943 = vadd.xlane.f32.xlu0 %v3942
        %v3944 = vpop.xlane.xlu0 %3943
        %v3945 = vsel %vm592, %v3916, 0.0
        %v3946 = vadd.f32 %v3914, %v3945
        %3947 = vadd.xlane.f32.xlu0 %v3946
        %v3948 = vpop.xlane.xlu0 %3947
        %v3949 = vsel %vm592, %v3920, 0.0
        %v3950 = vadd.f32 %v3918, %v3949
        %3951 = vadd.xlane.f32.xlu0 %v3950
        %v3952 = vpop.xlane.xlu0 %3951
        %v3953 = vrcp.pop %v3924
        %v3954 = vrcp.pop %v3928
        %v3955 = vrcp.pop %v3932
        %v3956 = vrcp.pop %v3936
        %v3957 = vrcp.pop %v3940
        %v3958 = vrcp.pop %v3944
        %v3959 = vrcp.pop %v3948
        %v3960 = vrcp.pop %v3952
        %v3961 = vmul.f32 %v3890, %v3953
        %v3962 = vmul.f32 %v3892, %v3953
        %v3963 = vmul.f32 %v3894, %v3954
        %v3964 = vmul.f32 %v3896, %v3954
        %v3965 = vmul.f32 %v3898, %v3955
        %v3966 = vmul.f32 %v3900, %v3955
        %v3967 = vmul.f32 %v3902, %v3956
        %v3968 = vmul.f32 %v3904, %v3956
        %v3969 = vmul.f32 %v3906, %v3957
        %v3970 = vmul.f32 %v3908, %v3957
        %v3971 = vmul.f32 %v3910, %v3958
        %v3972 = vmul.f32 %v3912, %v3958
        %v3973 = vmul.f32 %v3914, %v3959
        %v3974 = vmul.f32 %v3916, %v3959
        %v3975 = vmul.f32 %v3918, %v3960
        %v3976 = vmul.f32 %v3920, %v3960
        %v3977 = vpack.c.bf16 %v3963, %v3961
        %v3978 = vpack.c.bf16 %v3964, %v3962
        %v3979 = vpack.c.bf16 %v3967, %v3965
        %v3980 = vpack.c.bf16 %v3968, %v3966
        %v3981 = vpack.c.bf16 %v3971, %v3969
        %v3982 = vpack.c.bf16 %v3972, %v3970
        %v3983 = vpack.c.bf16 %v3975, %v3973
        %v3984 = vpack.c.bf16 %v3976, %v3974
        %3985 = vxpose.xlu0.c.b16.start [1/8] %v1692, 128
        %3986 = vxpose.xlu0.c.b16.cont [2/8] 0, 128
        %3987 = vxpose.xlu0.c.b16.cont [3/8] 0, 128
        %3988 = vxpose.xlu0.c.b16.cont [4/8] 0, 128
        %3989 = vxpose.xlu0.c.b16.cont [5/8] 0, 128
        %3990 = vxpose.xlu0.c.b16.cont [6/8] 0, 128
        %3991 = vxpose.xlu0.c.b16.cont [7/8] 0, 128
        %3992 = vxpose.xlu0.c.b16.end [8/8] 0, 128
        %v3993 = vpop.trf.xlu0
        %v3994 = vpop.trf.xlu0
        %v3995 = vpop.trf.xlu0
        %v3996 = vpop.trf.xlu0
        %v3997 = vpop.trf.xlu0
        %v3998 = vpop.trf.xlu0
        %v3999 = vpop.trf.xlu0
        %v4000 = vpop.trf.xlu0
        %4001 = vxpose.xlu0.c.b16.start [1/8] %v1693, 128
        %4002 = vxpose.xlu0.c.b16.cont [2/8] 0, 128
        %4003 = vxpose.xlu0.c.b16.cont [3/8] 0, 128
        %4004 = vxpose.xlu0.c.b16.cont [4/8] 0, 128
        %4005 = vxpose.xlu0.c.b16.cont [5/8] 0, 128
        %4006 = vxpose.xlu0.c.b16.cont [6/8] 0, 128
        %4007 = vxpose.xlu0.c.b16.cont [7/8] 0, 128
        %4008 = vxpose.xlu0.c.b16.end [8/8] 0, 128
        %v4009 = vpop.trf.xlu0
        %v4010 = vpop.trf.xlu0
        %v4011 = vpop.trf.xlu0
        %v4012 = vpop.trf.xlu0
        %v4013 = vpop.trf.xlu0
        %v4014 = vpop.trf.xlu0
        %v4015 = vpop.trf.xlu0
        %v4016 = vpop.trf.xlu0
        %v4018 = vsel %vm754, %v3993, 0
        %v4021 = vsel %vm754, %v3994, 0
        %v4024 = vsel %vm754, %v3995, 0
        %v4027 = vsel %vm754, %v3996, 0
        %v4030 = vsel %vm754, %v3997, 0
        %v4033 = vsel %vm754, %v3998, 0
        %v4036 = vsel %vm754, %v3999, 0
        %v4039 = vsel %vm754, %v4000, 0
        %v4042 = vsel %vm754, %v4009, 0
        %v4045 = vsel %vm754, %v4010, 0
        %v4048 = vsel %vm3069, %v2995, 0
        %v4051 = vsel %vm3069, %v2996, 0
        %4053 = vmatprep.subr.bf16.mxu0 %v4051
        %4054 = vmatpush1.bf16.msra.mxu0 %v4048
        %4055 = vmatprep.subr.bf16.mxu0 0
        %4056 = vmatpush1.bf16.msra.mxu0 0
        %4057 = vmatprep.subr.bf16.mxu0 0
        %4058 = vmatpush1.bf16.msra.mxu0 0
        %4059 = vmatprep.subr.bf16.mxu0 0
        %4060 = vmatpush1.bf16.msra.mxu0 0
        %4061 = vmatprep.subr.bf16.mxu0 0
        %4062 = vmatpush1.bf16.msra.mxu0 0
        %4063 = vmatprep.subr.bf16.mxu0 0
        %4064 = vmatpush1.bf16.msra.mxu0 0
        %4065 = vmatprep.subr.bf16.mxu0 0
        %4066 = vmatpush1.bf16.msra.mxu0 0
        %4067 = vmatprep.subr.bf16.mxu0 0
        %4068 = vmatpush1.bf16.msra.mxu0 0
        %4069 = vmatprep.subr.bf16.mxu0 0
        %4070 = vmatpush1.bf16.msra.mxu0 0
        %4071 = vmatprep.subr.bf16.mxu0 0
        %4072 = vmatpush1.bf16.msra.mxu0 0
        %4073 = vmatprep.subr.bf16.mxu0 0
        %4074 = vmatpush1.bf16.msra.mxu0 0
        %4075 = vmatprep.subr.bf16.mxu0 0
        %4076 = vmatpush1.bf16.msra.mxu0 0
        %4077 = vmatprep.subr.bf16.mxu0 0
        %4078 = vmatpush1.bf16.msra.mxu0 0
        %4079 = vmatprep.subr.bf16.mxu0 0
        %4080 = vmatpush1.bf16.msra.mxu0 0
        %4081 = vmatprep.subr.bf16.mxu0 0
        %4082 = vmatpush1.bf16.msra.mxu0 0
        %4083 = vmatprep.subr.bf16.mxu0 0
        %4084 = vmatpush1.bf16.msra.mxu0 0
        %4085 = vmatprep.mubr.bf16.mxu0 0
        %4086 = vmatmul.mubr.bf16.gmra.mrb[0].mxu0 %v4018
        %v4087 = vpop.f32.mrb[0].mxu0
        %v4088 = vadd.f32 0.0, %v4087
        %v4089 = vpop.f32.mrb[0].mxu0
        %v4090 = vadd.f32 0.0, %v4089
        %v4091 = vpop.f32.mrb[0].mxu0
        %v4092 = vadd.f32 0.0, %v4091
        %v4093 = vpop.f32.mrb[0].mxu0
        %v4094 = vadd.f32 0.0, %v4093
        %4095 = vmatprep.mubr.bf16.mxu0 0
        %4096 = vmatmul.mubr.bf16.gmra.mrb[0].mxu0 %v4021
        %v4097 = vpop.f32.mrb[0].mxu0
        %v4098 = vadd.f32 0.0, %v4097
        %v4099 = vpop.f32.mrb[0].mxu0
        %v4100 = vadd.f32 0.0, %v4099
        %v4101 = vpop.f32.mrb[0].mxu0
        %v4102 = vadd.f32 0.0, %v4101
        %v4103 = vpop.f32.mrb[0].mxu0
        %v4104 = vadd.f32 0.0, %v4103
        %4105 = vmatprep.mubr.bf16.mxu0 0
        %4106 = vmatmul.mubr.bf16.gmra.mrb[0].mxu0 %v4024
        %v4107 = vpop.f32.mrb[0].mxu0
        %v4108 = vadd.f32 0.0, %v4107
        %v4109 = vpop.f32.mrb[0].mxu0
        %v4110 = vadd.f32 0.0, %v4109
        %v4111 = vpop.f32.mrb[0].mxu0
        %v4112 = vadd.f32 0.0, %v4111
        %v4113 = vpop.f32.mrb[0].mxu0
        %v4114 = vadd.f32 0.0, %v4113
        %4115 = vmatprep.mubr.bf16.mxu0 0
        %4116 = vmatmul.mubr.bf16.gmra.mrb[0].mxu0 %v4027
        %v4117 = vpop.f32.mrb[0].mxu0
        %v4118 = vadd.f32 0.0, %v4117
        %v4119 = vpop.f32.mrb[0].mxu0
        %v4120 = vadd.f32 0.0, %v4119
        %v4121 = vpop.f32.mrb[0].mxu0
        %v4122 = vadd.f32 0.0, %v4121
        %v4123 = vpop.f32.mrb[0].mxu0
        %v4124 = vadd.f32 0.0, %v4123
        %4125 = vmatprep.mubr.bf16.mxu0 0
        %4126 = vmatmul.mubr.bf16.gmra.mrb[0].mxu0 %v4030
        %v4127 = vpop.f32.mrb[0].mxu0
        %v4128 = vadd.f32 0.0, %v4127
        %v4129 = vpop.f32.mrb[0].mxu0
        %v4130 = vadd.f32 0.0, %v4129
        %v4131 = vpop.f32.mrb[0].mxu0
        %v4132 = vadd.f32 0.0, %v4131
        %v4133 = vpop.f32.mrb[0].mxu0
        %v4134 = vadd.f32 0.0, %v4133
        %4135 = vmatprep.mubr.bf16.mxu0 0
        %4136 = vmatmul.mubr.bf16.gmra.mrb[0].mxu0 %v4033
        %v4137 = vpop.f32.mrb[0].mxu0
        %v4138 = vadd.f32 0.0, %v4137
        %v4139 = vpop.f32.mrb[0].mxu0
        %v4140 = vadd.f32 0.0, %v4139
        %v4141 = vpop.f32.mrb[0].mxu0
        %v4142 = vadd.f32 0.0, %v4141
        %v4143 = vpop.f32.mrb[0].mxu0
        %v4144 = vadd.f32 0.0, %v4143
        %4145 = vmatprep.mubr.bf16.mxu0 0
        %4146 = vmatmul.mubr.bf16.gmra.mrb[0].mxu0 %v4036
        %v4147 = vpop.f32.mrb[0].mxu0
        %v4148 = vadd.f32 0.0, %v4147
        %v4149 = vpop.f32.mrb[0].mxu0
        %v4150 = vadd.f32 0.0, %v4149
        %v4151 = vpop.f32.mrb[0].mxu0
        %v4152 = vadd.f32 0.0, %v4151
        %v4153 = vpop.f32.mrb[0].mxu0
        %v4154 = vadd.f32 0.0, %v4153
        %4155 = vmatprep.mubr.bf16.mxu0 0
        %4156 = vmatmul.mubr.bf16.gmra.mrb[0].mxu0 %v4039
        %v4157 = vpop.f32.mrb[0].mxu0
        %v4158 = vadd.f32 0.0, %v4157
        %v4159 = vpop.f32.mrb[0].mxu0
        %v4160 = vadd.f32 0.0, %v4159
        %v4161 = vpop.f32.mrb[0].mxu0
        %v4162 = vadd.f32 0.0, %v4161
        %v4163 = vpop.f32.mrb[0].mxu0
        %v4164 = vadd.f32 0.0, %v4163
        %4165 = vmatprep.mubr.bf16.mxu0 0
        %4166 = vmatmul.mubr.bf16.gmra.mrb[0].mxu0 %v4042
        %v4167 = vpop.f32.mrb[0].mxu0
        %v4168 = vadd.f32 0.0, %v4167
        %v4169 = vpop.f32.mrb[0].mxu0
        %v4170 = vadd.f32 0.0, %v4169
        %v4171 = vpop.f32.mrb[0].mxu0
        %v4172 = vadd.f32 0.0, %v4171
        %v4173 = vpop.f32.mrb[0].mxu0
        %v4174 = vadd.f32 0.0, %v4173
        %4175 = vmatprep.mubr.bf16.mxu0 0
        %4176 = vmatmul.mubr.bf16.gmra.mrb[0].mxu0 %v4045
        %v4177 = vpop.f32.mrb[0].mxu0
        %v4178 = vadd.f32 0.0, %v4177
        %v4179 = vpop.f32.mrb[0].mxu0
        %v4180 = vadd.f32 0.0, %v4179
        %v4181 = vpop.f32.mrb[0].mxu0
        %v4182 = vadd.f32 0.0, %v4181
        %v4183 = vpop.f32.mrb[0].mxu0
        %v4184 = vadd.f32 0.0, %v4183
        %4185 = vdwg.mxu0
        %v4186 = vmul.f32 %v4088, 0.07905694
        %v4187 = vmul.f32 %v4090, 0.07905694
        %v4188 = vmul.f32 %v4092, 0.07905694
        %v4189 = vmul.f32 %v4094, 0.07905694
        %v4190 = vmul.f32 %v4098, 0.07905694
        %v4191 = vmul.f32 %v4100, 0.07905694
        %v4192 = vmul.f32 %v4102, 0.07905694
        %v4193 = vmul.f32 %v4104, 0.07905694
        %v4194 = vmul.f32 %v4108, 0.07905694
        %v4195 = vmul.f32 %v4110, 0.07905694
        %v4196 = vmul.f32 %v4112, 0.07905694
        %v4197 = vmul.f32 %v4114, 0.07905694
        %v4198 = vmul.f32 %v4118, 0.07905694
        %v4199 = vmul.f32 %v4120, 0.07905694
        %v4200 = vmul.f32 %v4122, 0.07905694
        %v4201 = vmul.f32 %v4124, 0.07905694
        %v4202 = vmul.f32 %v4128, 0.07905694
        %v4203 = vmul.f32 %v4130, 0.07905694
        %v4204 = vmul.f32 %v4132, 0.07905694
        %v4205 = vmul.f32 %v4134, 0.07905694
        %v4206 = vmul.f32 %v4138, 0.07905694
        %v4207 = vmul.f32 %v4140, 0.07905694
        %v4208 = vmul.f32 %v4142, 0.07905694
        %v4209 = vmul.f32 %v4144, 0.07905694
        %v4210 = vmul.f32 %v4148, 0.07905694
        %v4211 = vmul.f32 %v4150, 0.07905694
        %v4212 = vmul.f32 %v4152, 0.07905694
        %v4213 = vmul.f32 %v4154, 0.07905694
        %v4214 = vmul.f32 %v4158, 0.07905694
        %v4215 = vmul.f32 %v4160, 0.07905694
        %v4216 = vmul.f32 %v4162, 0.07905694
        %v4217 = vmul.f32 %v4164, 0.07905694
        %v4218 = vmul.f32 %v4168, 0.07905694
        %v4219 = vmul.f32 %v4170, 0.07905694
        %v4220 = vmul.f32 %v4172, 0.07905694
        %v4221 = vmul.f32 %v4174, 0.07905694
        %v4222 = vmul.f32 %v4178, 0.07905694
        %v4223 = vmul.f32 %v4180, 0.07905694
        %v4224 = vmul.f32 %v4182, 0.07905694
        %v4225 = vmul.f32 %v4184, 0.07905694
        %v4226 = vsel %vm592, %v4187, 0.0
        %v4227 = vadd.f32 %v4186, %v4226
        %4228 = vadd.xlane.f32.xlu0 %v4227
        %v4229 = vpop.xlane.xlu0 %4228
        %v4230 = vsel %vm592, %v4189, 0.0
        %v4231 = vadd.f32 %v4188, %v4230
        %4232 = vadd.xlane.f32.xlu0 %v4231
        %v4233 = vpop.xlane.xlu0 %4232
        %v4234 = vadd.f32 %v4229, %v4233
        %v4235 = vrot.slane %v4234, 4
        %v4236 = vadd.f32 %v4234, %v4235
        %v4237 = vrot.slane %v4236, 2
        %v4238 = vadd.f32 %v4236, %v4237
        %v4239 = vrot.slane %v4238, 1
        %v4240 = vadd.f32 %v4238, %v4239
        %v4241 = vmul.f32 %v4240, 0.000390625
        %v4242 = vsub.f32 %v4186, %v4241
        %v4243 = vsub.f32 %v4187, %v4241
        %v4244 = vsub.f32 %v4188, %v4241
        %v4245 = vsub.f32 %v4189, %v4241
        %v4246 = vmul.f32 %v4242, %v4242
        %v4247 = vmul.f32 %v4243, %v4243
        %v4248 = vmul.f32 %v4244, %v4244
        %v4249 = vmul.f32 %v4245, %v4245
        %v4250 = vsel %vm592, %v4247, 0.0
        %v4251 = vadd.f32 %v4246, %v4250
        %4252 = vadd.xlane.f32.xlu0 %v4251
        %v4253 = vpop.xlane.xlu0 %4252
        %v4254 = vsel %vm592, %v4249, 0.0
        %v4255 = vadd.f32 %v4248, %v4254
        %4256 = vadd.xlane.f32.xlu0 %v4255
        %v4257 = vpop.xlane.xlu0 %4256
        %v4258 = vadd.f32 %v4253, %v4257
        %v4259 = vrot.slane %v4258, 4
        %v4260 = vadd.f32 %v4258, %v4259
        %v4261 = vrot.slane %v4260, 2
        %v4262 = vadd.f32 %v4260, %v4261
        %v4263 = vrot.slane %v4262, 1
        %v4264 = vadd.f32 %v4262, %v4263
        %v4265 = vmul.f32 %v4264, 0.000390625
        %v4266 = vadd.f32 %v4265, 1e-05
        %v4267 = vrsqrt.pop %v4266
        %v4268 = vmul.f32 %v4242, %v4267
        %v4269 = vmul.f32 %v4243, %v4267
        %v4270 = vmul.f32 %v4244, %v4267
        %v4271 = vmul.f32 %v4245, %v4267
        %v4272 = vsel %vm592, %v4269, -inf
        %v4273 = vmax.f32 %v4268, %v4272
        %4274 = vmax.xlane.f32.xlu0 %v4273
        %v4275 = vpop.xlane.xlu0 %4274
        %v4276 = vsel %vm592, %v4271, -inf
        %v4277 = vmax.f32 %v4270, %v4276
        %4278 = vmax.xlane.f32.xlu0 %v4277
        %v4279 = vpop.xlane.xlu0 %4278
        %v4280 = vsub.f32 %v4268, %v4275
        %v4281 = vsub.f32 %v4269, %v4275
        %v4282 = vsub.f32 %v4270, %v4279
        %v4283 = vsub.f32 %v4271, %v4279
        %v4284 = vmul.f32 %v4280, 1.442695
        %v4285 = vpow.pop %v4284
        %v4286 = vmul.f32 %v4281, 1.442695
        %v4287 = vpow.pop %v4286
        %v4288 = vmul.f32 %v4282, 1.442695
        %v4289 = vpow.pop %v4288
        %v4290 = vmul.f32 %v4283, 1.442695
        %v4291 = vpow.pop %v4290
        %v4292 = vsel %vm592, %v4287, 0.0
        %v4293 = vadd.f32 %v4285, %v4292
        %4294 = vadd.xlane.f32.xlu0 %v4293
        %v4295 = vpop.xlane.xlu0 %4294
        %v4296 = vsel %vm592, %v4291, 0.0
        %v4297 = vadd.f32 %v4289, %v4296
        %4298 = vadd.xlane.f32.xlu0 %v4297
        %v4299 = vpop.xlane.xlu0 %4298
        %v4300 = vrcp.pop %v4295
        %v4301 = vrcp.pop %v4299
        %v4302 = vmul.f32 %v4285, %v4300
        %v4303 = vmul.f32 %v4287, %v4300
        %v4304 = vmul.f32 %v4289, %v4301
        %v4305 = vmul.f32 %v4291, %v4301
        %v4306 = vpack.c.bf16 %v4304, %v4302
        %v4307 = vpack.c.bf16 %v4305, %v4303
        %v4309 = vsel %vm592, %v4307, 0
        %v4312 = vsel %vm592, %v2998, 0
        %4314 = vmatprep.subr.bf16.mxu0 %v4312
        %4315 = vmatpush1.bf16.xpose.msra.mxu0 %v2997
        %4316 = vmatprep.subr.bf16.mxu0 0
        %4317 = vmatpush1.bf16.xpose.msra.mxu0 0
        %4318 = vmatprep.subr.bf16.mxu0 0
        %4319 = vmatpush1.bf16.xpose.msra.mxu0 0
        %4320 = vmatprep.subr.bf16.mxu0 0
        %4321 = vmatpush1.bf16.xpose.msra.mxu0 0
        %4322 = vmatprep.subr.bf16.mxu0 0
        %4323 = vmatpush1.bf16.xpose.msra.mxu0 0
        %4324 = vmatprep.subr.bf16.mxu0 0
        %4325 = vmatpush1.bf16.xpose.msra.mxu0 0
        %4326 = vmatprep.subr.bf16.mxu0 0
        %4327 = vmatpush1.bf16.xpose.msra.mxu0 0
        %4328 = vmatprep.subr.bf16.mxu0 0
        %4329 = vmatpush1.bf16.xpose.msra.mxu0 0
        %4330 = vmatprep.subr.bf16.mxu0 0
        %4331 = vmatpush1.bf16.xpose.msra.mxu0 0
        %4332 = vmatprep.subr.bf16.mxu0 0
        %4333 = vmatpush1.bf16.xpose.msra.mxu0 0
        %4334 = vmatprep.subr.bf16.mxu0 0
        %4335 = vmatpush1.bf16.xpose.msra.mxu0 0
        %4336 = vmatprep.subr.bf16.mxu0 0
        %4337 = vmatpush1.bf16.xpose.msra.mxu0 0
        %4338 = vmatprep.subr.bf16.mxu0 0
        %4339 = vmatpush1.bf16.xpose.msra.mxu0 0
        %4340 = vmatprep.subr.bf16.mxu0 0
        %4341 = vmatpush1.bf16.xpose.msra.mxu0 0
        %4342 = vmatprep.subr.bf16.mxu0 0
        %4343 = vmatpush1.bf16.xpose.msra.mxu0 0
        %4344 = vmatprep.subr.bf16.mxu0 0
        %4345 = vmatpush1.bf16.xpose.msra.mxu0 0
        %4346 = vmatprep.mubr.bf16.mxu0 %v4309
        %4347 = vmatmul.mubr.bf16.gmra.mrb[0].mxu0 %v4306
        %v4348 = vpop.f32.mrb[0].mxu0
        %v4349 = vadd.f32 0.0, %v4348
        %v4350 = vpop.f32.mrb[0].mxu0
        %v4351 = vpop.f32.mrb[0].mxu0
        %v4352 = vadd.f32 0.0, %v4351
        %v4353 = vpop.f32.mrb[0].mxu0
        %4354 = vdwg.mxu0
        %v4356 = vsel %vm592, %v3330, 0
        %v4359 = vsel %vm592, %v2994, 0
        %4361 = vmatprep.subr.bf16.mxu0 %v4359
        %4362 = vmatpush1.bf16.xpose.msra.mxu0 %v2993
        %4363 = vmatprep.subr.bf16.mxu0 0
        %4364 = vmatpush1.bf16.xpose.msra.mxu0 0
        %4365 = vmatprep.subr.bf16.mxu0 0
        %4366 = vmatpush1.bf16.xpose.msra.mxu0 0
        %4367 = vmatprep.subr.bf16.mxu0 0
        %4368 = vmatpush1.bf16.xpose.msra.mxu0 0
        %4369 = vmatprep.subr.bf16.mxu0 0
        %4370 = vmatpush1.bf16.xpose.msra.mxu0 0
        %4371 = vmatprep.subr.bf16.mxu0 0
        %4372 = vmatpush1.bf16.xpose.msra.mxu0 0
        %4373 = vmatprep.subr.bf16.mxu0 0
        %4374 = vmatpush1.bf16.xpose.msra.mxu0 0
        %4375 = vmatprep.subr.bf16.mxu0 0
        %4376 = vmatpush1.bf16.xpose.msra.mxu0 0
        %4377 = vmatprep.subr.bf16.mxu0 0
        %4378 = vmatpush1.bf16.xpose.msra.mxu0 0
        %4379 = vmatprep.subr.bf16.mxu0 0
        %4380 = vmatpush1.bf16.xpose.msra.mxu0 0
        %4381 = vmatprep.subr.bf16.mxu0 0
        %4382 = vmatpush1.bf16.xpose.msra.mxu0 0
        %4383 = vmatprep.subr.bf16.mxu0 0
        %4384 = vmatpush1.bf16.xpose.msra.mxu0 0
        %4385 = vmatprep.subr.bf16.mxu0 0
        %4386 = vmatpush1.bf16.xpose.msra.mxu0 0
        %4387 = vmatprep.subr.bf16.mxu0 0
        %4388 = vmatpush1.bf16.xpose.msra.mxu0 0
        %4389 = vmatprep.subr.bf16.mxu0 0
        %4390 = vmatpush1.bf16.xpose.msra.mxu0 0
        %4391 = vmatprep.subr.bf16.mxu0 0
        %4392 = vmatpush1.bf16.xpose.msra.mxu0 0
        %4393 = vmatprep.mubr.bf16.mxu0 %v4356
        %4394 = vmatmul.mubr.bf16.gmra.mrb[0].mxu0 %v3329
        %v4395 = vpop.f32.mrb[0].mxu0
        %v4396 = vadd.f32 %v4349, %v4395
        %v4397 = vpop.f32.mrb[0].mxu0
        %v4398 = vpop.f32.mrb[0].mxu0
        %v4399 = vadd.f32 %v4352, %v4398
        %v4400 = vpop.f32.mrb[0].mxu0
        %4401 = vdwg.mxu0
        %v4402 = vsel %vm592, %v4191, 0.0
        %v4403 = vadd.f32 %v4190, %v4402
        %4404 = vadd.xlane.f32.xlu0 %v4403
        %v4405 = vpop.xlane.xlu0 %4404
        %v4406 = vsel %vm592, %v4193, 0.0
        %v4407 = vadd.f32 %v4192, %v4406
        %4408 = vadd.xlane.f32.xlu0 %v4407
        %v4409 = vpop.xlane.xlu0 %4408
        %v4410 = vsel %vm592, %v4195, 0.0
        %v4411 = vadd.f32 %v4194, %v4410
        %4412 = vadd.xlane.f32.xlu0 %v4411
        %v4413 = vpop.xlane.xlu0 %4412
        %v4414 = vsel %vm592, %v4197, 0.0
        %v4415 = vadd.f32 %v4196, %v4414
        %4416 = vadd.xlane.f32.xlu0 %v4415
        %v4417 = vpop.xlane.xlu0 %4416
        %v4418 = vadd.f32 %v4405, %v4409
        %v4419 = vadd.f32 %v4418, %v4413
        %v4420 = vadd.f32 %v4419, %v4417
        %v4421 = vrot.slane %v4420, 4
        %v4422 = vadd.f32 %v4420, %v4421
        %v4423 = vrot.slane %v4422, 2
        %v4424 = vadd.f32 %v4422, %v4423
        %v4425 = vrot.slane %v4424, 1
        %v4426 = vadd.f32 %v4424, %v4425
        %v4427 = vmul.f32 %v4426, 0.0001953125
        %v4428 = vsub.f32 %v4190, %v4427
        %v4429 = vsub.f32 %v4191, %v4427
        %v4430 = vsub.f32 %v4192, %v4427
        %v4431 = vsub.f32 %v4193, %v4427
        %v4432 = vsub.f32 %v4194, %v4427
        %v4433 = vsub.f32 %v4195, %v4427
        %v4434 = vsub.f32 %v4196, %v4427
        %v4435 = vsub.f32 %v4197, %v4427
        %v4436 = vmul.f32 %v4428, %v4428
        %v4437 = vmul.f32 %v4429, %v4429
        %v4438 = vmul.f32 %v4430, %v4430
        %v4439 = vmul.f32 %v4431, %v4431
        %v4440 = vmul.f32 %v4432, %v4432
        %v4441 = vmul.f32 %v4433, %v4433
        %v4442 = vmul.f32 %v4434, %v4434
        %v4443 = vmul.f32 %v4435, %v4435
        %v4444 = vsel %vm592, %v4437, 0.0
        %v4445 = vadd.f32 %v4436, %v4444
        %4446 = vadd.xlane.f32.xlu0 %v4445
        %v4447 = vpop.xlane.xlu0 %4446
        %v4448 = vsel %vm592, %v4439, 0.0
        %v4449 = vadd.f32 %v4438, %v4448
        %4450 = vadd.xlane.f32.xlu0 %v4449
        %v4451 = vpop.xlane.xlu0 %4450
        %v4452 = vsel %vm592, %v4441, 0.0
        %v4453 = vadd.f32 %v4440, %v4452
        %4454 = vadd.xlane.f32.xlu0 %v4453
        %v4455 = vpop.xlane.xlu0 %4454
        %v4456 = vsel %vm592, %v4443, 0.0
        %v4457 = vadd.f32 %v4442, %v4456
        %4458 = vadd.xlane.f32.xlu0 %v4457
        %v4459 = vpop.xlane.xlu0 %4458
        %v4460 = vadd.f32 %v4447, %v4451
        %v4461 = vadd.f32 %v4460, %v4455
        %v4462 = vadd.f32 %v4461, %v4459
        %v4463 = vrot.slane %v4462, 4
        %v4464 = vadd.f32 %v4462, %v4463
        %v4465 = vrot.slane %v4464, 2
        %v4466 = vadd.f32 %v4464, %v4465
        %v4467 = vrot.slane %v4466, 1
        %v4468 = vadd.f32 %v4466, %v4467
        %v4469 = vmul.f32 %v4468, 0.0001953125
        %v4470 = vadd.f32 %v4469, 1e-05
        %v4471 = vrsqrt.pop %v4470
        %v4472 = vmul.f32 %v4428, %v4471
        %v4473 = vmul.f32 %v4429, %v4471
        %v4474 = vmul.f32 %v4430, %v4471
        %v4475 = vmul.f32 %v4431, %v4471
        %v4476 = vmul.f32 %v4432, %v4471
        %v4477 = vmul.f32 %v4433, %v4471
        %v4478 = vmul.f32 %v4434, %v4471
        %v4479 = vmul.f32 %v4435, %v4471
        %v4480 = vsel %vm592, %v4473, -inf
        %v4481 = vmax.f32 %v4472, %v4480
        %4482 = vmax.xlane.f32.xlu0 %v4481
        %v4483 = vpop.xlane.xlu0 %4482
        %v4484 = vsel %vm592, %v4475, -inf
        %v4485 = vmax.f32 %v4474, %v4484
        %4486 = vmax.xlane.f32.xlu0 %v4485
        %v4487 = vpop.xlane.xlu0 %4486
        %v4488 = vsel %vm592, %v4477, -inf
        %v4489 = vmax.f32 %v4476, %v4488
        %4490 = vmax.xlane.f32.xlu0 %v4489
        %v4491 = vpop.xlane.xlu0 %4490
        %v4492 = vsel %vm592, %v4479, -inf
        %v4493 = vmax.f32 %v4478, %v4492
        %4494 = vmax.xlane.f32.xlu0 %v4493
        %v4495 = vpop.xlane.xlu0 %4494
        %v4496 = vsub.f32 %v4472, %v4483
        %v4497 = vsub.f32 %v4473, %v4483
        %v4498 = vsub.f32 %v4474, %v4487
        %v4499 = vsub.f32 %v4475, %v4487
        %v4500 = vsub.f32 %v4476, %v4491
        %v4501 = vsub.f32 %v4477, %v4491
        %v4502 = vsub.f32 %v4478, %v4495
        %v4503 = vsub.f32 %v4479, %v4495
        %v4504 = vmul.f32 %v4496, 1.442695
        %v4505 = vpow.pop %v4504
        %v4506 = vmul.f32 %v4497, 1.442695
        %v4507 = vpow.pop %v4506
        %v4508 = vmul.f32 %v4498, 1.442695
        %v4509 = vpow.pop %v4508
        %v4510 = vmul.f32 %v4499, 1.442695
        %v4511 = vpow.pop %v4510
        %v4512 = vmul.f32 %v4500, 1.442695
        %v4513 = vpow.pop %v4512
        %v4514 = vmul.f32 %v4501, 1.442695
        %v4515 = vpow.pop %v4514
        %v4516 = vmul.f32 %v4502, 1.442695
        %v4517 = vpow.pop %v4516
        %v4518 = vmul.f32 %v4503, 1.442695
        %v4519 = vpow.pop %v4518
        %v4520 = vsel %vm592, %v4507, 0.0
        %v4521 = vadd.f32 %v4505, %v4520
        %4522 = vadd.xlane.f32.xlu0 %v4521
        %v4523 = vpop.xlane.xlu0 %4522
        %v4524 = vsel %vm592, %v4511, 0.0
        %v4525 = vadd.f32 %v4509, %v4524
        %4526 = vadd.xlane.f32.xlu0 %v4525
        %v4527 = vpop.xlane.xlu0 %4526
        %v4528 = vsel %vm592, %v4515, 0.0
        %v4529 = vadd.f32 %v4513, %v4528
        %4530 = vadd.xlane.f32.xlu0 %v4529
        %v4531 = vpop.xlane.xlu0 %4530
        %v4532 = vsel %vm592, %v4519, 0.0
        %v4533 = vadd.f32 %v4517, %v4532
        %4534 = vadd.xlane.f32.xlu0 %v4533
        %v4535 = vpop.xlane.xlu0 %4534
        %v4536 = vrcp.pop %v4523
        %v4537 = vrcp.pop %v4527
        %v4538 = vrcp.pop %v4531
        %v4539 = vrcp.pop %v4535
        %v4540 = vmul.f32 %v4505, %v4536
        %v4541 = vmul.f32 %v4507, %v4536
        %v4542 = vmul.f32 %v4509, %v4537
        %v4543 = vmul.f32 %v4511, %v4537
        %v4544 = vmul.f32 %v4513, %v4538
        %v4545 = vmul.f32 %v4515, %v4538
        %v4546 = vmul.f32 %v4517, %v4539
        %v4547 = vmul.f32 %v4519, %v4539
        %v4548 = vpack.c.bf16 %v4542, %v4540
        %v4549 = vpack.c.bf16 %v4543, %v4541
        %v4550 = vpack.c.bf16 %v4546, %v4544
        %v4551 = vpack.c.bf16 %v4547, %v4545
        %v4553 = vsel %vm592, %v4549, 0
        %v4556 = vsel %vm592, %v4551, 0
        %4558 = vmatprep.subr.bf16.mxu0 %v4312
        %4559 = vmatpush1.bf16.xpose.msra.mxu0 %v2997
        %4560 = vmatprep.subr.bf16.mxu0 0
        %4561 = vmatpush1.bf16.xpose.msra.mxu0 0
        %4562 = vmatprep.subr.bf16.mxu0 0
        %4563 = vmatpush1.bf16.xpose.msra.mxu0 0
        %4564 = vmatprep.subr.bf16.mxu0 0
        %4565 = vmatpush1.bf16.xpose.msra.mxu0 0
        %4566 = vmatprep.subr.bf16.mxu0 0
        %4567 = vmatpush1.bf16.xpose.msra.mxu0 0
        %4568 = vmatprep.subr.bf16.mxu0 0
        %4569 = vmatpush1.bf16.xpose.msra.mxu0 0
        %4570 = vmatprep.subr.bf16.mxu0 0
        %4571 = vmatpush1.bf16.xpose.msra.mxu0 0
        %4572 = vmatprep.subr.bf16.mxu0 0
        %4573 = vmatpush1.bf16.xpose.msra.mxu0 0
        %4574 = vmatprep.subr.bf16.mxu0 0
        %4575 = vmatpush1.bf16.xpose.msra.mxu0 0
        %4576 = vmatprep.subr.bf16.mxu0 0
        %4577 = vmatpush1.bf16.xpose.msra.mxu0 0
        %4578 = vmatprep.subr.bf16.mxu0 0
        %4579 = vmatpush1.bf16.xpose.msra.mxu0 0
        %4580 = vmatprep.subr.bf16.mxu0 0
        %4581 = vmatpush1.bf16.xpose.msra.mxu0 0
        %4582 = vmatprep.subr.bf16.mxu0 0
        %4583 = vmatpush1.bf16.xpose.msra.mxu0 0
        %4584 = vmatprep.subr.bf16.mxu0 0
        %4585 = vmatpush1.bf16.xpose.msra.mxu0 0
        %4586 = vmatprep.subr.bf16.mxu0 0
        %4587 = vmatpush1.bf16.xpose.msra.mxu0 0
        %4588 = vmatprep.subr.bf16.mxu0 0
        %4589 = vmatpush1.bf16.xpose.msra.mxu0 0
        %4590 = vmatprep.mubr.bf16.mxu0 %v4553
        %4591 = vmatmul.mubr.bf16.gmra.mrb[0].mxu0 %v4548
        %v4592 = vpop.f32.mrb[0].mxu0
        %v4593 = vadd.f32 0.0, %v4592
        %v4594 = vpop.f32.mrb[0].mxu0
        %v4595 = vpop.f32.mrb[0].mxu0
        %v4596 = vadd.f32 0.0, %v4595
        %v4597 = vpop.f32.mrb[0].mxu0
        %4598 = vmatprep.mubr.bf16.mxu0 %v4556
        %4599 = vmatmul.mubr.bf16.gmra.mrb[0].mxu0 %v4550
        %v4600 = vpop.f32.mrb[0].mxu0
        %v4601 = vadd.f32 0.0, %v4600
        %v4602 = vpop.f32.mrb[0].mxu0
        %v4603 = vpop.f32.mrb[0].mxu0
        %v4604 = vadd.f32 0.0, %v4603
        %v4605 = vpop.f32.mrb[0].mxu0
        %4606 = vdwg.mxu0
        %v4608 = vsel %vm592, %v3478, 0
        %v4611 = vsel %vm592, %v3480, 0
        %4613 = vmatprep.subr.bf16.mxu0 %v4359
        %4614 = vmatpush1.bf16.xpose.msra.mxu0 %v2993
        %4615 = vmatprep.subr.bf16.mxu0 0
        %4616 = vmatpush1.bf16.xpose.msra.mxu0 0
        %4617 = vmatprep.subr.bf16.mxu0 0
        %4618 = vmatpush1.bf16.xpose.msra.mxu0 0
        %4619 = vmatprep.subr.bf16.mxu0 0
        %4620 = vmatpush1.bf16.xpose.msra.mxu0 0
        %4621 = vmatprep.subr.bf16.mxu0 0
        %4622 = vmatpush1.bf16.xpose.msra.mxu0 0
        %4623 = vmatprep.subr.bf16.mxu0 0
        %4624 = vmatpush1.bf16.xpose.msra.mxu0 0
        %4625 = vmatprep.subr.bf16.mxu0 0
        %4626 = vmatpush1.bf16.xpose.msra.mxu0 0
        %4627 = vmatprep.subr.bf16.mxu0 0
        %4628 = vmatpush1.bf16.xpose.msra.mxu0 0
        %4629 = vmatprep.subr.bf16.mxu0 0
        %4630 = vmatpush1.bf16.xpose.msra.mxu0 0
        %4631 = vmatprep.subr.bf16.mxu0 0
        %4632 = vmatpush1.bf16.xpose.msra.mxu0 0
        %4633 = vmatprep.subr.bf16.mxu0 0
        %4634 = vmatpush1.bf16.xpose.msra.mxu0 0
        %4635 = vmatprep.subr.bf16.mxu0 0
        %4636 = vmatpush1.bf16.xpose.msra.mxu0 0
        %4637 = vmatprep.subr.bf16.mxu0 0
        %4638 = vmatpush1.bf16.xpose.msra.mxu0 0
        %4639 = vmatprep.subr.bf16.mxu0 0
        %4640 = vmatpush1.bf16.xpose.msra.mxu0 0
        %4641 = vmatprep.subr.bf16.mxu0 0
        %4642 = vmatpush1.bf16.xpose.msra.mxu0 0
        %4643 = vmatprep.subr.bf16.mxu0 0
        %4644 = vmatpush1.bf16.xpose.msra.mxu0 0
        %4645 = vmatprep.mubr.bf16.mxu0 %v4608
        %4646 = vmatmul.mubr.bf16.gmra.mrb[0].mxu0 %v3477
        %v4647 = vpop.f32.mrb[0].mxu0
        %v4648 = vadd.f32 %v4593, %v4647
        %v4649 = vpop.f32.mrb[0].mxu0
        %v4650 = vpop.f32.mrb[0].mxu0
        %v4651 = vadd.f32 %v4596, %v4650
        %v4652 = vpop.f32.mrb[0].mxu0
        %4653 = vmatprep.mubr.bf16.mxu0 %v4611
        %4654 = vmatmul.mubr.bf16.gmra.mrb[0].mxu0 %v3479
        %v4655 = vpop.f32.mrb[0].mxu0
        %v4656 = vadd.f32 %v4601, %v4655
        %v4657 = vpop.f32.mrb[0].mxu0
        %v4658 = vpop.f32.mrb[0].mxu0
        %v4659 = vadd.f32 %v4604, %v4658
        %v4660 = vpop.f32.mrb[0].mxu0
        %4661 = vdwg.mxu0
        %v4662 = vsel %vm592, %v4199, 0.0
        %v4663 = vadd.f32 %v4198, %v4662
        %4664 = vadd.xlane.f32.xlu0 %v4663
        %v4665 = vpop.xlane.xlu0 %4664
        %v4666 = vsel %vm592, %v4201, 0.0
        %v4667 = vadd.f32 %v4200, %v4666
        %4668 = vadd.xlane.f32.xlu0 %v4667
        %v4669 = vpop.xlane.xlu0 %4668
        %v4670 = vsel %vm592, %v4203, 0.0
        %v4671 = vadd.f32 %v4202, %v4670
        %4672 = vadd.xlane.f32.xlu0 %v4671
        %v4673 = vpop.xlane.xlu0 %4672
        %v4674 = vsel %vm592, %v4205, 0.0
        %v4675 = vadd.f32 %v4204, %v4674
        %4676 = vadd.xlane.f32.xlu0 %v4675
        %v4677 = vpop.xlane.xlu0 %4676
        %v4678 = vsel %vm592, %v4207, 0.0
        %v4679 = vadd.f32 %v4206, %v4678
        %4680 = vadd.xlane.f32.xlu0 %v4679
        %v4681 = vpop.xlane.xlu0 %4680
        %v4682 = vsel %vm592, %v4209, 0.0
        %v4683 = vadd.f32 %v4208, %v4682
        %4684 = vadd.xlane.f32.xlu0 %v4683
        %v4685 = vpop.xlane.xlu0 %4684
        %v4686 = vadd.f32 %v4665, %v4669
        %v4687 = vadd.f32 %v4686, %v4673
        %v4688 = vadd.f32 %v4687, %v4677
        %v4689 = vadd.f32 %v4688, %v4681
        %v4690 = vadd.f32 %v4689, %v4685
        %v4691 = vrot.slane %v4690, 4
        %v4692 = vadd.f32 %v4690, %v4691
        %v4693 = vrot.slane %v4692, 2
        %v4694 = vadd.f32 %v4692, %v4693
        %v4695 = vrot.slane %v4694, 1
        %v4696 = vadd.f32 %v4694, %v4695
        %v4697 = vmul.f32 %v4696, 0.00013020834
        %v4698 = vsub.f32 %v4198, %v4697
        %v4699 = vsub.f32 %v4199, %v4697
        %v4700 = vsub.f32 %v4200, %v4697
        %v4701 = vsub.f32 %v4201, %v4697
        %v4702 = vsub.f32 %v4202, %v4697
        %v4703 = vsub.f32 %v4203, %v4697
        %v4704 = vsub.f32 %v4204, %v4697
        %v4705 = vsub.f32 %v4205, %v4697
        %v4706 = vsub.f32 %v4206, %v4697
        %v4707 = vsub.f32 %v4207, %v4697
        %v4708 = vsub.f32 %v4208, %v4697
        %v4709 = vsub.f32 %v4209, %v4697
        %v4710 = vmul.f32 %v4698, %v4698
        %v4711 = vmul.f32 %v4699, %v4699
        %v4712 = vmul.f32 %v4700, %v4700
        %v4713 = vmul.f32 %v4701, %v4701
        %v4714 = vmul.f32 %v4702, %v4702
        %v4715 = vmul.f32 %v4703, %v4703
        %v4716 = vmul.f32 %v4704, %v4704
        %v4717 = vmul.f32 %v4705, %v4705
        %v4718 = vmul.f32 %v4706, %v4706
        %v4719 = vmul.f32 %v4707, %v4707
        %v4720 = vmul.f32 %v4708, %v4708
        %v4721 = vmul.f32 %v4709, %v4709
        %v4722 = vsel %vm592, %v4711, 0.0
        %v4723 = vadd.f32 %v4710, %v4722
        %4724 = vadd.xlane.f32.xlu0 %v4723
        %v4725 = vpop.xlane.xlu0 %4724
        %v4726 = vsel %vm592, %v4713, 0.0
        %v4727 = vadd.f32 %v4712, %v4726
        %4728 = vadd.xlane.f32.xlu0 %v4727
        %v4729 = vpop.xlane.xlu0 %4728
        %v4730 = vsel %vm592, %v4715, 0.0
        %v4731 = vadd.f32 %v4714, %v4730
        %4732 = vadd.xlane.f32.xlu0 %v4731
        %v4733 = vpop.xlane.xlu0 %4732
        %v4734 = vsel %vm592, %v4717, 0.0
        %v4735 = vadd.f32 %v4716, %v4734
        %4736 = vadd.xlane.f32.xlu0 %v4735
        %v4737 = vpop.xlane.xlu0 %4736
        %v4738 = vsel %vm592, %v4719, 0.0
        %v4739 = vadd.f32 %v4718, %v4738
        %4740 = vadd.xlane.f32.xlu0 %v4739
        %v4741 = vpop.xlane.xlu0 %4740
        %v4742 = vsel %vm592, %v4721, 0.0
        %v4743 = vadd.f32 %v4720, %v4742
        %4744 = vadd.xlane.f32.xlu0 %v4743
        %v4745 = vpop.xlane.xlu0 %4744
        %v4746 = vadd.f32 %v4725, %v4729
        %v4747 = vadd.f32 %v4746, %v4733
        %v4748 = vadd.f32 %v4747, %v4737
        %v4749 = vadd.f32 %v4748, %v4741
        %v4750 = vadd.f32 %v4749, %v4745
        %v4751 = vrot.slane %v4750, 4
        %v4752 = vadd.f32 %v4750, %v4751
        %v4753 = vrot.slane %v4752, 2
        %v4754 = vadd.f32 %v4752, %v4753
        %v4755 = vrot.slane %v4754, 1
        %v4756 = vadd.f32 %v4754, %v4755
        %v4757 = vmul.f32 %v4756, 0.00013020834
        %v4758 = vadd.f32 %v4757, 1e-05
        %v4759 = vrsqrt.pop %v4758
        %v4760 = vmul.f32 %v4698, %v4759
        %v4761 = vmul.f32 %v4699, %v4759
        %v4762 = vmul.f32 %v4700, %v4759
        %v4763 = vmul.f32 %v4701, %v4759
        %v4764 = vmul.f32 %v4702, %v4759
        %v4765 = vmul.f32 %v4703, %v4759
        %v4766 = vmul.f32 %v4704, %v4759
        %v4767 = vmul.f32 %v4705, %v4759
        %v4768 = vmul.f32 %v4706, %v4759
        %v4769 = vmul.f32 %v4707, %v4759
        %v4770 = vmul.f32 %v4708, %v4759
        %v4771 = vmul.f32 %v4709, %v4759
        %v4772 = vsel %vm592, %v4761, -inf
        %v4773 = vmax.f32 %v4760, %v4772
        %4774 = vmax.xlane.f32.xlu0 %v4773
        %v4775 = vpop.xlane.xlu0 %4774
        %v4776 = vsel %vm592, %v4763, -inf
        %v4777 = vmax.f32 %v4762, %v4776
        %4778 = vmax.xlane.f32.xlu0 %v4777
        %v4779 = vpop.xlane.xlu0 %4778
        %v4780 = vsel %vm592, %v4765, -inf
        %v4781 = vmax.f32 %v4764, %v4780
        %4782 = vmax.xlane.f32.xlu0 %v4781
        %v4783 = vpop.xlane.xlu0 %4782
        %v4784 = vsel %vm592, %v4767, -inf
        %v4785 = vmax.f32 %v4766, %v4784
        %4786 = vmax.xlane.f32.xlu0 %v4785
        %v4787 = vpop.xlane.xlu0 %4786
        %v4788 = vsel %vm592, %v4769, -inf
        %v4789 = vmax.f32 %v4768, %v4788
        %4790 = vmax.xlane.f32.xlu0 %v4789
        %v4791 = vpop.xlane.xlu0 %4790
        %v4792 = vsel %vm592, %v4771, -inf
        %v4793 = vmax.f32 %v4770, %v4792
        %4794 = vmax.xlane.f32.xlu0 %v4793
        %v4795 = vpop.xlane.xlu0 %4794
        %v4796 = vsub.f32 %v4760, %v4775
        %v4797 = vsub.f32 %v4761, %v4775
        %v4798 = vsub.f32 %v4762, %v4779
        %v4799 = vsub.f32 %v4763, %v4779
        %v4800 = vsub.f32 %v4764, %v4783
        %v4801 = vsub.f32 %v4765, %v4783
        %v4802 = vsub.f32 %v4766, %v4787
        %v4803 = vsub.f32 %v4767, %v4787
        %v4804 = vsub.f32 %v4768, %v4791
        %v4805 = vsub.f32 %v4769, %v4791
        %v4806 = vsub.f32 %v4770, %v4795
        %v4807 = vsub.f32 %v4771, %v4795
        %v4808 = vmul.f32 %v4796, 1.442695
        %v4809 = vpow.pop %v4808
        %v4810 = vmul.f32 %v4797, 1.442695
        %v4811 = vpow.pop %v4810
        %v4812 = vmul.f32 %v4798, 1.442695
        %v4813 = vpow.pop %v4812
        %v4814 = vmul.f32 %v4799, 1.442695
        %v4815 = vpow.pop %v4814
        %v4816 = vmul.f32 %v4800, 1.442695
        %v4817 = vpow.pop %v4816
        %v4818 = vmul.f32 %v4801, 1.442695
        %v4819 = vpow.pop %v4818
        %v4820 = vmul.f32 %v4802, 1.442695
        %v4821 = vpow.pop %v4820
        %v4822 = vmul.f32 %v4803, 1.442695
        %v4823 = vpow.pop %v4822
        %v4824 = vmul.f32 %v4804, 1.442695
        %v4825 = vpow.pop %v4824
        %v4826 = vmul.f32 %v4805, 1.442695
        %v4827 = vpow.pop %v4826
        %v4828 = vmul.f32 %v4806, 1.442695
        %v4829 = vpow.pop %v4828
        %v4830 = vmul.f32 %v4807, 1.442695
        %v4831 = vpow.pop %v4830
        %v4832 = vsel %vm592, %v4811, 0.0
        %v4833 = vadd.f32 %v4809, %v4832
        %4834 = vadd.xlane.f32.xlu0 %v4833
        %v4835 = vpop.xlane.xlu0 %4834
        %v4836 = vsel %vm592, %v4815, 0.0
        %v4837 = vadd.f32 %v4813, %v4836
        %4838 = vadd.xlane.f32.xlu0 %v4837
        %v4839 = vpop.xlane.xlu0 %4838
        %v4840 = vsel %vm592, %v4819, 0.0
        %v4841 = vadd.f32 %v4817, %v4840
        %4842 = vadd.xlane.f32.xlu0 %v4841
        %v4843 = vpop.xlane.xlu0 %4842
        %v4844 = vsel %vm592, %v4823, 0.0
        %v4845 = vadd.f32 %v4821, %v4844
        %4846 = vadd.xlane.f32.xlu0 %v4845
        %v4847 = vpop.xlane.xlu0 %4846
        %v4848 = vsel %vm592, %v4827, 0.0
        %v4849 = vadd.f32 %v4825, %v4848
        %4850 = vadd.xlane.f32.xlu0 %v4849
        %v4851 = vpop.xlane.xlu0 %4850
        %v4852 = vsel %vm592, %v4831, 0.0
        %v4853 = vadd.f32 %v4829, %v4852
        %4854 = vadd.xlane.f32.xlu0 %v4853
        %v4855 = vpop.xlane.xlu0 %4854
        %v4856 = vrcp.pop %v4835
        %v4857 = vrcp.pop %v4839
        %v4858 = vrcp.pop %v4843
        %v4859 = vrcp.pop %v4847
        %v4860 = vrcp.pop %v4851
        %v4861 = vrcp.pop %v4855
        %v4862 = vmul.f32 %v4809, %v4856
        %v4863 = vmul.f32 %v4811, %v4856
        %v4864 = vmul.f32 %v4813, %v4857
        %v4865 = vmul.f32 %v4815, %v4857
        %v4866 = vmul.f32 %v4817, %v4858
        %v4867 = vmul.f32 %v4819, %v4858
        %v4868 = vmul.f32 %v4821, %v4859
        %v4869 = vmul.f32 %v4823, %v4859
        %v4870 = vmul.f32 %v4825, %v4860
        %v4871 = vmul.f32 %v4827, %v4860
        %v4872 = vmul.f32 %v4829, %v4861
        %v4873 = vmul.f32 %v4831, %v4861
        %v4874 = vpack.c.bf16 %v4864, %v4862
        %v4875 = vpack.c.bf16 %v4865, %v4863
        %v4876 = vpack.c.bf16 %v4868, %v4866
        %v4877 = vpack.c.bf16 %v4869, %v4867
        %v4878 = vpack.c.bf16 %v4872, %v4870
        %v4879 = vpack.c.bf16 %v4873, %v4871
        %v4881 = vsel %vm592, %v4875, 0
        %v4884 = vsel %vm592, %v4877, 0
        %v4887 = vsel %vm592, %v4879, 0
        %4889 = vmatprep.subr.bf16.mxu0 %v4312
        %4890 = vmatpush1.bf16.xpose.msra.mxu0 %v2997
        %4891 = vmatprep.subr.bf16.mxu0 0
        %4892 = vmatpush1.bf16.xpose.msra.mxu0 0
        %4893 = vmatprep.subr.bf16.mxu0 0
        %4894 = vmatpush1.bf16.xpose.msra.mxu0 0
        %4895 = vmatprep.subr.bf16.mxu0 0
        %4896 = vmatpush1.bf16.xpose.msra.mxu0 0
        %4897 = vmatprep.subr.bf16.mxu0 0
        %4898 = vmatpush1.bf16.xpose.msra.mxu0 0
        %4899 = vmatprep.subr.bf16.mxu0 0
        %4900 = vmatpush1.bf16.xpose.msra.mxu0 0
        %4901 = vmatprep.subr.bf16.mxu0 0
        %4902 = vmatpush1.bf16.xpose.msra.mxu0 0
        %4903 = vmatprep.subr.bf16.mxu0 0
        %4904 = vmatpush1.bf16.xpose.msra.mxu0 0
        %4905 = vmatprep.subr.bf16.mxu0 0
        %4906 = vmatpush1.bf16.xpose.msra.mxu0 0
        %4907 = vmatprep.subr.bf16.mxu0 0
        %4908 = vmatpush1.bf16.xpose.msra.mxu0 0
        %4909 = vmatprep.subr.bf16.mxu0 0
        %4910 = vmatpush1.bf16.xpose.msra.mxu0 0
        %4911 = vmatprep.subr.bf16.mxu0 0
        %4912 = vmatpush1.bf16.xpose.msra.mxu0 0
        %4913 = vmatprep.subr.bf16.mxu0 0
        %4914 = vmatpush1.bf16.xpose.msra.mxu0 0
        %4915 = vmatprep.subr.bf16.mxu0 0
        %4916 = vmatpush1.bf16.xpose.msra.mxu0 0
        %4917 = vmatprep.subr.bf16.mxu0 0
        %4918 = vmatpush1.bf16.xpose.msra.mxu0 0
        %4919 = vmatprep.subr.bf16.mxu0 0
        %4920 = vmatpush1.bf16.xpose.msra.mxu0 0
        %4921 = vmatprep.mubr.bf16.mxu0 %v4881
        %4922 = vmatmul.mubr.bf16.gmra.mrb[0].mxu0 %v4874
        %v4923 = vpop.f32.mrb[0].mxu0
        %v4924 = vadd.f32 0.0, %v4923
        %v4925 = vpop.f32.mrb[0].mxu0
        %v4926 = vpop.f32.mrb[0].mxu0
        %v4927 = vadd.f32 0.0, %v4926
        %v4928 = vpop.f32.mrb[0].mxu0
        %4929 = vmatprep.mubr.bf16.mxu0 %v4884
        %4930 = vmatmul.mubr.bf16.gmra.mrb[0].mxu0 %v4876
        %v4931 = vpop.f32.mrb[0].mxu0
        %v4932 = vadd.f32 0.0, %v4931
        %v4933 = vpop.f32.mrb[0].mxu0
        %v4934 = vpop.f32.mrb[0].mxu0
        %v4935 = vadd.f32 0.0, %v4934
        %v4936 = vpop.f32.mrb[0].mxu0
        %4937 = vmatprep.mubr.bf16.mxu0 %v4887
        %4938 = vmatmul.mubr.bf16.gmra.mrb[0].mxu0 %v4878
        %v4939 = vpop.f32.mrb[0].mxu0
        %v4940 = vadd.f32 0.0, %v4939
        %v4941 = vpop.f32.mrb[0].mxu0
        %v4942 = vpop.f32.mrb[0].mxu0
        %v4943 = vadd.f32 0.0, %v4942
        %v4944 = vpop.f32.mrb[0].mxu0
        %4945 = vdwg.mxu0
        %v4947 = vsel %vm592, %v3694, 0
        %v4950 = vsel %vm592, %v3696, 0
        %v4953 = vsel %vm592, %v3698, 0
        %4955 = vmatprep.subr.bf16.mxu0 %v4359
        %4956 = vmatpush1.bf16.xpose.msra.mxu0 %v2993
        %4957 = vmatprep.subr.bf16.mxu0 0
        %4958 = vmatpush1.bf16.xpose.msra.mxu0 0
        %4959 = vmatprep.subr.bf16.mxu0 0
        %4960 = vmatpush1.bf16.xpose.msra.mxu0 0
        %4961 = vmatprep.subr.bf16.mxu0 0
        %4962 = vmatpush1.bf16.xpose.msra.mxu0 0
        %4963 = vmatprep.subr.bf16.mxu0 0
        %4964 = vmatpush1.bf16.xpose.msra.mxu0 0
        %4965 = vmatprep.subr.bf16.mxu0 0
        %4966 = vmatpush1.bf16.xpose.msra.mxu0 0
        %4967 = vmatprep.subr.bf16.mxu0 0
        %4968 = vmatpush1.bf16.xpose.msra.mxu0 0
        %4969 = vmatprep.subr.bf16.mxu0 0
        %4970 = vmatpush1.bf16.xpose.msra.mxu0 0
        %4971 = vmatprep.subr.bf16.mxu0 0
        %4972 = vmatpush1.bf16.xpose.msra.mxu0 0
        %4973 = vmatprep.subr.bf16.mxu0 0
        %4974 = vmatpush1.bf16.xpose.msra.mxu0 0
        %4975 = vmatprep.subr.bf16.mxu0 0
        %4976 = vmatpush1.bf16.xpose.msra.mxu0 0
        %4977 = vmatprep.subr.bf16.mxu0 0
        %4978 = vmatpush1.bf16.xpose.msra.mxu0 0
        %4979 = vmatprep.subr.bf16.mxu0 0
        %4980 = vmatpush1.bf16.xpose.msra.mxu0 0
        %4981 = vmatprep.subr.bf16.mxu0 0
        %4982 = vmatpush1.bf16.xpose.msra.mxu0 0
        %4983 = vmatprep.subr.bf16.mxu0 0
        %4984 = vmatpush1.bf16.xpose.msra.mxu0 0
        %4985 = vmatprep.subr.bf16.mxu0 0
        %4986 = vmatpush1.bf16.xpose.msra.mxu0 0
        %4987 = vmatprep.mubr.bf16.mxu0 %v4947
        %4988 = vmatmul.mubr.bf16.gmra.mrb[0].mxu0 %v3693
        %v4989 = vpop.f32.mrb[0].mxu0
        %v4990 = vadd.f32 %v4924, %v4989
        %v4991 = vpop.f32.mrb[0].mxu0
        %v4992 = vpop.f32.mrb[0].mxu0
        %v4993 = vadd.f32 %v4927, %v4992
        %v4994 = vpop.f32.mrb[0].mxu0
        %4995 = vmatprep.mubr.bf16.mxu0 %v4950
        %4996 = vmatmul.mubr.bf16.gmra.mrb[0].mxu0 %v3695
        %v4997 = vpop.f32.mrb[0].mxu0
        %v4998 = vadd.f32 %v4932, %v4997
        %v4999 = vpop.f32.mrb[0].mxu0
        %v5000 = vpop.f32.mrb[0].mxu0
        %v5001 = vadd.f32 %v4935, %v5000
        %v5002 = vpop.f32.mrb[0].mxu0
        %5003 = vmatprep.mubr.bf16.mxu0 %v4953
        %5004 = vmatmul.mubr.bf16.gmra.mrb[0].mxu0 %v3697
        %v5005 = vpop.f32.mrb[0].mxu0
        %v5006 = vadd.f32 %v4940, %v5005
        %v5007 = vpop.f32.mrb[0].mxu0
        %v5008 = vpop.f32.mrb[0].mxu0
        %v5009 = vadd.f32 %v4943, %v5008
        %v5010 = vpop.f32.mrb[0].mxu0
        %5011 = vdwg.mxu0
        %v5012 = vsel %vm592, %v4211, 0.0
        %v5013 = vadd.f32 %v4210, %v5012
        %5014 = vadd.xlane.f32.xlu0 %v5013
        %v5015 = vpop.xlane.xlu0 %5014
        %v5016 = vsel %vm592, %v4213, 0.0
        %v5017 = vadd.f32 %v4212, %v5016
        %5018 = vadd.xlane.f32.xlu0 %v5017
        %v5019 = vpop.xlane.xlu0 %5018
        %v5020 = vsel %vm592, %v4215, 0.0
        %v5021 = vadd.f32 %v4214, %v5020
        %5022 = vadd.xlane.f32.xlu0 %v5021
        %v5023 = vpop.xlane.xlu0 %5022
        %v5024 = vsel %vm592, %v4217, 0.0
        %v5025 = vadd.f32 %v4216, %v5024
        %5026 = vadd.xlane.f32.xlu0 %v5025
        %v5027 = vpop.xlane.xlu0 %5026
        %v5028 = vsel %vm592, %v4219, 0.0
        %v5029 = vadd.f32 %v4218, %v5028
        %5030 = vadd.xlane.f32.xlu0 %v5029
        %v5031 = vpop.xlane.xlu0 %5030
        %v5032 = vsel %vm592, %v4221, 0.0
        %v5033 = vadd.f32 %v4220, %v5032
        %5034 = vadd.xlane.f32.xlu0 %v5033
        %v5035 = vpop.xlane.xlu0 %5034
        %v5036 = vsel %vm592, %v4223, 0.0
        %v5037 = vadd.f32 %v4222, %v5036
        %5038 = vadd.xlane.f32.xlu0 %v5037
        %v5039 = vpop.xlane.xlu0 %5038
        %v5040 = vsel %vm592, %v4225, 0.0
        %v5041 = vadd.f32 %v4224, %v5040
        %5042 = vadd.xlane.f32.xlu0 %v5041
        %v5043 = vpop.xlane.xlu0 %5042
        %v5044 = vadd.f32 %v5015, %v5019
        %v5045 = vadd.f32 %v5044, %v5023
        %v5046 = vadd.f32 %v5045, %v5027
        %v5047 = vadd.f32 %v5046, %v5031
        %v5048 = vadd.f32 %v5047, %v5035
        %v5049 = vadd.f32 %v5048, %v5039
        %v5050 = vadd.f32 %v5049, %v5043
        %v5051 = vrot.slane %v5050, 4
        %v5052 = vadd.f32 %v5050, %v5051
        %v5053 = vrot.slane %v5052, 2
        %v5054 = vadd.f32 %v5052, %v5053
        %v5055 = vrot.slane %v5054, 1
        %v5056 = vadd.f32 %v5054, %v5055
        %v5057 = vmul.f32 %v5056, 9.765625e-05
        %v5058 = vsub.f32 %v4210, %v5057
        %v5059 = vsub.f32 %v4211, %v5057
        %v5060 = vsub.f32 %v4212, %v5057
        %v5061 = vsub.f32 %v4213, %v5057
        %v5062 = vsub.f32 %v4214, %v5057
        %v5063 = vsub.f32 %v4215, %v5057
        %v5064 = vsub.f32 %v4216, %v5057
        %v5065 = vsub.f32 %v4217, %v5057
        %v5066 = vsub.f32 %v4218, %v5057
        %v5067 = vsub.f32 %v4219, %v5057
        %v5068 = vsub.f32 %v4220, %v5057
        %v5069 = vsub.f32 %v4221, %v5057
        %v5070 = vsub.f32 %v4222, %v5057
        %v5071 = vsub.f32 %v4223, %v5057
        %v5072 = vsub.f32 %v4224, %v5057
        %v5073 = vsub.f32 %v4225, %v5057
        %v5074 = vmul.f32 %v5058, %v5058
        %v5075 = vmul.f32 %v5059, %v5059
        %v5076 = vmul.f32 %v5060, %v5060
        %v5077 = vmul.f32 %v5061, %v5061
        %v5078 = vmul.f32 %v5062, %v5062
        %v5079 = vmul.f32 %v5063, %v5063
        %v5080 = vmul.f32 %v5064, %v5064
        %v5081 = vmul.f32 %v5065, %v5065
        %v5082 = vmul.f32 %v5066, %v5066
        %v5083 = vmul.f32 %v5067, %v5067
        %v5084 = vmul.f32 %v5068, %v5068
        %v5085 = vmul.f32 %v5069, %v5069
        %v5086 = vmul.f32 %v5070, %v5070
        %v5087 = vmul.f32 %v5071, %v5071
        %v5088 = vmul.f32 %v5072, %v5072
        %v5089 = vmul.f32 %v5073, %v5073
        %v5090 = vsel %vm592, %v5075, 0.0
        %v5091 = vadd.f32 %v5074, %v5090
        %5092 = vadd.xlane.f32.xlu0 %v5091
        %v5093 = vpop.xlane.xlu0 %5092
        %v5094 = vsel %vm592, %v5077, 0.0
        %v5095 = vadd.f32 %v5076, %v5094
        %5096 = vadd.xlane.f32.xlu0 %v5095
        %v5097 = vpop.xlane.xlu0 %5096
        %v5098 = vsel %vm592, %v5079, 0.0
        %v5099 = vadd.f32 %v5078, %v5098
        %5100 = vadd.xlane.f32.xlu0 %v5099
        %v5101 = vpop.xlane.xlu0 %5100
        %v5102 = vsel %vm592, %v5081, 0.0
        %v5103 = vadd.f32 %v5080, %v5102
        %5104 = vadd.xlane.f32.xlu0 %v5103
        %v5105 = vpop.xlane.xlu0 %5104
        %v5106 = vsel %vm592, %v5083, 0.0
        %v5107 = vadd.f32 %v5082, %v5106
        %5108 = vadd.xlane.f32.xlu0 %v5107
        %v5109 = vpop.xlane.xlu0 %5108
        %v5110 = vsel %vm592, %v5085, 0.0
        %v5111 = vadd.f32 %v5084, %v5110
        %5112 = vadd.xlane.f32.xlu0 %v5111
        %v5113 = vpop.xlane.xlu0 %5112
        %v5114 = vsel %vm592, %v5087, 0.0
        %v5115 = vadd.f32 %v5086, %v5114
        %5116 = vadd.xlane.f32.xlu0 %v5115
        %v5117 = vpop.xlane.xlu0 %5116
        %v5118 = vsel %vm592, %v5089, 0.0
        %v5119 = vadd.f32 %v5088, %v5118
        %5120 = vadd.xlane.f32.xlu0 %v5119
        %v5121 = vpop.xlane.xlu0 %5120
        %v5122 = vadd.f32 %v5093, %v5097
        %v5123 = vadd.f32 %v5122, %v5101
        %v5124 = vadd.f32 %v5123, %v5105
        %v5125 = vadd.f32 %v5124, %v5109
        %v5126 = vadd.f32 %v5125, %v5113
        %v5127 = vadd.f32 %v5126, %v5117
        %v5128 = vadd.f32 %v5127, %v5121
        %v5129 = vrot.slane %v5128, 4
        %v5130 = vadd.f32 %v5128, %v5129
        %v5131 = vrot.slane %v5130, 2
        %v5132 = vadd.f32 %v5130, %v5131
        %v5133 = vrot.slane %v5132, 1
        %v5134 = vadd.f32 %v5132, %v5133
        %v5135 = vmul.f32 %v5134, 9.765625e-05
        %v5136 = vadd.f32 %v5135, 1e-05
        %v5137 = vrsqrt.pop %v5136
        %v5138 = vmul.f32 %v5058, %v5137
        %v5139 = vmul.f32 %v5059, %v5137
        %v5140 = vmul.f32 %v5060, %v5137
        %v5141 = vmul.f32 %v5061, %v5137
        %v5142 = vmul.f32 %v5062, %v5137
        %v5143 = vmul.f32 %v5063, %v5137
        %v5144 = vmul.f32 %v5064, %v5137
        %v5145 = vmul.f32 %v5065, %v5137
        %v5146 = vmul.f32 %v5066, %v5137
        %v5147 = vmul.f32 %v5067, %v5137
        %v5148 = vmul.f32 %v5068, %v5137
        %v5149 = vmul.f32 %v5069, %v5137
        %v5150 = vmul.f32 %v5070, %v5137
        %v5151 = vmul.f32 %v5071, %v5137
        %v5152 = vmul.f32 %v5072, %v5137
        %v5153 = vmul.f32 %v5073, %v5137
        %v5154 = vsel %vm592, %v5139, -inf
        %v5155 = vmax.f32 %v5138, %v5154
        %5156 = vmax.xlane.f32.xlu0 %v5155
        %v5157 = vpop.xlane.xlu0 %5156
        %v5158 = vsel %vm592, %v5141, -inf
        %v5159 = vmax.f32 %v5140, %v5158
        %5160 = vmax.xlane.f32.xlu0 %v5159
        %v5161 = vpop.xlane.xlu0 %5160
        %v5162 = vsel %vm592, %v5143, -inf
        %v5163 = vmax.f32 %v5142, %v5162
        %5164 = vmax.xlane.f32.xlu0 %v5163
        %v5165 = vpop.xlane.xlu0 %5164
        %v5166 = vsel %vm592, %v5145, -inf
        %v5167 = vmax.f32 %v5144, %v5166
        %5168 = vmax.xlane.f32.xlu0 %v5167
        %v5169 = vpop.xlane.xlu0 %5168
        %v5170 = vsel %vm592, %v5147, -inf
        %v5171 = vmax.f32 %v5146, %v5170
        %5172 = vmax.xlane.f32.xlu0 %v5171
        %v5173 = vpop.xlane.xlu0 %5172
        %v5174 = vsel %vm592, %v5149, -inf
        %v5175 = vmax.f32 %v5148, %v5174
        %5176 = vmax.xlane.f32.xlu0 %v5175
        %v5177 = vpop.xlane.xlu0 %5176
        %v5178 = vsel %vm592, %v5151, -inf
        %v5179 = vmax.f32 %v5150, %v5178
        %5180 = vmax.xlane.f32.xlu0 %v5179
        %v5181 = vpop.xlane.xlu0 %5180
        %v5182 = vsel %vm592, %v5153, -inf
        %v5183 = vmax.f32 %v5152, %v5182
        %5184 = vmax.xlane.f32.xlu0 %v5183
        %v5185 = vpop.xlane.xlu0 %5184
        %v5186 = vsub.f32 %v5138, %v5157
        %v5187 = vsub.f32 %v5139, %v5157
        %v5188 = vsub.f32 %v5140, %v5161
        %v5189 = vsub.f32 %v5141, %v5161
        %v5190 = vsub.f32 %v5142, %v5165
        %v5191 = vsub.f32 %v5143, %v5165
        %v5192 = vsub.f32 %v5144, %v5169
        %v5193 = vsub.f32 %v5145, %v5169
        %v5194 = vsub.f32 %v5146, %v5173
        %v5195 = vsub.f32 %v5147, %v5173
        %v5196 = vsub.f32 %v5148, %v5177
        %v5197 = vsub.f32 %v5149, %v5177
        %v5198 = vsub.f32 %v5150, %v5181
        %v5199 = vsub.f32 %v5151, %v5181
        %v5200 = vsub.f32 %v5152, %v5185
        %v5201 = vsub.f32 %v5153, %v5185
        %v5202 = vmul.f32 %v5186, 1.442695
        %v5203 = vpow.pop %v5202
        %v5204 = vmul.f32 %v5187, 1.442695
        %v5205 = vpow.pop %v5204
        %v5206 = vmul.f32 %v5188, 1.442695
        %v5207 = vpow.pop %v5206
        %v5208 = vmul.f32 %v5189, 1.442695
        %v5209 = vpow.pop %v5208
        %v5210 = vmul.f32 %v5190, 1.442695
        %v5211 = vpow.pop %v5210
        %v5212 = vmul.f32 %v5191, 1.442695
        %v5213 = vpow.pop %v5212
        %v5214 = vmul.f32 %v5192, 1.442695
        %v5215 = vpow.pop %v5214
        %v5216 = vmul.f32 %v5193, 1.442695
        %v5217 = vpow.pop %v5216
        %v5218 = vmul.f32 %v5194, 1.442695
        %v5219 = vpow.pop %v5218
        %v5220 = vmul.f32 %v5195, 1.442695
        %v5221 = vpow.pop %v5220
        %v5222 = vmul.f32 %v5196, 1.442695
        %v5223 = vpow.pop %v5222
        %v5224 = vmul.f32 %v5197, 1.442695
        %v5225 = vpow.pop %v5224
        %v5226 = vmul.f32 %v5198, 1.442695
        %v5227 = vpow.pop %v5226
        %v5228 = vmul.f32 %v5199, 1.442695
        %v5229 = vpow.pop %v5228
        %v5230 = vmul.f32 %v5200, 1.442695
        %v5231 = vpow.pop %v5230
        %v5232 = vmul.f32 %v5201, 1.442695
        %v5233 = vpow.pop %v5232
        %v5234 = vsel %vm592, %v5205, 0.0
        %v5235 = vadd.f32 %v5203, %v5234
        %5236 = vadd.xlane.f32.xlu0 %v5235
        %v5237 = vpop.xlane.xlu0 %5236
        %v5238 = vsel %vm592, %v5209, 0.0
        %v5239 = vadd.f32 %v5207, %v5238
        %5240 = vadd.xlane.f32.xlu0 %v5239
        %v5241 = vpop.xlane.xlu0 %5240
        %v5242 = vsel %vm592, %v5213, 0.0
        %v5243 = vadd.f32 %v5211, %v5242
        %5244 = vadd.xlane.f32.xlu0 %v5243
        %v5245 = vpop.xlane.xlu0 %5244
        %v5246 = vsel %vm592, %v5217, 0.0
        %v5247 = vadd.f32 %v5215, %v5246
        %5248 = vadd.xlane.f32.xlu0 %v5247
        %v5249 = vpop.xlane.xlu0 %5248
        %v5250 = vsel %vm592, %v5221, 0.0
        %v5251 = vadd.f32 %v5219, %v5250
        %5252 = vadd.xlane.f32.xlu0 %v5251
        %v5253 = vpop.xlane.xlu0 %5252
        %v5254 = vsel %vm592, %v5225, 0.0
        %v5255 = vadd.f32 %v5223, %v5254
        %5256 = vadd.xlane.f32.xlu0 %v5255
        %v5257 = vpop.xlane.xlu0 %5256
        %v5258 = vsel %vm592, %v5229, 0.0
        %v5259 = vadd.f32 %v5227, %v5258
        %5260 = vadd.xlane.f32.xlu0 %v5259
        %v5261 = vpop.xlane.xlu0 %5260
        %v5262 = vsel %vm592, %v5233, 0.0
        %v5263 = vadd.f32 %v5231, %v5262
        %5264 = vadd.xlane.f32.xlu0 %v5263
        %v5265 = vpop.xlane.xlu0 %5264
        %v5266 = vrcp.pop %v5237
        %v5267 = vrcp.pop %v5241
        %v5268 = vrcp.pop %v5245
        %v5269 = vrcp.pop %v5249
        %v5270 = vrcp.pop %v5253
        %v5271 = vrcp.pop %v5257
        %v5272 = vrcp.pop %v5261
        %v5273 = vrcp.pop %v5265
        %v5274 = vmul.f32 %v5203, %v5266
        %v5275 = vmul.f32 %v5205, %v5266
        %v5276 = vmul.f32 %v5207, %v5267
        %v5277 = vmul.f32 %v5209, %v5267
        %v5278 = vmul.f32 %v5211, %v5268
        %v5279 = vmul.f32 %v5213, %v5268
        %v5280 = vmul.f32 %v5215, %v5269
        %v5281 = vmul.f32 %v5217, %v5269
        %v5282 = vmul.f32 %v5219, %v5270
        %v5283 = vmul.f32 %v5221, %v5270
        %v5284 = vmul.f32 %v5223, %v5271
        %v5285 = vmul.f32 %v5225, %v5271
        %v5286 = vmul.f32 %v5227, %v5272
        %v5287 = vmul.f32 %v5229, %v5272
        %v5288 = vmul.f32 %v5231, %v5273
        %v5289 = vmul.f32 %v5233, %v5273
        %v5290 = vpack.c.bf16 %v5276, %v5274
        %v5291 = vpack.c.bf16 %v5277, %v5275
        %v5292 = vpack.c.bf16 %v5280, %v5278
        %v5293 = vpack.c.bf16 %v5281, %v5279
        %v5294 = vpack.c.bf16 %v5284, %v5282
        %v5295 = vpack.c.bf16 %v5285, %v5283
        %v5296 = vpack.c.bf16 %v5288, %v5286
        %v5297 = vpack.c.bf16 %v5289, %v5287
        %v5299 = vsel %vm592, %v5291, 0
        %v5302 = vsel %vm592, %v5293, 0
        %v5305 = vsel %vm592, %v5295, 0
        %v5308 = vsel %vm592, %v5297, 0
        %5310 = vmatprep.subr.bf16.mxu0 %v4312
        %5311 = vmatpush1.bf16.xpose.msra.mxu0 %v2997
        %5312 = vmatprep.subr.bf16.mxu0 0
        %5313 = vmatpush1.bf16.xpose.msra.mxu0 0
        %5314 = vmatprep.subr.bf16.mxu0 0
        %5315 = vmatpush1.bf16.xpose.msra.mxu0 0
        %5316 = vmatprep.subr.bf16.mxu0 0
        %5317 = vmatpush1.bf16.xpose.msra.mxu0 0
        %5318 = vmatprep.subr.bf16.mxu0 0
        %5319 = vmatpush1.bf16.xpose.msra.mxu0 0
        %5320 = vmatprep.subr.bf16.mxu0 0
        %5321 = vmatpush1.bf16.xpose.msra.mxu0 0
        %5322 = vmatprep.subr.bf16.mxu0 0
        %5323 = vmatpush1.bf16.xpose.msra.mxu0 0
        %5324 = vmatprep.subr.bf16.mxu0 0
        %5325 = vmatpush1.bf16.xpose.msra.mxu0 0
        %5326 = vmatprep.subr.bf16.mxu0 0
        %5327 = vmatpush1.bf16.xpose.msra.mxu0 0
        %5328 = vmatprep.subr.bf16.mxu0 0
        %5329 = vmatpush1.bf16.xpose.msra.mxu0 0
        %5330 = vmatprep.subr.bf16.mxu0 0
        %5331 = vmatpush1.bf16.xpose.msra.mxu0 0
        %5332 = vmatprep.subr.bf16.mxu0 0
        %5333 = vmatpush1.bf16.xpose.msra.mxu0 0
        %5334 = vmatprep.subr.bf16.mxu0 0
        %5335 = vmatpush1.bf16.xpose.msra.mxu0 0
        %5336 = vmatprep.subr.bf16.mxu0 0
        %5337 = vmatpush1.bf16.xpose.msra.mxu0 0
        %5338 = vmatprep.subr.bf16.mxu0 0
        %5339 = vmatpush1.bf16.xpose.msra.mxu0 0
        %5340 = vmatprep.subr.bf16.mxu0 0
        %5341 = vmatpush1.bf16.xpose.msra.mxu0 0
        %5342 = vmatprep.mubr.bf16.mxu0 %v5299
        %5343 = vmatmul.mubr.bf16.gmra.mrb[0].mxu0 %v5290
        %v5344 = vpop.f32.mrb[0].mxu0
        %v5345 = vadd.f32 0.0, %v5344
        %v5346 = vpop.f32.mrb[0].mxu0
        %v5347 = vpop.f32.mrb[0].mxu0
        %v5348 = vadd.f32 0.0, %v5347
        %v5349 = vpop.f32.mrb[0].mxu0
        %5350 = vmatprep.mubr.bf16.mxu0 %v5302
        %5351 = vmatmul.mubr.bf16.gmra.mrb[0].mxu0 %v5292
        %v5352 = vpop.f32.mrb[0].mxu0
        %v5353 = vadd.f32 0.0, %v5352
        %v5354 = vpop.f32.mrb[0].mxu0
        %v5355 = vpop.f32.mrb[0].mxu0
        %v5356 = vadd.f32 0.0, %v5355
        %v5357 = vpop.f32.mrb[0].mxu0
        %5358 = vmatprep.mubr.bf16.mxu0 %v5305
        %5359 = vmatmul.mubr.bf16.gmra.mrb[0].mxu0 %v5294
        %v5360 = vpop.f32.mrb[0].mxu0
        %v5361 = vadd.f32 0.0, %v5360
        %v5362 = vpop.f32.mrb[0].mxu0
        %v5363 = vpop.f32.mrb[0].mxu0
        %v5364 = vadd.f32 0.0, %v5363
        %v5365 = vpop.f32.mrb[0].mxu0
        %5366 = vmatprep.mubr.bf16.mxu0 %v5308
        %5367 = vmatmul.mubr.bf16.gmra.mrb[0].mxu0 %v5296
        %v5368 = vpop.f32.mrb[0].mxu0
        %v5369 = vadd.f32 0.0, %v5368
        %v5370 = vpop.f32.mrb[0].mxu0
        %v5371 = vpop.f32.mrb[0].mxu0
        %v5372 = vadd.f32 0.0, %v5371
        %v5373 = vpop.f32.mrb[0].mxu0
        %5374 = vdwg.mxu0
        %v5376 = vsel %vm592, %v3978, 0
        %v5379 = vsel %vm592, %v3980, 0
        %v5382 = vsel %vm592, %v3982, 0
        %v5385 = vsel %vm592, %v3984, 0
        %5387 = vmatprep.subr.bf16.mxu0 %v4359
        %5388 = vmatpush1.bf16.xpose.msra.mxu0 %v2993
        %5389 = vmatprep.subr.bf16.mxu0 0
        %5390 = vmatpush1.bf16.xpose.msra.mxu0 0
        %5391 = vmatprep.subr.bf16.mxu0 0
        %5392 = vmatpush1.bf16.xpose.msra.mxu0 0
        %5393 = vmatprep.subr.bf16.mxu0 0
        %5394 = vmatpush1.bf16.xpose.msra.mxu0 0
        %5395 = vmatprep.subr.bf16.mxu0 0
        %5396 = vmatpush1.bf16.xpose.msra.mxu0 0
        %5397 = vmatprep.subr.bf16.mxu0 0
        %5398 = vmatpush1.bf16.xpose.msra.mxu0 0
        %5399 = vmatprep.subr.bf16.mxu0 0
        %5400 = vmatpush1.bf16.xpose.msra.mxu0 0
        %5401 = vmatprep.subr.bf16.mxu0 0
        %5402 = vmatpush1.bf16.xpose.msra.mxu0 0
        %5403 = vmatprep.subr.bf16.mxu0 0
        %5404 = vmatpush1.bf16.xpose.msra.mxu0 0
        %5405 = vmatprep.subr.bf16.mxu0 0
        %5406 = vmatpush1.bf16.xpose.msra.mxu0 0
        %5407 = vmatprep.subr.bf16.mxu0 0
        %5408 = vmatpush1.bf16.xpose.msra.mxu0 0
        %5409 = vmatprep.subr.bf16.mxu0 0
        %5410 = vmatpush1.bf16.xpose.msra.mxu0 0
        %5411 = vmatprep.subr.bf16.mxu0 0
        %5412 = vmatpush1.bf16.xpose.msra.mxu0 0
        %5413 = vmatprep.subr.bf16.mxu0 0
        %5414 = vmatpush1.bf16.xpose.msra.mxu0 0
        %5415 = vmatprep.subr.bf16.mxu0 0
        %5416 = vmatpush1.bf16.xpose.msra.mxu0 0
        %5417 = vmatprep.subr.bf16.mxu0 0
        %5418 = vmatpush1.bf16.xpose.msra.mxu0 0
        %5419 = vmatprep.mubr.bf16.mxu0 %v5376
        %5420 = vmatmul.mubr.bf16.gmra.mrb[0].mxu0 %v3977
        %v5421 = vpop.f32.mrb[0].mxu0
        %v5422 = vadd.f32 %v5345, %v5421
        %v5423 = vpop.f32.mrb[0].mxu0
        %v5424 = vpop.f32.mrb[0].mxu0
        %v5425 = vadd.f32 %v5348, %v5424
        %v5426 = vpop.f32.mrb[0].mxu0
        %5427 = vmatprep.mubr.bf16.mxu0 %v5379
        %5428 = vmatmul.mubr.bf16.gmra.mrb[0].mxu0 %v3979
        %v5429 = vpop.f32.mrb[0].mxu0
        %v5430 = vadd.f32 %v5353, %v5429
        %v5431 = vpop.f32.mrb[0].mxu0
        %v5432 = vpop.f32.mrb[0].mxu0
        %v5433 = vadd.f32 %v5356, %v5432
        %v5434 = vpop.f32.mrb[0].mxu0
        %5435 = vmatprep.mubr.bf16.mxu0 %v5382
        %5436 = vmatmul.mubr.bf16.gmra.mrb[0].mxu0 %v3981
        %v5437 = vpop.f32.mrb[0].mxu0
        %v5438 = vadd.f32 %v5361, %v5437
        %v5439 = vpop.f32.mrb[0].mxu0
        %v5440 = vpop.f32.mrb[0].mxu0
        %v5441 = vadd.f32 %v5364, %v5440
        %v5442 = vpop.f32.mrb[0].mxu0
        %5443 = vmatprep.mubr.bf16.mxu0 %v5385
        %5444 = vmatmul.mubr.bf16.gmra.mrb[0].mxu0 %v3983
        %v5445 = vpop.f32.mrb[0].mxu0
        %v5446 = vadd.f32 %v5369, %v5445
        %v5447 = vpop.f32.mrb[0].mxu0
        %v5448 = vpop.f32.mrb[0].mxu0
        %v5449 = vadd.f32 %v5372, %v5448
        %v5450 = vpop.f32.mrb[0].mxu0
        %5451 = vdwg.mxu0
        %5452 = vxpose.xlu0.c.b16.start [1/8] %v1694, 128
        %5453 = vxpose.xlu0.c.b16.cont [2/8] 0, 128
        %5454 = vxpose.xlu0.c.b16.cont [3/8] 0, 128
        %5455 = vxpose.xlu0.c.b16.cont [4/8] 0, 128
        %5456 = vxpose.xlu0.c.b16.cont [5/8] 0, 128
        %5457 = vxpose.xlu0.c.b16.cont [6/8] 0, 128
        %5458 = vxpose.xlu0.c.b16.cont [7/8] 0, 128
        %5459 = vxpose.xlu0.c.b16.end [8/8] 0, 128
        %v5460 = vpop.trf.xlu0
        %v5461 = vpop.trf.xlu0
        %v5462 = vpop.trf.xlu0
        %v5463 = vpop.trf.xlu0
        %v5464 = vpop.trf.xlu0
        %v5465 = vpop.trf.xlu0
        %v5466 = vpop.trf.xlu0
        %v5467 = vpop.trf.xlu0
        %5468 = vxpose.xlu0.c.b16.start [1/8] %v1695, 128
        %5469 = vxpose.xlu0.c.b16.cont [2/8] 0, 128
        %5470 = vxpose.xlu0.c.b16.cont [3/8] 0, 128
        %5471 = vxpose.xlu0.c.b16.cont [4/8] 0, 128
        %5472 = vxpose.xlu0.c.b16.cont [5/8] 0, 128
        %5473 = vxpose.xlu0.c.b16.cont [6/8] 0, 128
        %5474 = vxpose.xlu0.c.b16.cont [7/8] 0, 128
        %5475 = vxpose.xlu0.c.b16.end [8/8] 0, 128
        %v5476 = vpop.trf.xlu0
        %v5477 = vpop.trf.xlu0
        %v5478 = vpop.trf.xlu0
        %v5479 = vpop.trf.xlu0
        %v5480 = vpop.trf.xlu0
        %v5481 = vpop.trf.xlu0
        %v5482 = vpop.trf.xlu0
        %v5483 = vpop.trf.xlu0
        %v5485 = vsel %vm754, %v5460, 0
        %v5488 = vsel %vm754, %v5461, 0
        %v5491 = vsel %vm754, %v5462, 0
        %v5494 = vsel %vm754, %v5463, 0
        %v5497 = vsel %vm754, %v5464, 0
        %v5500 = vsel %vm754, %v5465, 0
        %v5503 = vsel %vm754, %v5466, 0
        %v5506 = vsel %vm754, %v5467, 0
        %v5509 = vsel %vm754, %v5476, 0
        %v5512 = vsel %vm754, %v5477, 0
        %v5515 = vsel %vm3069, %v2999, 0
        %v5518 = vsel %vm3069, %v3000, 0
        %5520 = vmatprep.subr.bf16.mxu0 %v5518
        %5521 = vmatpush1.bf16.msra.mxu0 %v5515
        %5522 = vmatprep.subr.bf16.mxu0 0
        %5523 = vmatpush1.bf16.msra.mxu0 0
        %5524 = vmatprep.subr.bf16.mxu0 0
        %5525 = vmatpush1.bf16.msra.mxu0 0
        %5526 = vmatprep.subr.bf16.mxu0 0
        %5527 = vmatpush1.bf16.msra.mxu0 0
        %5528 = vmatprep.subr.bf16.mxu0 0
        %5529 = vmatpush1.bf16.msra.mxu0 0
        %5530 = vmatprep.subr.bf16.mxu0 0
        %5531 = vmatpush1.bf16.msra.mxu0 0
        %5532 = vmatprep.subr.bf16.mxu0 0
        %5533 = vmatpush1.bf16.msra.mxu0 0
        %5534 = vmatprep.subr.bf16.mxu0 0
        %5535 = vmatpush1.bf16.msra.mxu0 0
        %5536 = vmatprep.subr.bf16.mxu0 0
        %5537 = vmatpush1.bf16.msra.mxu0 0
        %5538 = vmatprep.subr.bf16.mxu0 0
        %5539 = vmatpush1.bf16.msra.mxu0 0
        %5540 = vmatprep.subr.bf16.mxu0 0
        %5541 = vmatpush1.bf16.msra.mxu0 0
        %5542 = vmatprep.subr.bf16.mxu0 0
        %5543 = vmatpush1.bf16.msra.mxu0 0
        %5544 = vmatprep.subr.bf16.mxu0 0
        %5545 = vmatpush1.bf16.msra.mxu0 0
        %5546 = vmatprep.subr.bf16.mxu0 0
        %5547 = vmatpush1.bf16.msra.mxu0 0
        %5548 = vmatprep.subr.bf16.mxu0 0
        %5549 = vmatpush1.bf16.msra.mxu0 0
        %5550 = vmatprep.subr.bf16.mxu0 0
        %5551 = vmatpush1.bf16.msra.mxu0 0
        %5552 = vmatprep.mubr.bf16.mxu0 0
        %5553 = vmatmul.mubr.bf16.gmra.mrb[0].mxu0 %v5485
        %v5554 = vpop.f32.mrb[0].mxu0
        %v5555 = vadd.f32 0.0, %v5554
        %v5556 = vpop.f32.mrb[0].mxu0
        %v5557 = vadd.f32 0.0, %v5556
        %v5558 = vpop.f32.mrb[0].mxu0
        %v5559 = vadd.f32 0.0, %v5558
        %v5560 = vpop.f32.mrb[0].mxu0
        %v5561 = vadd.f32 0.0, %v5560
        %5562 = vmatprep.mubr.bf16.mxu0 0
        %5563 = vmatmul.mubr.bf16.gmra.mrb[0].mxu0 %v5488
        %v5564 = vpop.f32.mrb[0].mxu0
        %v5565 = vadd.f32 0.0, %v5564
        %v5566 = vpop.f32.mrb[0].mxu0
        %v5567 = vadd.f32 0.0, %v5566
        %v5568 = vpop.f32.mrb[0].mxu0
        %v5569 = vadd.f32 0.0, %v5568
        %v5570 = vpop.f32.mrb[0].mxu0
        %v5571 = vadd.f32 0.0, %v5570
        %5572 = vmatprep.mubr.bf16.mxu0 0
        %5573 = vmatmul.mubr.bf16.gmra.mrb[0].mxu0 %v5491
        %v5574 = vpop.f32.mrb[0].mxu0
        %v5575 = vadd.f32 0.0, %v5574
        %v5576 = vpop.f32.mrb[0].mxu0
        %v5577 = vadd.f32 0.0, %v5576
        %v5578 = vpop.f32.mrb[0].mxu0
        %v5579 = vadd.f32 0.0, %v5578
        %v5580 = vpop.f32.mrb[0].mxu0
        %v5581 = vadd.f32 0.0, %v5580
        %5582 = vmatprep.mubr.bf16.mxu0 0
        %5583 = vmatmul.mubr.bf16.gmra.mrb[0].mxu0 %v5494
        %v5584 = vpop.f32.mrb[0].mxu0
        %v5585 = vadd.f32 0.0, %v5584
        %v5586 = vpop.f32.mrb[0].mxu0
        %v5587 = vadd.f32 0.0, %v5586
        %v5588 = vpop.f32.mrb[0].mxu0
        %v5589 = vadd.f32 0.0, %v5588
        %v5590 = vpop.f32.mrb[0].mxu0
        %v5591 = vadd.f32 0.0, %v5590
        %5592 = vmatprep.mubr.bf16.mxu0 0
        %5593 = vmatmul.mubr.bf16.gmra.mrb[0].mxu0 %v5497
        %v5594 = vpop.f32.mrb[0].mxu0
        %v5595 = vadd.f32 0.0, %v5594
        %v5596 = vpop.f32.mrb[0].mxu0
        %v5597 = vadd.f32 0.0, %v5596
        %v5598 = vpop.f32.mrb[0].mxu0
        %v5599 = vadd.f32 0.0, %v5598
        %v5600 = vpop.f32.mrb[0].mxu0
        %v5601 = vadd.f32 0.0, %v5600
        %5602 = vmatprep.mubr.bf16.mxu0 0
        %5603 = vmatmul.mubr.bf16.gmra.mrb[0].mxu0 %v5500
        %v5604 = vpop.f32.mrb[0].mxu0
        %v5605 = vadd.f32 0.0, %v5604
        %v5606 = vpop.f32.mrb[0].mxu0
        %v5607 = vadd.f32 0.0, %v5606
        %v5608 = vpop.f32.mrb[0].mxu0
        %v5609 = vadd.f32 0.0, %v5608
        %v5610 = vpop.f32.mrb[0].mxu0
        %v5611 = vadd.f32 0.0, %v5610
        %5612 = vmatprep.mubr.bf16.mxu0 0
        %5613 = vmatmul.mubr.bf16.gmra.mrb[0].mxu0 %v5503
        %v5614 = vpop.f32.mrb[0].mxu0
        %v5615 = vadd.f32 0.0, %v5614
        %v5616 = vpop.f32.mrb[0].mxu0
        %v5617 = vadd.f32 0.0, %v5616
        %v5618 = vpop.f32.mrb[0].mxu0
        %v5619 = vadd.f32 0.0, %v5618
        %v5620 = vpop.f32.mrb[0].mxu0
        %v5621 = vadd.f32 0.0, %v5620
        %5622 = vmatprep.mubr.bf16.mxu0 0
        %5623 = vmatmul.mubr.bf16.gmra.mrb[0].mxu0 %v5506
        %v5624 = vpop.f32.mrb[0].mxu0
        %v5625 = vadd.f32 0.0, %v5624
        %v5626 = vpop.f32.mrb[0].mxu0
        %v5627 = vadd.f32 0.0, %v5626
        %v5628 = vpop.f32.mrb[0].mxu0
        %v5629 = vadd.f32 0.0, %v5628
        %v5630 = vpop.f32.mrb[0].mxu0
        %v5631 = vadd.f32 0.0, %v5630
        %5632 = vmatprep.mubr.bf16.mxu0 0
        %5633 = vmatmul.mubr.bf16.gmra.mrb[0].mxu0 %v5509
        %v5634 = vpop.f32.mrb[0].mxu0
        %v5635 = vadd.f32 0.0, %v5634
        %v5636 = vpop.f32.mrb[0].mxu0
        %v5637 = vadd.f32 0.0, %v5636
        %v5638 = vpop.f32.mrb[0].mxu0
        %v5639 = vadd.f32 0.0, %v5638
        %v5640 = vpop.f32.mrb[0].mxu0
        %v5641 = vadd.f32 0.0, %v5640
        %5642 = vmatprep.mubr.bf16.mxu0 0
        %5643 = vmatmul.mubr.bf16.gmra.mrb[0].mxu0 %v5512
        %v5644 = vpop.f32.mrb[0].mxu0
        %v5645 = vadd.f32 0.0, %v5644
        %v5646 = vpop.f32.mrb[0].mxu0
        %v5647 = vadd.f32 0.0, %v5646
        %v5648 = vpop.f32.mrb[0].mxu0
        %v5649 = vadd.f32 0.0, %v5648
        %v5650 = vpop.f32.mrb[0].mxu0
        %v5651 = vadd.f32 0.0, %v5650
        %5652 = vdwg.mxu0
        %v5653 = vmul.f32 %v5555, 0.07905694
        %v5654 = vmul.f32 %v5557, 0.07905694
        %v5655 = vmul.f32 %v5559, 0.07905694
        %v5656 = vmul.f32 %v5561, 0.07905694
        %v5657 = vmul.f32 %v5565, 0.07905694
        %v5658 = vmul.f32 %v5567, 0.07905694
        %v5659 = vmul.f32 %v5569, 0.07905694
        %v5660 = vmul.f32 %v5571, 0.07905694
        %v5661 = vmul.f32 %v5575, 0.07905694
        %v5662 = vmul.f32 %v5577, 0.07905694
        %v5663 = vmul.f32 %v5579, 0.07905694
        %v5664 = vmul.f32 %v5581, 0.07905694
        %v5665 = vmul.f32 %v5585, 0.07905694
        %v5666 = vmul.f32 %v5587, 0.07905694
        %v5667 = vmul.f32 %v5589, 0.07905694
        %v5668 = vmul.f32 %v5591, 0.07905694
        %v5669 = vmul.f32 %v5595, 0.07905694
        %v5670 = vmul.f32 %v5597, 0.07905694
        %v5671 = vmul.f32 %v5599, 0.07905694
        %v5672 = vmul.f32 %v5601, 0.07905694
        %v5673 = vmul.f32 %v5605, 0.07905694
        %v5674 = vmul.f32 %v5607, 0.07905694
        %v5675 = vmul.f32 %v5609, 0.07905694
        %v5676 = vmul.f32 %v5611, 0.07905694
        %v5677 = vmul.f32 %v5615, 0.07905694
        %v5678 = vmul.f32 %v5617, 0.07905694
        %v5679 = vmul.f32 %v5619, 0.07905694
        %v5680 = vmul.f32 %v5621, 0.07905694
        %v5681 = vmul.f32 %v5625, 0.07905694
        %v5682 = vmul.f32 %v5627, 0.07905694
        %v5683 = vmul.f32 %v5629, 0.07905694
        %v5684 = vmul.f32 %v5631, 0.07905694
        %v5685 = vmul.f32 %v5635, 0.07905694
        %v5686 = vmul.f32 %v5637, 0.07905694
        %v5687 = vmul.f32 %v5639, 0.07905694
        %v5688 = vmul.f32 %v5641, 0.07905694
        %v5689 = vmul.f32 %v5645, 0.07905694
        %v5690 = vmul.f32 %v5647, 0.07905694
        %v5691 = vmul.f32 %v5649, 0.07905694
        %v5692 = vmul.f32 %v5651, 0.07905694
        %v5693 = vsel %vm592, %v5654, 0.0
        %v5694 = vadd.f32 %v5653, %v5693
        %5695 = vadd.xlane.f32.xlu0 %v5694
        %v5696 = vpop.xlane.xlu0 %5695
        %v5697 = vsel %vm592, %v5656, 0.0
        %v5698 = vadd.f32 %v5655, %v5697
        %5699 = vadd.xlane.f32.xlu0 %v5698
        %v5700 = vpop.xlane.xlu0 %5699
        %v5701 = vadd.f32 %v5696, %v5700
        %v5702 = vrot.slane %v5701, 4
        %v5703 = vadd.f32 %v5701, %v5702
        %v5704 = vrot.slane %v5703, 2
        %v5705 = vadd.f32 %v5703, %v5704
        %v5706 = vrot.slane %v5705, 1
        %v5707 = vadd.f32 %v5705, %v5706
        %v5708 = vmul.f32 %v5707, 0.000390625
        %v5709 = vsub.f32 %v5653, %v5708
        %v5710 = vsub.f32 %v5654, %v5708
        %v5711 = vsub.f32 %v5655, %v5708
        %v5712 = vsub.f32 %v5656, %v5708
        %v5713 = vmul.f32 %v5709, %v5709
        %v5714 = vmul.f32 %v5710, %v5710
        %v5715 = vmul.f32 %v5711, %v5711
        %v5716 = vmul.f32 %v5712, %v5712
        %v5717 = vsel %vm592, %v5714, 0.0
        %v5718 = vadd.f32 %v5713, %v5717
        %5719 = vadd.xlane.f32.xlu0 %v5718
        %v5720 = vpop.xlane.xlu0 %5719
        %v5721 = vsel %vm592, %v5716, 0.0
        %v5722 = vadd.f32 %v5715, %v5721
        %5723 = vadd.xlane.f32.xlu0 %v5722
        %v5724 = vpop.xlane.xlu0 %5723
        %v5725 = vadd.f32 %v5720, %v5724
        %v5726 = vrot.slane %v5725, 4
        %v5727 = vadd.f32 %v5725, %v5726
        %v5728 = vrot.slane %v5727, 2
        %v5729 = vadd.f32 %v5727, %v5728
        %v5730 = vrot.slane %v5729, 1
        %v5731 = vadd.f32 %v5729, %v5730
        %v5732 = vmul.f32 %v5731, 0.000390625
        %v5733 = vadd.f32 %v5732, 1e-05
        %v5734 = vrsqrt.pop %v5733
        %v5735 = vmul.f32 %v5709, %v5734
        %v5736 = vmul.f32 %v5710, %v5734
        %v5737 = vmul.f32 %v5711, %v5734
        %v5738 = vmul.f32 %v5712, %v5734
        %v5739 = vsel %vm592, %v5736, -inf
        %v5740 = vmax.f32 %v5735, %v5739
        %5741 = vmax.xlane.f32.xlu0 %v5740
        %v5742 = vpop.xlane.xlu0 %5741
        %v5743 = vsel %vm592, %v5738, -inf
        %v5744 = vmax.f32 %v5737, %v5743
        %5745 = vmax.xlane.f32.xlu0 %v5744
        %v5746 = vpop.xlane.xlu0 %5745
        %v5747 = vsub.f32 %v5735, %v5742
        %v5748 = vsub.f32 %v5736, %v5742
        %v5749 = vsub.f32 %v5737, %v5746
        %v5750 = vsub.f32 %v5738, %v5746
        %v5751 = vmul.f32 %v5747, 1.442695
        %v5752 = vpow.pop %v5751
        %v5753 = vmul.f32 %v5748, 1.442695
        %v5754 = vpow.pop %v5753
        %v5755 = vmul.f32 %v5749, 1.442695
        %v5756 = vpow.pop %v5755
        %v5757 = vmul.f32 %v5750, 1.442695
        %v5758 = vpow.pop %v5757
        %v5759 = vsel %vm592, %v5754, 0.0
        %v5760 = vadd.f32 %v5752, %v5759
        %5761 = vadd.xlane.f32.xlu0 %v5760
        %v5762 = vpop.xlane.xlu0 %5761
        %v5763 = vsel %vm592, %v5758, 0.0
        %v5764 = vadd.f32 %v5756, %v5763
        %5765 = vadd.xlane.f32.xlu0 %v5764
        %v5766 = vpop.xlane.xlu0 %5765
        %v5767 = vrcp.pop %v5762
        %v5768 = vrcp.pop %v5766
        %v5769 = vmul.f32 %v5752, %v5767
        %v5770 = vmul.f32 %v5754, %v5767
        %v5771 = vmul.f32 %v5756, %v5768
        %v5772 = vmul.f32 %v5758, %v5768
        %v5773 = vpack.c.bf16 %v5771, %v5769
        %v5774 = vpack.c.bf16 %v5772, %v5770
        %v5776 = vsel %vm592, %v5774, 0
        %v5779 = vsel %vm592, %v3002, 0
        %5781 = vmatprep.subr.bf16.mxu0 %v5779
        %5782 = vmatpush1.bf16.xpose.msra.mxu0 %v3001
        %5783 = vmatprep.subr.bf16.mxu0 0
        %5784 = vmatpush1.bf16.xpose.msra.mxu0 0
        %5785 = vmatprep.subr.bf16.mxu0 0
        %5786 = vmatpush1.bf16.xpose.msra.mxu0 0
        %5787 = vmatprep.subr.bf16.mxu0 0
        %5788 = vmatpush1.bf16.xpose.msra.mxu0 0
        %5789 = vmatprep.subr.bf16.mxu0 0
        %5790 = vmatpush1.bf16.xpose.msra.mxu0 0
        %5791 = vmatprep.subr.bf16.mxu0 0
        %5792 = vmatpush1.bf16.xpose.msra.mxu0 0
        %5793 = vmatprep.subr.bf16.mxu0 0
        %5794 = vmatpush1.bf16.xpose.msra.mxu0 0
        %5795 = vmatprep.subr.bf16.mxu0 0
        %5796 = vmatpush1.bf16.xpose.msra.mxu0 0
        %5797 = vmatprep.subr.bf16.mxu0 0
        %5798 = vmatpush1.bf16.xpose.msra.mxu0 0
        %5799 = vmatprep.subr.bf16.mxu0 0
        %5800 = vmatpush1.bf16.xpose.msra.mxu0 0
        %5801 = vmatprep.subr.bf16.mxu0 0
        %5802 = vmatpush1.bf16.xpose.msra.mxu0 0
        %5803 = vmatprep.subr.bf16.mxu0 0
        %5804 = vmatpush1.bf16.xpose.msra.mxu0 0
        %5805 = vmatprep.subr.bf16.mxu0 0
        %5806 = vmatpush1.bf16.xpose.msra.mxu0 0
        %5807 = vmatprep.subr.bf16.mxu0 0
        %5808 = vmatpush1.bf16.xpose.msra.mxu0 0
        %5809 = vmatprep.subr.bf16.mxu0 0
        %5810 = vmatpush1.bf16.xpose.msra.mxu0 0
        %5811 = vmatprep.subr.bf16.mxu0 0
        %5812 = vmatpush1.bf16.xpose.msra.mxu0 0
        %5813 = vmatprep.mubr.bf16.mxu0 %v5776
        %5814 = vmatmul.mubr.bf16.gmra.mrb[0].mxu0 %v5773
        %v5815 = vpop.f32.mrb[0].mxu0
        %v5816 = vadd.f32 0.0, %v5815
        %v5817 = vpop.f32.mrb[0].mxu0
        %v5818 = vpop.f32.mrb[0].mxu0
        %v5819 = vadd.f32 0.0, %v5818
        %v5820 = vpop.f32.mrb[0].mxu0
        %5821 = vdwg.mxu0
        %v5822 = vadd.f32 %v4396, %v5816
        %v5823 = vadd.f32 %v4399, %v5819
        %v5824 = vsel %vm592, %v5658, 0.0
        %v5825 = vadd.f32 %v5657, %v5824
        %5826 = vadd.xlane.f32.xlu0 %v5825
        %v5827 = vpop.xlane.xlu0 %5826
        %v5828 = vsel %vm592, %v5660, 0.0
        %v5829 = vadd.f32 %v5659, %v5828
        %5830 = vadd.xlane.f32.xlu0 %v5829
        %v5831 = vpop.xlane.xlu0 %5830
        %v5832 = vsel %vm592, %v5662, 0.0
        %v5833 = vadd.f32 %v5661, %v5832
        %5834 = vadd.xlane.f32.xlu0 %v5833
        %v5835 = vpop.xlane.xlu0 %5834
        %v5836 = vsel %vm592, %v5664, 0.0
        %v5837 = vadd.f32 %v5663, %v5836
        %5838 = vadd.xlane.f32.xlu0 %v5837
        %v5839 = vpop.xlane.xlu0 %5838
        %v5840 = vadd.f32 %v5827, %v5831
        %v5841 = vadd.f32 %v5840, %v5835
        %v5842 = vadd.f32 %v5841, %v5839
        %v5843 = vrot.slane %v5842, 4
        %v5844 = vadd.f32 %v5842, %v5843
        %v5845 = vrot.slane %v5844, 2
        %v5846 = vadd.f32 %v5844, %v5845
        %v5847 = vrot.slane %v5846, 1
        %v5848 = vadd.f32 %v5846, %v5847
        %v5849 = vmul.f32 %v5848, 0.0001953125
        %v5850 = vsub.f32 %v5657, %v5849
        %v5851 = vsub.f32 %v5658, %v5849
        %v5852 = vsub.f32 %v5659, %v5849
        %v5853 = vsub.f32 %v5660, %v5849
        %v5854 = vsub.f32 %v5661, %v5849
        %v5855 = vsub.f32 %v5662, %v5849
        %v5856 = vsub.f32 %v5663, %v5849
        %v5857 = vsub.f32 %v5664, %v5849
        %v5858 = vmul.f32 %v5850, %v5850
        %v5859 = vmul.f32 %v5851, %v5851
        %v5860 = vmul.f32 %v5852, %v5852
        %v5861 = vmul.f32 %v5853, %v5853
        %v5862 = vmul.f32 %v5854, %v5854
        %v5863 = vmul.f32 %v5855, %v5855
        %v5864 = vmul.f32 %v5856, %v5856
        %v5865 = vmul.f32 %v5857, %v5857
        %v5866 = vsel %vm592, %v5859, 0.0
        %v5867 = vadd.f32 %v5858, %v5866
        %5868 = vadd.xlane.f32.xlu0 %v5867
        %v5869 = vpop.xlane.xlu0 %5868
        %v5870 = vsel %vm592, %v5861, 0.0
        %v5871 = vadd.f32 %v5860, %v5870
        %5872 = vadd.xlane.f32.xlu0 %v5871
        %v5873 = vpop.xlane.xlu0 %5872
        %v5874 = vsel %vm592, %v5863, 0.0
        %v5875 = vadd.f32 %v5862, %v5874
        %5876 = vadd.xlane.f32.xlu0 %v5875
        %v5877 = vpop.xlane.xlu0 %5876
        %v5878 = vsel %vm592, %v5865, 0.0
        %v5879 = vadd.f32 %v5864, %v5878
        %5880 = vadd.xlane.f32.xlu0 %v5879
        %v5881 = vpop.xlane.xlu0 %5880
        %v5882 = vadd.f32 %v5869, %v5873
        %v5883 = vadd.f32 %v5882, %v5877
        %v5884 = vadd.f32 %v5883, %v5881
        %v5885 = vrot.slane %v5884, 4
        %v5886 = vadd.f32 %v5884, %v5885
        %v5887 = vrot.slane %v5886, 2
        %v5888 = vadd.f32 %v5886, %v5887
        %v5889 = vrot.slane %v5888, 1
        %v5890 = vadd.f32 %v5888, %v5889
        %v5891 = vmul.f32 %v5890, 0.0001953125
        %v5892 = vadd.f32 %v5891, 1e-05
        %v5893 = vrsqrt.pop %v5892
        %v5894 = vmul.f32 %v5850, %v5893
        %v5895 = vmul.f32 %v5851, %v5893
        %v5896 = vmul.f32 %v5852, %v5893
        %v5897 = vmul.f32 %v5853, %v5893
        %v5898 = vmul.f32 %v5854, %v5893
        %v5899 = vmul.f32 %v5855, %v5893
        %v5900 = vmul.f32 %v5856, %v5893
        %v5901 = vmul.f32 %v5857, %v5893
        %v5902 = vsel %vm592, %v5895, -inf
        %v5903 = vmax.f32 %v5894, %v5902
        %5904 = vmax.xlane.f32.xlu0 %v5903
        %v5905 = vpop.xlane.xlu0 %5904
        %v5906 = vsel %vm592, %v5897, -inf
        %v5907 = vmax.f32 %v5896, %v5906
        %5908 = vmax.xlane.f32.xlu0 %v5907
        %v5909 = vpop.xlane.xlu0 %5908
        %v5910 = vsel %vm592, %v5899, -inf
        %v5911 = vmax.f32 %v5898, %v5910
        %5912 = vmax.xlane.f32.xlu0 %v5911
        %v5913 = vpop.xlane.xlu0 %5912
        %v5914 = vsel %vm592, %v5901, -inf
        %v5915 = vmax.f32 %v5900, %v5914
        %5916 = vmax.xlane.f32.xlu0 %v5915
        %v5917 = vpop.xlane.xlu0 %5916
        %v5918 = vsub.f32 %v5894, %v5905
        %v5919 = vsub.f32 %v5895, %v5905
        %v5920 = vsub.f32 %v5896, %v5909
        %v5921 = vsub.f32 %v5897, %v5909
        %v5922 = vsub.f32 %v5898, %v5913
        %v5923 = vsub.f32 %v5899, %v5913
        %v5924 = vsub.f32 %v5900, %v5917
        %v5925 = vsub.f32 %v5901, %v5917
        %v5926 = vmul.f32 %v5918, 1.442695
        %v5927 = vpow.pop %v5926
        %v5928 = vmul.f32 %v5919, 1.442695
        %v5929 = vpow.pop %v5928
        %v5930 = vmul.f32 %v5920, 1.442695
        %v5931 = vpow.pop %v5930
        %v5932 = vmul.f32 %v5921, 1.442695
        %v5933 = vpow.pop %v5932
        %v5934 = vmul.f32 %v5922, 1.442695
        %v5935 = vpow.pop %v5934
        %v5936 = vmul.f32 %v5923, 1.442695
        %v5937 = vpow.pop %v5936
        %v5938 = vmul.f32 %v5924, 1.442695
        %v5939 = vpow.pop %v5938
        %v5940 = vmul.f32 %v5925, 1.442695
        %v5941 = vpow.pop %v5940
        %v5942 = vsel %vm592, %v5929, 0.0
        %v5943 = vadd.f32 %v5927, %v5942
        %5944 = vadd.xlane.f32.xlu0 %v5943
        %v5945 = vpop.xlane.xlu0 %5944
        %v5946 = vsel %vm592, %v5933, 0.0
        %v5947 = vadd.f32 %v5931, %v5946
        %5948 = vadd.xlane.f32.xlu0 %v5947
        %v5949 = vpop.xlane.xlu0 %5948
        %v5950 = vsel %vm592, %v5937, 0.0
        %v5951 = vadd.f32 %v5935, %v5950
        %5952 = vadd.xlane.f32.xlu0 %v5951
        %v5953 = vpop.xlane.xlu0 %5952
        %v5954 = vsel %vm592, %v5941, 0.0
        %v5955 = vadd.f32 %v5939, %v5954
        %5956 = vadd.xlane.f32.xlu0 %v5955
        %v5957 = vpop.xlane.xlu0 %5956
        %v5958 = vrcp.pop %v5945
        %v5959 = vrcp.pop %v5949
        %v5960 = vrcp.pop %v5953
        %v5961 = vrcp.pop %v5957
        %v5962 = vmul.f32 %v5927, %v5958
        %v5963 = vmul.f32 %v5929, %v5958
        %v5964 = vmul.f32 %v5931, %v5959
        %v5965 = vmul.f32 %v5933, %v5959
        %v5966 = vmul.f32 %v5935, %v5960
        %v5967 = vmul.f32 %v5937, %v5960
        %v5968 = vmul.f32 %v5939, %v5961
        %v5969 = vmul.f32 %v5941, %v5961
        %v5970 = vpack.c.bf16 %v5964, %v5962
        %v5971 = vpack.c.bf16 %v5965, %v5963
        %v5972 = vpack.c.bf16 %v5968, %v5966
        %v5973 = vpack.c.bf16 %v5969, %v5967
        %v5975 = vsel %vm592, %v5971, 0
        %v5978 = vsel %vm592, %v5973, 0
        %5980 = vmatprep.subr.bf16.mxu0 %v5779
        %5981 = vmatpush1.bf16.xpose.msra.mxu0 %v3001
        %5982 = vmatprep.subr.bf16.mxu0 0
        %5983 = vmatpush1.bf16.xpose.msra.mxu0 0
        %5984 = vmatprep.subr.bf16.mxu0 0
        %5985 = vmatpush1.bf16.xpose.msra.mxu0 0
        %5986 = vmatprep.subr.bf16.mxu0 0
        %5987 = vmatpush1.bf16.xpose.msra.mxu0 0
        %5988 = vmatprep.subr.bf16.mxu0 0
        %5989 = vmatpush1.bf16.xpose.msra.mxu0 0
        %5990 = vmatprep.subr.bf16.mxu0 0
        %5991 = vmatpush1.bf16.xpose.msra.mxu0 0
        %5992 = vmatprep.subr.bf16.mxu0 0
        %5993 = vmatpush1.bf16.xpose.msra.mxu0 0
        %5994 = vmatprep.subr.bf16.mxu0 0
        %5995 = vmatpush1.bf16.xpose.msra.mxu0 0
        %5996 = vmatprep.subr.bf16.mxu0 0
        %5997 = vmatpush1.bf16.xpose.msra.mxu0 0
        %5998 = vmatprep.subr.bf16.mxu0 0
        %5999 = vmatpush1.bf16.xpose.msra.mxu0 0
        %6000 = vmatprep.subr.bf16.mxu0 0
        %6001 = vmatpush1.bf16.xpose.msra.mxu0 0
        %6002 = vmatprep.subr.bf16.mxu0 0
        %6003 = vmatpush1.bf16.xpose.msra.mxu0 0
        %6004 = vmatprep.subr.bf16.mxu0 0
        %6005 = vmatpush1.bf16.xpose.msra.mxu0 0
        %6006 = vmatprep.subr.bf16.mxu0 0
        %6007 = vmatpush1.bf16.xpose.msra.mxu0 0
        %6008 = vmatprep.subr.bf16.mxu0 0
        %6009 = vmatpush1.bf16.xpose.msra.mxu0 0
        %6010 = vmatprep.subr.bf16.mxu0 0
        %6011 = vmatpush1.bf16.xpose.msra.mxu0 0
        %6012 = vmatprep.mubr.bf16.mxu0 %v5975
        %6013 = vmatmul.mubr.bf16.gmra.mrb[0].mxu0 %v5970
        %v6014 = vpop.f32.mrb[0].mxu0
        %v6015 = vadd.f32 0.0, %v6014
        %v6016 = vpop.f32.mrb[0].mxu0
        %v6017 = vpop.f32.mrb[0].mxu0
        %v6018 = vadd.f32 0.0, %v6017
        %v6019 = vpop.f32.mrb[0].mxu0
        %6020 = vmatprep.mubr.bf16.mxu0 %v5978
        %6021 = vmatmul.mubr.bf16.gmra.mrb[0].mxu0 %v5972
        %v6022 = vpop.f32.mrb[0].mxu0
        %v6023 = vadd.f32 0.0, %v6022
        %v6024 = vpop.f32.mrb[0].mxu0
        %v6025 = vpop.f32.mrb[0].mxu0
        %v6026 = vadd.f32 0.0, %v6025
        %v6027 = vpop.f32.mrb[0].mxu0
        %6028 = vdwg.mxu0
        %v6029 = vadd.f32 %v4648, %v6015
        %v6030 = vadd.f32 %v4651, %v6018
        %v6031 = vadd.f32 %v4656, %v6023
        %v6032 = vadd.f32 %v4659, %v6026
        %v6033 = vsel %vm592, %v5666, 0.0
        %v6034 = vadd.f32 %v5665, %v6033
        %6035 = vadd.xlane.f32.xlu0 %v6034
        %v6036 = vpop.xlane.xlu0 %6035
        %v6037 = vsel %vm592, %v5668, 0.0
        %v6038 = vadd.f32 %v5667, %v6037
        %6039 = vadd.xlane.f32.xlu0 %v6038
        %v6040 = vpop.xlane.xlu0 %6039
        %v6041 = vsel %vm592, %v5670, 0.0
        %v6042 = vadd.f32 %v5669, %v6041
        %6043 = vadd.xlane.f32.xlu0 %v6042
        %v6044 = vpop.xlane.xlu0 %6043
        %v6045 = vsel %vm592, %v5672, 0.0
        %v6046 = vadd.f32 %v5671, %v6045
        %6047 = vadd.xlane.f32.xlu0 %v6046
        %v6048 = vpop.xlane.xlu0 %6047
        %v6049 = vsel %vm592, %v5674, 0.0
        %v6050 = vadd.f32 %v5673, %v6049
        %6051 = vadd.xlane.f32.xlu0 %v6050
        %v6052 = vpop.xlane.xlu0 %6051
        %v6053 = vsel %vm592, %v5676, 0.0
        %v6054 = vadd.f32 %v5675, %v6053
        %6055 = vadd.xlane.f32.xlu0 %v6054
        %v6056 = vpop.xlane.xlu0 %6055
        %v6057 = vadd.f32 %v6036, %v6040
        %v6058 = vadd.f32 %v6057, %v6044
        %v6059 = vadd.f32 %v6058, %v6048
        %v6060 = vadd.f32 %v6059, %v6052
        %v6061 = vadd.f32 %v6060, %v6056
        %v6062 = vrot.slane %v6061, 4
        %v6063 = vadd.f32 %v6061, %v6062
        %v6064 = vrot.slane %v6063, 2
        %v6065 = vadd.f32 %v6063, %v6064
        %v6066 = vrot.slane %v6065, 1
        %v6067 = vadd.f32 %v6065, %v6066
        %v6068 = vmul.f32 %v6067, 0.00013020834
        %v6069 = vsub.f32 %v5665, %v6068
        %v6070 = vsub.f32 %v5666, %v6068
        %v6071 = vsub.f32 %v5667, %v6068
        %v6072 = vsub.f32 %v5668, %v6068
        %v6073 = vsub.f32 %v5669, %v6068
        %v6074 = vsub.f32 %v5670, %v6068
        %v6075 = vsub.f32 %v5671, %v6068
        %v6076 = vsub.f32 %v5672, %v6068
        %v6077 = vsub.f32 %v5673, %v6068
        %v6078 = vsub.f32 %v5674, %v6068
        %v6079 = vsub.f32 %v5675, %v6068
        %v6080 = vsub.f32 %v5676, %v6068
        %v6081 = vmul.f32 %v6069, %v6069
        %v6082 = vmul.f32 %v6070, %v6070
        %v6083 = vmul.f32 %v6071, %v6071
        %v6084 = vmul.f32 %v6072, %v6072
        %v6085 = vmul.f32 %v6073, %v6073
        %v6086 = vmul.f32 %v6074, %v6074
        %v6087 = vmul.f32 %v6075, %v6075
        %v6088 = vmul.f32 %v6076, %v6076
        %v6089 = vmul.f32 %v6077, %v6077
        %v6090 = vmul.f32 %v6078, %v6078
        %v6091 = vmul.f32 %v6079, %v6079
        %v6092 = vmul.f32 %v6080, %v6080
        %v6093 = vsel %vm592, %v6082, 0.0
        %v6094 = vadd.f32 %v6081, %v6093
        %6095 = vadd.xlane.f32.xlu0 %v6094
        %v6096 = vpop.xlane.xlu0 %6095
        %v6097 = vsel %vm592, %v6084, 0.0
        %v6098 = vadd.f32 %v6083, %v6097
        %6099 = vadd.xlane.f32.xlu0 %v6098
        %v6100 = vpop.xlane.xlu0 %6099
        %v6101 = vsel %vm592, %v6086, 0.0
        %v6102 = vadd.f32 %v6085, %v6101
        %6103 = vadd.xlane.f32.xlu0 %v6102
        %v6104 = vpop.xlane.xlu0 %6103
        %v6105 = vsel %vm592, %v6088, 0.0
        %v6106 = vadd.f32 %v6087, %v6105
        %6107 = vadd.xlane.f32.xlu0 %v6106
        %v6108 = vpop.xlane.xlu0 %6107
        %v6109 = vsel %vm592, %v6090, 0.0
        %v6110 = vadd.f32 %v6089, %v6109
        %6111 = vadd.xlane.f32.xlu0 %v6110
        %v6112 = vpop.xlane.xlu0 %6111
        %v6113 = vsel %vm592, %v6092, 0.0
        %v6114 = vadd.f32 %v6091, %v6113
        %6115 = vadd.xlane.f32.xlu0 %v6114
        %v6116 = vpop.xlane.xlu0 %6115
        %v6117 = vadd.f32 %v6096, %v6100
        %v6118 = vadd.f32 %v6117, %v6104
        %v6119 = vadd.f32 %v6118, %v6108
        %v6120 = vadd.f32 %v6119, %v6112
        %v6121 = vadd.f32 %v6120, %v6116
        %v6122 = vrot.slane %v6121, 4
        %v6123 = vadd.f32 %v6121, %v6122
        %v6124 = vrot.slane %v6123, 2
        %v6125 = vadd.f32 %v6123, %v6124
        %v6126 = vrot.slane %v6125, 1
        %v6127 = vadd.f32 %v6125, %v6126
        %v6128 = vmul.f32 %v6127, 0.00013020834
        %v6129 = vadd.f32 %v6128, 1e-05
        %v6130 = vrsqrt.pop %v6129
        %v6131 = vmul.f32 %v6069, %v6130
        %v6132 = vmul.f32 %v6070, %v6130
        %v6133 = vmul.f32 %v6071, %v6130
        %v6134 = vmul.f32 %v6072, %v6130
        %v6135 = vmul.f32 %v6073, %v6130
        %v6136 = vmul.f32 %v6074, %v6130
        %v6137 = vmul.f32 %v6075, %v6130
        %v6138 = vmul.f32 %v6076, %v6130
        %v6139 = vmul.f32 %v6077, %v6130
        %v6140 = vmul.f32 %v6078, %v6130
        %v6141 = vmul.f32 %v6079, %v6130
        %v6142 = vmul.f32 %v6080, %v6130
        %v6143 = vsel %vm592, %v6132, -inf
        %v6144 = vmax.f32 %v6131, %v6143
        %6145 = vmax.xlane.f32.xlu0 %v6144
        %v6146 = vpop.xlane.xlu0 %6145
        %v6147 = vsel %vm592, %v6134, -inf
        %v6148 = vmax.f32 %v6133, %v6147
        %6149 = vmax.xlane.f32.xlu0 %v6148
        %v6150 = vpop.xlane.xlu0 %6149
        %v6151 = vsel %vm592, %v6136, -inf
        %v6152 = vmax.f32 %v6135, %v6151
        %6153 = vmax.xlane.f32.xlu0 %v6152
        %v6154 = vpop.xlane.xlu0 %6153
        %v6155 = vsel %vm592, %v6138, -inf
        %v6156 = vmax.f32 %v6137, %v6155
        %6157 = vmax.xlane.f32.xlu0 %v6156
        %v6158 = vpop.xlane.xlu0 %6157
        %v6159 = vsel %vm592, %v6140, -inf
        %v6160 = vmax.f32 %v6139, %v6159
        %6161 = vmax.xlane.f32.xlu0 %v6160
        %v6162 = vpop.xlane.xlu0 %6161
        %v6163 = vsel %vm592, %v6142, -inf
        %v6164 = vmax.f32 %v6141, %v6163
        %6165 = vmax.xlane.f32.xlu0 %v6164
        %v6166 = vpop.xlane.xlu0 %6165
        %v6167 = vsub.f32 %v6131, %v6146
        %v6168 = vsub.f32 %v6132, %v6146
        %v6169 = vsub.f32 %v6133, %v6150
        %v6170 = vsub.f32 %v6134, %v6150
        %v6171 = vsub.f32 %v6135, %v6154
        %v6172 = vsub.f32 %v6136, %v6154
        %v6173 = vsub.f32 %v6137, %v6158
        %v6174 = vsub.f32 %v6138, %v6158
        %v6175 = vsub.f32 %v6139, %v6162
        %v6176 = vsub.f32 %v6140, %v6162
        %v6177 = vsub.f32 %v6141, %v6166
        %v6178 = vsub.f32 %v6142, %v6166
        %v6179 = vmul.f32 %v6167, 1.442695
        %v6180 = vpow.pop %v6179
        %v6181 = vmul.f32 %v6168, 1.442695
        %v6182 = vpow.pop %v6181
        %v6183 = vmul.f32 %v6169, 1.442695
        %v6184 = vpow.pop %v6183
        %v6185 = vmul.f32 %v6170, 1.442695
        %v6186 = vpow.pop %v6185
        %v6187 = vmul.f32 %v6171, 1.442695
        %v6188 = vpow.pop %v6187
        %v6189 = vmul.f32 %v6172, 1.442695
        %v6190 = vpow.pop %v6189
        %v6191 = vmul.f32 %v6173, 1.442695
        %v6192 = vpow.pop %v6191
        %v6193 = vmul.f32 %v6174, 1.442695
        %v6194 = vpow.pop %v6193
        %v6195 = vmul.f32 %v6175, 1.442695
        %v6196 = vpow.pop %v6195
        %v6197 = vmul.f32 %v6176, 1.442695
        %v6198 = vpow.pop %v6197
        %v6199 = vmul.f32 %v6177, 1.442695
        %v6200 = vpow.pop %v6199
        %v6201 = vmul.f32 %v6178, 1.442695
        %v6202 = vpow.pop %v6201
        %v6203 = vsel %vm592, %v6182, 0.0
        %v6204 = vadd.f32 %v6180, %v6203
        %6205 = vadd.xlane.f32.xlu0 %v6204
        %v6206 = vpop.xlane.xlu0 %6205
        %v6207 = vsel %vm592, %v6186, 0.0
        %v6208 = vadd.f32 %v6184, %v6207
        %6209 = vadd.xlane.f32.xlu0 %v6208
        %v6210 = vpop.xlane.xlu0 %6209
        %v6211 = vsel %vm592, %v6190, 0.0
        %v6212 = vadd.f32 %v6188, %v6211
        %6213 = vadd.xlane.f32.xlu0 %v6212
        %v6214 = vpop.xlane.xlu0 %6213
        %v6215 = vsel %vm592, %v6194, 0.0
        %v6216 = vadd.f32 %v6192, %v6215
        %6217 = vadd.xlane.f32.xlu0 %v6216
        %v6218 = vpop.xlane.xlu0 %6217
        %v6219 = vsel %vm592, %v6198, 0.0
        %v6220 = vadd.f32 %v6196, %v6219
        %6221 = vadd.xlane.f32.xlu0 %v6220
        %v6222 = vpop.xlane.xlu0 %6221
        %v6223 = vsel %vm592, %v6202, 0.0
        %v6224 = vadd.f32 %v6200, %v6223
        %6225 = vadd.xlane.f32.xlu0 %v6224
        %v6226 = vpop.xlane.xlu0 %6225
        %v6227 = vrcp.pop %v6206
        %v6228 = vrcp.pop %v6210
        %v6229 = vrcp.pop %v6214
        %v6230 = vrcp.pop %v6218
        %v6231 = vrcp.pop %v6222
        %v6232 = vrcp.pop %v6226
        %v6233 = vmul.f32 %v6180, %v6227
        %v6234 = vmul.f32 %v6182, %v6227
        %v6235 = vmul.f32 %v6184, %v6228
        %v6236 = vmul.f32 %v6186, %v6228
        %v6237 = vmul.f32 %v6188, %v6229
        %v6238 = vmul.f32 %v6190, %v6229
        %v6239 = vmul.f32 %v6192, %v6230
        %v6240 = vmul.f32 %v6194, %v6230
        %v6241 = vmul.f32 %v6196, %v6231
        %v6242 = vmul.f32 %v6198, %v6231
        %v6243 = vmul.f32 %v6200, %v6232
        %v6244 = vmul.f32 %v6202, %v6232
        %v6245 = vpack.c.bf16 %v6235, %v6233
        %v6246 = vpack.c.bf16 %v6236, %v6234
        %v6247 = vpack.c.bf16 %v6239, %v6237
        %v6248 = vpack.c.bf16 %v6240, %v6238
        %v6249 = vpack.c.bf16 %v6243, %v6241
        %v6250 = vpack.c.bf16 %v6244, %v6242
        %v6252 = vsel %vm592, %v6246, 0
        %v6255 = vsel %vm592, %v6248, 0
        %v6258 = vsel %vm592, %v6250, 0
        %6260 = vmatprep.subr.bf16.mxu0 %v5779
        %6261 = vmatpush1.bf16.xpose.msra.mxu0 %v3001
        %6262 = vmatprep.subr.bf16.mxu0 0
        %6263 = vmatpush1.bf16.xpose.msra.mxu0 0
        %6264 = vmatprep.subr.bf16.mxu0 0
        %6265 = vmatpush1.bf16.xpose.msra.mxu0 0
        %6266 = vmatprep.subr.bf16.mxu0 0
        %6267 = vmatpush1.bf16.xpose.msra.mxu0 0
        %6268 = vmatprep.subr.bf16.mxu0 0
        %6269 = vmatpush1.bf16.xpose.msra.mxu0 0
        %6270 = vmatprep.subr.bf16.mxu0 0
        %6271 = vmatpush1.bf16.xpose.msra.mxu0 0
        %6272 = vmatprep.subr.bf16.mxu0 0
        %6273 = vmatpush1.bf16.xpose.msra.mxu0 0
        %6274 = vmatprep.subr.bf16.mxu0 0
        %6275 = vmatpush1.bf16.xpose.msra.mxu0 0
        %6276 = vmatprep.subr.bf16.mxu0 0
        %6277 = vmatpush1.bf16.xpose.msra.mxu0 0
        %6278 = vmatprep.subr.bf16.mxu0 0
        %6279 = vmatpush1.bf16.xpose.msra.mxu0 0
        %6280 = vmatprep.subr.bf16.mxu0 0
        %6281 = vmatpush1.bf16.xpose.msra.mxu0 0
        %6282 = vmatprep.subr.bf16.mxu0 0
        %6283 = vmatpush1.bf16.xpose.msra.mxu0 0
        %6284 = vmatprep.subr.bf16.mxu0 0
        %6285 = vmatpush1.bf16.xpose.msra.mxu0 0
        %6286 = vmatprep.subr.bf16.mxu0 0
        %6287 = vmatpush1.bf16.xpose.msra.mxu0 0
        %6288 = vmatprep.subr.bf16.mxu0 0
        %6289 = vmatpush1.bf16.xpose.msra.mxu0 0
        %6290 = vmatprep.subr.bf16.mxu0 0
        %6291 = vmatpush1.bf16.xpose.msra.mxu0 0
        %6292 = vmatprep.mubr.bf16.mxu0 %v6252
        %6293 = vmatmul.mubr.bf16.gmra.mrb[0].mxu0 %v6245
        %v6294 = vpop.f32.mrb[0].mxu0
        %v6295 = vadd.f32 0.0, %v6294
        %v6296 = vpop.f32.mrb[0].mxu0
        %v6297 = vpop.f32.mrb[0].mxu0
        %v6298 = vadd.f32 0.0, %v6297
        %v6299 = vpop.f32.mrb[0].mxu0
        %6300 = vmatprep.mubr.bf16.mxu0 %v6255
        %6301 = vmatmul.mubr.bf16.gmra.mrb[0].mxu0 %v6247
        %v6302 = vpop.f32.mrb[0].mxu0
        %v6303 = vadd.f32 0.0, %v6302
        %v6304 = vpop.f32.mrb[0].mxu0
        %v6305 = vpop.f32.mrb[0].mxu0
        %v6306 = vadd.f32 0.0, %v6305
        %v6307 = vpop.f32.mrb[0].mxu0
        %6308 = vmatprep.mubr.bf16.mxu0 %v6258
        %6309 = vmatmul.mubr.bf16.gmra.mrb[0].mxu0 %v6249
        %v6310 = vpop.f32.mrb[0].mxu0
        %v6311 = vadd.f32 0.0, %v6310
        %v6312 = vpop.f32.mrb[0].mxu0
        %v6313 = vpop.f32.mrb[0].mxu0
        %v6314 = vadd.f32 0.0, %v6313
        %v6315 = vpop.f32.mrb[0].mxu0
        %6316 = vdwg.mxu0
        %v6317 = vadd.f32 %v4990, %v6295
        %v6318 = vadd.f32 %v4993, %v6298
        %v6319 = vadd.f32 %v4998, %v6303
        %v6320 = vadd.f32 %v5001, %v6306
        %v6321 = vadd.f32 %v5006, %v6311
        %v6322 = vadd.f32 %v5009, %v6314
        %v6323 = vsel %vm592, %v5678, 0.0
        %v6324 = vadd.f32 %v5677, %v6323
        %6325 = vadd.xlane.f32.xlu0 %v6324
        %v6326 = vpop.xlane.xlu0 %6325
        %v6327 = vsel %vm592, %v5680, 0.0
        %v6328 = vadd.f32 %v5679, %v6327
        %6329 = vadd.xlane.f32.xlu0 %v6328
        %v6330 = vpop.xlane.xlu0 %6329
        %v6331 = vsel %vm592, %v5682, 0.0
        %v6332 = vadd.f32 %v5681, %v6331
        %6333 = vadd.xlane.f32.xlu0 %v6332
        %v6334 = vpop.xlane.xlu0 %6333
        %v6335 = vsel %vm592, %v5684, 0.0
        %v6336 = vadd.f32 %v5683, %v6335
        %6337 = vadd.xlane.f32.xlu0 %v6336
        %v6338 = vpop.xlane.xlu0 %6337
        %v6339 = vsel %vm592, %v5686, 0.0
        %v6340 = vadd.f32 %v5685, %v6339
        %6341 = vadd.xlane.f32.xlu0 %v6340
        %v6342 = vpop.xlane.xlu0 %6341
        %v6343 = vsel %vm592, %v5688, 0.0
        %v6344 = vadd.f32 %v5687, %v6343
        %6345 = vadd.xlane.f32.xlu0 %v6344
        %v6346 = vpop.xlane.xlu0 %6345
        %v6347 = vsel %vm592, %v5690, 0.0
        %v6348 = vadd.f32 %v5689, %v6347
        %6349 = vadd.xlane.f32.xlu0 %v6348
        %v6350 = vpop.xlane.xlu0 %6349
        %v6351 = vsel %vm592, %v5692, 0.0
        %v6352 = vadd.f32 %v5691, %v6351
        %6353 = vadd.xlane.f32.xlu0 %v6352
        %v6354 = vpop.xlane.xlu0 %6353
        %v6355 = vadd.f32 %v6326, %v6330
        %v6356 = vadd.f32 %v6355, %v6334
        %v6357 = vadd.f32 %v6356, %v6338
        %v6358 = vadd.f32 %v6357, %v6342
        %v6359 = vadd.f32 %v6358, %v6346
        %v6360 = vadd.f32 %v6359, %v6350
        %v6361 = vadd.f32 %v6360, %v6354
        %v6362 = vrot.slane %v6361, 4
        %v6363 = vadd.f32 %v6361, %v6362
        %v6364 = vrot.slane %v6363, 2
        %v6365 = vadd.f32 %v6363, %v6364
        %v6366 = vrot.slane %v6365, 1
        %v6367 = vadd.f32 %v6365, %v6366
        %v6368 = vmul.f32 %v6367, 9.765625e-05
        %v6369 = vsub.f32 %v5677, %v6368
        %v6370 = vsub.f32 %v5678, %v6368
        %v6371 = vsub.f32 %v5679, %v6368
        %v6372 = vsub.f32 %v5680, %v6368
        %v6373 = vsub.f32 %v5681, %v6368
        %v6374 = vsub.f32 %v5682, %v6368
        %v6375 = vsub.f32 %v5683, %v6368
        %v6376 = vsub.f32 %v5684, %v6368
        %v6377 = vsub.f32 %v5685, %v6368
        %v6378 = vsub.f32 %v5686, %v6368
        %v6379 = vsub.f32 %v5687, %v6368
        %v6380 = vsub.f32 %v5688, %v6368
        %v6381 = vsub.f32 %v5689, %v6368
        %v6382 = vsub.f32 %v5690, %v6368
        %v6383 = vsub.f32 %v5691, %v6368
        %v6384 = vsub.f32 %v5692, %v6368
        %v6385 = vmul.f32 %v6369, %v6369
        %v6386 = vmul.f32 %v6370, %v6370
        %v6387 = vmul.f32 %v6371, %v6371
        %v6388 = vmul.f32 %v6372, %v6372
        %v6389 = vmul.f32 %v6373, %v6373
        %v6390 = vmul.f32 %v6374, %v6374
        %v6391 = vmul.f32 %v6375, %v6375
        %v6392 = vmul.f32 %v6376, %v6376
        %v6393 = vmul.f32 %v6377, %v6377
        %v6394 = vmul.f32 %v6378, %v6378
        %v6395 = vmul.f32 %v6379, %v6379
        %v6396 = vmul.f32 %v6380, %v6380
        %v6397 = vmul.f32 %v6381, %v6381
        %v6398 = vmul.f32 %v6382, %v6382
        %v6399 = vmul.f32 %v6383, %v6383
        %v6400 = vmul.f32 %v6384, %v6384
        %v6401 = vsel %vm592, %v6386, 0.0
        %v6402 = vadd.f32 %v6385, %v6401
        %6403 = vadd.xlane.f32.xlu0 %v6402
        %v6404 = vpop.xlane.xlu0 %6403
        %v6405 = vsel %vm592, %v6388, 0.0
        %v6406 = vadd.f32 %v6387, %v6405
        %6407 = vadd.xlane.f32.xlu0 %v6406
        %v6408 = vpop.xlane.xlu0 %6407
        %v6409 = vsel %vm592, %v6390, 0.0
        %v6410 = vadd.f32 %v6389, %v6409
        %6411 = vadd.xlane.f32.xlu0 %v6410
        %v6412 = vpop.xlane.xlu0 %6411
        %v6413 = vsel %vm592, %v6392, 0.0
        %v6414 = vadd.f32 %v6391, %v6413
        %6415 = vadd.xlane.f32.xlu0 %v6414
        %v6416 = vpop.xlane.xlu0 %6415
        %v6417 = vsel %vm592, %v6394, 0.0
        %v6418 = vadd.f32 %v6393, %v6417
        %6419 = vadd.xlane.f32.xlu0 %v6418
        %v6420 = vpop.xlane.xlu0 %6419
        %v6421 = vsel %vm592, %v6396, 0.0
        %v6422 = vadd.f32 %v6395, %v6421
        %6423 = vadd.xlane.f32.xlu0 %v6422
        %v6424 = vpop.xlane.xlu0 %6423
        %v6425 = vsel %vm592, %v6398, 0.0
        %v6426 = vadd.f32 %v6397, %v6425
        %6427 = vadd.xlane.f32.xlu0 %v6426
        %v6428 = vpop.xlane.xlu0 %6427
        %v6429 = vsel %vm592, %v6400, 0.0
        %v6430 = vadd.f32 %v6399, %v6429
        %6431 = vadd.xlane.f32.xlu0 %v6430
        %v6432 = vpop.xlane.xlu0 %6431
        %v6433 = vadd.f32 %v6404, %v6408
        %v6434 = vadd.f32 %v6433, %v6412
        %v6435 = vadd.f32 %v6434, %v6416
        %v6436 = vadd.f32 %v6435, %v6420
        %v6437 = vadd.f32 %v6436, %v6424
        %v6438 = vadd.f32 %v6437, %v6428
        %v6439 = vadd.f32 %v6438, %v6432
        %v6440 = vrot.slane %v6439, 4
        %v6441 = vadd.f32 %v6439, %v6440
        %v6442 = vrot.slane %v6441, 2
        %v6443 = vadd.f32 %v6441, %v6442
        %v6444 = vrot.slane %v6443, 1
        %v6445 = vadd.f32 %v6443, %v6444
        %v6446 = vmul.f32 %v6445, 9.765625e-05
        %v6447 = vadd.f32 %v6446, 1e-05
        %v6448 = vrsqrt.pop %v6447
        %v6449 = vmul.f32 %v6369, %v6448
        %v6450 = vmul.f32 %v6370, %v6448
        %v6451 = vmul.f32 %v6371, %v6448
        %v6452 = vmul.f32 %v6372, %v6448
        %v6453 = vmul.f32 %v6373, %v6448
        %v6454 = vmul.f32 %v6374, %v6448
        %v6455 = vmul.f32 %v6375, %v6448
        %v6456 = vmul.f32 %v6376, %v6448
        %v6457 = vmul.f32 %v6377, %v6448
        %v6458 = vmul.f32 %v6378, %v6448
        %v6459 = vmul.f32 %v6379, %v6448
        %v6460 = vmul.f32 %v6380, %v6448
        %v6461 = vmul.f32 %v6381, %v6448
        %v6462 = vmul.f32 %v6382, %v6448
        %v6463 = vmul.f32 %v6383, %v6448
        %v6464 = vmul.f32 %v6384, %v6448
        %v6465 = vsel %vm592, %v6450, -inf
        %v6466 = vmax.f32 %v6449, %v6465
        %6467 = vmax.xlane.f32.xlu0 %v6466
        %v6468 = vpop.xlane.xlu0 %6467
        %v6469 = vsel %vm592, %v6452, -inf
        %v6470 = vmax.f32 %v6451, %v6469
        %6471 = vmax.xlane.f32.xlu0 %v6470
        %v6472 = vpop.xlane.xlu0 %6471
        %v6473 = vsel %vm592, %v6454, -inf
        %v6474 = vmax.f32 %v6453, %v6473
        %6475 = vmax.xlane.f32.xlu0 %v6474
        %v6476 = vpop.xlane.xlu0 %6475
        %v6477 = vsel %vm592, %v6456, -inf
        %v6478 = vmax.f32 %v6455, %v6477
        %6479 = vmax.xlane.f32.xlu0 %v6478
        %v6480 = vpop.xlane.xlu0 %6479
        %v6481 = vsel %vm592, %v6458, -inf
        %v6482 = vmax.f32 %v6457, %v6481
        %6483 = vmax.xlane.f32.xlu0 %v6482
        %v6484 = vpop.xlane.xlu0 %6483
        %v6485 = vsel %vm592, %v6460, -inf
        %v6486 = vmax.f32 %v6459, %v6485
        %6487 = vmax.xlane.f32.xlu0 %v6486
        %v6488 = vpop.xlane.xlu0 %6487
        %v6489 = vsel %vm592, %v6462, -inf
        %v6490 = vmax.f32 %v6461, %v6489
        %6491 = vmax.xlane.f32.xlu0 %v6490
        %v6492 = vpop.xlane.xlu0 %6491
        %v6493 = vsel %vm592, %v6464, -inf
        %v6494 = vmax.f32 %v6463, %v6493
        %6495 = vmax.xlane.f32.xlu0 %v6494
        %v6496 = vpop.xlane.xlu0 %6495
        %v6497 = vsub.f32 %v6449, %v6468
        %v6498 = vsub.f32 %v6450, %v6468
        %v6499 = vsub.f32 %v6451, %v6472
        %v6500 = vsub.f32 %v6452, %v6472
        %v6501 = vsub.f32 %v6453, %v6476
        %v6502 = vsub.f32 %v6454, %v6476
        %v6503 = vsub.f32 %v6455, %v6480
        %v6504 = vsub.f32 %v6456, %v6480
        %v6505 = vsub.f32 %v6457, %v6484
        %v6506 = vsub.f32 %v6458, %v6484
        %v6507 = vsub.f32 %v6459, %v6488
        %v6508 = vsub.f32 %v6460, %v6488
        %v6509 = vsub.f32 %v6461, %v6492
        %v6510 = vsub.f32 %v6462, %v6492
        %v6511 = vsub.f32 %v6463, %v6496
        %v6512 = vsub.f32 %v6464, %v6496
        %v6513 = vmul.f32 %v6497, 1.442695
        %v6514 = vpow.pop %v6513
        %v6515 = vmul.f32 %v6498, 1.442695
        %v6516 = vpow.pop %v6515
        %v6517 = vmul.f32 %v6499, 1.442695
        %v6518 = vpow.pop %v6517
        %v6519 = vmul.f32 %v6500, 1.442695
        %v6520 = vpow.pop %v6519
        %v6521 = vmul.f32 %v6501, 1.442695
        %v6522 = vpow.pop %v6521
        %v6523 = vmul.f32 %v6502, 1.442695
        %v6524 = vpow.pop %v6523
        %v6525 = vmul.f32 %v6503, 1.442695
        %v6526 = vpow.pop %v6525
        %v6527 = vmul.f32 %v6504, 1.442695
        %v6528 = vpow.pop %v6527
        %v6529 = vmul.f32 %v6505, 1.442695
        %v6530 = vpow.pop %v6529
        %v6531 = vmul.f32 %v6506, 1.442695
        %v6532 = vpow.pop %v6531
        %v6533 = vmul.f32 %v6507, 1.442695
        %v6534 = vpow.pop %v6533
        %v6535 = vmul.f32 %v6508, 1.442695
        %v6536 = vpow.pop %v6535
        %v6537 = vmul.f32 %v6509, 1.442695
        %v6538 = vpow.pop %v6537
        %v6539 = vmul.f32 %v6510, 1.442695
        %v6540 = vpow.pop %v6539
        %v6541 = vmul.f32 %v6511, 1.442695
        %v6542 = vpow.pop %v6541
        %v6543 = vmul.f32 %v6512, 1.442695
        %v6544 = vpow.pop %v6543
        %v6545 = vsel %vm592, %v6516, 0.0
        %v6546 = vadd.f32 %v6514, %v6545
        %6547 = vadd.xlane.f32.xlu0 %v6546
        %v6548 = vpop.xlane.xlu0 %6547
        %v6549 = vsel %vm592, %v6520, 0.0
        %v6550 = vadd.f32 %v6518, %v6549
        %6551 = vadd.xlane.f32.xlu0 %v6550
        %v6552 = vpop.xlane.xlu0 %6551
        %v6553 = vsel %vm592, %v6524, 0.0
        %v6554 = vadd.f32 %v6522, %v6553
        %6555 = vadd.xlane.f32.xlu0 %v6554
        %v6556 = vpop.xlane.xlu0 %6555
        %v6557 = vsel %vm592, %v6528, 0.0
        %v6558 = vadd.f32 %v6526, %v6557
        %6559 = vadd.xlane.f32.xlu0 %v6558
        %v6560 = vpop.xlane.xlu0 %6559
        %v6561 = vsel %vm592, %v6532, 0.0
        %v6562 = vadd.f32 %v6530, %v6561
        %6563 = vadd.xlane.f32.xlu0 %v6562
        %v6564 = vpop.xlane.xlu0 %6563
        %v6565 = vsel %vm592, %v6536, 0.0
        %v6566 = vadd.f32 %v6534, %v6565
        %6567 = vadd.xlane.f32.xlu0 %v6566
        %v6568 = vpop.xlane.xlu0 %6567
        %v6569 = vsel %vm592, %v6540, 0.0
        %v6570 = vadd.f32 %v6538, %v6569
        %6571 = vadd.xlane.f32.xlu0 %v6570
        %v6572 = vpop.xlane.xlu0 %6571
        %v6573 = vsel %vm592, %v6544, 0.0
        %v6574 = vadd.f32 %v6542, %v6573
        %6575 = vadd.xlane.f32.xlu0 %v6574
        %v6576 = vpop.xlane.xlu0 %6575
        %v6577 = vrcp.pop %v6548
        %v6578 = vrcp.pop %v6552
        %v6579 = vrcp.pop %v6556
        %v6580 = vrcp.pop %v6560
        %v6581 = vrcp.pop %v6564
        %v6582 = vrcp.pop %v6568
        %v6583 = vrcp.pop %v6572
        %v6584 = vrcp.pop %v6576
        %v6585 = vmul.f32 %v6514, %v6577
        %v6586 = vmul.f32 %v6516, %v6577
        %v6587 = vmul.f32 %v6518, %v6578
        %v6588 = vmul.f32 %v6520, %v6578
        %v6589 = vmul.f32 %v6522, %v6579
        %v6590 = vmul.f32 %v6524, %v6579
        %v6591 = vmul.f32 %v6526, %v6580
        %v6592 = vmul.f32 %v6528, %v6580
        %v6593 = vmul.f32 %v6530, %v6581
        %v6594 = vmul.f32 %v6532, %v6581
        %v6595 = vmul.f32 %v6534, %v6582
        %v6596 = vmul.f32 %v6536, %v6582
        %v6597 = vmul.f32 %v6538, %v6583
        %v6598 = vmul.f32 %v6540, %v6583
        %v6599 = vmul.f32 %v6542, %v6584
        %v6600 = vmul.f32 %v6544, %v6584
        %v6601 = vpack.c.bf16 %v6587, %v6585
        %v6602 = vpack.c.bf16 %v6588, %v6586
        %v6603 = vpack.c.bf16 %v6591, %v6589
        %v6604 = vpack.c.bf16 %v6592, %v6590
        %v6605 = vpack.c.bf16 %v6595, %v6593
        %v6606 = vpack.c.bf16 %v6596, %v6594
        %v6607 = vpack.c.bf16 %v6599, %v6597
        %v6608 = vpack.c.bf16 %v6600, %v6598
        %v6610 = vsel %vm592, %v6602, 0
        %v6613 = vsel %vm592, %v6604, 0
        %v6616 = vsel %vm592, %v6606, 0
        %v6619 = vsel %vm592, %v6608, 0
        %6621 = vmatprep.subr.bf16.mxu0 %v5779
        %6622 = vmatpush1.bf16.xpose.msra.mxu0 %v3001
        %6623 = vmatprep.subr.bf16.mxu0 0
        %6624 = vmatpush1.bf16.xpose.msra.mxu0 0
        %6625 = vmatprep.subr.bf16.mxu0 0
        %6626 = vmatpush1.bf16.xpose.msra.mxu0 0
        %6627 = vmatprep.subr.bf16.mxu0 0
        %6628 = vmatpush1.bf16.xpose.msra.mxu0 0
        %6629 = vmatprep.subr.bf16.mxu0 0
        %6630 = vmatpush1.bf16.xpose.msra.mxu0 0
        %6631 = vmatprep.subr.bf16.mxu0 0
        %6632 = vmatpush1.bf16.xpose.msra.mxu0 0
        %6633 = vmatprep.subr.bf16.mxu0 0
        %6634 = vmatpush1.bf16.xpose.msra.mxu0 0
        %6635 = vmatprep.subr.bf16.mxu0 0
        %6636 = vmatpush1.bf16.xpose.msra.mxu0 0
        %6637 = vmatprep.subr.bf16.mxu0 0
        %6638 = vmatpush1.bf16.xpose.msra.mxu0 0
        %6639 = vmatprep.subr.bf16.mxu0 0
        %6640 = vmatpush1.bf16.xpose.msra.mxu0 0
        %6641 = vmatprep.subr.bf16.mxu0 0
        %6642 = vmatpush1.bf16.xpose.msra.mxu0 0
        %6643 = vmatprep.subr.bf16.mxu0 0
        %6644 = vmatpush1.bf16.xpose.msra.mxu0 0
        %6645 = vmatprep.subr.bf16.mxu0 0
        %6646 = vmatpush1.bf16.xpose.msra.mxu0 0
        %6647 = vmatprep.subr.bf16.mxu0 0
        %6648 = vmatpush1.bf16.xpose.msra.mxu0 0
        %6649 = vmatprep.subr.bf16.mxu0 0
        %6650 = vmatpush1.bf16.xpose.msra.mxu0 0
        %6651 = vmatprep.subr.bf16.mxu0 0
        %6652 = vmatpush1.bf16.xpose.msra.mxu0 0
        %6653 = vmatprep.mubr.bf16.mxu0 %v6610
        %6654 = vmatmul.mubr.bf16.gmra.mrb[0].mxu0 %v6601
        %v6655 = vpop.f32.mrb[0].mxu0
        %v6656 = vadd.f32 0.0, %v6655
        %v6657 = vpop.f32.mrb[0].mxu0
        %v6658 = vpop.f32.mrb[0].mxu0
        %v6659 = vadd.f32 0.0, %v6658
        %v6660 = vpop.f32.mrb[0].mxu0
        %6661 = vmatprep.mubr.bf16.mxu0 %v6613
        %6662 = vmatmul.mubr.bf16.gmra.mrb[0].mxu0 %v6603
        %v6663 = vpop.f32.mrb[0].mxu0
        %v6664 = vadd.f32 0.0, %v6663
        %v6665 = vpop.f32.mrb[0].mxu0
        %v6666 = vpop.f32.mrb[0].mxu0
        %v6667 = vadd.f32 0.0, %v6666
        %v6668 = vpop.f32.mrb[0].mxu0
        %6669 = vmatprep.mubr.bf16.mxu0 %v6616
        %6670 = vmatmul.mubr.bf16.gmra.mrb[0].mxu0 %v6605
        %v6671 = vpop.f32.mrb[0].mxu0
        %v6672 = vadd.f32 0.0, %v6671
        %v6673 = vpop.f32.mrb[0].mxu0
        %v6674 = vpop.f32.mrb[0].mxu0
        %v6675 = vadd.f32 0.0, %v6674
        %v6676 = vpop.f32.mrb[0].mxu0
        %6677 = vmatprep.mubr.bf16.mxu0 %v6619
        %6678 = vmatmul.mubr.bf16.gmra.mrb[0].mxu0 %v6607
        %v6679 = vpop.f32.mrb[0].mxu0
        %v6680 = vadd.f32 0.0, %v6679
        %v6681 = vpop.f32.mrb[0].mxu0
        %v6682 = vpop.f32.mrb[0].mxu0
        %v6683 = vadd.f32 0.0, %v6682
        %v6684 = vpop.f32.mrb[0].mxu0
        %6685 = vdwg.mxu0
        %v6686 = vadd.f32 %v5422, %v6656
        %v6687 = vadd.f32 %v5425, %v6659
        %v6688 = vadd.f32 %v5430, %v6664
        %v6689 = vadd.f32 %v5433, %v6667
        %v6690 = vadd.f32 %v5438, %v6672
        %v6691 = vadd.f32 %v5441, %v6675
        %v6692 = vadd.f32 %v5446, %v6680
        %v6693 = vadd.f32 %v5449, %v6683
        %6694 = vxpose.xlu0.c.b16.start [1/8] %v1696, 128
        %6695 = vxpose.xlu0.c.b16.cont [2/8] 0, 128
        %6696 = vxpose.xlu0.c.b16.cont [3/8] 0, 128
        %6697 = vxpose.xlu0.c.b16.cont [4/8] 0, 128
        %6698 = vxpose.xlu0.c.b16.cont [5/8] 0, 128
        %6699 = vxpose.xlu0.c.b16.cont [6/8] 0, 128
        %6700 = vxpose.xlu0.c.b16.cont [7/8] 0, 128
        %6701 = vxpose.xlu0.c.b16.end [8/8] 0, 128
        %v6702 = vpop.trf.xlu0
        %v6703 = vpop.trf.xlu0
        %v6704 = vpop.trf.xlu0
        %v6705 = vpop.trf.xlu0
        %v6706 = vpop.trf.xlu0
        %v6707 = vpop.trf.xlu0
        %v6708 = vpop.trf.xlu0
        %v6709 = vpop.trf.xlu0
        %6710 = vxpose.xlu0.c.b16.start [1/8] %v1697, 128
        %6711 = vxpose.xlu0.c.b16.cont [2/8] 0, 128
        %6712 = vxpose.xlu0.c.b16.cont [3/8] 0, 128
        %6713 = vxpose.xlu0.c.b16.cont [4/8] 0, 128
        %6714 = vxpose.xlu0.c.b16.cont [5/8] 0, 128
        %6715 = vxpose.xlu0.c.b16.cont [6/8] 0, 128
        %6716 = vxpose.xlu0.c.b16.cont [7/8] 0, 128
        %6717 = vxpose.xlu0.c.b16.end [8/8] 0, 128
        %v6718 = vpop.trf.xlu0
        %v6719 = vpop.trf.xlu0
        %v6720 = vpop.trf.xlu0
        %v6721 = vpop.trf.xlu0
        %v6722 = vpop.trf.xlu0
        %v6723 = vpop.trf.xlu0
        %v6724 = vpop.trf.xlu0
        %v6725 = vpop.trf.xlu0
        %v6727 = vsel %vm754, %v6702, 0
        %v6730 = vsel %vm754, %v6703, 0
        %v6733 = vsel %vm754, %v6704, 0
        %v6736 = vsel %vm754, %v6705, 0
        %v6739 = vsel %vm754, %v6706, 0
        %v6742 = vsel %vm754, %v6707, 0
        %v6745 = vsel %vm754, %v6708, 0
        %v6748 = vsel %vm754, %v6709, 0
        %v6751 = vsel %vm754, %v6718, 0
        %v6754 = vsel %vm754, %v6719, 0
        %v6757 = vsel %vm3069, %v3003, 0
        %v6760 = vsel %vm3069, %v3004, 0
        %6762 = vmatprep.subr.bf16.mxu0 %v6760
        %6763 = vmatpush1.bf16.msra.mxu0 %v6757
        %6764 = vmatprep.subr.bf16.mxu0 0
        %6765 = vmatpush1.bf16.msra.mxu0 0
        %6766 = vmatprep.subr.bf16.mxu0 0
        %6767 = vmatpush1.bf16.msra.mxu0 0
        %6768 = vmatprep.subr.bf16.mxu0 0
        %6769 = vmatpush1.bf16.msra.mxu0 0
        %6770 = vmatprep.subr.bf16.mxu0 0
        %6771 = vmatpush1.bf16.msra.mxu0 0
        %6772 = vmatprep.subr.bf16.mxu0 0
        %6773 = vmatpush1.bf16.msra.mxu0 0
        %6774 = vmatprep.subr.bf16.mxu0 0
        %6775 = vmatpush1.bf16.msra.mxu0 0
        %6776 = vmatprep.subr.bf16.mxu0 0
        %6777 = vmatpush1.bf16.msra.mxu0 0
        %6778 = vmatprep.subr.bf16.mxu0 0
        %6779 = vmatpush1.bf16.msra.mxu0 0
        %6780 = vmatprep.subr.bf16.mxu0 0
        %6781 = vmatpush1.bf16.msra.mxu0 0
        %6782 = vmatprep.subr.bf16.mxu0 0
        %6783 = vmatpush1.bf16.msra.mxu0 0
        %6784 = vmatprep.subr.bf16.mxu0 0
        %6785 = vmatpush1.bf16.msra.mxu0 0
        %6786 = vmatprep.subr.bf16.mxu0 0
        %6787 = vmatpush1.bf16.msra.mxu0 0
        %6788 = vmatprep.subr.bf16.mxu0 0
        %6789 = vmatpush1.bf16.msra.mxu0 0
        %6790 = vmatprep.subr.bf16.mxu0 0
        %6791 = vmatpush1.bf16.msra.mxu0 0
        %6792 = vmatprep.subr.bf16.mxu0 0
        %6793 = vmatpush1.bf16.msra.mxu0 0
        %6794 = vmatprep.mubr.bf16.mxu0 0
        %6795 = vmatmul.mubr.bf16.gmra.mrb[0].mxu0 %v6727
        %v6796 = vpop.f32.mrb[0].mxu0
        %v6797 = vadd.f32 0.0, %v6796
        %v6798 = vpop.f32.mrb[0].mxu0
        %v6799 = vadd.f32 0.0, %v6798
        %v6800 = vpop.f32.mrb[0].mxu0
        %v6801 = vadd.f32 0.0, %v6800
        %v6802 = vpop.f32.mrb[0].mxu0
        %v6803 = vadd.f32 0.0, %v6802
        %6804 = vmatprep.mubr.bf16.mxu0 0
        %6805 = vmatmul.mubr.bf16.gmra.mrb[0].mxu0 %v6730
        %v6806 = vpop.f32.mrb[0].mxu0
        %v6807 = vadd.f32 0.0, %v6806
        %v6808 = vpop.f32.mrb[0].mxu0
        %v6809 = vadd.f32 0.0, %v6808
        %v6810 = vpop.f32.mrb[0].mxu0
        %v6811 = vadd.f32 0.0, %v6810
        %v6812 = vpop.f32.mrb[0].mxu0
        %v6813 = vadd.f32 0.0, %v6812
        %6814 = vmatprep.mubr.bf16.mxu0 0
        %6815 = vmatmul.mubr.bf16.gmra.mrb[0].mxu0 %v6733
        %v6816 = vpop.f32.mrb[0].mxu0
        %v6817 = vadd.f32 0.0, %v6816
        %v6818 = vpop.f32.mrb[0].mxu0
        %v6819 = vadd.f32 0.0, %v6818
        %v6820 = vpop.f32.mrb[0].mxu0
        %v6821 = vadd.f32 0.0, %v6820
        %v6822 = vpop.f32.mrb[0].mxu0
        %v6823 = vadd.f32 0.0, %v6822
        %6824 = vmatprep.mubr.bf16.mxu0 0
        %6825 = vmatmul.mubr.bf16.gmra.mrb[0].mxu0 %v6736
        %v6826 = vpop.f32.mrb[0].mxu0
        %v6827 = vadd.f32 0.0, %v6826
        %v6828 = vpop.f32.mrb[0].mxu0
        %v6829 = vadd.f32 0.0, %v6828
        %v6830 = vpop.f32.mrb[0].mxu0
        %v6831 = vadd.f32 0.0, %v6830
        %v6832 = vpop.f32.mrb[0].mxu0
        %v6833 = vadd.f32 0.0, %v6832
        %6834 = vmatprep.mubr.bf16.mxu0 0
        %6835 = vmatmul.mubr.bf16.gmra.mrb[0].mxu0 %v6739
        %v6836 = vpop.f32.mrb[0].mxu0
        %v6837 = vadd.f32 0.0, %v6836
        %v6838 = vpop.f32.mrb[0].mxu0
        %v6839 = vadd.f32 0.0, %v6838
        %v6840 = vpop.f32.mrb[0].mxu0
        %v6841 = vadd.f32 0.0, %v6840
        %v6842 = vpop.f32.mrb[0].mxu0
        %v6843 = vadd.f32 0.0, %v6842
        %6844 = vmatprep.mubr.bf16.mxu0 0
        %6845 = vmatmul.mubr.bf16.gmra.mrb[0].mxu0 %v6742
        %v6846 = vpop.f32.mrb[0].mxu0
        %v6847 = vadd.f32 0.0, %v6846
        %v6848 = vpop.f32.mrb[0].mxu0
        %v6849 = vadd.f32 0.0, %v6848
        %v6850 = vpop.f32.mrb[0].mxu0
        %v6851 = vadd.f32 0.0, %v6850
        %v6852 = vpop.f32.mrb[0].mxu0
        %v6853 = vadd.f32 0.0, %v6852
        %6854 = vmatprep.mubr.bf16.mxu0 0
        %6855 = vmatmul.mubr.bf16.gmra.mrb[0].mxu0 %v6745
        %v6856 = vpop.f32.mrb[0].mxu0
        %v6857 = vadd.f32 0.0, %v6856
        %v6858 = vpop.f32.mrb[0].mxu0
        %v6859 = vadd.f32 0.0, %v6858
        %v6860 = vpop.f32.mrb[0].mxu0
        %v6861 = vadd.f32 0.0, %v6860
        %v6862 = vpop.f32.mrb[0].mxu0
        %v6863 = vadd.f32 0.0, %v6862
        %6864 = vmatprep.mubr.bf16.mxu0 0
        %6865 = vmatmul.mubr.bf16.gmra.mrb[0].mxu0 %v6748
        %v6866 = vpop.f32.mrb[0].mxu0
        %v6867 = vadd.f32 0.0, %v6866
        %v6868 = vpop.f32.mrb[0].mxu0
        %v6869 = vadd.f32 0.0, %v6868
        %v6870 = vpop.f32.mrb[0].mxu0
        %v6871 = vadd.f32 0.0, %v6870
        %v6872 = vpop.f32.mrb[0].mxu0
        %v6873 = vadd.f32 0.0, %v6872
        %6874 = vmatprep.mubr.bf16.mxu0 0
        %6875 = vmatmul.mubr.bf16.gmra.mrb[0].mxu0 %v6751
        %v6876 = vpop.f32.mrb[0].mxu0
        %v6877 = vadd.f32 0.0, %v6876
        %v6878 = vpop.f32.mrb[0].mxu0
        %v6879 = vadd.f32 0.0, %v6878
        %v6880 = vpop.f32.mrb[0].mxu0
        %v6881 = vadd.f32 0.0, %v6880
        %v6882 = vpop.f32.mrb[0].mxu0
        %v6883 = vadd.f32 0.0, %v6882
        %6884 = vmatprep.mubr.bf16.mxu0 0
        %6885 = vmatmul.mubr.bf16.gmra.mrb[0].mxu0 %v6754
        %v6886 = vpop.f32.mrb[0].mxu0
        %v6887 = vadd.f32 0.0, %v6886
        %v6888 = vpop.f32.mrb[0].mxu0
        %v6889 = vadd.f32 0.0, %v6888
        %v6890 = vpop.f32.mrb[0].mxu0
        %v6891 = vadd.f32 0.0, %v6890
        %v6892 = vpop.f32.mrb[0].mxu0
        %v6893 = vadd.f32 0.0, %v6892
        %6894 = vdwg.mxu0
        %v6895 = vmul.f32 %v6797, 0.07905694
        %v6896 = vmul.f32 %v6799, 0.07905694
        %v6897 = vmul.f32 %v6801, 0.07905694
        %v6898 = vmul.f32 %v6803, 0.07905694
        %v6899 = vmul.f32 %v6807, 0.07905694
        %v6900 = vmul.f32 %v6809, 0.07905694
        %v6901 = vmul.f32 %v6811, 0.07905694
        %v6902 = vmul.f32 %v6813, 0.07905694
        %v6903 = vmul.f32 %v6817, 0.07905694
        %v6904 = vmul.f32 %v6819, 0.07905694
        %v6905 = vmul.f32 %v6821, 0.07905694
        %v6906 = vmul.f32 %v6823, 0.07905694
        %v6907 = vmul.f32 %v6827, 0.07905694
        %v6908 = vmul.f32 %v6829, 0.07905694
        %v6909 = vmul.f32 %v6831, 0.07905694
        %v6910 = vmul.f32 %v6833, 0.07905694
        %v6911 = vmul.f32 %v6837, 0.07905694
        %v6912 = vmul.f32 %v6839, 0.07905694
        %v6913 = vmul.f32 %v6841, 0.07905694
        %v6914 = vmul.f32 %v6843, 0.07905694
        %v6915 = vmul.f32 %v6847, 0.07905694
        %v6916 = vmul.f32 %v6849, 0.07905694
        %v6917 = vmul.f32 %v6851, 0.07905694
        %v6918 = vmul.f32 %v6853, 0.07905694
        %v6919 = vmul.f32 %v6857, 0.07905694
        %v6920 = vmul.f32 %v6859, 0.07905694
        %v6921 = vmul.f32 %v6861, 0.07905694
        %v6922 = vmul.f32 %v6863, 0.07905694
        %v6923 = vmul.f32 %v6867, 0.07905694
        %v6924 = vmul.f32 %v6869, 0.07905694
        %v6925 = vmul.f32 %v6871, 0.07905694
        %v6926 = vmul.f32 %v6873, 0.07905694
        %v6927 = vmul.f32 %v6877, 0.07905694
        %v6928 = vmul.f32 %v6879, 0.07905694
        %v6929 = vmul.f32 %v6881, 0.07905694
        %v6930 = vmul.f32 %v6883, 0.07905694
        %v6931 = vmul.f32 %v6887, 0.07905694
        %v6932 = vmul.f32 %v6889, 0.07905694
        %v6933 = vmul.f32 %v6891, 0.07905694
        %v6934 = vmul.f32 %v6893, 0.07905694
        %v6935 = vsel %vm592, %v6896, 0.0
        %v6936 = vadd.f32 %v6895, %v6935
        %6937 = vadd.xlane.f32.xlu0 %v6936
        %v6938 = vpop.xlane.xlu0 %6937
        %v6939 = vsel %vm592, %v6898, 0.0
        %v6940 = vadd.f32 %v6897, %v6939
        %6941 = vadd.xlane.f32.xlu0 %v6940
        %v6942 = vpop.xlane.xlu0 %6941
        %v6943 = vadd.f32 %v6938, %v6942
        %v6944 = vrot.slane %v6943, 4
        %v6945 = vadd.f32 %v6943, %v6944
        %v6946 = vrot.slane %v6945, 2
        %v6947 = vadd.f32 %v6945, %v6946
        %v6948 = vrot.slane %v6947, 1
        %v6949 = vadd.f32 %v6947, %v6948
        %v6950 = vmul.f32 %v6949, 0.000390625
        %v6951 = vsub.f32 %v6895, %v6950
        %v6952 = vsub.f32 %v6896, %v6950
        %v6953 = vsub.f32 %v6897, %v6950
        %v6954 = vsub.f32 %v6898, %v6950
        %v6955 = vmul.f32 %v6951, %v6951
        %v6956 = vmul.f32 %v6952, %v6952
        %v6957 = vmul.f32 %v6953, %v6953
        %v6958 = vmul.f32 %v6954, %v6954
        %v6959 = vsel %vm592, %v6956, 0.0
        %v6960 = vadd.f32 %v6955, %v6959
        %6961 = vadd.xlane.f32.xlu0 %v6960
        %v6962 = vpop.xlane.xlu0 %6961
        %v6963 = vsel %vm592, %v6958, 0.0
        %v6964 = vadd.f32 %v6957, %v6963
        %6965 = vadd.xlane.f32.xlu0 %v6964
        %v6966 = vpop.xlane.xlu0 %6965
        %v6967 = vadd.f32 %v6962, %v6966
        %v6968 = vrot.slane %v6967, 4
        %v6969 = vadd.f32 %v6967, %v6968
        %v6970 = vrot.slane %v6969, 2
        %v6971 = vadd.f32 %v6969, %v6970
        %v6972 = vrot.slane %v6971, 1
        %v6973 = vadd.f32 %v6971, %v6972
        %v6974 = vmul.f32 %v6973, 0.000390625
        %v6975 = vadd.f32 %v6974, 1e-05
        %v6976 = vrsqrt.pop %v6975
        %v6977 = vmul.f32 %v6951, %v6976
        %v6978 = vmul.f32 %v6952, %v6976
        %v6979 = vmul.f32 %v6953, %v6976
        %v6980 = vmul.f32 %v6954, %v6976
        %v6981 = vsel %vm592, %v6978, -inf
        %v6982 = vmax.f32 %v6977, %v6981
        %6983 = vmax.xlane.f32.xlu0 %v6982
        %v6984 = vpop.xlane.xlu0 %6983
        %v6985 = vsel %vm592, %v6980, -inf
        %v6986 = vmax.f32 %v6979, %v6985
        %6987 = vmax.xlane.f32.xlu0 %v6986
        %v6988 = vpop.xlane.xlu0 %6987
        %v6989 = vsub.f32 %v6977, %v6984
        %v6990 = vsub.f32 %v6978, %v6984
        %v6991 = vsub.f32 %v6979, %v6988
        %v6992 = vsub.f32 %v6980, %v6988
        %v6993 = vmul.f32 %v6989, 1.442695
        %v6994 = vpow.pop %v6993
        %v6995 = vmul.f32 %v6990, 1.442695
        %v6996 = vpow.pop %v6995
        %v6997 = vmul.f32 %v6991, 1.442695
        %v6998 = vpow.pop %v6997
        %v6999 = vmul.f32 %v6992, 1.442695
        %v7000 = vpow.pop %v6999
        %v7001 = vsel %vm592, %v6996, 0.0
        %v7002 = vadd.f32 %v6994, %v7001
        %7003 = vadd.xlane.f32.xlu0 %v7002
        %v7004 = vpop.xlane.xlu0 %7003
        %v7005 = vsel %vm592, %v7000, 0.0
        %v7006 = vadd.f32 %v6998, %v7005
        %7007 = vadd.xlane.f32.xlu0 %v7006
        %v7008 = vpop.xlane.xlu0 %7007
        %v7009 = vrcp.pop %v7004
        %v7010 = vrcp.pop %v7008
        %v7011 = vmul.f32 %v6994, %v7009
        %v7012 = vmul.f32 %v6996, %v7009
        %v7013 = vmul.f32 %v6998, %v7010
        %v7014 = vmul.f32 %v7000, %v7010
        %v7015 = vpack.c.bf16 %v7013, %v7011
        %v7016 = vpack.c.bf16 %v7014, %v7012
        %v7018 = vsel %vm592, %v7016, 0
        %v7021 = vsel %vm592, %v3006, 0
        %7023 = vmatprep.subr.bf16.mxu0 %v7021
        %7024 = vmatpush1.bf16.xpose.msra.mxu0 %v3005
        %7025 = vmatprep.subr.bf16.mxu0 0
        %7026 = vmatpush1.bf16.xpose.msra.mxu0 0
        %7027 = vmatprep.subr.bf16.mxu0 0
        %7028 = vmatpush1.bf16.xpose.msra.mxu0 0
        %7029 = vmatprep.subr.bf16.mxu0 0
        %7030 = vmatpush1.bf16.xpose.msra.mxu0 0
        %7031 = vmatprep.subr.bf16.mxu0 0
        %7032 = vmatpush1.bf16.xpose.msra.mxu0 0
        %7033 = vmatprep.subr.bf16.mxu0 0
        %7034 = vmatpush1.bf16.xpose.msra.mxu0 0
        %7035 = vmatprep.subr.bf16.mxu0 0
        %7036 = vmatpush1.bf16.xpose.msra.mxu0 0
        %7037 = vmatprep.subr.bf16.mxu0 0
        %7038 = vmatpush1.bf16.xpose.msra.mxu0 0
        %7039 = vmatprep.subr.bf16.mxu0 0
        %7040 = vmatpush1.bf16.xpose.msra.mxu0 0
        %7041 = vmatprep.subr.bf16.mxu0 0
        %7042 = vmatpush1.bf16.xpose.msra.mxu0 0
        %7043 = vmatprep.subr.bf16.mxu0 0
        %7044 = vmatpush1.bf16.xpose.msra.mxu0 0
        %7045 = vmatprep.subr.bf16.mxu0 0
        %7046 = vmatpush1.bf16.xpose.msra.mxu0 0
        %7047 = vmatprep.subr.bf16.mxu0 0
        %7048 = vmatpush1.bf16.xpose.msra.mxu0 0
        %7049 = vmatprep.subr.bf16.mxu0 0
        %7050 = vmatpush1.bf16.xpose.msra.mxu0 0
        %7051 = vmatprep.subr.bf16.mxu0 0
        %7052 = vmatpush1.bf16.xpose.msra.mxu0 0
        %7053 = vmatprep.subr.bf16.mxu0 0
        %7054 = vmatpush1.bf16.xpose.msra.mxu0 0
        %7055 = vmatprep.mubr.bf16.mxu0 %v7018
        %7056 = vmatmul.mubr.bf16.gmra.mrb[0].mxu0 %v7015
        %v7057 = vpop.f32.mrb[0].mxu0
        %v7058 = vadd.f32 0.0, %v7057
        %v7059 = vpop.f32.mrb[0].mxu0
        %v7060 = vpop.f32.mrb[0].mxu0
        %v7061 = vadd.f32 0.0, %v7060
        %v7062 = vpop.f32.mrb[0].mxu0
        %7063 = vdwg.mxu0
        %v7064 = vadd.f32 %v5822, %v7058
        %v7065 = vadd.f32 %v5823, %v7061
        %v7066 = vsel %vm592, %v6900, 0.0
        %v7067 = vadd.f32 %v6899, %v7066
        %7068 = vadd.xlane.f32.xlu0 %v7067
        %v7069 = vpop.xlane.xlu0 %7068
        %v7070 = vsel %vm592, %v6902, 0.0
        %v7071 = vadd.f32 %v6901, %v7070
        %7072 = vadd.xlane.f32.xlu0 %v7071
        %v7073 = vpop.xlane.xlu0 %7072
        %v7074 = vsel %vm592, %v6904, 0.0
        %v7075 = vadd.f32 %v6903, %v7074
        %7076 = vadd.xlane.f32.xlu0 %v7075
        %v7077 = vpop.xlane.xlu0 %7076
        %v7078 = vsel %vm592, %v6906, 0.0
        %v7079 = vadd.f32 %v6905, %v7078
        %7080 = vadd.xlane.f32.xlu0 %v7079
        %v7081 = vpop.xlane.xlu0 %7080
        %v7082 = vadd.f32 %v7069, %v7073
        %v7083 = vadd.f32 %v7082, %v7077
        %v7084 = vadd.f32 %v7083, %v7081
        %v7085 = vrot.slane %v7084, 4
        %v7086 = vadd.f32 %v7084, %v7085
        %v7087 = vrot.slane %v7086, 2
        %v7088 = vadd.f32 %v7086, %v7087
        %v7089 = vrot.slane %v7088, 1
        %v7090 = vadd.f32 %v7088, %v7089
        %v7091 = vmul.f32 %v7090, 0.0001953125
        %v7092 = vsub.f32 %v6899, %v7091
        %v7093 = vsub.f32 %v6900, %v7091
        %v7094 = vsub.f32 %v6901, %v7091
        %v7095 = vsub.f32 %v6902, %v7091
        %v7096 = vsub.f32 %v6903, %v7091
        %v7097 = vsub.f32 %v6904, %v7091
        %v7098 = vsub.f32 %v6905, %v7091
        %v7099 = vsub.f32 %v6906, %v7091
        %v7100 = vmul.f32 %v7092, %v7092
        %v7101 = vmul.f32 %v7093, %v7093
        %v7102 = vmul.f32 %v7094, %v7094
        %v7103 = vmul.f32 %v7095, %v7095
        %v7104 = vmul.f32 %v7096, %v7096
        %v7105 = vmul.f32 %v7097, %v7097
        %v7106 = vmul.f32 %v7098, %v7098
        %v7107 = vmul.f32 %v7099, %v7099
        %v7108 = vsel %vm592, %v7101, 0.0
        %v7109 = vadd.f32 %v7100, %v7108
        %7110 = vadd.xlane.f32.xlu0 %v7109
        %v7111 = vpop.xlane.xlu0 %7110
        %v7112 = vsel %vm592, %v7103, 0.0
        %v7113 = vadd.f32 %v7102, %v7112
        %7114 = vadd.xlane.f32.xlu0 %v7113
        %v7115 = vpop.xlane.xlu0 %7114
        %v7116 = vsel %vm592, %v7105, 0.0
        %v7117 = vadd.f32 %v7104, %v7116
        %7118 = vadd.xlane.f32.xlu0 %v7117
        %v7119 = vpop.xlane.xlu0 %7118
        %v7120 = vsel %vm592, %v7107, 0.0
        %v7121 = vadd.f32 %v7106, %v7120
        %7122 = vadd.xlane.f32.xlu0 %v7121
        %v7123 = vpop.xlane.xlu0 %7122
        %v7124 = vadd.f32 %v7111, %v7115
        %v7125 = vadd.f32 %v7124, %v7119
        %v7126 = vadd.f32 %v7125, %v7123
        %v7127 = vrot.slane %v7126, 4
        %v7128 = vadd.f32 %v7126, %v7127
        %v7129 = vrot.slane %v7128, 2
        %v7130 = vadd.f32 %v7128, %v7129
        %v7131 = vrot.slane %v7130, 1
        %v7132 = vadd.f32 %v7130, %v7131
        %v7133 = vmul.f32 %v7132, 0.0001953125
        %v7134 = vadd.f32 %v7133, 1e-05
        %v7135 = vrsqrt.pop %v7134
        %v7136 = vmul.f32 %v7092, %v7135
        %v7137 = vmul.f32 %v7093, %v7135
        %v7138 = vmul.f32 %v7094, %v7135
        %v7139 = vmul.f32 %v7095, %v7135
        %v7140 = vmul.f32 %v7096, %v7135
        %v7141 = vmul.f32 %v7097, %v7135
        %v7142 = vmul.f32 %v7098, %v7135
        %v7143 = vmul.f32 %v7099, %v7135
        %v7144 = vsel %vm592, %v7137, -inf
        %v7145 = vmax.f32 %v7136, %v7144
        %7146 = vmax.xlane.f32.xlu0 %v7145
        %v7147 = vpop.xlane.xlu0 %7146
        %v7148 = vsel %vm592, %v7139, -inf
        %v7149 = vmax.f32 %v7138, %v7148
        %7150 = vmax.xlane.f32.xlu0 %v7149
        %v7151 = vpop.xlane.xlu0 %7150
        %v7152 = vsel %vm592, %v7141, -inf
        %v7153 = vmax.f32 %v7140, %v7152
        %7154 = vmax.xlane.f32.xlu0 %v7153
        %v7155 = vpop.xlane.xlu0 %7154
        %v7156 = vsel %vm592, %v7143, -inf
        %v7157 = vmax.f32 %v7142, %v7156
        %7158 = vmax.xlane.f32.xlu0 %v7157
        %v7159 = vpop.xlane.xlu0 %7158
        %v7160 = vsub.f32 %v7136, %v7147
        %v7161 = vsub.f32 %v7137, %v7147
        %v7162 = vsub.f32 %v7138, %v7151
        %v7163 = vsub.f32 %v7139, %v7151
        %v7164 = vsub.f32 %v7140, %v7155
        %v7165 = vsub.f32 %v7141, %v7155
        %v7166 = vsub.f32 %v7142, %v7159
        %v7167 = vsub.f32 %v7143, %v7159
        %v7168 = vmul.f32 %v7160, 1.442695
        %v7169 = vpow.pop %v7168
        %v7170 = vmul.f32 %v7161, 1.442695
        %v7171 = vpow.pop %v7170
        %v7172 = vmul.f32 %v7162, 1.442695
        %v7173 = vpow.pop %v7172
        %v7174 = vmul.f32 %v7163, 1.442695
        %v7175 = vpow.pop %v7174
        %v7176 = vmul.f32 %v7164, 1.442695
        %v7177 = vpow.pop %v7176
        %v7178 = vmul.f32 %v7165, 1.442695
        %v7179 = vpow.pop %v7178
        %v7180 = vmul.f32 %v7166, 1.442695
        %v7181 = vpow.pop %v7180
        %v7182 = vmul.f32 %v7167, 1.442695
        %v7183 = vpow.pop %v7182
        %v7184 = vsel %vm592, %v7171, 0.0
        %v7185 = vadd.f32 %v7169, %v7184
        %7186 = vadd.xlane.f32.xlu0 %v7185
        %v7187 = vpop.xlane.xlu0 %7186
        %v7188 = vsel %vm592, %v7175, 0.0
        %v7189 = vadd.f32 %v7173, %v7188
        %7190 = vadd.xlane.f32.xlu0 %v7189
        %v7191 = vpop.xlane.xlu0 %7190
        %v7192 = vsel %vm592, %v7179, 0.0
        %v7193 = vadd.f32 %v7177, %v7192
        %7194 = vadd.xlane.f32.xlu0 %v7193
        %v7195 = vpop.xlane.xlu0 %7194
        %v7196 = vsel %vm592, %v7183, 0.0
        %v7197 = vadd.f32 %v7181, %v7196
        %7198 = vadd.xlane.f32.xlu0 %v7197
        %v7199 = vpop.xlane.xlu0 %7198
        %v7200 = vrcp.pop %v7187
        %v7201 = vrcp.pop %v7191
        %v7202 = vrcp.pop %v7195
        %v7203 = vrcp.pop %v7199
        %v7204 = vmul.f32 %v7169, %v7200
        %v7205 = vmul.f32 %v7171, %v7200
        %v7206 = vmul.f32 %v7173, %v7201
        %v7207 = vmul.f32 %v7175, %v7201
        %v7208 = vmul.f32 %v7177, %v7202
        %v7209 = vmul.f32 %v7179, %v7202
        %v7210 = vmul.f32 %v7181, %v7203
        %v7211 = vmul.f32 %v7183, %v7203
        %v7212 = vpack.c.bf16 %v7206, %v7204
        %v7213 = vpack.c.bf16 %v7207, %v7205
        %v7214 = vpack.c.bf16 %v7210, %v7208
        %v7215 = vpack.c.bf16 %v7211, %v7209
        %v7217 = vsel %vm592, %v7213, 0
        %v7220 = vsel %vm592, %v7215, 0
        %7222 = vmatprep.subr.bf16.mxu0 %v7021
        %7223 = vmatpush1.bf16.xpose.msra.mxu0 %v3005
        %7224 = vmatprep.subr.bf16.mxu0 0
        %7225 = vmatpush1.bf16.xpose.msra.mxu0 0
        %7226 = vmatprep.subr.bf16.mxu0 0
        %7227 = vmatpush1.bf16.xpose.msra.mxu0 0
        %7228 = vmatprep.subr.bf16.mxu0 0
        %7229 = vmatpush1.bf16.xpose.msra.mxu0 0
        %7230 = vmatprep.subr.bf16.mxu0 0
        %7231 = vmatpush1.bf16.xpose.msra.mxu0 0
        %7232 = vmatprep.subr.bf16.mxu0 0
        %7233 = vmatpush1.bf16.xpose.msra.mxu0 0
        %7234 = vmatprep.subr.bf16.mxu0 0
        %7235 = vmatpush1.bf16.xpose.msra.mxu0 0
        %7236 = vmatprep.subr.bf16.mxu0 0
        %7237 = vmatpush1.bf16.xpose.msra.mxu0 0
        %7238 = vmatprep.subr.bf16.mxu0 0
        %7239 = vmatpush1.bf16.xpose.msra.mxu0 0
        %7240 = vmatprep.subr.bf16.mxu0 0
        %7241 = vmatpush1.bf16.xpose.msra.mxu0 0
        %7242 = vmatprep.subr.bf16.mxu0 0
        %7243 = vmatpush1.bf16.xpose.msra.mxu0 0
        %7244 = vmatprep.subr.bf16.mxu0 0
        %7245 = vmatpush1.bf16.xpose.msra.mxu0 0
        %7246 = vmatprep.subr.bf16.mxu0 0
        %7247 = vmatpush1.bf16.xpose.msra.mxu0 0
        %7248 = vmatprep.subr.bf16.mxu0 0
        %7249 = vmatpush1.bf16.xpose.msra.mxu0 0
        %7250 = vmatprep.subr.bf16.mxu0 0
        %7251 = vmatpush1.bf16.xpose.msra.mxu0 0
        %7252 = vmatprep.subr.bf16.mxu0 0
        %7253 = vmatpush1.bf16.xpose.msra.mxu0 0
        %7254 = vmatprep.mubr.bf16.mxu0 %v7217
        %7255 = vmatmul.mubr.bf16.gmra.mrb[0].mxu0 %v7212
        %v7256 = vpop.f32.mrb[0].mxu0
        %v7257 = vadd.f32 0.0, %v7256
        %v7258 = vpop.f32.mrb[0].mxu0
        %v7259 = vpop.f32.mrb[0].mxu0
        %v7260 = vadd.f32 0.0, %v7259
        %v7261 = vpop.f32.mrb[0].mxu0
        %7262 = vmatprep.mubr.bf16.mxu0 %v7220
        %7263 = vmatmul.mubr.bf16.gmra.mrb[0].mxu0 %v7214
        %v7264 = vpop.f32.mrb[0].mxu0
        %v7265 = vadd.f32 0.0, %v7264
        %v7266 = vpop.f32.mrb[0].mxu0
        %v7267 = vpop.f32.mrb[0].mxu0
        %v7268 = vadd.f32 0.0, %v7267
        %v7269 = vpop.f32.mrb[0].mxu0
        %7270 = vdwg.mxu0
        %v7271 = vadd.f32 %v6029, %v7257
        %v7272 = vadd.f32 %v6030, %v7260
        %v7273 = vadd.f32 %v6031, %v7265
        %v7274 = vadd.f32 %v6032, %v7268
        %v7275 = vsel %vm592, %v6908, 0.0
        %v7276 = vadd.f32 %v6907, %v7275
        %7277 = vadd.xlane.f32.xlu0 %v7276
        %v7278 = vpop.xlane.xlu0 %7277
        %v7279 = vsel %vm592, %v6910, 0.0
        %v7280 = vadd.f32 %v6909, %v7279
        %7281 = vadd.xlane.f32.xlu0 %v7280
        %v7282 = vpop.xlane.xlu0 %7281
        %v7283 = vsel %vm592, %v6912, 0.0
        %v7284 = vadd.f32 %v6911, %v7283
        %7285 = vadd.xlane.f32.xlu0 %v7284
        %v7286 = vpop.xlane.xlu0 %7285
        %v7287 = vsel %vm592, %v6914, 0.0
        %v7288 = vadd.f32 %v6913, %v7287
        %7289 = vadd.xlane.f32.xlu0 %v7288
        %v7290 = vpop.xlane.xlu0 %7289
        %v7291 = vsel %vm592, %v6916, 0.0
        %v7292 = vadd.f32 %v6915, %v7291
        %7293 = vadd.xlane.f32.xlu0 %v7292
        %v7294 = vpop.xlane.xlu0 %7293
        %v7295 = vsel %vm592, %v6918, 0.0
        %v7296 = vadd.f32 %v6917, %v7295
        %7297 = vadd.xlane.f32.xlu0 %v7296
        %v7298 = vpop.xlane.xlu0 %7297
        %v7299 = vadd.f32 %v7278, %v7282
        %v7300 = vadd.f32 %v7299, %v7286
        %v7301 = vadd.f32 %v7300, %v7290
        %v7302 = vadd.f32 %v7301, %v7294
        %v7303 = vadd.f32 %v7302, %v7298
        %v7304 = vrot.slane %v7303, 4
        %v7305 = vadd.f32 %v7303, %v7304
        %v7306 = vrot.slane %v7305, 2
        %v7307 = vadd.f32 %v7305, %v7306
        %v7308 = vrot.slane %v7307, 1
        %v7309 = vadd.f32 %v7307, %v7308
        %v7310 = vmul.f32 %v7309, 0.00013020834
        %v7311 = vsub.f32 %v6907, %v7310
        %v7312 = vsub.f32 %v6908, %v7310
        %v7313 = vsub.f32 %v6909, %v7310
        %v7314 = vsub.f32 %v6910, %v7310
        %v7315 = vsub.f32 %v6911, %v7310
        %v7316 = vsub.f32 %v6912, %v7310
        %v7317 = vsub.f32 %v6913, %v7310
        %v7318 = vsub.f32 %v6914, %v7310
        %v7319 = vsub.f32 %v6915, %v7310
        %v7320 = vsub.f32 %v6916, %v7310
        %v7321 = vsub.f32 %v6917, %v7310
        %v7322 = vsub.f32 %v6918, %v7310
        %v7323 = vmul.f32 %v7311, %v7311
        %v7324 = vmul.f32 %v7312, %v7312
        %v7325 = vmul.f32 %v7313, %v7313
        %v7326 = vmul.f32 %v7314, %v7314
        %v7327 = vmul.f32 %v7315, %v7315
        %v7328 = vmul.f32 %v7316, %v7316
        %v7329 = vmul.f32 %v7317, %v7317
        %v7330 = vmul.f32 %v7318, %v7318
        %v7331 = vmul.f32 %v7319, %v7319
        %v7332 = vmul.f32 %v7320, %v7320
        %v7333 = vmul.f32 %v7321, %v7321
        %v7334 = vmul.f32 %v7322, %v7322
        %v7335 = vsel %vm592, %v7324, 0.0
        %v7336 = vadd.f32 %v7323, %v7335
        %7337 = vadd.xlane.f32.xlu0 %v7336
        %v7338 = vpop.xlane.xlu0 %7337
        %v7339 = vsel %vm592, %v7326, 0.0
        %v7340 = vadd.f32 %v7325, %v7339
        %7341 = vadd.xlane.f32.xlu0 %v7340
        %v7342 = vpop.xlane.xlu0 %7341
        %v7343 = vsel %vm592, %v7328, 0.0
        %v7344 = vadd.f32 %v7327, %v7343
        %7345 = vadd.xlane.f32.xlu0 %v7344
        %v7346 = vpop.xlane.xlu0 %7345
        %v7347 = vsel %vm592, %v7330, 0.0
        %v7348 = vadd.f32 %v7329, %v7347
        %7349 = vadd.xlane.f32.xlu0 %v7348
        %v7350 = vpop.xlane.xlu0 %7349
        %v7351 = vsel %vm592, %v7332, 0.0
        %v7352 = vadd.f32 %v7331, %v7351
        %7353 = vadd.xlane.f32.xlu0 %v7352
        %v7354 = vpop.xlane.xlu0 %7353
        %v7355 = vsel %vm592, %v7334, 0.0
        %v7356 = vadd.f32 %v7333, %v7355
        %7357 = vadd.xlane.f32.xlu0 %v7356
        %v7358 = vpop.xlane.xlu0 %7357
        %v7359 = vadd.f32 %v7338, %v7342
        %v7360 = vadd.f32 %v7359, %v7346
        %v7361 = vadd.f32 %v7360, %v7350
        %v7362 = vadd.f32 %v7361, %v7354
        %v7363 = vadd.f32 %v7362, %v7358
        %v7364 = vrot.slane %v7363, 4
        %v7365 = vadd.f32 %v7363, %v7364
        %v7366 = vrot.slane %v7365, 2
        %v7367 = vadd.f32 %v7365, %v7366
        %v7368 = vrot.slane %v7367, 1
        %v7369 = vadd.f32 %v7367, %v7368
        %v7370 = vmul.f32 %v7369, 0.00013020834
        %v7371 = vadd.f32 %v7370, 1e-05
        %v7372 = vrsqrt.pop %v7371
        %v7373 = vmul.f32 %v7311, %v7372
        %v7374 = vmul.f32 %v7312, %v7372
        %v7375 = vmul.f32 %v7313, %v7372
        %v7376 = vmul.f32 %v7314, %v7372
        %v7377 = vmul.f32 %v7315, %v7372
        %v7378 = vmul.f32 %v7316, %v7372
        %v7379 = vmul.f32 %v7317, %v7372
        %v7380 = vmul.f32 %v7318, %v7372
        %v7381 = vmul.f32 %v7319, %v7372
        %v7382 = vmul.f32 %v7320, %v7372
        %v7383 = vmul.f32 %v7321, %v7372
        %v7384 = vmul.f32 %v7322, %v7372
        %v7385 = vsel %vm592, %v7374, -inf
        %v7386 = vmax.f32 %v7373, %v7385
        %7387 = vmax.xlane.f32.xlu0 %v7386
        %v7388 = vpop.xlane.xlu0 %7387
        %v7389 = vsel %vm592, %v7376, -inf
        %v7390 = vmax.f32 %v7375, %v7389
        %7391 = vmax.xlane.f32.xlu0 %v7390
        %v7392 = vpop.xlane.xlu0 %7391
        %v7393 = vsel %vm592, %v7378, -inf
        %v7394 = vmax.f32 %v7377, %v7393
        %7395 = vmax.xlane.f32.xlu0 %v7394
        %v7396 = vpop.xlane.xlu0 %7395
        %v7397 = vsel %vm592, %v7380, -inf
        %v7398 = vmax.f32 %v7379, %v7397
        %7399 = vmax.xlane.f32.xlu0 %v7398
        %v7400 = vpop.xlane.xlu0 %7399
        %v7401 = vsel %vm592, %v7382, -inf
        %v7402 = vmax.f32 %v7381, %v7401
        %7403 = vmax.xlane.f32.xlu0 %v7402
        %v7404 = vpop.xlane.xlu0 %7403
        %v7405 = vsel %vm592, %v7384, -inf
        %v7406 = vmax.f32 %v7383, %v7405
        %7407 = vmax.xlane.f32.xlu0 %v7406
        %v7408 = vpop.xlane.xlu0 %7407
        %v7409 = vsub.f32 %v7373, %v7388
        %v7410 = vsub.f32 %v7374, %v7388
        %v7411 = vsub.f32 %v7375, %v7392
        %v7412 = vsub.f32 %v7376, %v7392
        %v7413 = vsub.f32 %v7377, %v7396
        %v7414 = vsub.f32 %v7378, %v7396
        %v7415 = vsub.f32 %v7379, %v7400
        %v7416 = vsub.f32 %v7380, %v7400
        %v7417 = vsub.f32 %v7381, %v7404
        %v7418 = vsub.f32 %v7382, %v7404
        %v7419 = vsub.f32 %v7383, %v7408
        %v7420 = vsub.f32 %v7384, %v7408
        %v7421 = vmul.f32 %v7409, 1.442695
        %v7422 = vpow.pop %v7421
        %v7423 = vmul.f32 %v7410, 1.442695
        %v7424 = vpow.pop %v7423
        %v7425 = vmul.f32 %v7411, 1.442695
        %v7426 = vpow.pop %v7425
        %v7427 = vmul.f32 %v7412, 1.442695
        %v7428 = vpow.pop %v7427
        %v7429 = vmul.f32 %v7413, 1.442695
        %v7430 = vpow.pop %v7429
        %v7431 = vmul.f32 %v7414, 1.442695
        %v7432 = vpow.pop %v7431
        %v7433 = vmul.f32 %v7415, 1.442695
        %v7434 = vpow.pop %v7433
        %v7435 = vmul.f32 %v7416, 1.442695
        %v7436 = vpow.pop %v7435
        %v7437 = vmul.f32 %v7417, 1.442695
        %v7438 = vpow.pop %v7437
        %v7439 = vmul.f32 %v7418, 1.442695
        %v7440 = vpow.pop %v7439
        %v7441 = vmul.f32 %v7419, 1.442695
        %v7442 = vpow.pop %v7441
        %v7443 = vmul.f32 %v7420, 1.442695
        %v7444 = vpow.pop %v7443
        %v7445 = vsel %vm592, %v7424, 0.0
        %v7446 = vadd.f32 %v7422, %v7445
        %7447 = vadd.xlane.f32.xlu0 %v7446
        %v7448 = vpop.xlane.xlu0 %7447
        %v7449 = vsel %vm592, %v7428, 0.0
        %v7450 = vadd.f32 %v7426, %v7449
        %7451 = vadd.xlane.f32.xlu0 %v7450
        %v7452 = vpop.xlane.xlu0 %7451
        %v7453 = vsel %vm592, %v7432, 0.0
        %v7454 = vadd.f32 %v7430, %v7453
        %7455 = vadd.xlane.f32.xlu0 %v7454
        %v7456 = vpop.xlane.xlu0 %7455
        %v7457 = vsel %vm592, %v7436, 0.0
        %v7458 = vadd.f32 %v7434, %v7457
        %7459 = vadd.xlane.f32.xlu0 %v7458
        %v7460 = vpop.xlane.xlu0 %7459
        %v7461 = vsel %vm592, %v7440, 0.0
        %v7462 = vadd.f32 %v7438, %v7461
        %7463 = vadd.xlane.f32.xlu0 %v7462
        %v7464 = vpop.xlane.xlu0 %7463
        %v7465 = vsel %vm592, %v7444, 0.0
        %v7466 = vadd.f32 %v7442, %v7465
        %7467 = vadd.xlane.f32.xlu0 %v7466
        %v7468 = vpop.xlane.xlu0 %7467
        %v7469 = vrcp.pop %v7448
        %v7470 = vrcp.pop %v7452
        %v7471 = vrcp.pop %v7456
        %v7472 = vrcp.pop %v7460
        %v7473 = vrcp.pop %v7464
        %v7474 = vrcp.pop %v7468
        %v7475 = vmul.f32 %v7422, %v7469
        %v7476 = vmul.f32 %v7424, %v7469
        %v7477 = vmul.f32 %v7426, %v7470
        %v7478 = vmul.f32 %v7428, %v7470
        %v7479 = vmul.f32 %v7430, %v7471
        %v7480 = vmul.f32 %v7432, %v7471
        %v7481 = vmul.f32 %v7434, %v7472
        %v7482 = vmul.f32 %v7436, %v7472
        %v7483 = vmul.f32 %v7438, %v7473
        %v7484 = vmul.f32 %v7440, %v7473
        %v7485 = vmul.f32 %v7442, %v7474
        %v7486 = vmul.f32 %v7444, %v7474
        %v7487 = vpack.c.bf16 %v7477, %v7475
        %v7488 = vpack.c.bf16 %v7478, %v7476
        %v7489 = vpack.c.bf16 %v7481, %v7479
        %v7490 = vpack.c.bf16 %v7482, %v7480
        %v7491 = vpack.c.bf16 %v7485, %v7483
        %v7492 = vpack.c.bf16 %v7486, %v7484
        %v7494 = vsel %vm592, %v7488, 0
        %v7497 = vsel %vm592, %v7490, 0
        %v7500 = vsel %vm592, %v7492, 0
        %7502 = vmatprep.subr.bf16.mxu0 %v7021
        %7503 = vmatpush1.bf16.xpose.msra.mxu0 %v3005
        %7504 = vmatprep.subr.bf16.mxu0 0
        %7505 = vmatpush1.bf16.xpose.msra.mxu0 0
        %7506 = vmatprep.subr.bf16.mxu0 0
        %7507 = vmatpush1.bf16.xpose.msra.mxu0 0
        %7508 = vmatprep.subr.bf16.mxu0 0
        %7509 = vmatpush1.bf16.xpose.msra.mxu0 0
        %7510 = vmatprep.subr.bf16.mxu0 0
        %7511 = vmatpush1.bf16.xpose.msra.mxu0 0
        %7512 = vmatprep.subr.bf16.mxu0 0
        %7513 = vmatpush1.bf16.xpose.msra.mxu0 0
        %7514 = vmatprep.subr.bf16.mxu0 0
        %7515 = vmatpush1.bf16.xpose.msra.mxu0 0
        %7516 = vmatprep.subr.bf16.mxu0 0
        %7517 = vmatpush1.bf16.xpose.msra.mxu0 0
        %7518 = vmatprep.subr.bf16.mxu0 0
        %7519 = vmatpush1.bf16.xpose.msra.mxu0 0
        %7520 = vmatprep.subr.bf16.mxu0 0
        %7521 = vmatpush1.bf16.xpose.msra.mxu0 0
        %7522 = vmatprep.subr.bf16.mxu0 0
        %7523 = vmatpush1.bf16.xpose.msra.mxu0 0
        %7524 = vmatprep.subr.bf16.mxu0 0
        %7525 = vmatpush1.bf16.xpose.msra.mxu0 0
        %7526 = vmatprep.subr.bf16.mxu0 0
        %7527 = vmatpush1.bf16.xpose.msra.mxu0 0
        %7528 = vmatprep.subr.bf16.mxu0 0
        %7529 = vmatpush1.bf16.xpose.msra.mxu0 0
        %7530 = vmatprep.subr.bf16.mxu0 0
        %7531 = vmatpush1.bf16.xpose.msra.mxu0 0
        %7532 = vmatprep.subr.bf16.mxu0 0
        %7533 = vmatpush1.bf16.xpose.msra.mxu0 0
        %7534 = vmatprep.mubr.bf16.mxu0 %v7494
        %7535 = vmatmul.mubr.bf16.gmra.mrb[0].mxu0 %v7487
        %v7536 = vpop.f32.mrb[0].mxu0
        %v7537 = vadd.f32 0.0, %v7536
        %v7538 = vpop.f32.mrb[0].mxu0
        %v7539 = vpop.f32.mrb[0].mxu0
        %v7540 = vadd.f32 0.0, %v7539
        %v7541 = vpop.f32.mrb[0].mxu0
        %7542 = vmatprep.mubr.bf16.mxu0 %v7497
        %7543 = vmatmul.mubr.bf16.gmra.mrb[0].mxu0 %v7489
        %v7544 = vpop.f32.mrb[0].mxu0
        %v7545 = vadd.f32 0.0, %v7544
        %v7546 = vpop.f32.mrb[0].mxu0
        %v7547 = vpop.f32.mrb[0].mxu0
        %v7548 = vadd.f32 0.0, %v7547
        %v7549 = vpop.f32.mrb[0].mxu0
        %7550 = vmatprep.mubr.bf16.mxu0 %v7500
        %7551 = vmatmul.mubr.bf16.gmra.mrb[0].mxu0 %v7491
        %v7552 = vpop.f32.mrb[0].mxu0
        %v7553 = vadd.f32 0.0, %v7552
        %v7554 = vpop.f32.mrb[0].mxu0
        %v7555 = vpop.f32.mrb[0].mxu0
        %v7556 = vadd.f32 0.0, %v7555
        %v7557 = vpop.f32.mrb[0].mxu0
        %7558 = vdwg.mxu0
        %v7559 = vadd.f32 %v6317, %v7537
        %v7560 = vadd.f32 %v6318, %v7540
        %v7561 = vadd.f32 %v6319, %v7545
        %v7562 = vadd.f32 %v6320, %v7548
        %v7563 = vadd.f32 %v6321, %v7553
        %v7564 = vadd.f32 %v6322, %v7556
        %v7565 = vsel %vm592, %v6920, 0.0
        %v7566 = vadd.f32 %v6919, %v7565
        %7567 = vadd.xlane.f32.xlu0 %v7566
        %v7568 = vpop.xlane.xlu0 %7567
        %v7569 = vsel %vm592, %v6922, 0.0
        %v7570 = vadd.f32 %v6921, %v7569
        %7571 = vadd.xlane.f32.xlu0 %v7570
        %v7572 = vpop.xlane.xlu0 %7571
        %v7573 = vsel %vm592, %v6924, 0.0
        %v7574 = vadd.f32 %v6923, %v7573
        %7575 = vadd.xlane.f32.xlu0 %v7574
        %v7576 = vpop.xlane.xlu0 %7575
        %v7577 = vsel %vm592, %v6926, 0.0
        %v7578 = vadd.f32 %v6925, %v7577
        %7579 = vadd.xlane.f32.xlu0 %v7578
        %v7580 = vpop.xlane.xlu0 %7579
        %v7581 = vsel %vm592, %v6928, 0.0
        %v7582 = vadd.f32 %v6927, %v7581
        %7583 = vadd.xlane.f32.xlu0 %v7582
        %v7584 = vpop.xlane.xlu0 %7583
        %v7585 = vsel %vm592, %v6930, 0.0
        %v7586 = vadd.f32 %v6929, %v7585
        %7587 = vadd.xlane.f32.xlu0 %v7586
        %v7588 = vpop.xlane.xlu0 %7587
        %v7589 = vsel %vm592, %v6932, 0.0
        %v7590 = vadd.f32 %v6931, %v7589
        %7591 = vadd.xlane.f32.xlu0 %v7590
        %v7592 = vpop.xlane.xlu0 %7591
        %v7593 = vsel %vm592, %v6934, 0.0
        %v7594 = vadd.f32 %v6933, %v7593
        %7595 = vadd.xlane.f32.xlu0 %v7594
        %v7596 = vpop.xlane.xlu0 %7595
        %v7597 = vadd.f32 %v7568, %v7572
        %v7598 = vadd.f32 %v7597, %v7576
        %v7599 = vadd.f32 %v7598, %v7580
        %v7600 = vadd.f32 %v7599, %v7584
        %v7601 = vadd.f32 %v7600, %v7588
        %v7602 = vadd.f32 %v7601, %v7592
        %v7603 = vadd.f32 %v7602, %v7596
        %v7604 = vrot.slane %v7603, 4
        %v7605 = vadd.f32 %v7603, %v7604
        %v7606 = vrot.slane %v7605, 2
        %v7607 = vadd.f32 %v7605, %v7606
        %v7608 = vrot.slane %v7607, 1
        %v7609 = vadd.f32 %v7607, %v7608
        %v7610 = vmul.f32 %v7609, 9.765625e-05
        %v7611 = vsub.f32 %v6919, %v7610
        %v7612 = vsub.f32 %v6920, %v7610
        %v7613 = vsub.f32 %v6921, %v7610
        %v7614 = vsub.f32 %v6922, %v7610
        %v7615 = vsub.f32 %v6923, %v7610
        %v7616 = vsub.f32 %v6924, %v7610
        %v7617 = vsub.f32 %v6925, %v7610
        %v7618 = vsub.f32 %v6926, %v7610
        %v7619 = vsub.f32 %v6927, %v7610
        %v7620 = vsub.f32 %v6928, %v7610
        %v7621 = vsub.f32 %v6929, %v7610
        %v7622 = vsub.f32 %v6930, %v7610
        %v7623 = vsub.f32 %v6931, %v7610
        %v7624 = vsub.f32 %v6932, %v7610
        %v7625 = vsub.f32 %v6933, %v7610
        %v7626 = vsub.f32 %v6934, %v7610
        %v7627 = vmul.f32 %v7611, %v7611
        %v7628 = vmul.f32 %v7612, %v7612
        %v7629 = vmul.f32 %v7613, %v7613
        %v7630 = vmul.f32 %v7614, %v7614
        %v7631 = vmul.f32 %v7615, %v7615
        %v7632 = vmul.f32 %v7616, %v7616
        %v7633 = vmul.f32 %v7617, %v7617
        %v7634 = vmul.f32 %v7618, %v7618
        %v7635 = vmul.f32 %v7619, %v7619
        %v7636 = vmul.f32 %v7620, %v7620
        %v7637 = vmul.f32 %v7621, %v7621
        %v7638 = vmul.f32 %v7622, %v7622
        %v7639 = vmul.f32 %v7623, %v7623
        %v7640 = vmul.f32 %v7624, %v7624
        %v7641 = vmul.f32 %v7625, %v7625
        %v7642 = vmul.f32 %v7626, %v7626
        %v7643 = vsel %vm592, %v7628, 0.0
        %v7644 = vadd.f32 %v7627, %v7643
        %7645 = vadd.xlane.f32.xlu0 %v7644
        %v7646 = vpop.xlane.xlu0 %7645
        %v7647 = vsel %vm592, %v7630, 0.0
        %v7648 = vadd.f32 %v7629, %v7647
        %7649 = vadd.xlane.f32.xlu0 %v7648
        %v7650 = vpop.xlane.xlu0 %7649
        %v7651 = vsel %vm592, %v7632, 0.0
        %v7652 = vadd.f32 %v7631, %v7651
        %7653 = vadd.xlane.f32.xlu0 %v7652
        %v7654 = vpop.xlane.xlu0 %7653
        %v7655 = vsel %vm592, %v7634, 0.0
        %v7656 = vadd.f32 %v7633, %v7655
        %7657 = vadd.xlane.f32.xlu0 %v7656
        %v7658 = vpop.xlane.xlu0 %7657
        %v7659 = vsel %vm592, %v7636, 0.0
        %v7660 = vadd.f32 %v7635, %v7659
        %7661 = vadd.xlane.f32.xlu0 %v7660
        %v7662 = vpop.xlane.xlu0 %7661
        %v7663 = vsel %vm592, %v7638, 0.0
        %v7664 = vadd.f32 %v7637, %v7663
        %7665 = vadd.xlane.f32.xlu0 %v7664
        %v7666 = vpop.xlane.xlu0 %7665
        %v7667 = vsel %vm592, %v7640, 0.0
        %v7668 = vadd.f32 %v7639, %v7667
        %7669 = vadd.xlane.f32.xlu0 %v7668
        %v7670 = vpop.xlane.xlu0 %7669
        %v7671 = vsel %vm592, %v7642, 0.0
        %v7672 = vadd.f32 %v7641, %v7671
        %7673 = vadd.xlane.f32.xlu0 %v7672
        %v7674 = vpop.xlane.xlu0 %7673
        %v7675 = vadd.f32 %v7646, %v7650
        %v7676 = vadd.f32 %v7675, %v7654
        %v7677 = vadd.f32 %v7676, %v7658
        %v7678 = vadd.f32 %v7677, %v7662
        %v7679 = vadd.f32 %v7678, %v7666
        %v7680 = vadd.f32 %v7679, %v7670
        %v7681 = vadd.f32 %v7680, %v7674
        %v7682 = vrot.slane %v7681, 4
        %v7683 = vadd.f32 %v7681, %v7682
        %v7684 = vrot.slane %v7683, 2
        %v7685 = vadd.f32 %v7683, %v7684
        %v7686 = vrot.slane %v7685, 1
        %v7687 = vadd.f32 %v7685, %v7686
        %v7688 = vmul.f32 %v7687, 9.765625e-05
        %v7689 = vadd.f32 %v7688, 1e-05
        %v7690 = vrsqrt.pop %v7689
        %v7691 = vmul.f32 %v7611, %v7690
        %v7692 = vmul.f32 %v7612, %v7690
        %v7693 = vmul.f32 %v7613, %v7690
        %v7694 = vmul.f32 %v7614, %v7690
        %v7695 = vmul.f32 %v7615, %v7690
        %v7696 = vmul.f32 %v7616, %v7690
        %v7697 = vmul.f32 %v7617, %v7690
        %v7698 = vmul.f32 %v7618, %v7690
        %v7699 = vmul.f32 %v7619, %v7690
        %v7700 = vmul.f32 %v7620, %v7690
        %v7701 = vmul.f32 %v7621, %v7690
        %v7702 = vmul.f32 %v7622, %v7690
        %v7703 = vmul.f32 %v7623, %v7690
        %v7704 = vmul.f32 %v7624, %v7690
        %v7705 = vmul.f32 %v7625, %v7690
        %v7706 = vmul.f32 %v7626, %v7690
        %v7707 = vsel %vm592, %v7692, -inf
        %v7708 = vmax.f32 %v7691, %v7707
        %7709 = vmax.xlane.f32.xlu0 %v7708
        %v7710 = vpop.xlane.xlu0 %7709
        %v7711 = vsel %vm592, %v7694, -inf
        %v7712 = vmax.f32 %v7693, %v7711
        %7713 = vmax.xlane.f32.xlu0 %v7712
        %v7714 = vpop.xlane.xlu0 %7713
        %v7715 = vsel %vm592, %v7696, -inf
        %v7716 = vmax.f32 %v7695, %v7715
        %7717 = vmax.xlane.f32.xlu0 %v7716
        %v7718 = vpop.xlane.xlu0 %7717
        %v7719 = vsel %vm592, %v7698, -inf
        %v7720 = vmax.f32 %v7697, %v7719
        %7721 = vmax.xlane.f32.xlu0 %v7720
        %v7722 = vpop.xlane.xlu0 %7721
        %v7723 = vsel %vm592, %v7700, -inf
        %v7724 = vmax.f32 %v7699, %v7723
        %7725 = vmax.xlane.f32.xlu0 %v7724
        %v7726 = vpop.xlane.xlu0 %7725
        %v7727 = vsel %vm592, %v7702, -inf
        %v7728 = vmax.f32 %v7701, %v7727
        %7729 = vmax.xlane.f32.xlu0 %v7728
        %v7730 = vpop.xlane.xlu0 %7729
        %v7731 = vsel %vm592, %v7704, -inf
        %v7732 = vmax.f32 %v7703, %v7731
        %7733 = vmax.xlane.f32.xlu0 %v7732
        %v7734 = vpop.xlane.xlu0 %7733
        %v7735 = vsel %vm592, %v7706, -inf
        %v7736 = vmax.f32 %v7705, %v7735
        %7737 = vmax.xlane.f32.xlu0 %v7736
        %v7738 = vpop.xlane.xlu0 %7737
        %v7739 = vsub.f32 %v7691, %v7710
        %v7740 = vsub.f32 %v7692, %v7710
        %v7741 = vsub.f32 %v7693, %v7714
        %v7742 = vsub.f32 %v7694, %v7714
        %v7743 = vsub.f32 %v7695, %v7718
        %v7744 = vsub.f32 %v7696, %v7718
        %v7745 = vsub.f32 %v7697, %v7722
        %v7746 = vsub.f32 %v7698, %v7722
        %v7747 = vsub.f32 %v7699, %v7726
        %v7748 = vsub.f32 %v7700, %v7726
        %v7749 = vsub.f32 %v7701, %v7730
        %v7750 = vsub.f32 %v7702, %v7730
        %v7751 = vsub.f32 %v7703, %v7734
        %v7752 = vsub.f32 %v7704, %v7734
        %v7753 = vsub.f32 %v7705, %v7738
        %v7754 = vsub.f32 %v7706, %v7738
        %v7755 = vmul.f32 %v7739, 1.442695
        %v7756 = vpow.pop %v7755
        %v7757 = vmul.f32 %v7740, 1.442695
        %v7758 = vpow.pop %v7757
        %v7759 = vmul.f32 %v7741, 1.442695
        %v7760 = vpow.pop %v7759
        %v7761 = vmul.f32 %v7742, 1.442695
        %v7762 = vpow.pop %v7761
        %v7763 = vmul.f32 %v7743, 1.442695
        %v7764 = vpow.pop %v7763
        %v7765 = vmul.f32 %v7744, 1.442695
        %v7766 = vpow.pop %v7765
        %v7767 = vmul.f32 %v7745, 1.442695
        %v7768 = vpow.pop %v7767
        %v7769 = vmul.f32 %v7746, 1.442695
        %v7770 = vpow.pop %v7769
        %v7771 = vmul.f32 %v7747, 1.442695
        %v7772 = vpow.pop %v7771
        %v7773 = vmul.f32 %v7748, 1.442695
        %v7774 = vpow.pop %v7773
        %v7775 = vmul.f32 %v7749, 1.442695
        %v7776 = vpow.pop %v7775
        %v7777 = vmul.f32 %v7750, 1.442695
        %v7778 = vpow.pop %v7777
        %v7779 = vmul.f32 %v7751, 1.442695
        %v7780 = vpow.pop %v7779
        %v7781 = vmul.f32 %v7752, 1.442695
        %v7782 = vpow.pop %v7781
        %v7783 = vmul.f32 %v7753, 1.442695
        %v7784 = vpow.pop %v7783
        %v7785 = vmul.f32 %v7754, 1.442695
        %v7786 = vpow.pop %v7785
        %v7787 = vsel %vm592, %v7758, 0.0
        %v7788 = vadd.f32 %v7756, %v7787
        %7789 = vadd.xlane.f32.xlu0 %v7788
        %v7790 = vpop.xlane.xlu0 %7789
        %v7791 = vsel %vm592, %v7762, 0.0
        %v7792 = vadd.f32 %v7760, %v7791
        %7793 = vadd.xlane.f32.xlu0 %v7792
        %v7794 = vpop.xlane.xlu0 %7793
        %v7795 = vsel %vm592, %v7766, 0.0
        %v7796 = vadd.f32 %v7764, %v7795
        %7797 = vadd.xlane.f32.xlu0 %v7796
        %v7798 = vpop.xlane.xlu0 %7797
        %v7799 = vsel %vm592, %v7770, 0.0
        %v7800 = vadd.f32 %v7768, %v7799
        %7801 = vadd.xlane.f32.xlu0 %v7800
        %v7802 = vpop.xlane.xlu0 %7801
        %v7803 = vsel %vm592, %v7774, 0.0
        %v7804 = vadd.f32 %v7772, %v7803
        %7805 = vadd.xlane.f32.xlu0 %v7804
        %v7806 = vpop.xlane.xlu0 %7805
        %v7807 = vsel %vm592, %v7778, 0.0
        %v7808 = vadd.f32 %v7776, %v7807
        %7809 = vadd.xlane.f32.xlu0 %v7808
        %v7810 = vpop.xlane.xlu0 %7809
        %v7811 = vsel %vm592, %v7782, 0.0
        %v7812 = vadd.f32 %v7780, %v7811
        %7813 = vadd.xlane.f32.xlu0 %v7812
        %v7814 = vpop.xlane.xlu0 %7813
        %v7815 = vsel %vm592, %v7786, 0.0
        %v7816 = vadd.f32 %v7784, %v7815
        %7817 = vadd.xlane.f32.xlu0 %v7816
        %v7818 = vpop.xlane.xlu0 %7817
        %v7819 = vrcp.pop %v7790
        %v7820 = vrcp.pop %v7794
        %v7821 = vrcp.pop %v7798
        %v7822 = vrcp.pop %v7802
        %v7823 = vrcp.pop %v7806
        %v7824 = vrcp.pop %v7810
        %v7825 = vrcp.pop %v7814
        %v7826 = vrcp.pop %v7818
        %v7827 = vmul.f32 %v7756, %v7819
        %v7828 = vmul.f32 %v7758, %v7819
        %v7829 = vmul.f32 %v7760, %v7820
        %v7830 = vmul.f32 %v7762, %v7820
        %v7831 = vmul.f32 %v7764, %v7821
        %v7832 = vmul.f32 %v7766, %v7821
        %v7833 = vmul.f32 %v7768, %v7822
        %v7834 = vmul.f32 %v7770, %v7822
        %v7835 = vmul.f32 %v7772, %v7823
        %v7836 = vmul.f32 %v7774, %v7823
        %v7837 = vmul.f32 %v7776, %v7824
        %v7838 = vmul.f32 %v7778, %v7824
        %v7839 = vmul.f32 %v7780, %v7825
        %v7840 = vmul.f32 %v7782, %v7825
        %v7841 = vmul.f32 %v7784, %v7826
        %v7842 = vmul.f32 %v7786, %v7826
        %v7843 = vpack.c.bf16 %v7829, %v7827
        %v7844 = vpack.c.bf16 %v7830, %v7828
        %v7845 = vpack.c.bf16 %v7833, %v7831
        %v7846 = vpack.c.bf16 %v7834, %v7832
        %v7847 = vpack.c.bf16 %v7837, %v7835
        %v7848 = vpack.c.bf16 %v7838, %v7836
        %v7849 = vpack.c.bf16 %v7841, %v7839
        %v7850 = vpack.c.bf16 %v7842, %v7840
        %v7852 = vsel %vm592, %v7844, 0
        %v7855 = vsel %vm592, %v7846, 0
        %v7858 = vsel %vm592, %v7848, 0
        %v7861 = vsel %vm592, %v7850, 0
        %7863 = vmatprep.subr.bf16.mxu0 %v7021
        %7864 = vmatpush1.bf16.xpose.msra.mxu0 %v3005
        %7865 = vmatprep.subr.bf16.mxu0 0
        %7866 = vmatpush1.bf16.xpose.msra.mxu0 0
        %7867 = vmatprep.subr.bf16.mxu0 0
        %7868 = vmatpush1.bf16.xpose.msra.mxu0 0
        %7869 = vmatprep.subr.bf16.mxu0 0
        %7870 = vmatpush1.bf16.xpose.msra.mxu0 0
        %7871 = vmatprep.subr.bf16.mxu0 0
        %7872 = vmatpush1.bf16.xpose.msra.mxu0 0
        %7873 = vmatprep.subr.bf16.mxu0 0
        %7874 = vmatpush1.bf16.xpose.msra.mxu0 0
        %7875 = vmatprep.subr.bf16.mxu0 0
        %7876 = vmatpush1.bf16.xpose.msra.mxu0 0
        %7877 = vmatprep.subr.bf16.mxu0 0
        %7878 = vmatpush1.bf16.xpose.msra.mxu0 0
        %7879 = vmatprep.subr.bf16.mxu0 0
        %7880 = vmatpush1.bf16.xpose.msra.mxu0 0
        %7881 = vmatprep.subr.bf16.mxu0 0
        %7882 = vmatpush1.bf16.xpose.msra.mxu0 0
        %7883 = vmatprep.subr.bf16.mxu0 0
        %7884 = vmatpush1.bf16.xpose.msra.mxu0 0
        %7885 = vmatprep.subr.bf16.mxu0 0
        %7886 = vmatpush1.bf16.xpose.msra.mxu0 0
        %7887 = vmatprep.subr.bf16.mxu0 0
        %7888 = vmatpush1.bf16.xpose.msra.mxu0 0
        %7889 = vmatprep.subr.bf16.mxu0 0
        %7890 = vmatpush1.bf16.xpose.msra.mxu0 0
        %7891 = vmatprep.subr.bf16.mxu0 0
        %7892 = vmatpush1.bf16.xpose.msra.mxu0 0
        %7893 = vmatprep.subr.bf16.mxu0 0
        %7894 = vmatpush1.bf16.xpose.msra.mxu0 0
        %7895 = vmatprep.mubr.bf16.mxu0 %v7852
        %7896 = vmatmul.mubr.bf16.gmra.mrb[0].mxu0 %v7843
        %v7897 = vpop.f32.mrb[0].mxu0
        %v7898 = vadd.f32 0.0, %v7897
        %v7899 = vpop.f32.mrb[0].mxu0
        %v7900 = vpop.f32.mrb[0].mxu0
        %v7901 = vadd.f32 0.0, %v7900
        %v7902 = vpop.f32.mrb[0].mxu0
        %7903 = vmatprep.mubr.bf16.mxu0 %v7855
        %7904 = vmatmul.mubr.bf16.gmra.mrb[0].mxu0 %v7845
        %v7905 = vpop.f32.mrb[0].mxu0
        %v7906 = vadd.f32 0.0, %v7905
        %v7907 = vpop.f32.mrb[0].mxu0
        %v7908 = vpop.f32.mrb[0].mxu0
        %v7909 = vadd.f32 0.0, %v7908
        %v7910 = vpop.f32.mrb[0].mxu0
        %7911 = vmatprep.mubr.bf16.mxu0 %v7858
        %7912 = vmatmul.mubr.bf16.gmra.mrb[0].mxu0 %v7847
        %v7913 = vpop.f32.mrb[0].mxu0
        %v7914 = vadd.f32 0.0, %v7913
        %v7915 = vpop.f32.mrb[0].mxu0
        %v7916 = vpop.f32.mrb[0].mxu0
        %v7917 = vadd.f32 0.0, %v7916
        %v7918 = vpop.f32.mrb[0].mxu0
        %7919 = vmatprep.mubr.bf16.mxu0 %v7861
        %7920 = vmatmul.mubr.bf16.gmra.mrb[0].mxu0 %v7849
        %v7921 = vpop.f32.mrb[0].mxu0
        %v7922 = vadd.f32 0.0, %v7921
        %v7923 = vpop.f32.mrb[0].mxu0
        %v7924 = vpop.f32.mrb[0].mxu0
        %v7925 = vadd.f32 0.0, %v7924
        %v7926 = vpop.f32.mrb[0].mxu0
        %7927 = vdwg.mxu0
        %v7928 = vadd.f32 %v6686, %v7898
        %v7929 = vadd.f32 %v6687, %v7901
        %v7930 = vadd.f32 %v6688, %v7906
        %v7931 = vadd.f32 %v6689, %v7909
        %v7932 = vadd.f32 %v6690, %v7914
        %v7933 = vadd.f32 %v6691, %v7917
        %v7934 = vadd.f32 %v6692, %v7922
        %v7935 = vadd.f32 %v6693, %v7925
        %v7936 = vmul.f32 %v7064, 0.25
        %v7937 = vmul.f32 %v7065, 0.25
        %v7938 = vmul.f32 %v7271, 0.25
        %v7939 = vmul.f32 %v7272, 0.25
        %v7940 = vmul.f32 %v7273, 0.25
        %v7941 = vmul.f32 %v7274, 0.25
        %v7942 = vmul.f32 %v7559, 0.25
        %v7943 = vmul.f32 %v7560, 0.25
        %v7944 = vmul.f32 %v7561, 0.25
        %v7945 = vmul.f32 %v7562, 0.25
        %v7946 = vmul.f32 %v7563, 0.25
        %v7947 = vmul.f32 %v7564, 0.25
        %v7948 = vmul.f32 %v7928, 0.25
        %v7949 = vmul.f32 %v7929, 0.25
        %v7950 = vmul.f32 %v7930, 0.25
        %v7951 = vmul.f32 %v7931, 0.25
        %v7952 = vmul.f32 %v7932, 0.25
        %v7953 = vmul.f32 %v7933, 0.25
        %v7954 = vmul.f32 %v7934, 0.25
        %v7955 = vmul.f32 %v7935, 0.25
        %v7956 = vpack.c.bf16 %v7937, %v7936
        %v7957 = vpack.c.bf16 %v7939, %v7938
        %v7958 = vpack.c.bf16 %v7941, %v7940
        %v7959 = vpack.c.bf16 %v7943, %v7942
        %v7960 = vpack.c.bf16 %v7945, %v7944
        %v7961 = vpack.c.bf16 %v7947, %v7946
        %v7962 = vpack.c.bf16 %v7949, %v7948
        %v7963 = vpack.c.bf16 %v7951, %v7950
        %v7964 = vpack.c.bf16 %v7953, %v7952
        %v7965 = vpack.c.bf16 %v7955, %v7954
        %v7966 = vld [vmem:[#allocation4] sm:$0xff]
        %v7967 = vld [vmem:[#allocation4 + $0x8] sm:$0xff]
        %v7968 = vld [vmem:[#allocation4 + $0x10] sm:$0xff]
        %v7969 = vld [vmem:[#allocation4 + $0x18] sm:$0xff]
        %v7970 = vld [vmem:[#allocation4 + $0x20] sm:$0xff]
        %v7971 = vld [vmem:[#allocation4 + $0x28] sm:$0xff]
        %v7972 = vld [vmem:[#allocation4 + $0x30] sm:$0xff]
        %v7973 = vld [vmem:[#allocation4 + $0x38] sm:$0xff]
        %v7974 = vld [vmem:[#allocation4 + $0x40] sm:$0xff]
        %v7975 = vld [vmem:[#allocation4 + $0x48] sm:$0xff]
        %v7976 = vld [vmem:[#allocation4 + $0x50] sm:$0xff]
        %v7977 = vld [vmem:[#allocation4 + $0x58] sm:$0xff]
        %v7978 = vld [vmem:[#allocation4 + $0x60] sm:$0xff]
        %v7979 = vld [vmem:[#allocation4 + $0x68] sm:$0xff]
        %v7980 = vld [vmem:[#allocation4 + $0x70] sm:$0xff]
        %v7981 = vld [vmem:[#allocation4 + $0x78] sm:$0xff]
        %v7982 = vld [vmem:[#allocation4 + $0x80] sm:$0xff]
        %v7983 = vld [vmem:[#allocation4 + $0x88] sm:$0xff]
        %v7984 = vld [vmem:[#allocation4 + $0x90] sm:$0xff]
        %v7985 = vld [vmem:[#allocation4 + $0x98] sm:$0xff]
        %7986 = vxpose.xlu0.c.b16.start [1/8] %v7956, 128
        %7987 = vxpose.xlu0.c.b16.cont [2/8] %v7957, 128
        %7988 = vxpose.xlu0.c.b16.cont [3/8] %v7958, 128
        %7989 = vxpose.xlu0.c.b16.cont [4/8] %v7959, 128
        %7990 = vxpose.xlu0.c.b16.cont [5/8] %v7960, 128
        %7991 = vxpose.xlu0.c.b16.cont [6/8] %v7961, 128
        %7992 = vxpose.xlu0.c.b16.cont [7/8] %v7962, 128
        %7993 = vxpose.xlu0.c.b16.end [8/8] %v7963, 128
        %v7994 = vpop.trf.xlu0
        %v7995 = vpop.trf.xlu0
        %v7996 = vpop.trf.xlu0
        %v7997 = vpop.trf.xlu0
        %v7998 = vpop.trf.xlu0
        %v7999 = vpop.trf.xlu0
        %v8000 = vpop.trf.xlu0
        %v8001 = vpop.trf.xlu0
        %8002 = vxpose.xlu0.c.b16.start [1/8] %v7964, 128
        %8003 = vxpose.xlu0.c.b16.cont [2/8] %v7965, 128
        %8004 = vxpose.xlu0.c.b16.cont [3/8] 0, 128
        %8005 = vxpose.xlu0.c.b16.cont [4/8] 0, 128
        %8006 = vxpose.xlu0.c.b16.cont [5/8] 0, 128
        %8007 = vxpose.xlu0.c.b16.cont [6/8] 0, 128
        %8008 = vxpose.xlu0.c.b16.cont [7/8] 0, 128
        %8009 = vxpose.xlu0.c.b16.end [8/8] 0, 128
        %v8010 = vpop.trf.xlu0
        %v8011 = vpop.trf.xlu0
        %v8012 = vpop.trf.xlu0
        %v8013 = vpop.trf.xlu0
        %v8014 = vpop.trf.xlu0
        %v8015 = vpop.trf.xlu0
        %v8016 = vpop.trf.xlu0
        %v8017 = vpop.trf.xlu0
        %v8038 = vunpack.c.l.b16 %v7966
        %v8039 = vunpack.c.h.b16 %v7966
        %v8040 = vunpack.c.l.b16 %v7967
        %v8041 = vunpack.c.h.b16 %v7967
        %v8042 = vunpack.c.l.b16 %v7968
        %v8043 = vunpack.c.h.b16 %v7968
        %v8044 = vunpack.c.l.b16 %v7969
        %v8045 = vunpack.c.h.b16 %v7969
        %v8046 = vunpack.c.l.b16 %v7970
        %v8047 = vunpack.c.h.b16 %v7970
        %v8048 = vunpack.c.l.b16 %v7971
        %v8049 = vunpack.c.h.b16 %v7971
        %v8050 = vunpack.c.l.b16 %v7972
        %v8051 = vunpack.c.h.b16 %v7972
        %v8052 = vunpack.c.l.b16 %v7973
        %v8053 = vunpack.c.h.b16 %v7973
        %v8054 = vunpack.c.l.b16 %v7974
        %v8055 = vunpack.c.h.b16 %v7974
        %v8056 = vunpack.c.l.b16 %v7975
        %v8057 = vunpack.c.h.b16 %v7975
        %v8058 = vunpack.c.l.b16 %v7976
        %v8059 = vunpack.c.h.b16 %v7976
        %v8060 = vunpack.c.l.b16 %v7977
        %v8061 = vunpack.c.h.b16 %v7977
        %v8062 = vunpack.c.l.b16 %v7978
        %v8063 = vunpack.c.h.b16 %v7978
        %v8064 = vunpack.c.l.b16 %v7979
        %v8065 = vunpack.c.h.b16 %v7979
        %v8066 = vunpack.c.l.b16 %v7980
        %v8067 = vunpack.c.h.b16 %v7980
        %v8068 = vunpack.c.l.b16 %v7981
        %v8069 = vunpack.c.h.b16 %v7981
        %v8070 = vunpack.c.l.b16 %v7982
        %v8071 = vunpack.c.h.b16 %v7982
        %v8072 = vunpack.c.l.b16 %v7983
        %v8073 = vunpack.c.h.b16 %v7983
        %v8074 = vunpack.c.l.b16 %v7984
        %v8075 = vunpack.c.h.b16 %v7984
        %v8076 = vunpack.c.l.b16 %v7985
        %v8077 = vunpack.c.h.b16 %v7985
        %v8078 = vpack.c.b16 %v8040, %v8038
        %v8079 = vpack.c.b16 %v8041, %v8039
        %v8080 = vpack.c.b16 %v8044, %v8042
        %v8081 = vpack.c.b16 %v8045, %v8043
        %v8082 = vpack.c.b16 %v8048, %v8046
        %v8083 = vpack.c.b16 %v8049, %v8047
        %v8084 = vpack.c.b16 %v8052, %v8050
        %v8085 = vpack.c.b16 %v8053, %v8051
        %v8086 = vpack.c.b16 %v8056, %v8054
        %v8087 = vpack.c.b16 %v8057, %v8055
        %v8088 = vpack.c.b16 %v8060, %v8058
        %v8089 = vpack.c.b16 %v8061, %v8059
        %v8090 = vpack.c.b16 %v8064, %v8062
        %v8091 = vpack.c.b16 %v8065, %v8063
        %v8092 = vpack.c.b16 %v8068, %v8066
        %v8093 = vpack.c.b16 %v8069, %v8067
        %v8094 = vpack.c.b16 %v8072, %v8070
        %v8095 = vpack.c.b16 %v8073, %v8071
        %v8096 = vpack.c.b16 %v8076, %v8074
        %v8097 = vpack.c.b16 %v8077, %v8075
        %v8119 = vsel %vm592, %v8010, 0
        %8121 = vmatprep.subr.bf16.mxu0 %v8079
        %8122 = vmatpush1.bf16.msra.mxu0 %v8078
        %8123 = vmatprep.subr.bf16.mxu0 %v8081
        %8124 = vmatpush1.bf16.msra.mxu0 %v8080
        %8125 = vmatprep.subr.bf16.mxu0 %v8083
        %8126 = vmatpush1.bf16.msra.mxu0 %v8082
        %8127 = vmatprep.subr.bf16.mxu0 %v8085
        %8128 = vmatpush1.bf16.msra.mxu0 %v8084
        %8129 = vmatprep.subr.bf16.mxu0 %v8087
        %8130 = vmatpush1.bf16.msra.mxu0 %v8086
        %8131 = vmatprep.subr.bf16.mxu0 %v8089
        %8132 = vmatpush1.bf16.msra.mxu0 %v8088
        %8133 = vmatprep.subr.bf16.mxu0 %v8091
        %8134 = vmatpush1.bf16.msra.mxu0 %v8090
        %8135 = vmatprep.subr.bf16.mxu0 %v8093
        %8136 = vmatpush1.bf16.msra.mxu0 %v8092
        %8137 = vmatprep.subr.bf16.mxu0 %v8095
        %8138 = vmatpush1.bf16.msra.mxu0 %v8094
        %8139 = vmatprep.subr.bf16.mxu0 %v8097
        %8140 = vmatpush1.bf16.msra.mxu0 %v8096
        %8141 = vmatprep.subr.bf16.mxu0 0
        %8142 = vmatpush1.bf16.msra.mxu0 0
        %8143 = vmatprep.subr.bf16.mxu0 0
        %8144 = vmatpush1.bf16.msra.mxu0 0
        %8145 = vmatprep.subr.bf16.mxu0 0
        %8146 = vmatpush1.bf16.msra.mxu0 0
        %8147 = vmatprep.subr.bf16.mxu0 0
        %8148 = vmatpush1.bf16.msra.mxu0 0
        %8149 = vmatprep.subr.bf16.mxu0 0
        %8150 = vmatpush1.bf16.msra.mxu0 0
        %8151 = vmatprep.subr.bf16.mxu0 0
        %8152 = vmatpush1.bf16.msra.mxu0 0
        %8153 = vmatprep.mubr.bf16.mxu0 %v8119
        %8154 = vmatmul.mubr.bf16.gmra.mrb[0].mxu0 %v7994
        %v8155 = vpop.f32.mrb[0].mxu0
        %v8156 = vadd.f32 0.0, %v8155
        %v8157 = vpop.f32.mrb[0].mxu0
        %v8158 = vadd.f32 0.0, %v8157
        %v8159 = vpop.f32.mrb[0].mxu0
        %v8160 = vpop.f32.mrb[0].mxu0
        %8161 = vdwg.mxu0
        %v8162 = vadd.f32 %v567, %v8156
        %v8163 = vadd.f32 %v568, %v8158
        %v8164 = vld [vmem:[%s7] sm:$0x3]
        %v8165 = vld [vmem:[%s8] sm:$0x3]
        %v8167 = vsel %vm592, %v8163, 0
        %8169 = vmatprep.subr.mxu0 0.0
        %8170 = vmatpush1.msra.mxu0 %v569
        %8171 = vmatprep.subr.mxu0 0.0
        %8172 = vmatpush1.msra.mxu0 %v570
        %8173 = vmatprep.subr.mxu0 0.0
        %8174 = vmatpush1.msra.mxu0 %v571
        %8175 = vmatprep.subr.mxu0 0.0
        %8176 = vmatpush1.msra.mxu0 %v572
        %8177 = vmatprep.subr.mxu0 0.0
        %8178 = vmatpush1.msra.mxu0 %v573
        %8179 = vmatprep.subr.mxu0 0.0
        %8180 = vmatpush1.msra.mxu0 %v574
        %8181 = vmatprep.subr.mxu0 0.0
        %8182 = vmatpush1.msra.mxu0 %v575
        %8183 = vmatprep.subr.mxu0 0.0
        %8184 = vmatpush1.msra.mxu0 %v576
        %8185 = vmatprep.subr.mxu0 0.0
        %8186 = vmatpush1.msra.mxu0 %v577
        %8187 = vmatprep.subr.mxu0 0.0
        %8188 = vmatpush1.msra.mxu0 %v578
        %8189 = vmatprep.subr.mxu0 0.0
        %8190 = vmatpush1.msra.mxu0 %v579
        %8191 = vmatprep.subr.mxu0 0.0
        %8192 = vmatpush1.msra.mxu0 %v580
        %8193 = vmatprep.subr.mxu0 0.0
        %8194 = vmatpush1.msra.mxu0 %v581
        %8195 = vmatprep.subr.mxu0 0.0
        %8196 = vmatpush1.msra.mxu0 %v582
        %8197 = vmatprep.subr.mxu0 0.0
        %8198 = vmatpush1.msra.mxu0 %v583
        %8199 = vmatprep.subr.mxu0 0.0
        %8200 = vmatpush1.msra.mxu0 %v584
        %8201 = vmatprep.subr.mxu0 0.0
        %8202 = vmatpush1.msra.mxu0 %v585
        %8203 = vmatprep.subr.mxu0 0.0
        %8204 = vmatpush1.msra.mxu0 %v586
        %8205 = vmatprep.subr.mxu0 0.0
        %8206 = vmatpush1.msra.mxu0 %v587
        %8207 = vmatprep.subr.mxu0 0.0
        %8208 = vmatpush1.msra.mxu0 %v588
        %8209 = vmatprep.subr.mxu0 0.0
        %8210 = vmatpush1.msra.mxu0 0.0
        %8211 = vmatprep.subr.mxu0 0.0
        %8212 = vmatpush1.msra.mxu0 0.0
        %8213 = vmatprep.subr.mxu0 0.0
        %8214 = vmatpush1.msra.mxu0 0.0
        %8215 = vmatprep.subr.mxu0 0.0
        %8216 = vmatpush1.msra.mxu0 0.0
        %8217 = vmatprep.subr.mxu0 0.0
        %8218 = vmatpush1.msra.mxu0 0.0
        %8219 = vmatprep.subr.mxu0 0.0
        %8220 = vmatpush1.msra.mxu0 0.0
        %8221 = vmatprep.subr.mxu0 0.0
        %8222 = vmatpush1.msra.mxu0 0.0
        %8223 = vmatprep.subr.mxu0 0.0
        %8224 = vmatpush1.msra.mxu0 0.0
        %8225 = vmatprep.subr.mxu0 0.0
        %8226 = vmatpush1.msra.mxu0 0.0
        %8227 = vmatprep.subr.mxu0 0.0
        %8228 = vmatpush1.msra.mxu0 0.0
        %8229 = vmatprep.subr.mxu0 0.0
        %8230 = vmatpush1.msra.mxu0 0.0
        %8231 = vmatprep.subr.mxu0 0.0
        %8232 = vmatpush1.msra.mxu0 0.0
        %8233 = vmatprep.mubr.f32.mxu0 %v8167
        %8234 = vmatmul.mubr.f32.gmra.mrb[0].mxu0 %v8162
        %v8235 = vpop.f32.mrb[0].mxu0
        %v8236 = vadd.f32 0.0, %v8235
        %v8237 = vpop.f32.mrb[0].mxu0
        %8238 = vdwg.mxu0
        %v8239 = vmul.f32 %v8162, %v8162
        %v8240 = vmul.f32 %v8163, %v8163
        %v8242 = vsel %vm592, %v8240, 0
        %8244 = vmatprep.subr.mxu0 0.0
        %8245 = vmatpush1.msra.mxu0 %v569
        %8246 = vmatprep.subr.mxu0 0.0
        %8247 = vmatpush1.msra.mxu0 %v570
        %8248 = vmatprep.subr.mxu0 0.0
        %8249 = vmatpush1.msra.mxu0 %v571
        %8250 = vmatprep.subr.mxu0 0.0
        %8251 = vmatpush1.msra.mxu0 %v572
        %8252 = vmatprep.subr.mxu0 0.0
        %8253 = vmatpush1.msra.mxu0 %v573
        %8254 = vmatprep.subr.mxu0 0.0
        %8255 = vmatpush1.msra.mxu0 %v574
        %8256 = vmatprep.subr.mxu0 0.0
        %8257 = vmatpush1.msra.mxu0 %v575
        %8258 = vmatprep.subr.mxu0 0.0
        %8259 = vmatpush1.msra.mxu0 %v576
        %8260 = vmatprep.subr.mxu0 0.0
        %8261 = vmatpush1.msra.mxu0 %v577
        %8262 = vmatprep.subr.mxu0 0.0
        %8263 = vmatpush1.msra.mxu0 %v578
        %8264 = vmatprep.subr.mxu0 0.0
        %8265 = vmatpush1.msra.mxu0 %v579
        %8266 = vmatprep.subr.mxu0 0.0
        %8267 = vmatpush1.msra.mxu0 %v580
        %8268 = vmatprep.subr.mxu0 0.0
        %8269 = vmatpush1.msra.mxu0 %v581
        %8270 = vmatprep.subr.mxu0 0.0
        %8271 = vmatpush1.msra.mxu0 %v582
        %8272 = vmatprep.subr.mxu0 0.0
        %8273 = vmatpush1.msra.mxu0 %v583
        %8274 = vmatprep.subr.mxu0 0.0
        %8275 = vmatpush1.msra.mxu0 %v584
        %8276 = vmatprep.subr.mxu0 0.0
        %8277 = vmatpush1.msra.mxu0 %v585
        %8278 = vmatprep.subr.mxu0 0.0
        %8279 = vmatpush1.msra.mxu0 %v586
        %8280 = vmatprep.subr.mxu0 0.0
        %8281 = vmatpush1.msra.mxu0 %v587
        %8282 = vmatprep.subr.mxu0 0.0
        %8283 = vmatpush1.msra.mxu0 %v588
        %8284 = vmatprep.subr.mxu0 0.0
        %8285 = vmatpush1.msra.mxu0 0.0
        %8286 = vmatprep.subr.mxu0 0.0
        %8287 = vmatpush1.msra.mxu0 0.0
        %8288 = vmatprep.subr.mxu0 0.0
        %8289 = vmatpush1.msra.mxu0 0.0
        %8290 = vmatprep.subr.mxu0 0.0
        %8291 = vmatpush1.msra.mxu0 0.0
        %8292 = vmatprep.subr.mxu0 0.0
        %8293 = vmatpush1.msra.mxu0 0.0
        %8294 = vmatprep.subr.mxu0 0.0
        %8295 = vmatpush1.msra.mxu0 0.0
        %8296 = vmatprep.subr.mxu0 0.0
        %8297 = vmatpush1.msra.mxu0 0.0
        %8298 = vmatprep.subr.mxu0 0.0
        %8299 = vmatpush1.msra.mxu0 0.0
        %8300 = vmatprep.subr.mxu0 0.0
        %8301 = vmatpush1.msra.mxu0 0.0
        %8302 = vmatprep.subr.mxu0 0.0
        %8303 = vmatpush1.msra.mxu0 0.0
        %8304 = vmatprep.subr.mxu0 0.0
        %8305 = vmatpush1.msra.mxu0 0.0
        %8306 = vmatprep.subr.mxu0 0.0
        %8307 = vmatpush1.msra.mxu0 0.0
        %8308 = vmatprep.mubr.f32.mxu0 %v8242
        %8309 = vmatmul.mubr.f32.gmra.mrb[0].mxu0 %v8239
        %v8310 = vpop.f32.mrb[0].mxu0
        %v8311 = vadd.f32 0.0, %v8310
        %v8312 = vpop.f32.mrb[0].mxu0
        %8313 = vdwg.mxu0
        %v8314 = vmul.f32 %v8236, %v745
        %v8315 = vmul.f32 %v8311, %v745
        %v8316 = vmul.f32 %v8314, %v8314
        %v8317 = vsub.f32 %v8315, %v8316
        %v8318 = vmax.f32 %v8317, 0.0
        %v8319 = vadd.f32 %v8318, 1e-06
        %v8320 = vrsqrt.pop %v8319
        %v8322 = vsel %vm754, %v8314, 0
        %8324 = vmatprep.subr.mxu0 0.0
        %8325 = vmatpush1.xpose.msra.mxu0 %v759
        %8326 = vmatprep.subr.mxu0 0.0
        %8327 = vmatpush1.xpose.msra.mxu0 %v762
        %8328 = vmatprep.subr.mxu0 0.0
        %8329 = vmatpush1.xpose.msra.mxu0 %v765
        %8330 = vmatprep.subr.mxu0 0.0
        %8331 = vmatpush1.xpose.msra.mxu0 %v768
        %8332 = vmatprep.subr.mxu0 0.0
        %8333 = vmatpush1.xpose.msra.mxu0 %v771
        %8334 = vmatprep.subr.mxu0 0.0
        %8335 = vmatpush1.xpose.msra.mxu0 %v774
        %8336 = vmatprep.subr.mxu0 0.0
        %8337 = vmatpush1.xpose.msra.mxu0 %v777
        %8338 = vmatprep.subr.mxu0 0.0
        %8339 = vmatpush1.xpose.msra.mxu0 %v780
        %8340 = vmatprep.subr.mxu0 0.0
        %8341 = vmatpush1.xpose.msra.mxu0 %v783
        %8342 = vmatprep.subr.mxu0 0.0
        %8343 = vmatpush1.xpose.msra.mxu0 %v786
        %8344 = vmatprep.subr.mxu0 0.0
        %8345 = vmatpush1.xpose.msra.mxu0 %v789
        %8346 = vmatprep.subr.mxu0 0.0
        %8347 = vmatpush1.xpose.msra.mxu0 %v792
        %8348 = vmatprep.subr.mxu0 0.0
        %8349 = vmatpush1.xpose.msra.mxu0 %v795
        %8350 = vmatprep.subr.mxu0 0.0
        %8351 = vmatpush1.xpose.msra.mxu0 %v798
        %8352 = vmatprep.subr.mxu0 0.0
        %8353 = vmatpush1.xpose.msra.mxu0 %v801
        %8354 = vmatprep.subr.mxu0 0.0
        %8355 = vmatpush1.xpose.msra.mxu0 %v804
        %8356 = vmatprep.subr.mxu0 0.0
        %8357 = vmatpush1.xpose.msra.mxu0 %v807
        %8358 = vmatprep.subr.mxu0 0.0
        %8359 = vmatpush1.xpose.msra.mxu0 %v810
        %8360 = vmatprep.subr.mxu0 0.0
        %8361 = vmatpush1.xpose.msra.mxu0 %v813
        %8362 = vmatprep.subr.mxu0 0.0
        %8363 = vmatpush1.xpose.msra.mxu0 %v816
        %8364 = vmatprep.subr.mxu0 0.0
        %8365 = vmatpush1.xpose.msra.mxu0 0.0
        %8366 = vmatprep.subr.mxu0 0.0
        %8367 = vmatpush1.xpose.msra.mxu0 0.0
        %8368 = vmatprep.subr.mxu0 0.0
        %8369 = vmatpush1.xpose.msra.mxu0 0.0
        %8370 = vmatprep.subr.mxu0 0.0
        %8371 = vmatpush1.xpose.msra.mxu0 0.0
        %8372 = vmatprep.subr.mxu0 0.0
        %8373 = vmatpush1.xpose.msra.mxu0 0.0
        %8374 = vmatprep.subr.mxu0 0.0
        %8375 = vmatpush1.xpose.msra.mxu0 0.0
        %8376 = vmatprep.subr.mxu0 0.0
        %8377 = vmatpush1.xpose.msra.mxu0 0.0
        %8378 = vmatprep.subr.mxu0 0.0
        %8379 = vmatpush1.xpose.msra.mxu0 0.0
        %8380 = vmatprep.subr.mxu0 0.0
        %8381 = vmatpush1.xpose.msra.mxu0 0.0
        %8382 = vmatprep.subr.mxu0 0.0
        %8383 = vmatpush1.xpose.msra.mxu0 0.0
        %8384 = vmatprep.subr.mxu0 0.0
        %8385 = vmatpush1.xpose.msra.mxu0 0.0
        %8386 = vmatprep.subr.mxu0 0.0
        %8387 = vmatpush1.xpose.msra.mxu0 0.0
        %8388 = vmatprep.mubr.f32.mxu0 0.0
        %8389 = vmatmul.mubr.f32.gmra.mrb[0].mxu0 %v8322
        %v8390 = vpop.f32.mrb[0].mxu0
        %v8391 = vadd.f32 0.0, %v8390
        %v8392 = vpop.f32.mrb[0].mxu0
        %v8393 = vadd.f32 0.0, %v8392
        %8394 = vdwg.mxu0
        %v8396 = vsel %vm754, %v8320, 0
        %8398 = vmatprep.subr.mxu0 0.0
        %8399 = vmatpush1.xpose.msra.mxu0 %v759
        %8400 = vmatprep.subr.mxu0 0.0
        %8401 = vmatpush1.xpose.msra.mxu0 %v762
        %8402 = vmatprep.subr.mxu0 0.0
        %8403 = vmatpush1.xpose.msra.mxu0 %v765
        %8404 = vmatprep.subr.mxu0 0.0
        %8405 = vmatpush1.xpose.msra.mxu0 %v768
        %8406 = vmatprep.subr.mxu0 0.0
        %8407 = vmatpush1.xpose.msra.mxu0 %v771
        %8408 = vmatprep.subr.mxu0 0.0
        %8409 = vmatpush1.xpose.msra.mxu0 %v774
        %8410 = vmatprep.subr.mxu0 0.0
        %8411 = vmatpush1.xpose.msra.mxu0 %v777
        %8412 = vmatprep.subr.mxu0 0.0
        %8413 = vmatpush1.xpose.msra.mxu0 %v780
        %8414 = vmatprep.subr.mxu0 0.0
        %8415 = vmatpush1.xpose.msra.mxu0 %v783
        %8416 = vmatprep.subr.mxu0 0.0
        %8417 = vmatpush1.xpose.msra.mxu0 %v786
        %8418 = vmatprep.subr.mxu0 0.0
        %8419 = vmatpush1.xpose.msra.mxu0 %v789
        %8420 = vmatprep.subr.mxu0 0.0
        %8421 = vmatpush1.xpose.msra.mxu0 %v792
        %8422 = vmatprep.subr.mxu0 0.0
        %8423 = vmatpush1.xpose.msra.mxu0 %v795
        %8424 = vmatprep.subr.mxu0 0.0
        %8425 = vmatpush1.xpose.msra.mxu0 %v798
        %8426 = vmatprep.subr.mxu0 0.0
        %8427 = vmatpush1.xpose.msra.mxu0 %v801
        %8428 = vmatprep.subr.mxu0 0.0
        %8429 = vmatpush1.xpose.msra.mxu0 %v804
        %8430 = vmatprep.subr.mxu0 0.0
        %8431 = vmatpush1.xpose.msra.mxu0 %v807
        %8432 = vmatprep.subr.mxu0 0.0
        %8433 = vmatpush1.xpose.msra.mxu0 %v810
        %8434 = vmatprep.subr.mxu0 0.0
        %8435 = vmatpush1.xpose.msra.mxu0 %v813
        %8436 = vmatprep.subr.mxu0 0.0
        %8437 = vmatpush1.xpose.msra.mxu0 %v816
        %8438 = vmatprep.subr.mxu0 0.0
        %8439 = vmatpush1.xpose.msra.mxu0 0.0
        %8440 = vmatprep.subr.mxu0 0.0
        %8441 = vmatpush1.xpose.msra.mxu0 0.0
        %8442 = vmatprep.subr.mxu0 0.0
        %8443 = vmatpush1.xpose.msra.mxu0 0.0
        %8444 = vmatprep.subr.mxu0 0.0
        %8445 = vmatpush1.xpose.msra.mxu0 0.0
        %8446 = vmatprep.subr.mxu0 0.0
        %8447 = vmatpush1.xpose.msra.mxu0 0.0
        %8448 = vmatprep.subr.mxu0 0.0
        %8449 = vmatpush1.xpose.msra.mxu0 0.0
        %8450 = vmatprep.subr.mxu0 0.0
        %8451 = vmatpush1.xpose.msra.mxu0 0.0
        %8452 = vmatprep.subr.mxu0 0.0
        %8453 = vmatpush1.xpose.msra.mxu0 0.0
        %8454 = vmatprep.subr.mxu0 0.0
        %8455 = vmatpush1.xpose.msra.mxu0 0.0
        %8456 = vmatprep.subr.mxu0 0.0
        %8457 = vmatpush1.xpose.msra.mxu0 0.0
        %8458 = vmatprep.subr.mxu0 0.0
        %8459 = vmatpush1.xpose.msra.mxu0 0.0
        %8460 = vmatprep.subr.mxu0 0.0
        %8461 = vmatpush1.xpose.msra.mxu0 0.0
        %8462 = vmatprep.mubr.f32.mxu0 0.0
        %8463 = vmatmul.mubr.f32.gmra.mrb[0].mxu0 %v8396
        %v8464 = vpop.f32.mrb[0].mxu0
        %v8465 = vadd.f32 0.0, %v8464
        %v8466 = vpop.f32.mrb[0].mxu0
        %v8467 = vadd.f32 0.0, %v8466
        %8468 = vdwg.mxu0
        %v8469 = vsub.f32 %v8162, %v8391
        %v8470 = vsub.f32 %v8163, %v8393
        %v8471 = vmul.f32 %v8469, %v8465
        %v8472 = vmul.f32 %v8470, %v8467
        %v8474 = vlaneseq
        %v8475 = vshrl.u32 %v8474, 7
        %v8476 = vsub.s32 0, %v8475
        %v8477 = vrot.slane %v8164, %v8476
        %v8478 = vlaneseq
        %v8479 = vshrl.u32 %v8478, 7
        %v8480 = vsub.s32 1, %v8479
        %v8481 = vrot.slane %v8164, %v8480
        %v8484 = vmul.f32 %v8471, %v8477
        %v8485 = vmul.f32 %v8472, %v8481
        %v8487 = vlaneseq
        %v8488 = vshrl.u32 %v8487, 7
        %v8489 = vsub.s32 0, %v8488
        %v8490 = vrot.slane %v8165, %v8489
        %v8491 = vlaneseq
        %v8492 = vshrl.u32 %v8491, 7
        %v8493 = vsub.s32 1, %v8492
        %v8494 = vrot.slane %v8165, %v8493
        %v8497 = vadd.f32 %v8484, %v8490
        %v8498 = vadd.f32 %v8485, %v8494
        %v8499 = vpack.c.bf16 %v8497, %v8497
        %v8500 = vpack.c.bf16 %v8498, %v8498
        %v8501 = vld [vmem:[#allocation6] sm:$0xff]
        %v8502 = vld [vmem:[#allocation6 + $0x8] sm:$0xff]
        %v8503 = vld [vmem:[#allocation6 + $0x10] sm:$0xf]
        %v8504 = vld [vmem:[#allocation6 + $0x14] sm:$0xff]
        %v8505 = vld [vmem:[#allocation6 + $0x1c] sm:$0xff]
        %v8506 = vld [vmem:[#allocation6 + $0x24] sm:$0xf]
        %v8507 = vld [vmem:[#allocation6 + $0x28] sm:$0xff]
        %v8508 = vld [vmem:[#allocation6 + $0x30] sm:$0xff]
        %v8509 = vld [vmem:[#allocation6 + $0x38] sm:$0xf]
        %v8510 = vld [vmem:[#allocation6 + $0x3c] sm:$0xff]
        %v8511 = vld [vmem:[#allocation6 + $0x44] sm:$0xff]
        %v8512 = vld [vmem:[#allocation6 + $0x4c] sm:$0xf]
        %v8513 = vld [vmem:[#allocation6 + $0x50] sm:$0xff]
        %v8514 = vld [vmem:[#allocation6 + $0x58] sm:$0xff]
        %v8515 = vld [vmem:[#allocation6 + $0x60] sm:$0xf]
        %v8516 = vld [vmem:[#allocation6 + $0x64] sm:$0xff]
        %v8517 = vld [vmem:[#allocation6 + $0x6c] sm:$0xff]
        %v8518 = vld [vmem:[#allocation6 + $0x74] sm:$0xf]
        %v8519 = vld [vmem:[#allocation6 + $0x78] sm:$0xff]
        %v8520 = vld [vmem:[#allocation6 + $0x80] sm:$0xff]
        %v8521 = vld [vmem:[#allocation6 + $0x88] sm:$0xf]
        %v8522 = vld [vmem:[#allocation6 + $0x8c] sm:$0xff]
        %v8523 = vld [vmem:[#allocation6 + $0x94] sm:$0xff]
        %v8524 = vld [vmem:[#allocation6 + $0x9c] sm:$0xf]
        %v8525 = vld [vmem:[#allocation6 + $0xa0] sm:$0xff]
        %v8526 = vld [vmem:[#allocation6 + $0xa8] sm:$0xff]
        %v8527 = vld [vmem:[#allocation6 + $0xb0] sm:$0xf]
        %v8528 = vld [vmem:[#allocation6 + $0xb4] sm:$0xff]
        %v8529 = vld [vmem:[#allocation6 + $0xbc] sm:$0xff]
        %v8530 = vld [vmem:[#allocation6 + $0xc4] sm:$0xf]
        %v8531 = vld [vmem:[#allocation6 + $0xc8] sm:$0xff]
        %v8532 = vld [vmem:[#allocation6 + $0xd0] sm:$0xff]
        %v8533 = vld [vmem:[#allocation6 + $0xd8] sm:$0xf]
        %v8534 = vld [vmem:[#allocation6 + $0xdc] sm:$0xff]
        %v8535 = vld [vmem:[#allocation6 + $0xe4] sm:$0xff]
        %v8536 = vld [vmem:[#allocation6 + $0xec] sm:$0xf]
        %v8537 = vld [vmem:[#allocation6 + $0xf0] sm:$0xff]
        %v8538 = vld [vmem:[#allocation6 + $0xf8] sm:$0xff]
        %v8539 = vld [vmem:[#allocation6 + $0x100] sm:$0xf]
        %v8540 = vld [vmem:[#allocation6 + $0x104] sm:$0xff]
        %v8541 = vld [vmem:[#allocation6 + $0x10c] sm:$0xff]
        %v8542 = vld [vmem:[#allocation6 + $0x114] sm:$0xf]
        %v8543 = vld [vmem:[#allocation6 + $0x118] sm:$0xff]
        %v8544 = vld [vmem:[#allocation6 + $0x120] sm:$0xff]
        %v8545 = vld [vmem:[#allocation6 + $0x128] sm:$0xf]
        %v8546 = vld [vmem:[#allocation6 + $0x12c] sm:$0xff]
        %v8547 = vld [vmem:[#allocation6 + $0x134] sm:$0xff]
        %v8548 = vld [vmem:[#allocation6 + $0x13c] sm:$0xf]
        %v8549 = vld [vmem:[#allocation6 + $0x140] sm:$0xff]
        %v8550 = vld [vmem:[#allocation6 + $0x148] sm:$0xff]
        %v8551 = vld [vmem:[#allocation6 + $0x150] sm:$0xf]
        %v8552 = vld [vmem:[#allocation6 + $0x154] sm:$0xff]
        %v8553 = vld [vmem:[#allocation6 + $0x15c] sm:$0xff]
        %v8554 = vld [vmem:[#allocation6 + $0x164] sm:$0xf]
        %v8555 = vld [vmem:[#allocation6 + $0x168] sm:$0xff]
        %v8556 = vld [vmem:[#allocation6 + $0x170] sm:$0xff]
        %v8557 = vld [vmem:[#allocation6 + $0x178] sm:$0xf]
        %v8558 = vld [vmem:[#allocation6 + $0x17c] sm:$0xff]
        %v8559 = vld [vmem:[#allocation6 + $0x184] sm:$0xff]
        %v8560 = vld [vmem:[#allocation6 + $0x18c] sm:$0xf]
        %v8561 = vld [vmem:[%s13] sm:$0x1f]
        %v8563 = vlaneseq
        %v8564 = vshrl.u32 %v8563, 7
        %v8565 = vsub.s32 0, %v8564
        %v8566 = vrot.slane %v8561, %v8565
        %v8567 = vlaneseq
        %v8568 = vshrl.u32 %v8567, 7
        %v8569 = vsub.s32 1, %v8568
        %v8570 = vrot.slane %v8561, %v8569
        %v8571 = vlaneseq
        %v8572 = vshrl.u32 %v8571, 7
        %v8573 = vsub.s32 2, %v8572
        %v8574 = vrot.slane %v8561, %v8573
        %v8575 = vlaneseq
        %v8576 = vshrl.u32 %v8575, 7
        %v8577 = vsub.s32 3, %v8576
        %v8578 = vrot.slane %v8561, %v8577
        %v8579 = vlaneseq
        %v8580 = vshrl.u32 %v8579, 7
        %v8581 = vsub.s32 4, %v8580
        %v8582 = vrot.slane %v8561, %v8581
        %v8648 = vunpack.c.l.b16 %v8501
        %v8649 = vunpack.c.h.b16 %v8501
        %v8650 = vunpack.c.l.b16 %v8502
        %v8651 = vunpack.c.h.b16 %v8502
        %v8652 = vunpack.c.l.b16 %v8503
        %v8653 = vunpack.c.l.b16 %v8504
        %v8654 = vunpack.c.h.b16 %v8504
        %v8655 = vunpack.c.l.b16 %v8505
        %v8656 = vunpack.c.h.b16 %v8505
        %v8657 = vunpack.c.l.b16 %v8506
        %v8658 = vunpack.c.l.b16 %v8507
        %v8659 = vunpack.c.h.b16 %v8507
        %v8660 = vunpack.c.l.b16 %v8508
        %v8661 = vunpack.c.h.b16 %v8508
        %v8662 = vunpack.c.l.b16 %v8509
        %v8663 = vunpack.c.l.b16 %v8510
        %v8664 = vunpack.c.h.b16 %v8510
        %v8665 = vunpack.c.l.b16 %v8511
        %v8666 = vunpack.c.h.b16 %v8511
        %v8667 = vunpack.c.l.b16 %v8512
        %v8668 = vunpack.c.l.b16 %v8513
        %v8669 = vunpack.c.h.b16 %v8513
        %v8670 = vunpack.c.l.b16 %v8514
        %v8671 = vunpack.c.h.b16 %v8514
        %v8672 = vunpack.c.l.b16 %v8515
        %v8673 = vunpack.c.l.b16 %v8516
        %v8674 = vunpack.c.h.b16 %v8516
        %v8675 = vunpack.c.l.b16 %v8517
        %v8676 = vunpack.c.h.b16 %v8517
        %v8677 = vunpack.c.l.b16 %v8518
        %v8678 = vunpack.c.l.b16 %v8519
        %v8679 = vunpack.c.h.b16 %v8519
        %v8680 = vunpack.c.l.b16 %v8520
        %v8681 = vunpack.c.h.b16 %v8520
        %v8682 = vunpack.c.l.b16 %v8521
        %v8683 = vunpack.c.l.b16 %v8522
        %v8684 = vunpack.c.h.b16 %v8522
        %v8685 = vunpack.c.l.b16 %v8523
        %v8686 = vunpack.c.h.b16 %v8523
        %v8687 = vunpack.c.l.b16 %v8524
        %v8688 = vunpack.c.l.b16 %v8525
        %v8689 = vunpack.c.h.b16 %v8525
        %v8690 = vunpack.c.l.b16 %v8526
        %v8691 = vunpack.c.h.b16 %v8526
        %v8692 = vunpack.c.l.b16 %v8527
        %v8693 = vunpack.c.l.b16 %v8528
        %v8694 = vunpack.c.h.b16 %v8528
        %v8695 = vunpack.c.l.b16 %v8529
        %v8696 = vunpack.c.h.b16 %v8529
        %v8697 = vunpack.c.l.b16 %v8530
        %v8698 = vunpack.c.l.b16 %v8531
        %v8699 = vunpack.c.h.b16 %v8531
        %v8700 = vunpack.c.l.b16 %v8532
        %v8701 = vunpack.c.h.b16 %v8532
        %v8702 = vunpack.c.l.b16 %v8533
        %v8703 = vunpack.c.l.b16 %v8534
        %v8704 = vunpack.c.h.b16 %v8534
        %v8705 = vunpack.c.l.b16 %v8535
        %v8706 = vunpack.c.h.b16 %v8535
        %v8707 = vunpack.c.l.b16 %v8536
        %v8708 = vunpack.c.l.b16 %v8537
        %v8709 = vunpack.c.h.b16 %v8537
        %v8710 = vunpack.c.l.b16 %v8538
        %v8711 = vunpack.c.h.b16 %v8538
        %v8712 = vunpack.c.l.b16 %v8539
        %v8713 = vunpack.c.l.b16 %v8540
        %v8714 = vunpack.c.h.b16 %v8540
        %v8715 = vunpack.c.l.b16 %v8541
        %v8716 = vunpack.c.h.b16 %v8541
        %v8717 = vunpack.c.l.b16 %v8542
        %v8718 = vunpack.c.l.b16 %v8543
        %v8719 = vunpack.c.h.b16 %v8543
        %v8720 = vunpack.c.l.b16 %v8544
        %v8721 = vunpack.c.h.b16 %v8544
        %v8722 = vunpack.c.l.b16 %v8545
        %v8723 = vunpack.c.l.b16 %v8546
        %v8724 = vunpack.c.h.b16 %v8546
        %v8725 = vunpack.c.l.b16 %v8547
        %v8726 = vunpack.c.h.b16 %v8547
        %v8727 = vunpack.c.l.b16 %v8548
        %v8728 = vunpack.c.l.b16 %v8549
        %v8729 = vunpack.c.h.b16 %v8549
        %v8730 = vunpack.c.l.b16 %v8550
        %v8731 = vunpack.c.h.b16 %v8550
        %v8732 = vunpack.c.l.b16 %v8551
        %v8733 = vunpack.c.l.b16 %v8552
        %v8734 = vunpack.c.h.b16 %v8552
        %v8735 = vunpack.c.l.b16 %v8553
        %v8736 = vunpack.c.h.b16 %v8553
        %v8737 = vunpack.c.l.b16 %v8554
        %v8738 = vunpack.c.l.b16 %v8555
        %v8739 = vunpack.c.h.b16 %v8555
        %v8740 = vunpack.c.l.b16 %v8556
        %v8741 = vunpack.c.h.b16 %v8556
        %v8742 = vunpack.c.l.b16 %v8557
        %v8743 = vunpack.c.l.b16 %v8558
        %v8744 = vunpack.c.h.b16 %v8558
        %v8745 = vunpack.c.l.b16 %v8559
        %v8746 = vunpack.c.h.b16 %v8559
        %v8747 = vunpack.c.l.b16 %v8560
        %v8748 = vpack.c.b16 %v8653, %v8648
        %v8749 = vpack.c.b16 %v8654, %v8649
        %v8750 = vpack.c.b16 %v8655, %v8650
        %v8751 = vpack.c.b16 %v8656, %v8651
        %v8752 = vpack.c.b16 %v8657, %v8652
        %v8753 = vpack.c.b16 %v8663, %v8658
        %v8754 = vpack.c.b16 %v8664, %v8659
        %v8755 = vpack.c.b16 %v8665, %v8660
        %v8756 = vpack.c.b16 %v8666, %v8661
        %v8757 = vpack.c.b16 %v8667, %v8662
        %v8758 = vpack.c.b16 %v8673, %v8668
        %v8759 = vpack.c.b16 %v8674, %v8669
        %v8760 = vpack.c.b16 %v8675, %v8670
        %v8761 = vpack.c.b16 %v8676, %v8671
        %v8762 = vpack.c.b16 %v8677, %v8672
        %v8763 = vpack.c.b16 %v8683, %v8678
        %v8764 = vpack.c.b16 %v8684, %v8679
        %v8765 = vpack.c.b16 %v8685, %v8680
        %v8766 = vpack.c.b16 %v8686, %v8681
        %v8767 = vpack.c.b16 %v8687, %v8682
        %v8768 = vpack.c.b16 %v8693, %v8688
        %v8769 = vpack.c.b16 %v8694, %v8689
        %v8770 = vpack.c.b16 %v8695, %v8690
        %v8771 = vpack.c.b16 %v8696, %v8691
        %v8772 = vpack.c.b16 %v8697, %v8692
        %v8773 = vpack.c.b16 %v8703, %v8698
        %v8774 = vpack.c.b16 %v8704, %v8699
        %v8775 = vpack.c.b16 %v8705, %v8700
        %v8776 = vpack.c.b16 %v8706, %v8701
        %v8777 = vpack.c.b16 %v8707, %v8702
        %v8778 = vpack.c.b16 %v8713, %v8708
        %v8779 = vpack.c.b16 %v8714, %v8709
        %v8780 = vpack.c.b16 %v8715, %v8710
        %v8781 = vpack.c.b16 %v8716, %v8711
        %v8782 = vpack.c.b16 %v8717, %v8712
        %v8783 = vpack.c.b16 %v8723, %v8718
        %v8784 = vpack.c.b16 %v8724, %v8719
        %v8785 = vpack.c.b16 %v8725, %v8720
        %v8786 = vpack.c.b16 %v8726, %v8721
        %v8787 = vpack.c.b16 %v8727, %v8722
        %v8788 = vpack.c.b16 %v8733, %v8728
        %v8789 = vpack.c.b16 %v8734, %v8729
        %v8790 = vpack.c.b16 %v8735, %v8730
        %v8791 = vpack.c.b16 %v8736, %v8731
        %v8792 = vpack.c.b16 %v8737, %v8732
        %v8793 = vpack.c.b16 %v8743, %v8738
        %v8794 = vpack.c.b16 %v8744, %v8739
        %v8795 = vpack.c.b16 %v8745, %v8740
        %v8796 = vpack.c.b16 %v8746, %v8741
        %v8797 = vpack.c.b16 %v8747, %v8742
        %v8849 = vsel %vm592, %v8500, 0
        %8851 = vmatprep.subr.bf16.mxu0 %v8749
        %8852 = vmatpush1.bf16.msra.mxu0 %v8748
        %8853 = vmatprep.subr.bf16.mxu0 %v8754
        %8854 = vmatpush1.bf16.msra.mxu0 %v8753
        %8855 = vmatprep.subr.bf16.mxu0 %v8759
        %8856 = vmatpush1.bf16.msra.mxu0 %v8758
        %8857 = vmatprep.subr.bf16.mxu0 %v8764
        %8858 = vmatpush1.bf16.msra.mxu0 %v8763
        %8859 = vmatprep.subr.bf16.mxu0 %v8769
        %8860 = vmatpush1.bf16.msra.mxu0 %v8768
        %8861 = vmatprep.subr.bf16.mxu0 %v8774
        %8862 = vmatpush1.bf16.msra.mxu0 %v8773
        %8863 = vmatprep.subr.bf16.mxu0 %v8779
        %8864 = vmatpush1.bf16.msra.mxu0 %v8778
        %8865 = vmatprep.subr.bf16.mxu0 %v8784
        %8866 = vmatpush1.bf16.msra.mxu0 %v8783
        %8867 = vmatprep.subr.bf16.mxu0 %v8789
        %8868 = vmatpush1.bf16.msra.mxu0 %v8788
        %8869 = vmatprep.subr.bf16.mxu0 %v8794
        %8870 = vmatpush1.bf16.msra.mxu0 %v8793
        %8871 = vmatprep.subr.bf16.mxu0 0
        %8872 = vmatpush1.bf16.msra.mxu0 0
        %8873 = vmatprep.subr.bf16.mxu0 0
        %8874 = vmatpush1.bf16.msra.mxu0 0
        %8875 = vmatprep.subr.bf16.mxu0 0
        %8876 = vmatpush1.bf16.msra.mxu0 0
        %8877 = vmatprep.subr.bf16.mxu0 0
        %8878 = vmatpush1.bf16.msra.mxu0 0
        %8879 = vmatprep.subr.bf16.mxu0 0
        %8880 = vmatpush1.bf16.msra.mxu0 0
        %8881 = vmatprep.subr.bf16.mxu0 0
        %8882 = vmatpush1.bf16.msra.mxu0 0
        %8883 = vmatprep.mubr.bf16.mxu0 %v8849
        %8884 = vmatmul.mubr.bf16.gmra.mrb[0].mxu0 %v8499
        %v8885 = vpop.f32.mrb[0].mxu0
        %v8886 = vadd.f32 %v8566, %v8885
        %v8887 = vpop.f32.mrb[0].mxu0
        %v8888 = vadd.f32 %v8570, %v8887
        %v8889 = vpop.f32.mrb[0].mxu0
        %v8890 = vpop.f32.mrb[0].mxu0
        %8891 = vdwg.mxu0
        %8892 = vmatprep.subr.bf16.mxu0 %v8751
        %8893 = vmatpush1.bf16.msra.mxu0 %v8750
        %8894 = vmatprep.subr.bf16.mxu0 %v8756
        %8895 = vmatpush1.bf16.msra.mxu0 %v8755
        %8896 = vmatprep.subr.bf16.mxu0 %v8761
        %8897 = vmatpush1.bf16.msra.mxu0 %v8760
        %8898 = vmatprep.subr.bf16.mxu0 %v8766
        %8899 = vmatpush1.bf16.msra.mxu0 %v8765
        %8900 = vmatprep.subr.bf16.mxu0 %v8771
        %8901 = vmatpush1.bf16.msra.mxu0 %v8770
        %8902 = vmatprep.subr.bf16.mxu0 %v8776
        %8903 = vmatpush1.bf16.msra.mxu0 %v8775
        %8904 = vmatprep.subr.bf16.mxu0 %v8781
        %8905 = vmatpush1.bf16.msra.mxu0 %v8780
        %8906 = vmatprep.subr.bf16.mxu0 %v8786
        %8907 = vmatpush1.bf16.msra.mxu0 %v8785
        %8908 = vmatprep.subr.bf16.mxu0 %v8791
        %8909 = vmatpush1.bf16.msra.mxu0 %v8790
        %8910 = vmatprep.subr.bf16.mxu0 %v8796
        %8911 = vmatpush1.bf16.msra.mxu0 %v8795
        %8912 = vmatprep.subr.bf16.mxu0 0
        %8913 = vmatpush1.bf16.msra.mxu0 0
        %8914 = vmatprep.subr.bf16.mxu0 0
        %8915 = vmatpush1.bf16.msra.mxu0 0
        %8916 = vmatprep.subr.bf16.mxu0 0
        %8917 = vmatpush1.bf16.msra.mxu0 0
        %8918 = vmatprep.subr.bf16.mxu0 0
        %8919 = vmatpush1.bf16.msra.mxu0 0
        %8920 = vmatprep.subr.bf16.mxu0 0
        %8921 = vmatpush1.bf16.msra.mxu0 0
        %8922 = vmatprep.subr.bf16.mxu0 0
        %8923 = vmatpush1.bf16.msra.mxu0 0
        %8924 = vmatprep.mubr.bf16.mxu0 %v8849
        %8925 = vmatmul.mubr.bf16.gmra.mrb[0].mxu0 %v8499
        %v8926 = vpop.f32.mrb[0].mxu0
        %v8927 = vadd.f32 %v8574, %v8926
        %v8928 = vpop.f32.mrb[0].mxu0
        %v8929 = vadd.f32 %v8578, %v8928
        %v8930 = vpop.f32.mrb[0].mxu0
        %v8931 = vpop.f32.mrb[0].mxu0
        %8932 = vdwg.mxu0
        %8933 = vmatprep.subr.bf16.mxu0 0
        %8934 = vmatpush1.bf16.msra.mxu0 %v8752
        %8935 = vmatprep.subr.bf16.mxu0 0
        %8936 = vmatpush1.bf16.msra.mxu0 %v8757
        %8937 = vmatprep.subr.bf16.mxu0 0
        %8938 = vmatpush1.bf16.msra.mxu0 %v8762
        %8939 = vmatprep.subr.bf16.mxu0 0
        %8940 = vmatpush1.bf16.msra.mxu0 %v8767
        %8941 = vmatprep.subr.bf16.mxu0 0
        %8942 = vmatpush1.bf16.msra.mxu0 %v8772
        %8943 = vmatprep.subr.bf16.mxu0 0
        %8944 = vmatpush1.bf16.msra.mxu0 %v8777
        %8945 = vmatprep.subr.bf16.mxu0 0
        %8946 = vmatpush1.bf16.msra.mxu0 %v8782
        %8947 = vmatprep.subr.bf16.mxu0 0
        %8948 = vmatpush1.bf16.msra.mxu0 %v8787
        %8949 = vmatprep.subr.bf16.mxu0 0
        %8950 = vmatpush1.bf16.msra.mxu0 %v8792
        %8951 = vmatprep.subr.bf16.mxu0 0
        %8952 = vmatpush1.bf16.msra.mxu0 %v8797
        %8953 = vmatprep.subr.bf16.mxu0 0
        %8954 = vmatpush1.bf16.msra.mxu0 0
        %8955 = vmatprep.subr.bf16.mxu0 0
        %8956 = vmatpush1.bf16.msra.mxu0 0
        %8957 = vmatprep.subr.bf16.mxu0 0
        %8958 = vmatpush1.bf16.msra.mxu0 0
        %8959 = vmatprep.subr.bf16.mxu0 0
        %8960 = vmatpush1.bf16.msra.mxu0 0
        %8961 = vmatprep.subr.bf16.mxu0 0
        %8962 = vmatpush1.bf16.msra.mxu0 0
        %8963 = vmatprep.subr.bf16.mxu0 0
        %8964 = vmatpush1.bf16.msra.mxu0 0
        %8965 = vmatprep.mubr.bf16.mxu0 %v8849
        %8966 = vmatmul.mubr.bf16.gmra.mrb[0].mxu0 %v8499
        %v8967 = vpop.f32.mrb[0].mxu0
        %v8968 = vadd.f32 %v8582, %v8967
        %v8969 = vpop.f32.mrb[0].mxu0
        %v8970 = vpop.f32.mrb[0].mxu0
        %v8971 = vpop.f32.mrb[0].mxu0
        %8972 = vdwg.mxu0
        %v8973 = vmul.f32 %v8886, 0.5
        %v8974 = vmul.f32 %v8888, 0.5
        %v8975 = vmul.f32 %v8927, 0.5
        %v8976 = vmul.f32 %v8929, 0.5
        %v8977 = vmul.f32 %v8968, 0.5
        %v8978 = vmul.f32 %v8886, %v8886
        %v8979 = vmul.f32 %v8888, %v8888
        %v8980 = vmul.f32 %v8927, %v8927
        %v8981 = vmul.f32 %v8929, %v8929
        %v8982 = vmul.f32 %v8968, %v8968
        %v8983 = vmul.f32 %v8978, %v8886
        %v8984 = vmul.f32 %v8979, %v8888
        %v8985 = vmul.f32 %v8980, %v8927
        %v8986 = vmul.f32 %v8981, %v8929
        %v8987 = vmul.f32 %v8982, %v8968
        %v8988 = vmul.f32 %v8983, 0.044715
        %v8989 = vmul.f32 %v8984, 0.044715
        %v8990 = vmul.f32 %v8985, 0.044715
        %v8991 = vmul.f32 %v8986, 0.044715
        %v8992 = vmul.f32 %v8987, 0.044715
        %v8993 = vadd.f32 %v8886, %v8988
        %v8994 = vadd.f32 %v8888, %v8989
        %v8995 = vadd.f32 %v8927, %v8990
        %v8996 = vadd.f32 %v8929, %v8991
        %v8997 = vadd.f32 %v8968, %v8992
        %v8998 = vmul.f32 %v8993, 0.7978846
        %v8999 = vmul.f32 %v8994, 0.7978846
        %v9000 = vmul.f32 %v8995, 0.7978846
        %v9001 = vmul.f32 %v8996, 0.7978846
        %v9002 = vmul.f32 %v8997, 0.7978846
        %v9003 = vtanh.pop %v8998
        %v9004 = vtanh.pop %v8999
        %v9005 = vtanh.pop %v9000
        %v9006 = vtanh.pop %v9001
        %v9007 = vtanh.pop %v9002
        %v9008 = vadd.f32 %v9003, 1.0
        %v9009 = vadd.f32 %v9004, 1.0
        %v9010 = vadd.f32 %v9005, 1.0
        %v9011 = vadd.f32 %v9006, 1.0
        %v9012 = vadd.f32 %v9007, 1.0
        %v9013 = vmul.f32 %v8973, %v9008
        %v9014 = vmul.f32 %v8974, %v9009
        %v9015 = vmul.f32 %v8975, %v9010
        %v9016 = vmul.f32 %v8976, %v9011
        %v9017 = vmul.f32 %v8977, %v9012
        %v9018 = vpack.c.bf16 %v9013, %v9013
        %v9019 = vpack.c.bf16 %v9014, %v9014
        %v9020 = vpack.c.bf16 %v9015, %v9015
        %v9021 = vpack.c.bf16 %v9016, %v9016
        %v9022 = vpack.c.bf16 %v9017, %v9017
        %v9023 = vld [vmem:[%s14] sm:$0xff]
        %v9024 = vld [vmem:[%s14 + $0x8] sm:$0xff]
        %v9025 = vld [vmem:[%s14 + $0x10] sm:$0xff]
        %v9026 = vld [vmem:[%s14 + $0x18] sm:$0xff]
        %v9027 = vld [vmem:[%s14 + $0x20] sm:$0xff]
        %v9028 = vld [vmem:[%s14 + $0x28] sm:$0xff]
        %v9029 = vld [vmem:[%s14 + $0x30] sm:$0xff]
        %v9030 = vld [vmem:[%s14 + $0x38] sm:$0xff]
        %v9031 = vld [vmem:[%s14 + $0x40] sm:$0xff]
        %v9032 = vld [vmem:[%s14 + $0x48] sm:$0xff]
        %v9033 = vld [vmem:[%s14 + $0x50] sm:$0xff]
        %v9034 = vld [vmem:[%s14 + $0x58] sm:$0xff]
        %v9035 = vld [vmem:[%s14 + $0x60] sm:$0xff]
        %v9036 = vld [vmem:[%s14 + $0x68] sm:$0xff]
        %v9037 = vld [vmem:[%s14 + $0x70] sm:$0xff]
        %v9038 = vld [vmem:[%s14 + $0x78] sm:$0xff]
        %v9039 = vld [vmem:[%s14 + $0x80] sm:$0xff]
        %v9040 = vld [vmem:[%s14 + $0x88] sm:$0xff]
        %v9041 = vld [vmem:[%s14 + $0x90] sm:$0xff]
        %v9042 = vld [vmem:[%s14 + $0x98] sm:$0xff]
        %v9043 = vld [vmem:[%s14 + $0xa0] sm:$0xff]
        %v9044 = vld [vmem:[%s14 + $0xa8] sm:$0xff]
        %v9045 = vld [vmem:[%s14 + $0xb0] sm:$0xff]
        %v9046 = vld [vmem:[%s14 + $0xb8] sm:$0xff]
        %v9047 = vld [vmem:[%s14 + $0xc0] sm:$0xff]
        %v9048 = vld [vmem:[%s14 + $0xc8] sm:$0xff]
        %v9049 = vld [vmem:[%s14 + $0xd0] sm:$0xff]
        %v9050 = vld [vmem:[%s14 + $0xd8] sm:$0xff]
        %v9051 = vld [vmem:[%s14 + $0xe0] sm:$0xff]
        %v9052 = vld [vmem:[%s14 + $0xe8] sm:$0xff]
        %v9053 = vld [vmem:[%s14 + $0xf0] sm:$0xff]
        %v9054 = vld [vmem:[%s14 + $0xf8] sm:$0xff]
        %v9055 = vld [vmem:[%s14 + $0x100] sm:$0xff]
        %v9056 = vld [vmem:[%s14 + $0x108] sm:$0xff]
        %v9057 = vld [vmem:[%s14 + $0x110] sm:$0xff]
        %v9058 = vld [vmem:[%s14 + $0x118] sm:$0xff]
        %v9059 = vld [vmem:[%s14 + $0x120] sm:$0xff]
        %v9060 = vld [vmem:[%s14 + $0x128] sm:$0xff]
        %v9061 = vld [vmem:[%s14 + $0x130] sm:$0xff]
        %v9062 = vld [vmem:[%s14 + $0x138] sm:$0xff]
        %v9063 = vld [vmem:[%s14 + $0x140] sm:$0xff]
        %v9064 = vld [vmem:[%s14 + $0x148] sm:$0xff]
        %v9065 = vld [vmem:[%s14 + $0x150] sm:$0xff]
        %v9066 = vld [vmem:[%s14 + $0x158] sm:$0xff]
        %v9067 = vld [vmem:[%s14 + $0x160] sm:$0xff]
        %v9068 = vld [vmem:[%s14 + $0x168] sm:$0xff]
        %v9069 = vld [vmem:[%s14 + $0x170] sm:$0xff]
        %v9070 = vld [vmem:[%s14 + $0x178] sm:$0xff]
        %v9071 = vld [vmem:[%s14 + $0x180] sm:$0xff]
        %v9072 = vld [vmem:[%s14 + $0x188] sm:$0xff]
        %v9073 = vld [vmem:[%s14 + $0x190] sm:$0xff]
        %v9074 = vld [vmem:[%s14 + $0x198] sm:$0xff]
        %v9075 = vld [vmem:[%s14 + $0x1a0] sm:$0xff]
        %v9076 = vld [vmem:[%s14 + $0x1a8] sm:$0xff]
        %v9077 = vld [vmem:[%s14 + $0x1b0] sm:$0xff]
        %v9078 = vld [vmem:[%s14 + $0x1b8] sm:$0xff]
        %v9079 = vld [vmem:[%s14 + $0x1c0] sm:$0xff]
        %v9080 = vld [vmem:[%s14 + $0x1c8] sm:$0xff]
        %v9081 = vld [vmem:[%s14 + $0x1d0] sm:$0xff]
        %v9082 = vld [vmem:[%s14 + $0x1d8] sm:$0xff]
        %v9083 = vld [vmem:[%s14 + $0x1e0] sm:$0xff]
        %v9084 = vld [vmem:[%s14 + $0x1e8] sm:$0xff]
        %v9085 = vld [vmem:[%s14 + $0x1f0] sm:$0xff]
        %v9086 = vld [vmem:[%s14 + $0x1f8] sm:$0xff]
        %v9087 = vld [vmem:[%s14 + $0x200] sm:$0xff]
        %v9088 = vld [vmem:[%s14 + $0x208] sm:$0xff]
        %v9089 = vld [vmem:[%s14 + $0x210] sm:$0xff]
        %v9090 = vld [vmem:[%s14 + $0x218] sm:$0xff]
        %v9091 = vld [vmem:[%s14 + $0x220] sm:$0xff]
        %v9092 = vld [vmem:[%s14 + $0x228] sm:$0xff]
        %v9093 = vld [vmem:[%s14 + $0x230] sm:$0xff]
        %v9094 = vld [vmem:[%s14 + $0x238] sm:$0xff]
        %v9095 = vld [vmem:[%s14 + $0x240] sm:$0xff]
        %v9096 = vld [vmem:[%s14 + $0x248] sm:$0xff]
        %v9097 = vld [vmem:[%s14 + $0x250] sm:$0xff]
        %v9098 = vld [vmem:[%s14 + $0x258] sm:$0xff]
        %v9099 = vld [vmem:[%s14 + $0x260] sm:$0xff]
        %v9100 = vld [vmem:[%s14 + $0x268] sm:$0xff]
        %v9101 = vld [vmem:[%s14 + $0x270] sm:$0xff]
        %v9102 = vld [vmem:[%s14 + $0x278] sm:$0xff]
        %v9103 = vld [vmem:[%s15] sm:$0x3]
        %v9105 = vlaneseq
        %v9106 = vshrl.u32 %v9105, 7
        %v9107 = vsub.s32 0, %v9106
        %v9108 = vrot.slane %v9103, %v9107
        %v9109 = vlaneseq
        %v9110 = vshrl.u32 %v9109, 7
        %v9111 = vsub.s32 1, %v9110
        %v9112 = vrot.slane %v9103, %v9111
        %v9195 = vunpack.c.l.b16 %v9023
        %v9196 = vunpack.c.h.b16 %v9023
        %v9197 = vunpack.c.l.b16 %v9024
        %v9198 = vunpack.c.h.b16 %v9024
        %v9199 = vunpack.c.l.b16 %v9025
        %v9200 = vunpack.c.h.b16 %v9025
        %v9201 = vunpack.c.l.b16 %v9026
        %v9202 = vunpack.c.h.b16 %v9026
        %v9203 = vunpack.c.l.b16 %v9027
        %v9204 = vunpack.c.h.b16 %v9027
        %v9205 = vunpack.c.l.b16 %v9028
        %v9206 = vunpack.c.h.b16 %v9028
        %v9207 = vunpack.c.l.b16 %v9029
        %v9208 = vunpack.c.h.b16 %v9029
        %v9209 = vunpack.c.l.b16 %v9030
        %v9210 = vunpack.c.h.b16 %v9030
        %v9211 = vunpack.c.l.b16 %v9031
        %v9212 = vunpack.c.h.b16 %v9031
        %v9213 = vunpack.c.l.b16 %v9032
        %v9214 = vunpack.c.h.b16 %v9032
        %v9215 = vunpack.c.l.b16 %v9033
        %v9216 = vunpack.c.h.b16 %v9033
        %v9217 = vunpack.c.l.b16 %v9034
        %v9218 = vunpack.c.h.b16 %v9034
        %v9219 = vunpack.c.l.b16 %v9035
        %v9220 = vunpack.c.h.b16 %v9035
        %v9221 = vunpack.c.l.b16 %v9036
        %v9222 = vunpack.c.h.b16 %v9036
        %v9223 = vunpack.c.l.b16 %v9037
        %v9224 = vunpack.c.h.b16 %v9037
        %v9225 = vunpack.c.l.b16 %v9038
        %v9226 = vunpack.c.h.b16 %v9038
        %v9227 = vunpack.c.l.b16 %v9039
        %v9228 = vunpack.c.h.b16 %v9039
        %v9229 = vunpack.c.l.b16 %v9040
        %v9230 = vunpack.c.h.b16 %v9040
        %v9231 = vunpack.c.l.b16 %v9041
        %v9232 = vunpack.c.h.b16 %v9041
        %v9233 = vunpack.c.l.b16 %v9042
        %v9234 = vunpack.c.h.b16 %v9042
        %v9235 = vunpack.c.l.b16 %v9043
        %v9236 = vunpack.c.h.b16 %v9043
        %v9237 = vunpack.c.l.b16 %v9044
        %v9238 = vunpack.c.h.b16 %v9044
        %v9239 = vunpack.c.l.b16 %v9045
        %v9240 = vunpack.c.h.b16 %v9045
        %v9241 = vunpack.c.l.b16 %v9046
        %v9242 = vunpack.c.h.b16 %v9046
        %v9243 = vunpack.c.l.b16 %v9047
        %v9244 = vunpack.c.h.b16 %v9047
        %v9245 = vunpack.c.l.b16 %v9048
        %v9246 = vunpack.c.h.b16 %v9048
        %v9247 = vunpack.c.l.b16 %v9049
        %v9248 = vunpack.c.h.b16 %v9049
        %v9249 = vunpack.c.l.b16 %v9050
        %v9250 = vunpack.c.h.b16 %v9050
        %v9251 = vunpack.c.l.b16 %v9051
        %v9252 = vunpack.c.h.b16 %v9051
        %v9253 = vunpack.c.l.b16 %v9052
        %v9254 = vunpack.c.h.b16 %v9052
        %v9255 = vunpack.c.l.b16 %v9053
        %v9256 = vunpack.c.h.b16 %v9053
        %v9257 = vunpack.c.l.b16 %v9054
        %v9258 = vunpack.c.h.b16 %v9054
        %v9259 = vunpack.c.l.b16 %v9055
        %v9260 = vunpack.c.h.b16 %v9055
        %v9261 = vunpack.c.l.b16 %v9056
        %v9262 = vunpack.c.h.b16 %v9056
        %v9263 = vunpack.c.l.b16 %v9057
        %v9264 = vunpack.c.h.b16 %v9057
        %v9265 = vunpack.c.l.b16 %v9058
        %v9266 = vunpack.c.h.b16 %v9058
        %v9267 = vunpack.c.l.b16 %v9059
        %v9268 = vunpack.c.h.b16 %v9059
        %v9269 = vunpack.c.l.b16 %v9060
        %v9270 = vunpack.c.h.b16 %v9060
        %v9271 = vunpack.c.l.b16 %v9061
        %v9272 = vunpack.c.h.b16 %v9061
        %v9273 = vunpack.c.l.b16 %v9062
        %v9274 = vunpack.c.h.b16 %v9062
        %v9275 = vunpack.c.l.b16 %v9063
        %v9276 = vunpack.c.h.b16 %v9063
        %v9277 = vunpack.c.l.b16 %v9064
        %v9278 = vunpack.c.h.b16 %v9064
        %v9279 = vunpack.c.l.b16 %v9065
        %v9280 = vunpack.c.h.b16 %v9065
        %v9281 = vunpack.c.l.b16 %v9066
        %v9282 = vunpack.c.h.b16 %v9066
        %v9283 = vunpack.c.l.b16 %v9067
        %v9284 = vunpack.c.h.b16 %v9067
        %v9285 = vunpack.c.l.b16 %v9068
        %v9286 = vunpack.c.h.b16 %v9068
        %v9287 = vunpack.c.l.b16 %v9069
        %v9288 = vunpack.c.h.b16 %v9069
        %v9289 = vunpack.c.l.b16 %v9070
        %v9290 = vunpack.c.h.b16 %v9070
        %v9291 = vunpack.c.l.b16 %v9071
        %v9292 = vunpack.c.h.b16 %v9071
        %v9293 = vunpack.c.l.b16 %v9072
        %v9294 = vunpack.c.h.b16 %v9072
        %v9295 = vunpack.c.l.b16 %v9073
        %v9296 = vunpack.c.h.b16 %v9073
        %v9297 = vunpack.c.l.b16 %v9074
        %v9298 = vunpack.c.h.b16 %v9074
        %v9299 = vunpack.c.l.b16 %v9075
        %v9300 = vunpack.c.h.b16 %v9075
        %v9301 = vunpack.c.l.b16 %v9076
        %v9302 = vunpack.c.h.b16 %v9076
        %v9303 = vunpack.c.l.b16 %v9077
        %v9304 = vunpack.c.h.b16 %v9077
        %v9305 = vunpack.c.l.b16 %v9078
        %v9306 = vunpack.c.h.b16 %v9078
        %v9307 = vunpack.c.l.b16 %v9079
        %v9308 = vunpack.c.h.b16 %v9079
        %v9309 = vunpack.c.l.b16 %v9080
        %v9310 = vunpack.c.h.b16 %v9080
        %v9311 = vunpack.c.l.b16 %v9081
        %v9312 = vunpack.c.h.b16 %v9081
        %v9313 = vunpack.c.l.b16 %v9082
        %v9314 = vunpack.c.h.b16 %v9082
        %v9315 = vunpack.c.l.b16 %v9083
        %v9316 = vunpack.c.h.b16 %v9083
        %v9317 = vunpack.c.l.b16 %v9084
        %v9318 = vunpack.c.h.b16 %v9084
        %v9319 = vunpack.c.l.b16 %v9085
        %v9320 = vunpack.c.h.b16 %v9085
        %v9321 = vunpack.c.l.b16 %v9086
        %v9322 = vunpack.c.h.b16 %v9086
        %v9323 = vunpack.c.l.b16 %v9087
        %v9324 = vunpack.c.h.b16 %v9087
        %v9325 = vunpack.c.l.b16 %v9088
        %v9326 = vunpack.c.h.b16 %v9088
        %v9327 = vunpack.c.l.b16 %v9089
        %v9328 = vunpack.c.h.b16 %v9089
        %v9329 = vunpack.c.l.b16 %v9090
        %v9330 = vunpack.c.h.b16 %v9090
        %v9331 = vunpack.c.l.b16 %v9091
        %v9332 = vunpack.c.h.b16 %v9091
        %v9333 = vunpack.c.l.b16 %v9092
        %v9334 = vunpack.c.h.b16 %v9092
        %v9335 = vunpack.c.l.b16 %v9093
        %v9336 = vunpack.c.h.b16 %v9093
        %v9337 = vunpack.c.l.b16 %v9094
        %v9338 = vunpack.c.h.b16 %v9094
        %v9339 = vunpack.c.l.b16 %v9095
        %v9340 = vunpack.c.h.b16 %v9095
        %v9341 = vunpack.c.l.b16 %v9096
        %v9342 = vunpack.c.h.b16 %v9096
        %v9343 = vunpack.c.l.b16 %v9097
        %v9344 = vunpack.c.h.b16 %v9097
        %v9345 = vunpack.c.l.b16 %v9098
        %v9346 = vunpack.c.h.b16 %v9098
        %v9347 = vunpack.c.l.b16 %v9099
        %v9348 = vunpack.c.h.b16 %v9099
        %v9349 = vunpack.c.l.b16 %v9100
        %v9350 = vunpack.c.h.b16 %v9100
        %v9351 = vunpack.c.l.b16 %v9101
        %v9352 = vunpack.c.h.b16 %v9101
        %v9353 = vunpack.c.l.b16 %v9102
        %v9354 = vunpack.c.h.b16 %v9102
        %v9355 = vpack.c.b16 %v9197, %v9195
        %v9356 = vpack.c.b16 %v9198, %v9196
        %v9357 = vpack.c.b16 %v9201, %v9199
        %v9358 = vpack.c.b16 %v9202, %v9200
        %v9359 = vpack.c.b16 %v9205, %v9203
        %v9360 = vpack.c.b16 %v9206, %v9204
        %v9361 = vpack.c.b16 %v9209, %v9207
        %v9362 = vpack.c.b16 %v9210, %v9208
        %v9363 = vpack.c.b16 %v9213, %v9211
        %v9364 = vpack.c.b16 %v9214, %v9212
        %v9365 = vpack.c.b16 %v9217, %v9215
        %v9366 = vpack.c.b16 %v9218, %v9216
        %v9367 = vpack.c.b16 %v9221, %v9219
        %v9368 = vpack.c.b16 %v9222, %v9220
        %v9369 = vpack.c.b16 %v9225, %v9223
        %v9370 = vpack.c.b16 %v9226, %v9224
        %v9371 = vpack.c.b16 %v9229, %v9227
        %v9372 = vpack.c.b16 %v9230, %v9228
        %v9373 = vpack.c.b16 %v9233, %v9231
        %v9374 = vpack.c.b16 %v9234, %v9232
        %v9375 = vpack.c.b16 %v9237, %v9235
        %v9376 = vpack.c.b16 %v9238, %v9236
        %v9377 = vpack.c.b16 %v9241, %v9239
        %v9378 = vpack.c.b16 %v9242, %v9240
        %v9379 = vpack.c.b16 %v9245, %v9243
        %v9380 = vpack.c.b16 %v9246, %v9244
        %v9381 = vpack.c.b16 %v9249, %v9247
        %v9382 = vpack.c.b16 %v9250, %v9248
        %v9383 = vpack.c.b16 %v9253, %v9251
        %v9384 = vpack.c.b16 %v9254, %v9252
        %v9385 = vpack.c.b16 %v9257, %v9255
        %v9386 = vpack.c.b16 %v9258, %v9256
        %v9387 = vpack.c.b16 %v9261, %v9259
        %v9388 = vpack.c.b16 %v9262, %v9260
        %v9389 = vpack.c.b16 %v9265, %v9263
        %v9390 = vpack.c.b16 %v9266, %v9264
        %v9391 = vpack.c.b16 %v9269, %v9267
        %v9392 = vpack.c.b16 %v9270, %v9268
        %v9393 = vpack.c.b16 %v9273, %v9271
        %v9394 = vpack.c.b16 %v9274, %v9272
        %v9395 = vpack.c.b16 %v9277, %v9275
        %v9396 = vpack.c.b16 %v9278, %v9276
        %v9397 = vpack.c.b16 %v9281, %v9279
        %v9398 = vpack.c.b16 %v9282, %v9280
        %v9399 = vpack.c.b16 %v9285, %v9283
        %v9400 = vpack.c.b16 %v9286, %v9284
        %v9401 = vpack.c.b16 %v9289, %v9287
        %v9402 = vpack.c.b16 %v9290, %v9288
        %v9403 = vpack.c.b16 %v9293, %v9291
        %v9404 = vpack.c.b16 %v9294, %v9292
        %v9405 = vpack.c.b16 %v9297, %v9295
        %v9406 = vpack.c.b16 %v9298, %v9296
        %v9407 = vpack.c.b16 %v9301, %v9299
        %v9408 = vpack.c.b16 %v9302, %v9300
        %v9409 = vpack.c.b16 %v9305, %v9303
        %v9410 = vpack.c.b16 %v9306, %v9304
        %v9411 = vpack.c.b16 %v9309, %v9307
        %v9412 = vpack.c.b16 %v9310, %v9308
        %v9413 = vpack.c.b16 %v9313, %v9311
        %v9414 = vpack.c.b16 %v9314, %v9312
        %v9415 = vpack.c.b16 %v9317, %v9315
        %v9416 = vpack.c.b16 %v9318, %v9316
        %v9417 = vpack.c.b16 %v9321, %v9319
        %v9418 = vpack.c.b16 %v9322, %v9320
        %v9419 = vpack.c.b16 %v9325, %v9323
        %v9420 = vpack.c.b16 %v9326, %v9324
        %v9421 = vpack.c.b16 %v9329, %v9327
        %v9422 = vpack.c.b16 %v9330, %v9328
        %v9423 = vpack.c.b16 %v9333, %v9331
        %v9424 = vpack.c.b16 %v9334, %v9332
        %v9425 = vpack.c.b16 %v9337, %v9335
        %v9426 = vpack.c.b16 %v9338, %v9336
        %v9427 = vpack.c.b16 %v9341, %v9339
        %v9428 = vpack.c.b16 %v9342, %v9340
        %v9429 = vpack.c.b16 %v9345, %v9343
        %v9430 = vpack.c.b16 %v9346, %v9344
        %v9431 = vpack.c.b16 %v9349, %v9347
        %v9432 = vpack.c.b16 %v9350, %v9348
        %v9433 = vpack.c.b16 %v9353, %v9351
        %v9434 = vpack.c.b16 %v9354, %v9352
        %9515 = vmatprep.subr.bf16.mxu0 %v9356
        %9516 = vmatpush1.bf16.msra.mxu0 %v9355
        %9517 = vmatprep.subr.bf16.mxu0 %v9358
        %9518 = vmatpush1.bf16.msra.mxu0 %v9357
        %9519 = vmatprep.subr.bf16.mxu0 %v9360
        %9520 = vmatpush1.bf16.msra.mxu0 %v9359
        %9521 = vmatprep.subr.bf16.mxu0 %v9362
        %9522 = vmatpush1.bf16.msra.mxu0 %v9361
        %9523 = vmatprep.subr.bf16.mxu0 %v9364
        %9524 = vmatpush1.bf16.msra.mxu0 %v9363
        %9525 = vmatprep.subr.bf16.mxu0 %v9366
        %9526 = vmatpush1.bf16.msra.mxu0 %v9365
        %9527 = vmatprep.subr.bf16.mxu0 %v9368
        %9528 = vmatpush1.bf16.msra.mxu0 %v9367
        %9529 = vmatprep.subr.bf16.mxu0 %v9370
        %9530 = vmatpush1.bf16.msra.mxu0 %v9369
        %9531 = vmatprep.subr.bf16.mxu0 %v9372
        %9532 = vmatpush1.bf16.msra.mxu0 %v9371
        %9533 = vmatprep.subr.bf16.mxu0 %v9374
        %9534 = vmatpush1.bf16.msra.mxu0 %v9373
        %9535 = vmatprep.subr.bf16.mxu0 %v9376
        %9536 = vmatpush1.bf16.msra.mxu0 %v9375
        %9537 = vmatprep.subr.bf16.mxu0 %v9378
        %9538 = vmatpush1.bf16.msra.mxu0 %v9377
        %9539 = vmatprep.subr.bf16.mxu0 %v9380
        %9540 = vmatpush1.bf16.msra.mxu0 %v9379
        %9541 = vmatprep.subr.bf16.mxu0 %v9382
        %9542 = vmatpush1.bf16.msra.mxu0 %v9381
        %9543 = vmatprep.subr.bf16.mxu0 %v9384
        %9544 = vmatpush1.bf16.msra.mxu0 %v9383
        %9545 = vmatprep.subr.bf16.mxu0 %v9386
        %9546 = vmatpush1.bf16.msra.mxu0 %v9385
        %9547 = vmatprep.mubr.bf16.mxu0 %v9019
        %9548 = vmatmul.mubr.bf16.gmra.mrb[0].mxu0 %v9018
        %v9549 = vpop.f32.mrb[0].mxu0
        %v9550 = vadd.f32 %v9108, %v9549
        %v9551 = vpop.f32.mrb[0].mxu0
        %v9552 = vadd.f32 %v9112, %v9551
        %v9553 = vpop.f32.mrb[0].mxu0
        %v9554 = vpop.f32.mrb[0].mxu0
        %9555 = vdwg.mxu0
        %9556 = vmatprep.subr.bf16.mxu0 %v9388
        %9557 = vmatpush1.bf16.msra.mxu0 %v9387
        %9558 = vmatprep.subr.bf16.mxu0 %v9390
        %9559 = vmatpush1.bf16.msra.mxu0 %v9389
        %9560 = vmatprep.subr.bf16.mxu0 %v9392
        %9561 = vmatpush1.bf16.msra.mxu0 %v9391
        %9562 = vmatprep.subr.bf16.mxu0 %v9394
        %9563 = vmatpush1.bf16.msra.mxu0 %v9393
        %9564 = vmatprep.subr.bf16.mxu0 %v9396
        %9565 = vmatpush1.bf16.msra.mxu0 %v9395
        %9566 = vmatprep.subr.bf16.mxu0 %v9398
        %9567 = vmatpush1.bf16.msra.mxu0 %v9397
        %9568 = vmatprep.subr.bf16.mxu0 %v9400
        %9569 = vmatpush1.bf16.msra.mxu0 %v9399
        %9570 = vmatprep.subr.bf16.mxu0 %v9402
        %9571 = vmatpush1.bf16.msra.mxu0 %v9401
        %9572 = vmatprep.subr.bf16.mxu0 %v9404
        %9573 = vmatpush1.bf16.msra.mxu0 %v9403
        %9574 = vmatprep.subr.bf16.mxu0 %v9406
        %9575 = vmatpush1.bf16.msra.mxu0 %v9405
        %9576 = vmatprep.subr.bf16.mxu0 %v9408
        %9577 = vmatpush1.bf16.msra.mxu0 %v9407
        %9578 = vmatprep.subr.bf16.mxu0 %v9410
        %9579 = vmatpush1.bf16.msra.mxu0 %v9409
        %9580 = vmatprep.subr.bf16.mxu0 %v9412
        %9581 = vmatpush1.bf16.msra.mxu0 %v9411
        %9582 = vmatprep.subr.bf16.mxu0 %v9414
        %9583 = vmatpush1.bf16.msra.mxu0 %v9413
        %9584 = vmatprep.subr.bf16.mxu0 %v9416
        %9585 = vmatpush1.bf16.msra.mxu0 %v9415
        %9586 = vmatprep.subr.bf16.mxu0 %v9418
        %9587 = vmatpush1.bf16.msra.mxu0 %v9417
        %9588 = vmatprep.mubr.bf16.mxu0 %v9021
        %9589 = vmatmul.mubr.bf16.gmra.mrb[0].mxu0 %v9020
        %v9590 = vpop.f32.mrb[0].mxu0
        %v9591 = vadd.f32 %v9550, %v9590
        %v9592 = vpop.f32.mrb[0].mxu0
        %v9593 = vadd.f32 %v9552, %v9592
        %v9594 = vpop.f32.mrb[0].mxu0
        %v9595 = vpop.f32.mrb[0].mxu0
        %9596 = vdwg.mxu0
        %9597 = vmatprep.subr.bf16.mxu0 %v9420
        %9598 = vmatpush1.bf16.msra.mxu0 %v9419
        %9599 = vmatprep.subr.bf16.mxu0 %v9422
        %9600 = vmatpush1.bf16.msra.mxu0 %v9421
        %9601 = vmatprep.subr.bf16.mxu0 %v9424
        %9602 = vmatpush1.bf16.msra.mxu0 %v9423
        %9603 = vmatprep.subr.bf16.mxu0 %v9426
        %9604 = vmatpush1.bf16.msra.mxu0 %v9425
        %9605 = vmatprep.subr.bf16.mxu0 %v9428
        %9606 = vmatpush1.bf16.msra.mxu0 %v9427
        %9607 = vmatprep.subr.bf16.mxu0 %v9430
        %9608 = vmatpush1.bf16.msra.mxu0 %v9429
        %9609 = vmatprep.subr.bf16.mxu0 %v9432
        %9610 = vmatpush1.bf16.msra.mxu0 %v9431
        %9611 = vmatprep.subr.bf16.mxu0 %v9434
        %9612 = vmatpush1.bf16.msra.mxu0 %v9433
        %9613 = vmatprep.subr.bf16.mxu0 0
        %9614 = vmatpush1.bf16.msra.mxu0 0
        %9615 = vmatprep.subr.bf16.mxu0 0
        %9616 = vmatpush1.bf16.msra.mxu0 0
        %9617 = vmatprep.subr.bf16.mxu0 0
        %9618 = vmatpush1.bf16.msra.mxu0 0
        %9619 = vmatprep.subr.bf16.mxu0 0
        %9620 = vmatpush1.bf16.msra.mxu0 0
        %9621 = vmatprep.subr.bf16.mxu0 0
        %9622 = vmatpush1.bf16.msra.mxu0 0
        %9623 = vmatprep.subr.bf16.mxu0 0
        %9624 = vmatpush1.bf16.msra.mxu0 0
        %9625 = vmatprep.subr.bf16.mxu0 0
        %9626 = vmatpush1.bf16.msra.mxu0 0
        %9627 = vmatprep.subr.bf16.mxu0 0
        %9628 = vmatpush1.bf16.msra.mxu0 0
        %9629 = vmatprep.mubr.bf16.mxu0 0
        %9630 = vmatmul.mubr.bf16.gmra.mrb[0].mxu0 %v9022
        %v9631 = vpop.f32.mrb[0].mxu0
        %v9632 = vadd.f32 %v9591, %v9631
        %v9633 = vpop.f32.mrb[0].mxu0
        %v9634 = vadd.f32 %v9593, %v9633
        %v9635 = vpop.f32.mrb[0].mxu0
        %v9636 = vpop.f32.mrb[0].mxu0
        %9637 = vdwg.mxu0
        %v9638 = vadd.f32 %v9632, %v8162
        %v9639 = vadd.f32 %v9634, %v8163
        %9640 = vst [vmem:[%s565] sm:$0xff] %v9638
        %9641 = vst.msk [vmem:[%s565 + $0x8] sm:$0xff] %vm592, %v9639
        %p9642 = scmp.lt.s32.totalorder %s29, 1
        %s9643 = scalar_select %p9642, %s29, 1
        %s9644 = smul.addr %s9643, 2
        %s9645 = smul.addr %s9644, 8
        %s9646 = scalar_lea.vmem %s16, %s9645
        // Predicated region
        $region97: #{block_vit_forward.1} parent=83 // pred_check
          %p9647 = pneg %p388
        $region98: #{block_vit_forward.1} parent=83 // pred_check_branch
          %9649 = sbr.rel (%p9647) target = $region100
        $region99: #{block_vit_forward.1} parent=83 // pred_region
          _
        $region100: #{block_vit_forward.1} parent=83 // pred_fallthru
          _
      $region84: #{block_vit_forward.1} parent=5 // pred_fallthru
        _
      %p9650 = scmp.le.s32.totalorder 2, %s24
      // Predicated region
      $region101: #{block_vit_forward.1} parent=5 // pred_check
        %p9651 = pneg %p9650
      $region102: #{block_vit_forward.1} parent=5 // pred_check_branch
        %9653 = sbr.rel (%p9651) target = $region104
      $region103: #{block_vit_forward.1} parent=5 // pred_region
        %s9654 = ssub.s32 %s24, 2
        // Predicated region
        $region105: #{block_vit_forward.1} parent=103 // pred_check
          %p9655 = pneg %p394
        $region106: #{block_vit_forward.1} parent=103 // pred_check_branch
          %9657 = sbr.rel (%p9655) target = $region108
        $region107: #{block_vit_forward.1} parent=103 // pred_region
          %p9658 = scmp.lt.s32.totalorder %s30, 1
          %s9659 = scalar_select %p9658, %s30, 1
          %s9660 = smul.addr %s9659, 2
          %s9661 = smul.addr %s9660, 8
          %s9662 = scalar_lea.vmem %s16, %s9661
        $region108: #{block_vit_forward.1} parent=103 // pred_fallthru
          _
      $region104: #{block_vit_forward.1} parent=5 // pred_fallthru
        _
    $region6: #{block_vit_forward.1} parent=1 // loop_footer
      %s28 = sadd.s32 1, %s24
    $region7: #{block_vit_forward.1} parent=1 // loop_footer_branch
      %23 = sbr.rel target = $region3
    $region8: #{block_vit_forward.1} parent=1 // loop_exit
      _
    %9663 = vsyncpa [#allocation3], 1
    %s9664 = scalar_lea.sflag [#allocation3], 1
    %9665 = vsyncpa %s9664, 1
    %9666 = vsyncpa [#allocation5], 1

</llo_original>
